<compile_context>
chip_gen: v5e
topology: v5e:2x2
jax: 0.10.0
libtpu: 0.0.40
codegen_flags: <defaults>
</compile_context>

<pallas_src>
import functools

import jax
import jax.numpy as jnp
from jax.experimental import pallas as pl
from jax.experimental.pallas import tpu as pltpu

_VMEM = pl.BlockSpec(memory_space=pltpu.MemorySpace.VMEM)
_BN_EPS = 1e-5


# ----------------------------------------------------------------------------
# Pallas kernels
# ----------------------------------------------------------------------------
def _adaptive_adj_kernel(nv1_ref, nv2_ref, o_ref):
    """adp = softmax(relu(nodevec1 @ nodevec2), dim=1)  (one-time, tiny)."""
    a = jnp.dot(nv1_ref[...], nv2_ref[...], preferred_element_type=jnp.float32)
    a = jnp.maximum(a, 0.0)
    a = a - jnp.max(a, axis=-1, keepdims=True)
    e = jnp.exp(a)
    o_ref[...] = e / jnp.sum(e, axis=-1, keepdims=True)


def adaptive_adjacency(nv1, nv2):
    v = nv1.shape[0]
    return pl.pallas_call(
        _adaptive_adj_kernel,
        out_shape=jax.ShapeDtypeStruct((v, v), jnp.float32),
        in_specs=[_VMEM, _VMEM],
        out_specs=_VMEM,
    )(nv1.astype(jnp.float32), nv2.astype(jnp.float32))


def _stabc_fused_kernel(x_ref, m_ref, sw_ref, sb_ref,
                        w0_ref, w1_ref, bfg_ref,
                        ws_ref, bs_ref,
                        wgc_ref, bgc_ref, bns_ref, bnb_ref,
                        e1w_ref, e1b_ref, e2w_ref, e2b_ref,
                        o_ref, *, BV, dils, Cd):
    """Whole STABC forward on a VMEM-resident time-major (T*B*V, C) slab."""
    f32 = jnp.float32

    # ---- start 1x1 conv (Cin -> residual channels) ----
    x_in = x_ref[...]                                   # (T*BV, Cin)
    sw = sw_ref[...]                                    # (Cin, Cres)
    if x_in.shape[1] == 1:                              # outer-product fast path
        x = x_in * sw + sb_ref[...]
    else:
        x = jnp.dot(x_in, sw, preferred_element_type=f32) + sb_ref[...]

    n_layers = len(dils)
    T = x_in.shape[0] // BV
    skip = None
    for i, d in enumerate(dils):
        Tout = T - d
        R = Tout * BV
        residual = x                                    # (T*BV, Cres)

        # ---- gated dilated temporal conv: fused [filter|gate], 2 taps ----
        xl = x[:R, :]                                   # input times [0, Tout)
        xr = x[d * BV:, :]                              # input times [d, T)
        fg = (jnp.dot(xl, w0_ref[i], preferred_element_type=f32)
              + jnp.dot(xr, w1_ref[i], preferred_element_type=f32)
              + bfg_ref[i])                             # (R, 2*Cd)
        x = jnp.tanh(fg[:, :Cd]) * jax.nn.sigmoid(fg[:, Cd:])

        # ---- skip connection (1x1 conv, accumulate on last Tout steps) ----
        s = jnp.dot(x, ws_ref[i], preferred_element_type=f32) + bs_ref[i]
        skip = s if skip is None else s + skip[skip.shape[0] - R:, :]

        if i == n_layers - 1:
            break

        # ---- GraphConvNet (order=2, adaptive support) ----
        # nconv via block-diagonal kron(I, adp^T): 2-D matmuls only.
        Mi = m_ref[:R, :R]
        x1 = jnp.dot(Mi, x, preferred_element_type=f32)
        x2 = jnp.dot(Mi, x1, preferred_element_type=f32)
        wgc = wgc_ref[i]                                # (3*Cd, Cres)
        go = (jnp.dot(x, wgc[:Cd, :], preferred_element_type=f32)
              + jnp.dot(x1, wgc[Cd:2 * Cd, :], preferred_element_type=f32)
              + jnp.dot(x2, wgc[2 * Cd:, :], preferred_element_type=f32)
              + bgc_ref[i])
        # dropout: eval mode -> identity

        # ---- residual add (last Tout steps) + eval-mode BatchNorm ----
        x = (go + residual[d * BV:, :]) * bns_ref[i] + bnb_ref[i]
        T = Tout

    # ---- head: relu(skip) -> end1(relu) -> end2 ----
    h = jnp.maximum(skip, 0.0)
    h = jnp.dot(h, e1w_ref[...], preferred_element_type=f32) + e1b_ref[...]
    h = jnp.maximum(h, 0.0)
    o_ref[...] = jnp.dot(h, e2w_ref[...], preferred_element_type=f32) + e2b_ref[...]


# ----------------------------------------------------------------------------
# one-time glue: schedule, weight repacking, layout transforms
# ----------------------------------------------------------------------------
def _receptive_field_and_dilations(blocks, layers, kernel_size):
    rf = 1
    dils = []
    for _ in range(blocks):
        add = kernel_size - 1
        d = 1
        for _ in range(layers):
            dils.append(d)
            rf += add
            add *= 2
            d *= 2
    return rf, tuple(dils)


def _pack_params(params):
    """Repack PyTorch-shaped parameters into the fused-kernel layout."""
    lp = params["layers"]
    f32 = jnp.float32
    fw = jnp.stack([p["filter_w"] for p in lp]).astype(f32)       # (L, Cd, Cr, 2)
    gw = jnp.stack([p["gate_w"] for p in lp]).astype(f32)
    fb = jnp.stack([p["filter_b"] for p in lp]).astype(f32)       # (L, Cd)
    gb = jnp.stack([p["gate_b"] for p in lp]).astype(f32)
    # per-tap, transposed to (Cres, Cd), filter|gate merged along lanes
    w0 = jnp.concatenate([jnp.transpose(fw[..., 0], (0, 2, 1)),
                          jnp.transpose(gw[..., 0], (0, 2, 1))], axis=-1)
    w1 = jnp.concatenate([jnp.transpose(fw[..., 1], (0, 2, 1)),
                          jnp.transpose(gw[..., 1], (0, 2, 1))], axis=-1)
    bfg = jnp.concatenate([fb, gb], axis=-1)[:, None, :]          # (L, 1, 2Cd)

    ws = jnp.stack([p["skip_w"].T for p in lp]).astype(f32)       # (L, Cd, Cs)
    bs = jnp.stack([p["skip_b"] for p in lp]).astype(f32)[:, None, :]
    wgc = jnp.stack([p["gc_w"].T for p in lp]).astype(f32)        # (L, 3Cd, Cr)
    bgc = jnp.stack([p["gc_b"] for p in lp]).astype(f32)[:, None, :]

    gamma = jnp.stack([p["bn_gamma"] for p in lp]).astype(f32)
    beta = jnp.stack([p["bn_beta"] for p in lp]).astype(f32)
    mean = jnp.stack([p["bn_mean"] for p in lp]).astype(f32)
    var = jnp.stack([p["bn_var"] for p in lp]).astype(f32)
    scale = gamma / jnp.sqrt(var + _BN_EPS)
    shift = beta - mean * scale
    bns = scale[:, None, :]                                        # (L, 1, Cr)
    bnb = shift[:, None, :]

    sw = params["start_w"].astype(f32).T                           # (Cin, Cr)
    sb = params["start_b"].astype(f32)[None, :]
    e1w = params["end1_w"].astype(f32).T                           # (Cs, Ce)
    e1b = params["end1_b"].astype(f32)[None, :]
    e2w = params["end2_w"].astype(f32).T                           # (Ce, out)
    e2b = params["end2_b"].astype(f32)[None, :]
    return (sw, sb, w0, w1, bfg, ws, bs, wgc, bgc, bns, bnb, e1w, e1b, e2w, e2b)


# ----------------------------------------------------------------------------
# STABC forward (inference mode)
# ----------------------------------------------------------------------------
def stabc_forward(params, x, *, blocks=4, layers=2, kernel_size=2):
    rf, dils = _receptive_field_and_dilations(blocks, layers, kernel_size)

    B, Cin, V, T = x.shape
    if T < rf:
        x = jnp.pad(x, ((0, 0), (0, 0), (0, 0), (rf - T, 0)))
        T = rf
    BV = B * V

    # time-major channels-last slab: row = (t*B + b)*V + v
    x2 = jnp.transpose(x.astype(jnp.float32), (3, 0, 2, 1)).reshape(T * BV, Cin)

    # per-layer time lengths after each gated TCN
    Ts = [T]
    for d in dils:
        Ts.append(Ts[-1] - d)
    Tf = Ts[-1]

    # adaptive adjacency + block-diagonal propagation matrix kron(I, adp^T)
    adp = adaptive_adjacency(params["nodevec1"], params["nodevec2"])
    g_list = [Ts[i + 1] * B for i in range(len(dils) - 1)]
    g_max = max(g_list) if g_list else 1
    M = jnp.kron(jnp.eye(g_max, dtype=jnp.float32), adp.T)

    packed = _pack_params(params)
    Cd = packed[2].shape[-1] // 2             # dilation channels
    out_dim = packed[-2].shape[-1]

    operands = (x2, M) + packed
    out2 = pl.pallas_call(
        functools.partial(_stabc_fused_kernel, BV=BV, dils=dils, Cd=Cd),
        out_shape=jax.ShapeDtypeStruct((Tf * BV, out_dim), jnp.float32),
        in_specs=[_VMEM] * len(operands),
        out_specs=_VMEM,
    )(*operands)

    # (Tf*B*V, out_dim) -> (B, out_dim, V, Tf)  (== PyTorch output; Tf == 1)
    return jnp.transpose(out2.reshape(Tf, B, V, out_dim), (1, 3, 2, 0))


# ----------------------------------------------------------------------------
# pure-JAX reference (mirrors the PyTorch forward) for verification
# ----------------------------------------------------------------------------
def stabc_reference(params, x, *, blocks=4, layers=2, kernel_size=2):
    rf, dils = _receptive_field_and_dilations(blocks, layers, kernel_size)
    B, Cin, V, T = x.shape
    if T < rf:
        x = jnp.pad(x, ((0, 0), (0, 0), (0, 0), (rf - T, 0)))
    x = x.astype(jnp.float32)

    def conv1x1(h, w, b):
        return jnp.einsum('bcvt,oc->bovt', h, w) + b[None, :, None, None]

    x = conv1x1(x, params["start_w"], params["start_b"])
    adp = jax.nn.softmax(
        jnp.maximum(params["nodevec1"] @ params["nodevec2"], 0.0), axis=1)

    skip = None
    for i, d in enumerate(dils):
        lp = params["layers"][i]
        residual = x
        xl = x[..., :x.shape[3] - d]
        xr = x[..., d:]
        filt = jnp.tanh(jnp.einsum('bcvt,oc->bovt', xl, lp["filter_w"][..., 0])
                        + jnp.einsum('bcvt,oc->bovt', xr, lp["filter_w"][..., 1])
                        + lp["filter_b"][None, :, None, None])
        gate = jax.nn.sigmoid(jnp.einsum('bcvt,oc->bovt', xl, lp["gate_w"][..., 0])
                              + jnp.einsum('bcvt,oc->bovt', xr, lp["gate_w"][..., 1])
                              + lp["gate_b"][None, :, None, None])
        x = filt * gate
        s = conv1x1(x, lp["skip_w"], lp["skip_b"])
        skip = s if skip is None else s + skip[..., -s.shape[3]:]
        if i == len(dils) - 1:
            break
        x1 = jnp.einsum('bcvt,vw->bcwt', x, adp)
        x2 = jnp.einsum('bcvt,vw->bcwt', x1, adp)
        h = jnp.concatenate([x, x1, x2], axis=1)
        x = conv1x1(h, lp["gc_w"], lp["gc_b"])
        x = x + residual[..., -x.shape[3]:]
        scale = lp["bn_gamma"] / jnp.sqrt(lp["bn_var"] + _BN_EPS)
        shift = lp["bn_beta"] - lp["bn_mean"] * scale
        x = x * scale[None, :, None, None] + shift[None, :, None, None]

    x = jnp.maximum(skip, 0.0)
    x = jnp.maximum(conv1x1(x, params["end1_w"], params["end1_b"]), 0.0)
    x = conv1x1(x, params["end2_w"], params["end2_b"])
    return x                                           # (B, out_dim, V, Tf)


# ----------------------------------------------------------------------------
# parameters (deterministic synthetic init — shapes follow STABC.__init__)
# ----------------------------------------------------------------------------
def init_params(key, *, num_nodes, out_dim, in_dim=1, residual=32, dilation=32,
                skip=64, end=128, blocks=4, layers=2, kernel_size=2, apt_size=10):
    keys = iter(jax.random.split(key, 256))

    def nrm(shape, scale=0.1):
        return (scale * jax.random.normal(next(keys), shape)).astype(jnp.float32)

    supports_len = 1                                # adaptive adjacency only
    gc_in = (2 * supports_len + 1) * dilation       # GraphConvNet order=2
    p = {
        "start_w": nrm((residual, in_dim)), "start_b": nrm((residual,)),
        "nodevec1": jax.random.normal(next(keys), (num_nodes, apt_size)).astype(jnp.float32),
        "nodevec2": jax.random.normal(next(keys), (apt_size, num_nodes)).astype(jnp.float32),
        "end1_w": nrm((end, skip)), "end1_b": nrm((end,)),
        "end2_w": nrm((out_dim, end)), "end2_b": nrm((out_dim,)),
        "layers": [],
    }
    for _ in range(blocks * layers):
        p["layers"].append({
            "filter_w": nrm((dilation, residual, kernel_size)),
            "filter_b": nrm((dilation,)),
            "gate_w":   nrm((dilation, residual, kernel_size)),
            "gate_b":   nrm((dilation,)),
            "skip_w":   nrm((skip, dilation)),   "skip_b": nrm((skip,)),
            "gc_w":     nrm((residual, gc_in)),  "gc_b":   nrm((residual,)),
            "bn_gamma": jnp.ones((residual,), jnp.float32),
            "bn_beta":  jnp.zeros((residual,), jnp.float32),
            "bn_mean":  jnp.zeros((residual,), jnp.float32),
            "bn_var":   jnp.ones((residual,), jnp.float32),
        })
    return p


# ----------------------------------------------------------------------------
if __name__ == "__main__":
    key = jax.random.PRNGKey(0)
    pkey, xkey = jax.random.split(key)

    B, in_dim, num_nodes, T, out_dim = 2, 1, 8, 13, 12
    params = init_params(pkey, num_nodes=num_nodes, out_dim=out_dim, in_dim=in_dim)
    x = jax.random.normal(xkey, (B, in_dim, num_nodes, T), dtype=jnp.float32)

    out = jax.jit(stabc_forward)(params, x)
    out = jax.block_until_ready(out)
    assert out.shape == (B, out_dim, num_nodes, 1), out.shape
    assert bool(jnp.all(jnp.isfinite(out)))

    ref = stabc_reference(params, x)
    assert out.shape == ref.shape, (out.shape, ref.shape)
    assert bool(jnp.allclose(out, ref, rtol=2e-2, atol=2e-2)), \
        float(jnp.max(jnp.abs(out - ref)))

    print("KERNEL_OK")
</pallas_src>

<mosaic_0001>
module attributes {stable_mosaic.version = 11 : i64} {
  func.func @_adaptive_adj_kernel(%arg0: memref<8x10xf32, #tpu.memory_space<vmem>>, %arg1: memref<10x8xf32, #tpu.memory_space<vmem>>, %arg2: memref<8x8xf32, #tpu.memory_space<vmem>>) attributes {dimension_semantics = [], scalar_prefetch = 0 : i64, scratch_operands = 0 : i64, tpu.core_type = #tpu.core_type<tc>} {
    %c0 = arith.constant 0 : index
    %c0_0 = arith.constant 0 : index
    %0 = vector.load %arg0[%c0, %c0_0] : memref<8x10xf32, #tpu.memory_space<vmem>>, vector<8x10xf32>
    %c0_1 = arith.constant 0 : index
    %c0_2 = arith.constant 0 : index
    %1 = vector.load %arg1[%c0_1, %c0_2] : memref<10x8xf32, #tpu.memory_space<vmem>>, vector<10x8xf32>
    %cst = arith.constant dense<0.000000e+00> : vector<8x8xf32>
    %2 = tpu.matmul %0, %1, %cst {dimension_numbers = #tpu.dot_dimension_numbers<[1], [0], [0], [1], [0, 0, 1, 1], [], []>} : vector<8x10xf32>, vector<10x8xf32>, vector<8x8xf32> -> vector<8x8xf32>
    %cst_3 = arith.constant 0.000000e+00 : f32
    %3 = vector.broadcast %cst_3 : f32 to vector<8x8xf32>
    %4 = arith.maximumf %2, %3 : vector<8x8xf32>
    %cst_4 = arith.constant dense<0xFF800000> : vector<8xf32>
    %5 = vector.multi_reduction <maximumf>, %4, %cst_4 [1] : vector<8x8xf32> to vector<8xf32>
    %6 = vector.shape_cast %5 : vector<8xf32> to vector<8x1xf32>
    %7 = vector.broadcast %6 : vector<8x1xf32> to vector<8x8xf32>
    %8 = arith.subf %4, %7 : vector<8x8xf32>
    %9 = math.exp %8 : vector<8x8xf32>
    %cst_5 = arith.constant dense<0.000000e+00> : vector<8xf32>
    %10 = vector.multi_reduction <add>, %9, %cst_5 [1] : vector<8x8xf32> to vector<8xf32>
    %11 = vector.shape_cast %10 : vector<8xf32> to vector<8x1xf32>
    %12 = vector.broadcast %11 : vector<8x1xf32> to vector<8x8xf32>
    %13 = arith.divf %9, %12 : vector<8x8xf32>
    %c0_6 = arith.constant 0 : index
    %c0_7 = arith.constant 0 : index
    %14 = vector.load %arg2[%c0_6, %c0_7] : memref<8x8xf32, #tpu.memory_space<vmem>>, vector<8x8xf32>
    tpu.vector_store %arg2[%c0_6, %c0_7], %13 {strides = array<i32>} : memref<8x8xf32, #tpu.memory_space<vmem>>, vector<8x8xf32>,
    return
  }
}

module attributes {stable_mosaic.version = 11 : i64} {
  func.func @_stabc_fused_kernel(%arg0: memref<208x1xf32, #tpu.memory_space<vmem>>, %arg1: memref<192x192xf32, #tpu.memory_space<vmem>>, %arg2: memref<1x32xf32, #tpu.memory_space<vmem>>, %arg3: memref<1x32xf32, #tpu.memory_space<vmem>>, %arg4: memref<8x32x64xf32, #tpu.memory_space<vmem>>, %arg5: memref<8x32x64xf32, #tpu.memory_space<vmem>>, %arg6: memref<8x1x64xf32, #tpu.memory_space<vmem>>, %arg7: memref<8x32x64xf32, #tpu.memory_space<vmem>>, %arg8: memref<8x1x64xf32, #tpu.memory_space<vmem>>, %arg9: memref<8x96x32xf32, #tpu.memory_space<vmem>>, %arg10: memref<8x1x32xf32, #tpu.memory_space<vmem>>, %arg11: memref<8x1x32xf32, #tpu.memory_space<vmem>>, %arg12: memref<8x1x32xf32, #tpu.memory_space<vmem>>, %arg13: memref<64x128xf32, #tpu.memory_space<vmem>>, %arg14: memref<1x128xf32, #tpu.memory_space<vmem>>, %arg15: memref<128x12xf32, #tpu.memory_space<vmem>>, %arg16: memref<1x12xf32, #tpu.memory_space<vmem>>, %arg17: memref<16x12xf32, #tpu.memory_space<vmem>>) attributes {dimension_semantics = [], scalar_prefetch = 0 : i64, scratch_operands = 0 : i64, tpu.core_type = #tpu.core_type<tc>} {
    %c0 = arith.constant 0 : index
    %c0_0 = arith.constant 0 : index
    %0 = vector.load %arg0[%c0, %c0_0] : memref<208x1xf32, #tpu.memory_space<vmem>>, vector<208x1xf32>
    %c0_1 = arith.constant 0 : index
    %c0_2 = arith.constant 0 : index
    %1 = vector.load %arg2[%c0_1, %c0_2] : memref<1x32xf32, #tpu.memory_space<vmem>>, vector<1x32xf32>
    %2 = vector.broadcast %0 : vector<208x1xf32> to vector<208x32xf32>
    %3 = vector.broadcast %1 : vector<1x32xf32> to vector<208x32xf32>
    %4 = arith.mulf %2, %3 : vector<208x32xf32>
    %c0_3 = arith.constant 0 : index
    %c0_4 = arith.constant 0 : index
    %5 = vector.load %arg3[%c0_3, %c0_4] : memref<1x32xf32, #tpu.memory_space<vmem>>, vector<1x32xf32>
    %6 = vector.broadcast %5 : vector<1x32xf32> to vector<208x32xf32>
    %7 = arith.addf %4, %6 : vector<208x32xf32>
    %8 = vector.extract_strided_slice %7 {offsets = [0, 0], sizes = [192, 32], strides = [1, 1]} : vector<208x32xf32> to vector<192x32xf32>
    %9 = vector.extract_strided_slice %7 {offsets = [16, 0], sizes = [192, 32], strides = [1, 1]} : vector<208x32xf32> to vector<192x32xf32>
    %c0_5 = arith.constant 0 : index
    %c0_6 = arith.constant 0 : index
    %c0_7 = arith.constant 0 : index
    %10 = vector.load %arg4[%c0_5, %c0_6, %c0_7] : memref<8x32x64xf32, #tpu.memory_space<vmem>>, vector<1x32x64xf32>
    %11 = vector.shape_cast %10 : vector<1x32x64xf32> to vector<32x64xf32>
    %cst = arith.constant dense<0.000000e+00> : vector<192x64xf32>
    %12 = tpu.matmul %8, %11, %cst {dimension_numbers = #tpu.dot_dimension_numbers<[1], [0], [0], [1], [0, 0, 1, 1], [], []>} : vector<192x32xf32>, vector<32x64xf32>, vector<192x64xf32> -> vector<192x64xf32>
    %c0_8 = arith.constant 0 : index
    %c0_9 = arith.constant 0 : index
    %c0_10 = arith.constant 0 : index
    %13 = vector.load %arg5[%c0_8, %c0_9, %c0_10] : memref<8x32x64xf32, #tpu.memory_space<vmem>>, vector<1x32x64xf32>
    %14 = vector.shape_cast %13 : vector<1x32x64xf32> to vector<32x64xf32>
    %cst_11 = arith.constant dense<0.000000e+00> : vector<192x64xf32>
    %15 = tpu.matmul %9, %14, %cst_11 {dimension_numbers = #tpu.dot_dimension_numbers<[1], [0], [0], [1], [0, 0, 1, 1], [], []>} : vector<192x32xf32>, vector<32x64xf32>, vector<192x64xf32> -> vector<192x64xf32>
    %16 = arith.addf %12, %15 : vector<192x64xf32>
    %c0_12 = arith.constant 0 : index
    %c0_13 = arith.constant 0 : index
    %c0_14 = arith.constant 0 : index
    %17 = vector.load %arg6[%c0_12, %c0_13, %c0_14] : memref<8x1x64xf32, #tpu.memory_space<vmem>>, vector<1x1x64xf32>
    %18 = vector.shape_cast %17 : vector<1x1x64xf32> to vector<1x64xf32>
    %19 = vector.broadcast %18 : vector<1x64xf32> to vector<192x64xf32>
    %20 = arith.addf %16, %19 : vector<192x64xf32>
    %21 = vector.extract_strided_slice %20 {offsets = [0, 0], sizes = [192, 32], strides = [1, 1]} : vector<192x64xf32> to vector<192x32xf32>
    %22 = math.tanh %21 : vector<192x32xf32>
    %23 = vector.extract_strided_slice %20 {offsets = [0, 32], sizes = [192, 32], strides = [1, 1]} : vector<192x64xf32> to vector<192x32xf32>
    %24 = arith.negf %23 : vector<192x32xf32>
    %25 = math.exp %24 : vector<192x32xf32>
    %cst_15 = arith.constant 1.000000e+00 : f32
    %26 = vector.broadcast %cst_15 : f32 to vector<192x32xf32>
    %27 = arith.addf %26, %25 : vector<192x32xf32>
    %28 = arith.divf %26, %27 : vector<192x32xf32>
    %29 = arith.mulf %22, %28 : vector<192x32xf32>
    %c0_16 = arith.constant 0 : index
    %c0_17 = arith.constant 0 : index
    %c0_18 = arith.constant 0 : index
    %30 = vector.load %arg7[%c0_16, %c0_17, %c0_18] : memref<8x32x64xf32, #tpu.memory_space<vmem>>, vector<1x32x64xf32>
    %31 = vector.shape_cast %30 : vector<1x32x64xf32> to vector<32x64xf32>
    %cst_19 = arith.constant dense<0.000000e+00> : vector<192x64xf32>
    %32 = tpu.matmul %29, %31, %cst_19 {dimension_numbers = #tpu.dot_dimension_numbers<[1], [0], [0], [1], [0, 0, 1, 1], [], []>} : vector<192x32xf32>, vector<32x64xf32>, vector<192x64xf32> -> vector<192x64xf32>
    %c0_20 = arith.constant 0 : index
    %c0_21 = arith.constant 0 : index
    %c0_22 = arith.constant 0 : index
    %33 = vector.load %arg8[%c0_20, %c0_21, %c0_22] : memref<8x1x64xf32, #tpu.memory_space<vmem>>, vector<1x1x64xf32>
    %34 = vector.shape_cast %33 : vector<1x1x64xf32> to vector<1x64xf32>
    %35 = vector.broadcast %34 : vector<1x64xf32> to vector<192x64xf32>
    %36 = arith.addf %32, %35 : vector<192x64xf32>
    %c0_23 = arith.constant 0 : index
    %c0_24 = arith.constant 0 : index
    %37 = vector.load %arg1[%c0_23, %c0_24] : memref<192x192xf32, #tpu.memory_space<vmem>>, vector<192x192xf32>
    %cst_25 = arith.constant dense<0.000000e+00> : vector<192x32xf32>
    %38 = tpu.matmul %37, %29, %cst_25 {dimension_numbers = #tpu.dot_dimension_numbers<[1], [0], [0], [1], [0, 0, 1, 1], [], []>} : vector<192x192xf32>, vector<192x32xf32>, vector<192x32xf32> -> vector<192x32xf32>
    %cst_26 = arith.constant dense<0.000000e+00> : vector<192x32xf32>
    %39 = tpu.matmul %37, %38, %cst_26 {dimension_numbers = #tpu.dot_dimension_numbers<[1], [0], [0], [1], [0, 0, 1, 1], [], []>} : vector<192x192xf32>, vector<192x32xf32>, vector<192x32xf32> -> vector<192x32xf32>
    %c0_27 = arith.constant 0 : index
    %c0_28 = arith.constant 0 : index
    %c0_29 = arith.constant 0 : index
    %40 = vector.load %arg9[%c0_27, %c0_28, %c0_29] : memref<8x96x32xf32, #tpu.memory_space<vmem>>, vector<1x96x32xf32>
    %41 = vector.shape_cast %40 : vector<1x96x32xf32> to vector<96x32xf32>
    %42 = vector.extract_strided_slice %41 {offsets = [0, 0], sizes = [32, 32], strides = [1, 1]} : vector<96x32xf32> to vector<32x32xf32>
    %cst_30 = arith.constant dense<0.000000e+00> : vector<192x32xf32>
    %43 = tpu.matmul %29, %42, %cst_30 {dimension_numbers = #tpu.dot_dimension_numbers<[1], [0], [0], [1], [0, 0, 1, 1], [], []>} : vector<192x32xf32>, vector<32x32xf32>, vector<192x32xf32> -> vector<192x32xf32>
    %44 = vector.extract_strided_slice %41 {offsets = [32, 0], sizes = [32, 32], strides = [1, 1]} : vector<96x32xf32> to vector<32x32xf32>
    %cst_31 = arith.constant dense<0.000000e+00> : vector<192x32xf32>
    %45 = tpu.matmul %38, %44, %cst_31 {dimension_numbers = #tpu.dot_dimension_numbers<[1], [0], [0], [1], [0, 0, 1, 1], [], []>} : vector<192x32xf32>, vector<32x32xf32>, vector<192x32xf32> -> vector<192x32xf32>
    %46 = arith.addf %43, %45 : vector<192x32xf32>
    %47 = vector.extract_strided_slice %41 {offsets = [64, 0], sizes = [32, 32], strides = [1, 1]} : vector<96x32xf32> to vector<32x32xf32>
    %cst_32 = arith.constant dense<0.000000e+00> : vector<192x32xf32>
    %48 = tpu.matmul %39, %47, %cst_32 {dimension_numbers = #tpu.dot_dimension_numbers<[1], [0], [0], [1], [0, 0, 1, 1], [], []>} : vector<192x32xf32>, vector<32x32xf32>, vector<192x32xf32> -> vector<192x32xf32>
    %49 = arith.addf %46, %48 : vector<192x32xf32>
    %c0_33 = arith.constant 0 : index
    %c0_34 = arith.constant 0 : index
    %c0_35 = arith.constant 0 : index
    %50 = vector.load %arg10[%c0_33, %c0_34, %c0_35] : memref<8x1x32xf32, #tpu.memory_space<vmem>>, vector<1x1x32xf32>
    %51 = vector.shape_cast %50 : vector<1x1x32xf32> to vector<1x32xf32>
    %52 = vector.broadcast %51 : vector<1x32xf32> to vector<192x32xf32>
    %53 = arith.addf %49, %52 : vector<192x32xf32>
    %54 = vector.extract_strided_slice %7 {offsets = [16, 0], sizes = [192, 32], strides = [1, 1]} : vector<208x32xf32> to vector<192x32xf32>
    %55 = arith.addf %53, %54 : vector<192x32xf32>
    %c0_36 = arith.constant 0 : index
    %c0_37 = arith.constant 0 : index
    %c0_38 = arith.constant 0 : index
    %56 = vector.load %arg11[%c0_36, %c0_37, %c0_38] : memref<8x1x32xf32, #tpu.memory_space<vmem>>, vector<1x1x32xf32>
    %57 = vector.shape_cast %56 : vector<1x1x32xf32> to vector<1x32xf32>
    %58 = vector.broadcast %57 : vector<1x32xf32> to vector<192x32xf32>
    %59 = arith.mulf %55, %58 : vector<192x32xf32>
    %c0_39 = arith.constant 0 : index
    %c0_40 = arith.constant 0 : index
    %c0_41 = arith.constant 0 : index
    %60 = vector.load %arg12[%c0_39, %c0_40, %c0_41] : memref<8x1x32xf32, #tpu.memory_space<vmem>>, vector<1x1x32xf32>
    %61 = vector.shape_cast %60 : vector<1x1x32xf32> to vector<1x32xf32>
    %62 = vector.broadcast %61 : vector<1x32xf32> to vector<192x32xf32>
    %63 = arith.addf %59, %62 : vector<192x32xf32>
    %64 = vector.extract_strided_slice %63 {offsets = [0, 0], sizes = [160, 32], strides = [1, 1]} : vector<192x32xf32> to vector<160x32xf32>
    %65 = vector.extract_strided_slice %63 {offsets = [32, 0], sizes = [160, 32], strides = [1, 1]} : vector<192x32xf32> to vector<160x32xf32>
    %c1 = arith.constant 1 : index
    %c0_42 = arith.constant 0 : index
    %c0_43 = arith.constant 0 : index
    %66 = vector.load %arg4[%c1, %c0_42, %c0_43] : memref<8x32x64xf32, #tpu.memory_space<vmem>>, vector<1x32x64xf32>
    %67 = vector.shape_cast %66 : vector<1x32x64xf32> to vector<32x64xf32>
    %cst_44 = arith.constant dense<0.000000e+00> : vector<160x64xf32>
    %68 = tpu.matmul %64, %67, %cst_44 {dimension_numbers = #tpu.dot_dimension_numbers<[1], [0], [0], [1], [0, 0, 1, 1], [], []>} : vector<160x32xf32>, vector<32x64xf32>, vector<160x64xf32> -> vector<160x64xf32>
    %c1_45 = arith.constant 1 : index
    %c0_46 = arith.constant 0 : index
    %c0_47 = arith.constant 0 : index
    %69 = vector.load %arg5[%c1_45, %c0_46, %c0_47] : memref<8x32x64xf32, #tpu.memory_space<vmem>>, vector<1x32x64xf32>
    %70 = vector.shape_cast %69 : vector<1x32x64xf32> to vector<32x64xf32>
    %cst_48 = arith.constant dense<0.000000e+00> : vector<160x64xf32>
    %71 = tpu.matmul %65, %70, %cst_48 {dimension_numbers = #tpu.dot_dimension_numbers<[1], [0], [0], [1], [0, 0, 1, 1], [], []>} : vector<160x32xf32>, vector<32x64xf32>, vector<160x64xf32> -> vector<160x64xf32>
    %72 = arith.addf %68, %71 : vector<160x64xf32>
    %c1_49 = arith.constant 1 : index
    %c0_50 = arith.constant 0 : index
    %c0_51 = arith.constant 0 : index
    %73 = vector.load %arg6[%c1_49, %c0_50, %c0_51] : memref<8x1x64xf32, #tpu.memory_space<vmem>>, vector<1x1x64xf32>
    %74 = vector.shape_cast %73 : vector<1x1x64xf32> to vector<1x64xf32>
    %75 = vector.broadcast %74 : vector<1x64xf32> to vector<160x64xf32>
    %76 = arith.addf %72, %75 : vector<160x64xf32>
    %77 = vector.extract_strided_slice %76 {offsets = [0, 0], sizes = [160, 32], strides = [1, 1]} : vector<160x64xf32> to vector<160x32xf32>
    %78 = math.tanh %77 : vector<160x32xf32>
    %79 = vector.extract_strided_slice %76 {offsets = [0, 32], sizes = [160, 32], strides = [1, 1]} : vector<160x64xf32> to vector<160x32xf32>
    %80 = arith.negf %79 : vector<160x32xf32>
    %81 = math.exp %80 : vector<160x32xf32>
    %cst_52 = arith.constant 1.000000e+00 : f32
    %82 = vector.broadcast %cst_52 : f32 to vector<160x32xf32>
    %83 = arith.addf %82, %81 : vector<160x32xf32>
    %84 = arith.divf %82, %83 : vector<160x32xf32>
    %85 = arith.mulf %78, %84 : vector<160x32xf32>
    %c1_53 = arith.constant 1 : index
    %c0_54 = arith.constant 0 : index
    %c0_55 = arith.constant 0 : index
    %86 = vector.load %arg7[%c1_53, %c0_54, %c0_55] : memref<8x32x64xf32, #tpu.memory_space<vmem>>, vector<1x32x64xf32>
    %87 = vector.shape_cast %86 : vector<1x32x64xf32> to vector<32x64xf32>
    %cst_56 = arith.constant dense<0.000000e+00> : vector<160x64xf32>
    %88 = tpu.matmul %85, %87, %cst_56 {dimension_numbers = #tpu.dot_dimension_numbers<[1], [0], [0], [1], [0, 0, 1, 1], [], []>} : vector<160x32xf32>, vector<32x64xf32>, vector<160x64xf32> -> vector<160x64xf32>
    %c1_57 = arith.constant 1 : index
    %c0_58 = arith.constant 0 : index
    %c0_59 = arith.constant 0 : index
    %89 = vector.load %arg8[%c1_57, %c0_58, %c0_59] : memref<8x1x64xf32, #tpu.memory_space<vmem>>, vector<1x1x64xf32>
    %90 = vector.shape_cast %89 : vector<1x1x64xf32> to vector<1x64xf32>
    %91 = vector.broadcast %90 : vector<1x64xf32> to vector<160x64xf32>
    %92 = arith.addf %88, %91 : vector<160x64xf32>
    %93 = vector.extract_strided_slice %36 {offsets = [32, 0], sizes = [160, 64], strides = [1, 1]} : vector<192x64xf32> to vector<160x64xf32>
    %94 = arith.addf %92, %93 : vector<160x64xf32>
    %c0_60 = arith.constant 0 : index
    %c0_61 = arith.constant 0 : index
    %95 = vector.load %arg1[%c0_60, %c0_61] : memref<192x192xf32, #tpu.memory_space<vmem>>, vector<160x160xf32>
    %cst_62 = arith.constant dense<0.000000e+00> : vector<160x32xf32>
    %96 = tpu.matmul %95, %85, %cst_62 {dimension_numbers = #tpu.dot_dimension_numbers<[1], [0], [0], [1], [0, 0, 1, 1], [], []>} : vector<160x160xf32>, vector<160x32xf32>, vector<160x32xf32> -> vector<160x32xf32>
    %cst_63 = arith.constant dense<0.000000e+00> : vector<160x32xf32>
    %97 = tpu.matmul %95, %96, %cst_63 {dimension_numbers = #tpu.dot_dimension_numbers<[1], [0], [0], [1], [0, 0, 1, 1], [], []>} : vector<160x160xf32>, vector<160x32xf32>, vector<160x32xf32> -> vector<160x32xf32>
    %c1_64 = arith.constant 1 : index
    %c0_65 = arith.constant 0 : index
    %c0_66 = arith.constant 0 : index
    %98 = vector.load %arg9[%c1_64, %c0_65, %c0_66] : memref<8x96x32xf32, #tpu.memory_space<vmem>>, vector<1x96x32xf32>
    %99 = vector.shape_cast %98 : vector<1x96x32xf32> to vector<96x32xf32>
    %100 = vector.extract_strided_slice %99 {offsets = [0, 0], sizes = [32, 32], strides = [1, 1]} : vector<96x32xf32> to vector<32x32xf32>
    %cst_67 = arith.constant dense<0.000000e+00> : vector<160x32xf32>
    %101 = tpu.matmul %85, %100, %cst_67 {dimension_numbers = #tpu.dot_dimension_numbers<[1], [0], [0], [1], [0, 0, 1, 1], [], []>} : vector<160x32xf32>, vector<32x32xf32>, vector<160x32xf32> -> vector<160x32xf32>
    %102 = vector.extract_strided_slice %99 {offsets = [32, 0], sizes = [32, 32], strides = [1, 1]} : vector<96x32xf32> to vector<32x32xf32>
    %cst_68 = arith.constant dense<0.000000e+00> : vector<160x32xf32>
    %103 = tpu.matmul %96, %102, %cst_68 {dimension_numbers = #tpu.dot_dimension_numbers<[1], [0], [0], [1], [0, 0, 1, 1], [], []>} : vector<160x32xf32>, vector<32x32xf32>, vector<160x32xf32> -> vector<160x32xf32>
    %104 = arith.addf %101, %103 : vector<160x32xf32>
    %105 = vector.extract_strided_slice %99 {offsets = [64, 0], sizes = [32, 32], strides = [1, 1]} : vector<96x32xf32> to vector<32x32xf32>
    %cst_69 = arith.constant dense<0.000000e+00> : vector<160x32xf32>
    %106 = tpu.matmul %97, %105, %cst_69 {dimension_numbers = #tpu.dot_dimension_numbers<[1], [0], [0], [1], [0, 0, 1, 1], [], []>} : vector<160x32xf32>, vector<32x32xf32>, vector<160x32xf32> -> vector<160x32xf32>
    %107 = arith.addf %104, %106 : vector<160x32xf32>
    %c1_70 = arith.constant 1 : index
    %c0_71 = arith.constant 0 : index
    %c0_72 = arith.constant 0 : index
    %108 = vector.load %arg10[%c1_70, %c0_71, %c0_72] : memref<8x1x32xf32, #tpu.memory_space<vmem>>, vector<1x1x32xf32>
    %109 = vector.shape_cast %108 : vector<1x1x32xf32> to vector<1x32xf32>
    %110 = vector.broadcast %109 : vector<1x32xf32> to vector<160x32xf32>
    %111 = arith.addf %107, %110 : vector<160x32xf32>
    %112 = vector.extract_strided_slice %63 {offsets = [32, 0], sizes = [160, 32], strides = [1, 1]} : vector<192x32xf32> to vector<160x32xf32>
    %113 = arith.addf %111, %112 : vector<160x32xf32>
    %c1_73 = arith.constant 1 : index
    %c0_74 = arith.constant 0 : index
    %c0_75 = arith.constant 0 : index
    %114 = vector.load %arg11[%c1_73, %c0_74, %c0_75] : memref<8x1x32xf32, #tpu.memory_space<vmem>>, vector<1x1x32xf32>
    %115 = vector.shape_cast %114 : vector<1x1x32xf32> to vector<1x32xf32>
    %116 = vector.broadcast %115 : vector<1x32xf32> to vector<160x32xf32>
    %117 = arith.mulf %113, %116 : vector<160x32xf32>
    %c1_76 = arith.constant 1 : index
    %c0_77 = arith.constant 0 : index
    %c0_78 = arith.constant 0 : index
    %118 = vector.load %arg12[%c1_76, %c0_77, %c0_78] : memref<8x1x32xf32, #tpu.memory_space<vmem>>, vector<1x1x32xf32>
    %119 = vector.shape_cast %118 : vector<1x1x32xf32> to vector<1x32xf32>
    %120 = vector.broadcast %119 : vector<1x32xf32> to vector<160x32xf32>
    %121 = arith.addf %117, %120 : vector<160x32xf32>
    %122 = vector.extract_strided_slice %121 {offsets = [0, 0], sizes = [144, 32], strides = [1, 1]} : vector<160x32xf32> to vector<144x32xf32>
    %123 = vector.extract_strided_slice %121 {offsets = [16, 0], sizes = [144, 32], strides = [1, 1]} : vector<160x32xf32> to vector<144x32xf32>
    %c2 = arith.constant 2 : index
    %c0_79 = arith.constant 0 : index
    %c0_80 = arith.constant 0 : index
    %124 = vector.load %arg4[%c2, %c0_79, %c0_80] : memref<8x32x64xf32, #tpu.memory_space<vmem>>, vector<1x32x64xf32>
    %125 = vector.shape_cast %124 : vector<1x32x64xf32> to vector<32x64xf32>
    %cst_81 = arith.constant dense<0.000000e+00> : vector<144x64xf32>
    %126 = tpu.matmul %122, %125, %cst_81 {dimension_numbers = #tpu.dot_dimension_numbers<[1], [0], [0], [1], [0, 0, 1, 1], [], []>} : vector<144x32xf32>, vector<32x64xf32>, vector<144x64xf32> -> vector<144x64xf32>
    %c2_82 = arith.constant 2 : index
    %c0_83 = arith.constant 0 : index
    %c0_84 = arith.constant 0 : index
    %127 = vector.load %arg5[%c2_82, %c0_83, %c0_84] : memref<8x32x64xf32, #tpu.memory_space<vmem>>, vector<1x32x64xf32>
    %128 = vector.shape_cast %127 : vector<1x32x64xf32> to vector<32x64xf32>
    %cst_85 = arith.constant dense<0.000000e+00> : vector<144x64xf32>
    %129 = tpu.matmul %123, %128, %cst_85 {dimension_numbers = #tpu.dot_dimension_numbers<[1], [0], [0], [1], [0, 0, 1, 1], [], []>} : vector<144x32xf32>, vector<32x64xf32>, vector<144x64xf32> -> vector<144x64xf32>
    %130 = arith.addf %126, %129 : vector<144x64xf32>
    %c2_86 = arith.constant 2 : index
    %c0_87 = arith.constant 0 : index
    %c0_88 = arith.constant 0 : index
    %131 = vector.load %arg6[%c2_86, %c0_87, %c0_88] : memref<8x1x64xf32, #tpu.memory_space<vmem>>, vector<1x1x64xf32>
    %132 = vector.shape_cast %131 : vector<1x1x64xf32> to vector<1x64xf32>
    %133 = vector.broadcast %132 : vector<1x64xf32> to vector<144x64xf32>
    %134 = arith.addf %130, %133 : vector<144x64xf32>
    %135 = vector.extract_strided_slice %134 {offsets = [0, 0], sizes = [144, 32], strides = [1, 1]} : vector<144x64xf32> to vector<144x32xf32>
    %136 = math.tanh %135 : vector<144x32xf32>
    %137 = vector.extract_strided_slice %134 {offsets = [0, 32], sizes = [144, 32], strides = [1, 1]} : vector<144x64xf32> to vector<144x32xf32>
    %138 = arith.negf %137 : vector<144x32xf32>
    %139 = math.exp %138 : vector<144x32xf32>
    %cst_89 = arith.constant 1.000000e+00 : f32
    %140 = vector.broadcast %cst_89 : f32 to vector<144x32xf32>
    %141 = arith.addf %140, %139 : vector<144x32xf32>
    %142 = arith.divf %140, %141 : vector<144x32xf32>
    %143 = arith.mulf %136, %142 : vector<144x32xf32>
    %c2_90 = arith.constant 2 : index
    %c0_91 = arith.constant 0 : index
    %c0_92 = arith.constant 0 : index
    %144 = vector.load %arg7[%c2_90, %c0_91, %c0_92] : memref<8x32x64xf32, #tpu.memory_space<vmem>>, vector<1x32x64xf32>
    %145 = vector.shape_cast %144 : vector<1x32x64xf32> to vector<32x64xf32>
    %cst_93 = arith.constant dense<0.000000e+00> : vector<144x64xf32>
    %146 = tpu.matmul %143, %145, %cst_93 {dimension_numbers = #tpu.dot_dimension_numbers<[1], [0], [0], [1], [0, 0, 1, 1], [], []>} : vector<144x32xf32>, vector<32x64xf32>, vector<144x64xf32> -> vector<144x64xf32>
    %c2_94 = arith.constant 2 : index
    %c0_95 = arith.constant 0 : index
    %c0_96 = arith.constant 0 : index
    %147 = vector.load %arg8[%c2_94, %c0_95, %c0_96] : memref<8x1x64xf32, #tpu.memory_space<vmem>>, vector<1x1x64xf32>
    %148 = vector.shape_cast %147 : vector<1x1x64xf32> to vector<1x64xf32>
    %149 = vector.broadcast %148 : vector<1x64xf32> to vector<144x64xf32>
    %150 = arith.addf %146, %149 : vector<144x64xf32>
    %151 = vector.extract_strided_slice %94 {offsets = [16, 0], sizes = [144, 64], strides = [1, 1]} : vector<160x64xf32> to vector<144x64xf32>
    %152 = arith.addf %150, %151 : vector<144x64xf32>
    %c0_97 = arith.constant 0 : index
    %c0_98 = arith.constant 0 : index
    %153 = vector.load %arg1[%c0_97, %c0_98] : memref<192x192xf32, #tpu.memory_space<vmem>>, vector<144x144xf32>
    %cst_99 = arith.constant dense<0.000000e+00> : vector<144x32xf32>
    %154 = tpu.matmul %153, %143, %cst_99 {dimension_numbers = #tpu.dot_dimension_numbers<[1], [0], [0], [1], [0, 0, 1, 1], [], []>} : vector<144x144xf32>, vector<144x32xf32>, vector<144x32xf32> -> vector<144x32xf32>
    %cst_100 = arith.constant dense<0.000000e+00> : vector<144x32xf32>
    %155 = tpu.matmul %153, %154, %cst_100 {dimension_numbers = #tpu.dot_dimension_numbers<[1], [0], [0], [1], [0, 0, 1, 1], [], []>} : vector<144x144xf32>, vector<144x32xf32>, vector<144x32xf32> -> vector<144x32xf32>
    %c2_101 = arith.constant 2 : index
    %c0_102 = arith.constant 0 : index
    %c0_103 = arith.constant 0 : index
    %156 = vector.load %arg9[%c2_101, %c0_102, %c0_103] : memref<8x96x32xf32, #tpu.memory_space<vmem>>, vector<1x96x32xf32>
    %157 = vector.shape_cast %156 : vector<1x96x32xf32> to vector<96x32xf32>
    %158 = vector.extract_strided_slice %157 {offsets = [0, 0], sizes = [32, 32], strides = [1, 1]} : vector<96x32xf32> to vector<32x32xf32>
    %cst_104 = arith.constant dense<0.000000e+00> : vector<144x32xf32>
    %159 = tpu.matmul %143, %158, %cst_104 {dimension_numbers = #tpu.dot_dimension_numbers<[1], [0], [0], [1], [0, 0, 1, 1], [], []>} : vector<144x32xf32>, vector<32x32xf32>, vector<144x32xf32> -> vector<144x32xf32>
    %160 = vector.extract_strided_slice %157 {offsets = [32, 0], sizes = [32, 32], strides = [1, 1]} : vector<96x32xf32> to vector<32x32xf32>
    %cst_105 = arith.constant dense<0.000000e+00> : vector<144x32xf32>
    %161 = tpu.matmul %154, %160, %cst_105 {dimension_numbers = #tpu.dot_dimension_numbers<[1], [0], [0], [1], [0, 0, 1, 1], [], []>} : vector<144x32xf32>, vector<32x32xf32>, vector<144x32xf32> -> vector<144x32xf32>
    %162 = arith.addf %159, %161 : vector<144x32xf32>
    %163 = vector.extract_strided_slice %157 {offsets = [64, 0], sizes = [32, 32], strides = [1, 1]} : vector<96x32xf32> to vector<32x32xf32>
    %cst_106 = arith.constant dense<0.000000e+00> : vector<144x32xf32>
    %164 = tpu.matmul %155, %163, %cst_106 {dimension_numbers = #tpu.dot_dimension_numbers<[1], [0], [0], [1], [0, 0, 1, 1], [], []>} : vector<144x32xf32>, vector<32x32xf32>, vector<144x32xf32> -> vector<144x32xf32>
    %165 = arith.addf %162, %164 : vector<144x32xf32>
    %c2_107 = arith.constant 2 : index
    %c0_108 = arith.constant 0 : index
    %c0_109 = arith.constant 0 : index
    %166 = vector.load %arg10[%c2_107, %c0_108, %c0_109] : memref<8x1x32xf32, #tpu.memory_space<vmem>>, vector<1x1x32xf32>
    %167 = vector.shape_cast %166 : vector<1x1x32xf32> to vector<1x32xf32>
    %168 = vector.broadcast %167 : vector<1x32xf32> to vector<144x32xf32>
    %169 = arith.addf %165, %168 : vector<144x32xf32>
    %170 = vector.extract_strided_slice %121 {offsets = [16, 0], sizes = [144, 32], strides = [1, 1]} : vector<160x32xf32> to vector<144x32xf32>
    %171 = arith.addf %169, %170 : vector<144x32xf32>
    %c2_110 = arith.constant 2 : index
    %c0_111 = arith.constant 0 : index
    %c0_112 = arith.constant 0 : index
    %172 = vector.load %arg11[%c2_110, %c0_111, %c0_112] : memref<8x1x32xf32, #tpu.memory_space<vmem>>, vector<1x1x32xf32>
    %173 = vector.shape_cast %172 : vector<1x1x32xf32> to vector<1x32xf32>
    %174 = vector.broadcast %173 : vector<1x32xf32> to vector<144x32xf32>
    %175 = arith.mulf %171, %174 : vector<144x32xf32>
    %c2_113 = arith.constant 2 : index
    %c0_114 = arith.constant 0 : index
    %c0_115 = arith.constant 0 : index
    %176 = vector.load %arg12[%c2_113, %c0_114, %c0_115] : memref<8x1x32xf32, #tpu.memory_space<vmem>>, vector<1x1x32xf32>
    %177 = vector.shape_cast %176 : vector<1x1x32xf32> to vector<1x32xf32>
    %178 = vector.broadcast %177 : vector<1x32xf32> to vector<144x32xf32>
    %179 = arith.addf %175, %178 : vector<144x32xf32>
    %180 = vector.extract_strided_slice %179 {offsets = [0, 0], sizes = [112, 32], strides = [1, 1]} : vector<144x32xf32> to vector<112x32xf32>
    %181 = vector.extract_strided_slice %179 {offsets = [32, 0], sizes = [112, 32], strides = [1, 1]} : vector<144x32xf32> to vector<112x32xf32>
    %c3 = arith.constant 3 : index
    %c0_116 = arith.constant 0 : index
    %c0_117 = arith.constant 0 : index
    %182 = vector.load %arg4[%c3, %c0_116, %c0_117] : memref<8x32x64xf32, #tpu.memory_space<vmem>>, vector<1x32x64xf32>
    %183 = vector.shape_cast %182 : vector<1x32x64xf32> to vector<32x64xf32>
    %cst_118 = arith.constant dense<0.000000e+00> : vector<112x64xf32>
    %184 = tpu.matmul %180, %183, %cst_118 {dimension_numbers = #tpu.dot_dimension_numbers<[1], [0], [0], [1], [0, 0, 1, 1], [], []>} : vector<112x32xf32>, vector<32x64xf32>, vector<112x64xf32> -> vector<112x64xf32>
    %c3_119 = arith.constant 3 : index
    %c0_120 = arith.constant 0 : index
    %c0_121 = arith.constant 0 : index
    %185 = vector.load %arg5[%c3_119, %c0_120, %c0_121] : memref<8x32x64xf32, #tpu.memory_space<vmem>>, vector<1x32x64xf32>
    %186 = vector.shape_cast %185 : vector<1x32x64xf32> to vector<32x64xf32>
    %cst_122 = arith.constant dense<0.000000e+00> : vector<112x64xf32>
    %187 = tpu.matmul %181, %186, %cst_122 {dimension_numbers = #tpu.dot_dimension_numbers<[1], [0], [0], [1], [0, 0, 1, 1], [], []>} : vector<112x32xf32>, vector<32x64xf32>, vector<112x64xf32> -> vector<112x64xf32>
    %188 = arith.addf %184, %187 : vector<112x64xf32>
    %c3_123 = arith.constant 3 : index
    %c0_124 = arith.constant 0 : index
    %c0_125 = arith.constant 0 : index
    %189 = vector.load %arg6[%c3_123, %c0_124, %c0_125] : memref<8x1x64xf32, #tpu.memory_space<vmem>>, vector<1x1x64xf32>
    %190 = vector.shape_cast %189 : vector<1x1x64xf32> to vector<1x64xf32>
    %191 = vector.broadcast %190 : vector<1x64xf32> to vector<112x64xf32>
    %192 = arith.addf %188, %191 : vector<112x64xf32>
    %193 = vector.extract_strided_slice %192 {offsets = [0, 0], sizes = [112, 32], strides = [1, 1]} : vector<112x64xf32> to vector<112x32xf32>
    %194 = math.tanh %193 : vector<112x32xf32>
    %195 = vector.extract_strided_slice %192 {offsets = [0, 32], sizes = [112, 32], strides = [1, 1]} : vector<112x64xf32> to vector<112x32xf32>
    %196 = arith.negf %195 : vector<112x32xf32>
    %197 = math.exp %196 : vector<112x32xf32>
    %cst_126 = arith.constant 1.000000e+00 : f32
    %198 = vector.broadcast %cst_126 : f32 to vector<112x32xf32>
    %199 = arith.addf %198, %197 : vector<112x32xf32>
    %200 = arith.divf %198, %199 : vector<112x32xf32>
    %201 = arith.mulf %194, %200 : vector<112x32xf32>
    %c3_127 = arith.constant 3 : index
    %c0_128 = arith.constant 0 : index
    %c0_129 = arith.constant 0 : index
    %202 = vector.load %arg7[%c3_127, %c0_128, %c0_129] : memref<8x32x64xf32, #tpu.memory_space<vmem>>, vector<1x32x64xf32>
    %203 = vector.shape_cast %202 : vector<1x32x64xf32> to vector<32x64xf32>
    %cst_130 = arith.constant dense<0.000000e+00> : vector<112x64xf32>
    %204 = tpu.matmul %201, %203, %cst_130 {dimension_numbers = #tpu.dot_dimension_numbers<[1], [0], [0], [1], [0, 0, 1, 1], [], []>} : vector<112x32xf32>, vector<32x64xf32>, vector<112x64xf32> -> vector<112x64xf32>
    %c3_131 = arith.constant 3 : index
    %c0_132 = arith.constant 0 : index
    %c0_133 = arith.constant 0 : index
    %205 = vector.load %arg8[%c3_131, %c0_132, %c0_133] : memref<8x1x64xf32, #tpu.memory_space<vmem>>, vector<1x1x64xf32>
    %206 = vector.shape_cast %205 : vector<1x1x64xf32> to vector<1x64xf32>
    %207 = vector.broadcast %206 : vector<1x64xf32> to vector<112x64xf32>
    %208 = arith.addf %204, %207 : vector<112x64xf32>
    %209 = vector.extract_strided_slice %152 {offsets = [32, 0], sizes = [112, 64], strides = [1, 1]} : vector<144x64xf32> to vector<112x64xf32>
    %210 = arith.addf %208, %209 : vector<112x64xf32>
    %c0_134 = arith.constant 0 : index
    %c0_135 = arith.constant 0 : index
    %211 = vector.load %arg1[%c0_134, %c0_135] : memref<192x192xf32, #tpu.memory_space<vmem>>, vector<112x112xf32>
    %cst_136 = arith.constant dense<0.000000e+00> : vector<112x32xf32>
    %212 = tpu.matmul %211, %201, %cst_136 {dimension_numbers = #tpu.dot_dimension_numbers<[1], [0], [0], [1], [0, 0, 1, 1], [], []>} : vector<112x112xf32>, vector<112x32xf32>, vector<112x32xf32> -> vector<112x32xf32>
    %cst_137 = arith.constant dense<0.000000e+00> : vector<112x32xf32>
    %213 = tpu.matmul %211, %212, %cst_137 {dimension_numbers = #tpu.dot_dimension_numbers<[1], [0], [0], [1], [0, 0, 1, 1], [], []>} : vector<112x112xf32>, vector<112x32xf32>, vector<112x32xf32> -> vector<112x32xf32>
    %c3_138 = arith.constant 3 : index
    %c0_139 = arith.constant 0 : index
    %c0_140 = arith.constant 0 : index
    %214 = vector.load %arg9[%c3_138, %c0_139, %c0_140] : memref<8x96x32xf32, #tpu.memory_space<vmem>>, vector<1x96x32xf32>
    %215 = vector.shape_cast %214 : vector<1x96x32xf32> to vector<96x32xf32>
    %216 = vector.extract_strided_slice %215 {offsets = [0, 0], sizes = [32, 32], strides = [1, 1]} : vector<96x32xf32> to vector<32x32xf32>
    %cst_141 = arith.constant dense<0.000000e+00> : vector<112x32xf32>
    %217 = tpu.matmul %201, %216, %cst_141 {dimension_numbers = #tpu.dot_dimension_numbers<[1], [0], [0], [1], [0, 0, 1, 1], [], []>} : vector<112x32xf32>, vector<32x32xf32>, vector<112x32xf32> -> vector<112x32xf32>
    %218 = vector.extract_strided_slice %215 {offsets = [32, 0], sizes = [32, 32], strides = [1, 1]} : vector<96x32xf32> to vector<32x32xf32>
    %cst_142 = arith.constant dense<0.000000e+00> : vector<112x32xf32>
    %219 = tpu.matmul %212, %218, %cst_142 {dimension_numbers = #tpu.dot_dimension_numbers<[1], [0], [0], [1], [0, 0, 1, 1], [], []>} : vector<112x32xf32>, vector<32x32xf32>, vector<112x32xf32> -> vector<112x32xf32>
    %220 = arith.addf %217, %219 : vector<112x32xf32>
    %221 = vector.extract_strided_slice %215 {offsets = [64, 0], sizes = [32, 32], strides = [1, 1]} : vector<96x32xf32> to vector<32x32xf32>
    %cst_143 = arith.constant dense<0.000000e+00> : vector<112x32xf32>
    %222 = tpu.matmul %213, %221, %cst_143 {dimension_numbers = #tpu.dot_dimension_numbers<[1], [0], [0], [1], [0, 0, 1, 1], [], []>} : vector<112x32xf32>, vector<32x32xf32>, vector<112x32xf32> -> vector<112x32xf32>
    %223 = arith.addf %220, %222 : vector<112x32xf32>
    %c3_144 = arith.constant 3 : index
    %c0_145 = arith.constant 0 : index
    %c0_146 = arith.constant 0 : index
    %224 = vector.load %arg10[%c3_144, %c0_145, %c0_146] : memref<8x1x32xf32, #tpu.memory_space<vmem>>, vector<1x1x32xf32>
    %225 = vector.shape_cast %224 : vector<1x1x32xf32> to vector<1x32xf32>
    %226 = vector.broadcast %225 : vector<1x32xf32> to vector<112x32xf32>
    %227 = arith.addf %223, %226 : vector<112x32xf32>
    %228 = vector.extract_strided_slice %179 {offsets = [32, 0], sizes = [112, 32], strides = [1, 1]} : vector<144x32xf32> to vector<112x32xf32>
    %229 = arith.addf %227, %228 : vector<112x32xf32>
    %c3_147 = arith.constant 3 : index
    %c0_148 = arith.constant 0 : index
    %c0_149 = arith.constant 0 : index
    %230 = vector.load %arg11[%c3_147, %c0_148, %c0_149] : memref<8x1x32xf32, #tpu.memory_space<vmem>>, vector<1x1x32xf32>
    %231 = vector.shape_cast %230 : vector<1x1x32xf32> to vector<1x32xf32>
    %232 = vector.broadcast %231 : vector<1x32xf32> to vector<112x32xf32>
    %233 = arith.mulf %229, %232 : vector<112x32xf32>
    %c3_150 = arith.constant 3 : index
    %c0_151 = arith.constant 0 : index
    %c0_152 = arith.constant 0 : index
    %234 = vector.load %arg12[%c3_150, %c0_151, %c0_152] : memref<8x1x32xf32, #tpu.memory_space<vmem>>, vector<1x1x32xf32>
    %235 = vector.shape_cast %234 : vector<1x1x32xf32> to vector<1x32xf32>
    %236 = vector.broadcast %235 : vector<1x32xf32> to vector<112x32xf32>
    %237 = arith.addf %233, %236 : vector<112x32xf32>
    %238 = vector.extract_strided_slice %237 {offsets = [0, 0], sizes = [96, 32], strides = [1, 1]} : vector<112x32xf32> to vector<96x32xf32>
    %239 = vector.extract_strided_slice %237 {offsets = [16, 0], sizes = [96, 32], strides = [1, 1]} : vector<112x32xf32> to vector<96x32xf32>
    %c4 = arith.constant 4 : index
    %c0_153 = arith.constant 0 : index
    %c0_154 = arith.constant 0 : index
    %240 = vector.load %arg4[%c4, %c0_153, %c0_154] : memref<8x32x64xf32, #tpu.memory_space<vmem>>, vector<1x32x64xf32>
    %241 = vector.shape_cast %240 : vector<1x32x64xf32> to vector<32x64xf32>
    %cst_155 = arith.constant dense<0.000000e+00> : vector<96x64xf32>
    %242 = tpu.matmul %238, %241, %cst_155 {dimension_numbers = #tpu.dot_dimension_numbers<[1], [0], [0], [1], [0, 0, 1, 1], [], []>} : vector<96x32xf32>, vector<32x64xf32>, vector<96x64xf32> -> vector<96x64xf32>
    %c4_156 = arith.constant 4 : index
    %c0_157 = arith.constant 0 : index
    %c0_158 = arith.constant 0 : index
    %243 = vector.load %arg5[%c4_156, %c0_157, %c0_158] : memref<8x32x64xf32, #tpu.memory_space<vmem>>, vector<1x32x64xf32>
    %244 = vector.shape_cast %243 : vector<1x32x64xf32> to vector<32x64xf32>
    %cst_159 = arith.constant dense<0.000000e+00> : vector<96x64xf32>
    %245 = tpu.matmul %239, %244, %cst_159 {dimension_numbers = #tpu.dot_dimension_numbers<[1], [0], [0], [1], [0, 0, 1, 1], [], []>} : vector<96x32xf32>, vector<32x64xf32>, vector<96x64xf32> -> vector<96x64xf32>
    %246 = arith.addf %242, %245 : vector<96x64xf32>
    %c4_160 = arith.constant 4 : index
    %c0_161 = arith.constant 0 : index
    %c0_162 = arith.constant 0 : index
    %247 = vector.load %arg6[%c4_160, %c0_161, %c0_162] : memref<8x1x64xf32, #tpu.memory_space<vmem>>, vector<1x1x64xf32>
    %248 = vector.shape_cast %247 : vector<1x1x64xf32> to vector<1x64xf32>
    %249 = vector.broadcast %248 : vector<1x64xf32> to vector<96x64xf32>
    %250 = arith.addf %246, %249 : vector<96x64xf32>
    %251 = vector.extract_strided_slice %250 {offsets = [0, 0], sizes = [96, 32], strides = [1, 1]} : vector<96x64xf32> to vector<96x32xf32>
    %252 = math.tanh %251 : vector<96x32xf32>
    %253 = vector.extract_strided_slice %250 {offsets = [0, 32], sizes = [96, 32], strides = [1, 1]} : vector<96x64xf32> to vector<96x32xf32>
    %254 = arith.negf %253 : vector<96x32xf32>
    %255 = math.exp %254 : vector<96x32xf32>
    %cst_163 = arith.constant 1.000000e+00 : f32
    %256 = vector.broadcast %cst_163 : f32 to vector<96x32xf32>
    %257 = arith.addf %256, %255 : vector<96x32xf32>
    %258 = arith.divf %256, %257 : vector<96x32xf32>
    %259 = arith.mulf %252, %258 : vector<96x32xf32>
    %c4_164 = arith.constant 4 : index
    %c0_165 = arith.constant 0 : index
    %c0_166 = arith.constant 0 : index
    %260 = vector.load %arg7[%c4_164, %c0_165, %c0_166] : memref<8x32x64xf32, #tpu.memory_space<vmem>>, vector<1x32x64xf32>
    %261 = vector.shape_cast %260 : vector<1x32x64xf32> to vector<32x64xf32>
    %cst_167 = arith.constant dense<0.000000e+00> : vector<96x64xf32>
    %262 = tpu.matmul %259, %261, %cst_167 {dimension_numbers = #tpu.dot_dimension_numbers<[1], [0], [0], [1], [0, 0, 1, 1], [], []>} : vector<96x32xf32>, vector<32x64xf32>, vector<96x64xf32> -> vector<96x64xf32>
    %c4_168 = arith.constant 4 : index
    %c0_169 = arith.constant 0 : index
    %c0_170 = arith.constant 0 : index
    %263 = vector.load %arg8[%c4_168, %c0_169, %c0_170] : memref<8x1x64xf32, #tpu.memory_space<vmem>>, vector<1x1x64xf32>
    %264 = vector.shape_cast %263 : vector<1x1x64xf32> to vector<1x64xf32>
    %265 = vector.broadcast %264 : vector<1x64xf32> to vector<96x64xf32>
    %266 = arith.addf %262, %265 : vector<96x64xf32>
    %267 = vector.extract_strided_slice %210 {offsets = [16, 0], sizes = [96, 64], strides = [1, 1]} : vector<112x64xf32> to vector<96x64xf32>
    %268 = arith.addf %266, %267 : vector<96x64xf32>
    %c0_171 = arith.constant 0 : index
    %c0_172 = arith.constant 0 : index
    %269 = vector.load %arg1[%c0_171, %c0_172] : memref<192x192xf32, #tpu.memory_space<vmem>>, vector<96x96xf32>
    %cst_173 = arith.constant dense<0.000000e+00> : vector<96x32xf32>
    %270 = tpu.matmul %269, %259, %cst_173 {dimension_numbers = #tpu.dot_dimension_numbers<[1], [0], [0], [1], [0, 0, 1, 1], [], []>} : vector<96x96xf32>, vector<96x32xf32>, vector<96x32xf32> -> vector<96x32xf32>
    %cst_174 = arith.constant dense<0.000000e+00> : vector<96x32xf32>
    %271 = tpu.matmul %269, %270, %cst_174 {dimension_numbers = #tpu.dot_dimension_numbers<[1], [0], [0], [1], [0, 0, 1, 1], [], []>} : vector<96x96xf32>, vector<96x32xf32>, vector<96x32xf32> -> vector<96x32xf32>
    %c4_175 = arith.constant 4 : index
    %c0_176 = arith.constant 0 : index
    %c0_177 = arith.constant 0 : index
    %272 = vector.load %arg9[%c4_175, %c0_176, %c0_177] : memref<8x96x32xf32, #tpu.memory_space<vmem>>, vector<1x96x32xf32>
    %273 = vector.shape_cast %272 : vector<1x96x32xf32> to vector<96x32xf32>
    %274 = vector.extract_strided_slice %273 {offsets = [0, 0], sizes = [32, 32], strides = [1, 1]} : vector<96x32xf32> to vector<32x32xf32>
    %cst_178 = arith.constant dense<0.000000e+00> : vector<96x32xf32>
    %275 = tpu.matmul %259, %274, %cst_178 {dimension_numbers = #tpu.dot_dimension_numbers<[1], [0], [0], [1], [0, 0, 1, 1], [], []>} : vector<96x32xf32>, vector<32x32xf32>, vector<96x32xf32> -> vector<96x32xf32>
    %276 = vector.extract_strided_slice %273 {offsets = [32, 0], sizes = [32, 32], strides = [1, 1]} : vector<96x32xf32> to vector<32x32xf32>
    %cst_179 = arith.constant dense<0.000000e+00> : vector<96x32xf32>
    %277 = tpu.matmul %270, %276, %cst_179 {dimension_numbers = #tpu.dot_dimension_numbers<[1], [0], [0], [1], [0, 0, 1, 1], [], []>} : vector<96x32xf32>, vector<32x32xf32>, vector<96x32xf32> -> vector<96x32xf32>
    %278 = arith.addf %275, %277 : vector<96x32xf32>
    %279 = vector.extract_strided_slice %273 {offsets = [64, 0], sizes = [32, 32], strides = [1, 1]} : vector<96x32xf32> to vector<32x32xf32>
    %cst_180 = arith.constant dense<0.000000e+00> : vector<96x32xf32>
    %280 = tpu.matmul %271, %279, %cst_180 {dimension_numbers = #tpu.dot_dimension_numbers<[1], [0], [0], [1], [0, 0, 1, 1], [], []>} : vector<96x32xf32>, vector<32x32xf32>, vector<96x32xf32> -> vector<96x32xf32>
    %281 = arith.addf %278, %280 : vector<96x32xf32>
    %c4_181 = arith.constant 4 : index
    %c0_182 = arith.constant 0 : index
    %c0_183 = arith.constant 0 : index
    %282 = vector.load %arg10[%c4_181, %c0_182, %c0_183] : memref<8x1x32xf32, #tpu.memory_space<vmem>>, vector<1x1x32xf32>
    %283 = vector.shape_cast %282 : vector<1x1x32xf32> to vector<1x32xf32>
    %284 = vector.broadcast %283 : vector<1x32xf32> to vector<96x32xf32>
    %285 = arith.addf %281, %284 : vector<96x32xf32>
    %286 = vector.extract_strided_slice %237 {offsets = [16, 0], sizes = [96, 32], strides = [1, 1]} : vector<112x32xf32> to vector<96x32xf32>
    %287 = arith.addf %285, %286 : vector<96x32xf32>
    %c4_184 = arith.constant 4 : index
    %c0_185 = arith.constant 0 : index
    %c0_186 = arith.constant 0 : index
    %288 = vector.load %arg11[%c4_184, %c0_185, %c0_186] : memref<8x1x32xf32, #tpu.memory_space<vmem>>, vector<1x1x32xf32>
    %289 = vector.shape_cast %288 : vector<1x1x32xf32> to vector<1x32xf32>
    %290 = vector.broadcast %289 : vector<1x32xf32> to vector<96x32xf32>
    %291 = arith.mulf %287, %290 : vector<96x32xf32>
    %c4_187 = arith.constant 4 : index
    %c0_188 = arith.constant 0 : index
    %c0_189 = arith.constant 0 : index
    %292 = vector.load %arg12[%c4_187, %c0_188, %c0_189] : memref<8x1x32xf32, #tpu.memory_space<vmem>>, vector<1x1x32xf32>
    %293 = vector.shape_cast %292 : vector<1x1x32xf32> to vector<1x32xf32>
    %294 = vector.broadcast %293 : vector<1x32xf32> to vector<96x32xf32>
    %295 = arith.addf %291, %294 : vector<96x32xf32>
    %296 = vector.extract_strided_slice %295 {offsets = [0, 0], sizes = [64, 32], strides = [1, 1]} : vector<96x32xf32> to vector<64x32xf32>
    %297 = vector.extract_strided_slice %295 {offsets = [32, 0], sizes = [64, 32], strides = [1, 1]} : vector<96x32xf32> to vector<64x32xf32>
    %c5 = arith.constant 5 : index
    %c0_190 = arith.constant 0 : index
    %c0_191 = arith.constant 0 : index
    %298 = vector.load %arg4[%c5, %c0_190, %c0_191] : memref<8x32x64xf32, #tpu.memory_space<vmem>>, vector<1x32x64xf32>
    %299 = vector.shape_cast %298 : vector<1x32x64xf32> to vector<32x64xf32>
    %cst_192 = arith.constant dense<0.000000e+00> : vector<64x64xf32>
    %300 = tpu.matmul %296, %299, %cst_192 {dimension_numbers = #tpu.dot_dimension_numbers<[1], [0], [0], [1], [0, 0, 1, 1], [], []>} : vector<64x32xf32>, vector<32x64xf32>, vector<64x64xf32> -> vector<64x64xf32>
    %c5_193 = arith.constant 5 : index
    %c0_194 = arith.constant 0 : index
    %c0_195 = arith.constant 0 : index
    %301 = vector.load %arg5[%c5_193, %c0_194, %c0_195] : memref<8x32x64xf32, #tpu.memory_space<vmem>>, vector<1x32x64xf32>
    %302 = vector.shape_cast %301 : vector<1x32x64xf32> to vector<32x64xf32>
    %cst_196 = arith.constant dense<0.000000e+00> : vector<64x64xf32>
    %303 = tpu.matmul %297, %302, %cst_196 {dimension_numbers = #tpu.dot_dimension_numbers<[1], [0], [0], [1], [0, 0, 1, 1], [], []>} : vector<64x32xf32>, vector<32x64xf32>, vector<64x64xf32> -> vector<64x64xf32>
    %304 = arith.addf %300, %303 : vector<64x64xf32>
    %c5_197 = arith.constant 5 : index
    %c0_198 = arith.constant 0 : index
    %c0_199 = arith.constant 0 : index
    %305 = vector.load %arg6[%c5_197, %c0_198, %c0_199] : memref<8x1x64xf32, #tpu.memory_space<vmem>>, vector<1x1x64xf32>
    %306 = vector.shape_cast %305 : vector<1x1x64xf32> to vector<1x64xf32>
    %307 = vector.broadcast %306 : vector<1x64xf32> to vector<64x64xf32>
    %308 = arith.addf %304, %307 : vector<64x64xf32>
    %309 = vector.extract_strided_slice %308 {offsets = [0, 0], sizes = [64, 32], strides = [1, 1]} : vector<64x64xf32> to vector<64x32xf32>
    %310 = math.tanh %309 : vector<64x32xf32>
    %311 = vector.extract_strided_slice %308 {offsets = [0, 32], sizes = [64, 32], strides = [1, 1]} : vector<64x64xf32> to vector<64x32xf32>
    %312 = arith.negf %311 : vector<64x32xf32>
    %313 = math.exp %312 : vector<64x32xf32>
    %cst_200 = arith.constant 1.000000e+00 : f32
    %314 = vector.broadcast %cst_200 : f32 to vector<64x32xf32>
    %315 = arith.addf %314, %313 : vector<64x32xf32>
    %316 = arith.divf %314, %315 : vector<64x32xf32>
    %317 = arith.mulf %310, %316 : vector<64x32xf32>
    %c5_201 = arith.constant 5 : index
    %c0_202 = arith.constant 0 : index
    %c0_203 = arith.constant 0 : index
    %318 = vector.load %arg7[%c5_201, %c0_202, %c0_203] : memref<8x32x64xf32, #tpu.memory_space<vmem>>, vector<1x32x64xf32>
    %319 = vector.shape_cast %318 : vector<1x32x64xf32> to vector<32x64xf32>
    %cst_204 = arith.constant dense<0.000000e+00> : vector<64x64xf32>
    %320 = tpu.matmul %317, %319, %cst_204 {dimension_numbers = #tpu.dot_dimension_numbers<[1], [0], [0], [1], [0, 0, 1, 1], [], []>} : vector<64x32xf32>, vector<32x64xf32>, vector<64x64xf32> -> vector<64x64xf32>
    %c5_205 = arith.constant 5 : index
    %c0_206 = arith.constant 0 : index
    %c0_207 = arith.constant 0 : index
    %321 = vector.load %arg8[%c5_205, %c0_206, %c0_207] : memref<8x1x64xf32, #tpu.memory_space<vmem>>, vector<1x1x64xf32>
    %322 = vector.shape_cast %321 : vector<1x1x64xf32> to vector<1x64xf32>
    %323 = vector.broadcast %322 : vector<1x64xf32> to vector<64x64xf32>
    %324 = arith.addf %320, %323 : vector<64x64xf32>
    %325 = vector.extract_strided_slice %268 {offsets = [32, 0], sizes = [64, 64], strides = [1, 1]} : vector<96x64xf32> to vector<64x64xf32>
    %326 = arith.addf %324, %325 : vector<64x64xf32>
    %c0_208 = arith.constant 0 : index
    %c0_209 = arith.constant 0 : index
    %327 = vector.load %arg1[%c0_208, %c0_209] : memref<192x192xf32, #tpu.memory_space<vmem>>, vector<64x64xf32>
    %cst_210 = arith.constant dense<0.000000e+00> : vector<64x32xf32>
    %328 = tpu.matmul %327, %317, %cst_210 {dimension_numbers = #tpu.dot_dimension_numbers<[1], [0], [0], [1], [0, 0, 1, 1], [], []>} : vector<64x64xf32>, vector<64x32xf32>, vector<64x32xf32> -> vector<64x32xf32>
    %cst_211 = arith.constant dense<0.000000e+00> : vector<64x32xf32>
    %329 = tpu.matmul %327, %328, %cst_211 {dimension_numbers = #tpu.dot_dimension_numbers<[1], [0], [0], [1], [0, 0, 1, 1], [], []>} : vector<64x64xf32>, vector<64x32xf32>, vector<64x32xf32> -> vector<64x32xf32>
    %c5_212 = arith.constant 5 : index
    %c0_213 = arith.constant 0 : index
    %c0_214 = arith.constant 0 : index
    %330 = vector.load %arg9[%c5_212, %c0_213, %c0_214] : memref<8x96x32xf32, #tpu.memory_space<vmem>>, vector<1x96x32xf32>
    %331 = vector.shape_cast %330 : vector<1x96x32xf32> to vector<96x32xf32>
    %332 = vector.extract_strided_slice %331 {offsets = [0, 0], sizes = [32, 32], strides = [1, 1]} : vector<96x32xf32> to vector<32x32xf32>
    %cst_215 = arith.constant dense<0.000000e+00> : vector<64x32xf32>
    %333 = tpu.matmul %317, %332, %cst_215 {dimension_numbers = #tpu.dot_dimension_numbers<[1], [0], [0], [1], [0, 0, 1, 1], [], []>} : vector<64x32xf32>, vector<32x32xf32>, vector<64x32xf32> -> vector<64x32xf32>
    %334 = vector.extract_strided_slice %331 {offsets = [32, 0], sizes = [32, 32], strides = [1, 1]} : vector<96x32xf32> to vector<32x32xf32>
    %cst_216 = arith.constant dense<0.000000e+00> : vector<64x32xf32>
    %335 = tpu.matmul %328, %334, %cst_216 {dimension_numbers = #tpu.dot_dimension_numbers<[1], [0], [0], [1], [0, 0, 1, 1], [], []>} : vector<64x32xf32>, vector<32x32xf32>, vector<64x32xf32> -> vector<64x32xf32>
    %336 = arith.addf %333, %335 : vector<64x32xf32>
    %337 = vector.extract_strided_slice %331 {offsets = [64, 0], sizes = [32, 32], strides = [1, 1]} : vector<96x32xf32> to vector<32x32xf32>
    %cst_217 = arith.constant dense<0.000000e+00> : vector<64x32xf32>
    %338 = tpu.matmul %329, %337, %cst_217 {dimension_numbers = #tpu.dot_dimension_numbers<[1], [0], [0], [1], [0, 0, 1, 1], [], []>} : vector<64x32xf32>, vector<32x32xf32>, vector<64x32xf32> -> vector<64x32xf32>
    %339 = arith.addf %336, %338 : vector<64x32xf32>
    %c5_218 = arith.constant 5 : index
    %c0_219 = arith.constant 0 : index
    %c0_220 = arith.constant 0 : index
    %340 = vector.load %arg10[%c5_218, %c0_219, %c0_220] : memref<8x1x32xf32, #tpu.memory_space<vmem>>, vector<1x1x32xf32>
    %341 = vector.shape_cast %340 : vector<1x1x32xf32> to vector<1x32xf32>
    %342 = vector.broadcast %341 : vector<1x32xf32> to vector<64x32xf32>
    %343 = arith.addf %339, %342 : vector<64x32xf32>
    %344 = vector.extract_strided_slice %295 {offsets = [32, 0], sizes = [64, 32], strides = [1, 1]} : vector<96x32xf32> to vector<64x32xf32>
    %345 = arith.addf %343, %344 : vector<64x32xf32>
    %c5_221 = arith.constant 5 : index
    %c0_222 = arith.constant 0 : index
    %c0_223 = arith.constant 0 : index
    %346 = vector.load %arg11[%c5_221, %c0_222, %c0_223] : memref<8x1x32xf32, #tpu.memory_space<vmem>>, vector<1x1x32xf32>
    %347 = vector.shape_cast %346 : vector<1x1x32xf32> to vector<1x32xf32>
    %348 = vector.broadcast %347 : vector<1x32xf32> to vector<64x32xf32>
    %349 = arith.mulf %345, %348 : vector<64x32xf32>
    %c5_224 = arith.constant 5 : index
    %c0_225 = arith.constant 0 : index
    %c0_226 = arith.constant 0 : index
    %350 = vector.load %arg12[%c5_224, %c0_225, %c0_226] : memref<8x1x32xf32, #tpu.memory_space<vmem>>, vector<1x1x32xf32>
    %351 = vector.shape_cast %350 : vector<1x1x32xf32> to vector<1x32xf32>
    %352 = vector.broadcast %351 : vector<1x32xf32> to vector<64x32xf32>
    %353 = arith.addf %349, %352 : vector<64x32xf32>
    %354 = vector.extract_strided_slice %353 {offsets = [0, 0], sizes = [48, 32], strides = [1, 1]} : vector<64x32xf32> to vector<48x32xf32>
    %355 = vector.extract_strided_slice %353 {offsets = [16, 0], sizes = [48, 32], strides = [1, 1]} : vector<64x32xf32> to vector<48x32xf32>
    %c6 = arith.constant 6 : index
    %c0_227 = arith.constant 0 : index
    %c0_228 = arith.constant 0 : index
    %356 = vector.load %arg4[%c6, %c0_227, %c0_228] : memref<8x32x64xf32, #tpu.memory_space<vmem>>, vector<1x32x64xf32>
    %357 = vector.shape_cast %356 : vector<1x32x64xf32> to vector<32x64xf32>
    %cst_229 = arith.constant dense<0.000000e+00> : vector<48x64xf32>
    %358 = tpu.matmul %354, %357, %cst_229 {dimension_numbers = #tpu.dot_dimension_numbers<[1], [0], [0], [1], [0, 0, 1, 1], [], []>} : vector<48x32xf32>, vector<32x64xf32>, vector<48x64xf32> -> vector<48x64xf32>
    %c6_230 = arith.constant 6 : index
    %c0_231 = arith.constant 0 : index
    %c0_232 = arith.constant 0 : index
    %359 = vector.load %arg5[%c6_230, %c0_231, %c0_232] : memref<8x32x64xf32, #tpu.memory_space<vmem>>, vector<1x32x64xf32>
    %360 = vector.shape_cast %359 : vector<1x32x64xf32> to vector<32x64xf32>
    %cst_233 = arith.constant dense<0.000000e+00> : vector<48x64xf32>
    %361 = tpu.matmul %355, %360, %cst_233 {dimension_numbers = #tpu.dot_dimension_numbers<[1], [0], [0], [1], [0, 0, 1, 1], [], []>} : vector<48x32xf32>, vector<32x64xf32>, vector<48x64xf32> -> vector<48x64xf32>
    %362 = arith.addf %358, %361 : vector<48x64xf32>
    %c6_234 = arith.constant 6 : index
    %c0_235 = arith.constant 0 : index
    %c0_236 = arith.constant 0 : index
    %363 = vector.load %arg6[%c6_234, %c0_235, %c0_236] : memref<8x1x64xf32, #tpu.memory_space<vmem>>, vector<1x1x64xf32>
    %364 = vector.shape_cast %363 : vector<1x1x64xf32> to vector<1x64xf32>
    %365 = vector.broadcast %364 : vector<1x64xf32> to vector<48x64xf32>
    %366 = arith.addf %362, %365 : vector<48x64xf32>
    %367 = vector.extract_strided_slice %366 {offsets = [0, 0], sizes = [48, 32], strides = [1, 1]} : vector<48x64xf32> to vector<48x32xf32>
    %368 = math.tanh %367 : vector<48x32xf32>
    %369 = vector.extract_strided_slice %366 {offsets = [0, 32], sizes = [48, 32], strides = [1, 1]} : vector<48x64xf32> to vector<48x32xf32>
    %370 = arith.negf %369 : vector<48x32xf32>
    %371 = math.exp %370 : vector<48x32xf32>
    %cst_237 = arith.constant 1.000000e+00 : f32
    %372 = vector.broadcast %cst_237 : f32 to vector<48x32xf32>
    %373 = arith.addf %372, %371 : vector<48x32xf32>
    %374 = arith.divf %372, %373 : vector<48x32xf32>
    %375 = arith.mulf %368, %374 : vector<48x32xf32>
    %c6_238 = arith.constant 6 : index
    %c0_239 = arith.constant 0 : index
    %c0_240 = arith.constant 0 : index
    %376 = vector.load %arg7[%c6_238, %c0_239, %c0_240] : memref<8x32x64xf32, #tpu.memory_space<vmem>>, vector<1x32x64xf32>
    %377 = vector.shape_cast %376 : vector<1x32x64xf32> to vector<32x64xf32>
    %cst_241 = arith.constant dense<0.000000e+00> : vector<48x64xf32>
    %378 = tpu.matmul %375, %377, %cst_241 {dimension_numbers = #tpu.dot_dimension_numbers<[1], [0], [0], [1], [0, 0, 1, 1], [], []>} : vector<48x32xf32>, vector<32x64xf32>, vector<48x64xf32> -> vector<48x64xf32>
    %c6_242 = arith.constant 6 : index
    %c0_243 = arith.constant 0 : index
    %c0_244 = arith.constant 0 : index
    %379 = vector.load %arg8[%c6_242, %c0_243, %c0_244] : memref<8x1x64xf32, #tpu.memory_space<vmem>>, vector<1x1x64xf32>
    %380 = vector.shape_cast %379 : vector<1x1x64xf32> to vector<1x64xf32>
    %381 = vector.broadcast %380 : vector<1x64xf32> to vector<48x64xf32>
    %382 = arith.addf %378, %381 : vector<48x64xf32>
    %383 = vector.extract_strided_slice %326 {offsets = [16, 0], sizes = [48, 64], strides = [1, 1]} : vector<64x64xf32> to vector<48x64xf32>
    %384 = arith.addf %382, %383 : vector<48x64xf32>
    %c0_245 = arith.constant 0 : index
    %c0_246 = arith.constant 0 : index
    %385 = vector.load %arg1[%c0_245, %c0_246] : memref<192x192xf32, #tpu.memory_space<vmem>>, vector<48x48xf32>
    %cst_247 = arith.constant dense<0.000000e+00> : vector<48x32xf32>
    %386 = tpu.matmul %385, %375, %cst_247 {dimension_numbers = #tpu.dot_dimension_numbers<[1], [0], [0], [1], [0, 0, 1, 1], [], []>} : vector<48x48xf32>, vector<48x32xf32>, vector<48x32xf32> -> vector<48x32xf32>
    %cst_248 = arith.constant dense<0.000000e+00> : vector<48x32xf32>
    %387 = tpu.matmul %385, %386, %cst_248 {dimension_numbers = #tpu.dot_dimension_numbers<[1], [0], [0], [1], [0, 0, 1, 1], [], []>} : vector<48x48xf32>, vector<48x32xf32>, vector<48x32xf32> -> vector<48x32xf32>
    %c6_249 = arith.constant 6 : index
    %c0_250 = arith.constant 0 : index
    %c0_251 = arith.constant 0 : index
    %388 = vector.load %arg9[%c6_249, %c0_250, %c0_251] : memref<8x96x32xf32, #tpu.memory_space<vmem>>, vector<1x96x32xf32>
    %389 = vector.shape_cast %388 : vector<1x96x32xf32> to vector<96x32xf32>
    %390 = vector.extract_strided_slice %389 {offsets = [0, 0], sizes = [32, 32], strides = [1, 1]} : vector<96x32xf32> to vector<32x32xf32>
    %cst_252 = arith.constant dense<0.000000e+00> : vector<48x32xf32>
    %391 = tpu.matmul %375, %390, %cst_252 {dimension_numbers = #tpu.dot_dimension_numbers<[1], [0], [0], [1], [0, 0, 1, 1], [], []>} : vector<48x32xf32>, vector<32x32xf32>, vector<48x32xf32> -> vector<48x32xf32>
    %392 = vector.extract_strided_slice %389 {offsets = [32, 0], sizes = [32, 32], strides = [1, 1]} : vector<96x32xf32> to vector<32x32xf32>
    %cst_253 = arith.constant dense<0.000000e+00> : vector<48x32xf32>
    %393 = tpu.matmul %386, %392, %cst_253 {dimension_numbers = #tpu.dot_dimension_numbers<[1], [0], [0], [1], [0, 0, 1, 1], [], []>} : vector<48x32xf32>, vector<32x32xf32>, vector<48x32xf32> -> vector<48x32xf32>
    %394 = arith.addf %391, %393 : vector<48x32xf32>
    %395 = vector.extract_strided_slice %389 {offsets = [64, 0], sizes = [32, 32], strides = [1, 1]} : vector<96x32xf32> to vector<32x32xf32>
    %cst_254 = arith.constant dense<0.000000e+00> : vector<48x32xf32>
    %396 = tpu.matmul %387, %395, %cst_254 {dimension_numbers = #tpu.dot_dimension_numbers<[1], [0], [0], [1], [0, 0, 1, 1], [], []>} : vector<48x32xf32>, vector<32x32xf32>, vector<48x32xf32> -> vector<48x32xf32>
    %397 = arith.addf %394, %396 : vector<48x32xf32>
    %c6_255 = arith.constant 6 : index
    %c0_256 = arith.constant 0 : index
    %c0_257 = arith.constant 0 : index
    %398 = vector.load %arg10[%c6_255, %c0_256, %c0_257] : memref<8x1x32xf32, #tpu.memory_space<vmem>>, vector<1x1x32xf32>
    %399 = vector.shape_cast %398 : vector<1x1x32xf32> to vector<1x32xf32>
    %400 = vector.broadcast %399 : vector<1x32xf32> to vector<48x32xf32>
    %401 = arith.addf %397, %400 : vector<48x32xf32>
    %402 = vector.extract_strided_slice %353 {offsets = [16, 0], sizes = [48, 32], strides = [1, 1]} : vector<64x32xf32> to vector<48x32xf32>
    %403 = arith.addf %401, %402 : vector<48x32xf32>
    %c6_258 = arith.constant 6 : index
    %c0_259 = arith.constant 0 : index
    %c0_260 = arith.constant 0 : index
    %404 = vector.load %arg11[%c6_258, %c0_259, %c0_260] : memref<8x1x32xf32, #tpu.memory_space<vmem>>, vector<1x1x32xf32>
    %405 = vector.shape_cast %404 : vector<1x1x32xf32> to vector<1x32xf32>
    %406 = vector.broadcast %405 : vector<1x32xf32> to vector<48x32xf32>
    %407 = arith.mulf %403, %406 : vector<48x32xf32>
    %c6_261 = arith.constant 6 : index
    %c0_262 = arith.constant 0 : index
    %c0_263 = arith.constant 0 : index
    %408 = vector.load %arg12[%c6_261, %c0_262, %c0_263] : memref<8x1x32xf32, #tpu.memory_space<vmem>>, vector<1x1x32xf32>
    %409 = vector.shape_cast %408 : vector<1x1x32xf32> to vector<1x32xf32>
    %410 = vector.broadcast %409 : vector<1x32xf32> to vector<48x32xf32>
    %411 = arith.addf %407, %410 : vector<48x32xf32>
    %412 = vector.extract_strided_slice %411 {offsets = [0, 0], sizes = [16, 32], strides = [1, 1]} : vector<48x32xf32> to vector<16x32xf32>
    %413 = vector.extract_strided_slice %411 {offsets = [32, 0], sizes = [16, 32], strides = [1, 1]} : vector<48x32xf32> to vector<16x32xf32>
    %c7 = arith.constant 7 : index
    %c0_264 = arith.constant 0 : index
    %c0_265 = arith.constant 0 : index
    %414 = vector.load %arg4[%c7, %c0_264, %c0_265] : memref<8x32x64xf32, #tpu.memory_space<vmem>>, vector<1x32x64xf32>
    %415 = vector.shape_cast %414 : vector<1x32x64xf32> to vector<32x64xf32>
    %cst_266 = arith.constant dense<0.000000e+00> : vector<16x64xf32>
    %416 = tpu.matmul %412, %415, %cst_266 {dimension_numbers = #tpu.dot_dimension_numbers<[1], [0], [0], [1], [0, 0, 1, 1], [], []>} : vector<16x32xf32>, vector<32x64xf32>, vector<16x64xf32> -> vector<16x64xf32>
    %c7_267 = arith.constant 7 : index
    %c0_268 = arith.constant 0 : index
    %c0_269 = arith.constant 0 : index
    %417 = vector.load %arg5[%c7_267, %c0_268, %c0_269] : memref<8x32x64xf32, #tpu.memory_space<vmem>>, vector<1x32x64xf32>
    %418 = vector.shape_cast %417 : vector<1x32x64xf32> to vector<32x64xf32>
    %cst_270 = arith.constant dense<0.000000e+00> : vector<16x64xf32>
    %419 = tpu.matmul %413, %418, %cst_270 {dimension_numbers = #tpu.dot_dimension_numbers<[1], [0], [0], [1], [0, 0, 1, 1], [], []>} : vector<16x32xf32>, vector<32x64xf32>, vector<16x64xf32> -> vector<16x64xf32>
    %420 = arith.addf %416, %419 : vector<16x64xf32>
    %c7_271 = arith.constant 7 : index
    %c0_272 = arith.constant 0 : index
    %c0_273 = arith.constant 0 : index
    %421 = vector.load %arg6[%c7_271, %c0_272, %c0_273] : memref<8x1x64xf32, #tpu.memory_space<vmem>>, vector<1x1x64xf32>
    %422 = vector.shape_cast %421 : vector<1x1x64xf32> to vector<1x64xf32>
    %423 = vector.broadcast %422 : vector<1x64xf32> to vector<16x64xf32>
    %424 = arith.addf %420, %423 : vector<16x64xf32>
    %425 = vector.extract_strided_slice %424 {offsets = [0, 0], sizes = [16, 32], strides = [1, 1]} : vector<16x64xf32> to vector<16x32xf32>
    %426 = math.tanh %425 : vector<16x32xf32>
    %427 = vector.extract_strided_slice %424 {offsets = [0, 32], sizes = [16, 32], strides = [1, 1]} : vector<16x64xf32> to vector<16x32xf32>
    %428 = arith.negf %427 : vector<16x32xf32>
    %429 = math.exp %428 : vector<16x32xf32>
    %cst_274 = arith.constant 1.000000e+00 : f32
    %430 = vector.broadcast %cst_274 : f32 to vector<16x32xf32>
    %431 = arith.addf %430, %429 : vector<16x32xf32>
    %432 = arith.divf %430, %431 : vector<16x32xf32>
    %433 = arith.mulf %426, %432 : vector<16x32xf32>
    %c7_275 = arith.constant 7 : index
    %c0_276 = arith.constant 0 : index
    %c0_277 = arith.constant 0 : index
    %434 = vector.load %arg7[%c7_275, %c0_276, %c0_277] : memref<8x32x64xf32, #tpu.memory_space<vmem>>, vector<1x32x64xf32>
    %435 = vector.shape_cast %434 : vector<1x32x64xf32> to vector<32x64xf32>
    %cst_278 = arith.constant dense<0.000000e+00> : vector<16x64xf32>
    %436 = tpu.matmul %433, %435, %cst_278 {dimension_numbers = #tpu.dot_dimension_numbers<[1], [0], [0], [1], [0, 0, 1, 1], [], []>} : vector<16x32xf32>, vector<32x64xf32>, vector<16x64xf32> -> vector<16x64xf32>
    %c7_279 = arith.constant 7 : index
    %c0_280 = arith.constant 0 : index
    %c0_281 = arith.constant 0 : index
    %437 = vector.load %arg8[%c7_279, %c0_280, %c0_281] : memref<8x1x64xf32, #tpu.memory_space<vmem>>, vector<1x1x64xf32>
    %438 = vector.shape_cast %437 : vector<1x1x64xf32> to vector<1x64xf32>
    %439 = vector.broadcast %438 : vector<1x64xf32> to vector<16x64xf32>
    %440 = arith.addf %436, %439 : vector<16x64xf32>
    %441 = vector.extract_strided_slice %384 {offsets = [32, 0], sizes = [16, 64], strides = [1, 1]} : vector<48x64xf32> to vector<16x64xf32>
    %442 = arith.addf %440, %441 : vector<16x64xf32>
    %cst_282 = arith.constant 0.000000e+00 : f32
    %443 = vector.broadcast %cst_282 : f32 to vector<16x64xf32>
    %444 = arith.maximumf %442, %443 : vector<16x64xf32>
    %c0_283 = arith.constant 0 : index
    %c0_284 = arith.constant 0 : index
    %445 = vector.load %arg13[%c0_283, %c0_284] : memref<64x128xf32, #tpu.memory_space<vmem>>, vector<64x128xf32>
    %cst_285 = arith.constant dense<0.000000e+00> : vector<16x128xf32>
    %446 = tpu.matmul %444, %445, %cst_285 {dimension_numbers = #tpu.dot_dimension_numbers<[1], [0], [0], [1], [0, 0, 1, 1], [], []>} : vector<16x64xf32>, vector<64x128xf32>, vector<16x128xf32> -> vector<16x128xf32>
    %c0_286 = arith.constant 0 : index
    %c0_287 = arith.constant 0 : index
    %447 = vector.load %arg14[%c0_286, %c0_287] : memref<1x128xf32, #tpu.memory_space<vmem>>, vector<1x128xf32>
    %448 = vector.broadcast %447 : vector<1x128xf32> to vector<16x128xf32>
    %449 = arith.addf %446, %448 : vector<16x128xf32>
    %cst_288 = arith.constant 0.000000e+00 : f32
    %450 = vector.broadcast %cst_288 : f32 to vector<16x128xf32>
    %451 = arith.maximumf %449, %450 : vector<16x128xf32>
    %c0_289 = arith.constant 0 : index
    %c0_290 = arith.constant 0 : index
    %452 = vector.load %arg15[%c0_289, %c0_290] : memref<128x12xf32, #tpu.memory_space<vmem>>, vector<128x12xf32>
    %cst_291 = arith.constant dense<0.000000e+00> : vector<16x12xf32>
    %453 = tpu.matmul %451, %452, %cst_291 {dimension_numbers = #tpu.dot_dimension_numbers<[1], [0], [0], [1], [0, 0, 1, 1], [], []>} : vector<16x128xf32>, vector<128x12xf32>, vector<16x12xf32> -> vector<16x12xf32>
    %c0_292 = arith.constant 0 : index
    %c0_293 = arith.constant 0 : index
    %454 = vector.load %arg16[%c0_292, %c0_293] : memref<1x12xf32, #tpu.memory_space<vmem>>, vector<1x12xf32>
    %455 = vector.broadcast %454 : vector<1x12xf32> to vector<16x12xf32>
    %456 = arith.addf %453, %455 : vector<16x12xf32>
    %c0_294 = arith.constant 0 : index
    %c0_295 = arith.constant 0 : index
    %457 = vector.load %arg17[%c0_294, %c0_295] : memref<16x12xf32, #tpu.memory_space<vmem>>, vector<16x12xf32>
    tpu.vector_store %arg17[%c0_294, %c0_295], %456 {strides = array<i32>} : memref<16x12xf32, #tpu.memory_space<vmem>>, vector<16x12xf32>,
    return
  }
}

</mosaic_0001>

<llo_original>
// kernel: stabc_forward.2
$region0: #{stabc_forward.2}
  #allocation0 [shape = 'u32[]', space=smem, size = 0x4, offset = 0x4, fixed_abs, tag = 'smem constant byte address 0x4 - core index']
  #allocation1 [shape = 'u32[72,128]{1,0:T(1,128)}', space=vmem, size = 0x9000, scoped, tag = 'internal scratch']
  %s0 = inlined_call_operand.hbm [shape: f32[8,10], index: 0, kind: input, shape index: {}]
  %s1 = inlined_call_operand.vmem [shape: f32[10,8], index: 1, kind: input, shape index: {}]
  %s2 = inlined_call_operand.vmem [shape: f32[8,8], index: 2, kind: output, shape index: {}]
  %s3 = sld [smem:[#allocation0]]
  $region22: #{stabc_forward.2} parent=0
    _
  %s5 = ssub.s32 1, %s3
  %s6 = scalar_select 0, %s5, %s3
  $region1: #{stabc_forward.2} parent=0
    #allocation2 [shape = 'u8[4096]{0}', space=vmem, size = 0x1000, scoped, tag = 'input window, operand 0, single buffered']
    #allocation3 [shape = 's32[1]{0}', space=sflag, size = 0x4, scoped, tag = 'scoped memory for stabc_forward.2']
    %7 = vsyncpa [#allocation3], 0
    // Predicated region
    $region2: #{stabc_forward.2} parent=1 // pred_check
      _
    $region3: #{stabc_forward.2} parent=1 // pred_check_branch
      %9 = sbr.rel (0) target = $region5
    $region4: #{stabc_forward.2} parent=1 // pred_region
      %11 = vsyncadd [#allocation3], 0
      %s13 = sshll.u32 %s0, 4
      %s14 = int_to_ptr.hbm [resolvable:$true] %s13
      %s15 = sshll.u32 [#allocation2], 4
      %s16 = int_to_ptr.vmem [resolvable:$true] %s15
      %18 = dma.hbm_to_vmem [thread:$0]  %s14, 128, %s16, [#allocation3]
    $region5: #{stabc_forward.2} parent=1 // pred_fallthru
      _
    // Predicated region
    $region6: #{stabc_forward.2} parent=1 // pred_check
      _
    $region7: #{stabc_forward.2} parent=1 // pred_check_branch
      %20 = sbr.rel (0) target = $region9
    $region8: #{stabc_forward.2} parent=1 // pred_region
      _
    $region9: #{stabc_forward.2} parent=1 // pred_fallthru
      _
    // Predicated region
    $region10: #{stabc_forward.2} parent=1 // pred_check
      _
    $region11: #{stabc_forward.2} parent=1 // pred_check_branch
      %22 = sbr.rel (0) target = $region13
    $region12: #{stabc_forward.2} parent=1 // pred_region
      %24 = dma.done [#allocation3], 128
    $region13: #{stabc_forward.2} parent=1 // pred_fallthru
      _
    %v25 = vld [vmem:[#allocation2] sm:$0xff]
    %v26 = vld [vmem:[%s1] sm:$0xff]
    %v27 = vld [vmem:[%s1 + $0x8] sm:$0x3]
    %vm28 = vcmask 80896
    %v30 = vsel %vm28, %v25, 0
    %vm32 = vcmask 1041408
    %v34 = vsel %vm32, %v27, 0
    %36 = vmatpush.msra.mxu0 0.0
    %37 = vmatpush.msra.mxu0 0.0
    %38 = vmatpush.msra.mxu0 0.0
    %39 = vmatpush.msra.mxu0 0.0
    %40 = vmatpush.msra.mxu0 0.0
    %41 = vmatpush.msra.mxu0 0.0
    %42 = vmatpush.msra.mxu0 0.0
    %43 = vmatpush.msra.mxu0 0.0
    %44 = vmatpush.msra.mxu0 0.0
    %45 = vmatpush.msra.mxu0 0.0
    %46 = vmatpush.msra.mxu0 0.0
    %47 = vmatpush.msra.mxu0 0.0
    %48 = vmatpush.msra.mxu0 0.0
    %49 = vmatpush.msra.mxu0 0.0
    %50 = vmatpush.msra.mxu0 %v34
    %51 = vmatpush.msra.mxu0 %v26
    %52 = vmatmul.f32.gmra.mxu0 %v30
    %v53 = vpop.f32.mrf.mxu0
    %v54 = vadd.f32 0.0, %v53
    %55 = vdwg.mxu0
    %v56 = vmax.f32 %v54, 0.0
    %vm57 = vcmask 64512
    %v58 = vsel %vm57, %v56, -inf
    %59 = vmax.xlane.f32.xlu0 %v58
    %v60 = vpop.xlane.xlu0 %59
    %v61 = vsub.f32 %v56, %v60
    %v62 = vmul.f32 %v61, 1.442695
    %v63 = vpow.pop %v62
    %v64 = vsel %vm57, %v63, 0.0
    %65 = vadd.xlane.f32.xlu0 %v64
    %v66 = vpop.xlane.xlu0 %65
    %v67 = vrcp.pop %v66
    %v68 = vmul.f32 %v66, %v67
    %v69 = vsub.f32 1.0, %v68
    %v70 = vmul.f32 %v67, %v69
    %v71 = vadd.f32 %v67, %v70
    %vm72 = vweird.f32 %v66
    %vm73 = vweird.f32 %v67
    %vm74 = vmor %vm72, %vm73
    %v75 = vsel %vm74, %v67, %v71
    %v76 = vand.u32 2147483647, %v66
    %vm77 = vcmp.eq.f32.partialorder %v76, 8.507059e+37
    %v78 = vand.u32 %v66, 2147483648
    %v79 = vor.u32 1.1754944e-38, %v78
    %v80 = vsel %vm77, %v79, %v75
    %v81 = vmul.f32 %v63, %v80
    %82 = vst.msk [vmem:[%s2] sm:$0xff] %vm57, %v81
    // Predicated region
    $region14: #{stabc_forward.2} parent=1 // pred_check
      _
    $region15: #{stabc_forward.2} parent=1 // pred_check_branch
      %84 = sbr.rel (0) target = $region17
    $region16: #{stabc_forward.2} parent=1 // pred_region
      _
    $region17: #{stabc_forward.2} parent=1 // pred_fallthru
      _
    // Predicated region
    $region18: #{stabc_forward.2} parent=1 // pred_check
      _
    $region19: #{stabc_forward.2} parent=1 // pred_check_branch
      %86 = sbr.rel (0) target = $region21
    $region20: #{stabc_forward.2} parent=1 // pred_region
      _
    $region21: #{stabc_forward.2} parent=1 // pred_fallthru
      _
    %87 = vsyncpa [#allocation3], 1

// kernel: stabc_forward.3
$region0: #{stabc_forward.3}
  #allocation0 [shape = 'u32[]', space=smem, size = 0x4, offset = 0x4, fixed_abs, tag = 'smem constant byte address 0x4 - core index']
  #allocation1 [shape = 'u32[72,128]{1,0:T(1,128)}', space=vmem, size = 0x9000, scoped, tag = 'internal scratch']
  %s0 = inlined_call_operand.vmem [shape: f32[208,1], index: 0, kind: input, shape index: {}]
  %s1 = inlined_call_operand.vmem [shape: f32[192,192], index: 1, kind: input, shape index: {}]
  %s2 = inlined_call_operand.hbm [shape: f32[1,32], index: 2, kind: input, shape index: {}]
  %s3 = inlined_call_operand.hbm [shape: f32[1,32], index: 3, kind: input, shape index: {}]
  %s4 = inlined_call_operand.vmem [shape: f32[8,32,64], index: 4, kind: input, shape index: {}]
  %s5 = inlined_call_operand.vmem [shape: f32[8,32,64], index: 5, kind: input, shape index: {}]
  %s6 = inlined_call_operand.vmem [shape: f32[8,1,64], index: 6, kind: input, shape index: {}]
  %s7 = inlined_call_operand.vmem [shape: f32[8,32,64], index: 7, kind: input, shape index: {}]
  %s8 = inlined_call_operand.vmem [shape: f32[8,1,64], index: 8, kind: input, shape index: {}]
  %s9 = inlined_call_operand.vmem [shape: f32[8,96,32], index: 9, kind: input, shape index: {}]
  %s10 = inlined_call_operand.vmem [shape: f32[8,1,32], index: 10, kind: input, shape index: {}]
  %s11 = inlined_call_operand.vmem [shape: f32[8,1,32], index: 11, kind: input, shape index: {}]
  %s12 = inlined_call_operand.vmem [shape: f32[8,1,32], index: 12, kind: input, shape index: {}]
  %s13 = inlined_call_operand.hbm [shape: f32[64,128], index: 13, kind: input, shape index: {}]
  %s14 = inlined_call_operand.hbm [shape: f32[1,128], index: 14, kind: input, shape index: {}]
  %s15 = inlined_call_operand.vmem [shape: f32[128,12], index: 15, kind: input, shape index: {}]
  %s16 = inlined_call_operand.hbm [shape: f32[1,12], index: 16, kind: input, shape index: {}]
  %s17 = inlined_call_operand.hbm [shape: f32[16,12], index: 17, kind: output, shape index: {}]
  %s18 = sld [smem:[#allocation0]]
  $region98: #{stabc_forward.3} parent=0
    _
  %s20 = ssub.s32 1, %s18
  %s21 = scalar_select 0, %s20, %s18
  $region1: #{stabc_forward.3} parent=0
    #allocation2 [shape = 'u8[512]{0}', space=vmem, size = 0x400, scoped, tag = 'input window, operand 2, single buffered']
    #allocation3 [shape = 's32[1]{0}', space=sflag, size = 0x4, scoped, tag = 'scoped memory for stabc_forward.3']
    #allocation4 [shape = 's32[1]{0}', space=sflag, size = 0x4, scoped, tag = 'scoped memory for stabc_forward.3']
    #allocation5 [shape = 'u8[512]{0}', space=vmem, size = 0x400, scoped, tag = 'input window, operand 3, single buffered']
    #allocation6 [shape = 's32[1]{0}', space=sflag, size = 0x4, scoped, tag = 'scoped memory for stabc_forward.3']
    #allocation7 [shape = 'u8[32768]{0}', space=vmem, size = 0x8000, scoped, tag = 'input window, operand 13, single buffered']
    #allocation8 [shape = 'u8[512]{0}', space=vmem, size = 0x400, scoped, tag = 'input window, operand 14, single buffered']
    #allocation9 [shape = 's32[1]{0}', space=sflag, size = 0x4, scoped, tag = 'scoped memory for stabc_forward.3']
    #allocation10 [shape = 'u8[512]{0}', space=vmem, size = 0x400, scoped, tag = 'input window, operand 16, single buffered']
    #allocation11 [shape = 'u8[8192]{0}', space=vmem, size = 0x2000, scoped, tag = 'output window, operand 0, single buffered']
    %22 = vsyncpa [#allocation3], 0
    %23 = vsyncpa [#allocation6], 0
    %24 = vsyncpa [#allocation9], 0
    %25 = vsyncpa [#allocation4], 0
    // Predicated region
    $region2: #{stabc_forward.3} parent=1 // pred_check
      _
    $region3: #{stabc_forward.3} parent=1 // pred_check_branch
      %27 = sbr.rel (0) target = $region5
    $region4: #{stabc_forward.3} parent=1 // pred_region
      _
    $region5: #{stabc_forward.3} parent=1 // pred_fallthru
      _
    // Predicated region
    $region6: #{stabc_forward.3} parent=1 // pred_check
      _
    $region7: #{stabc_forward.3} parent=1 // pred_check_branch
      %29 = sbr.rel (0) target = $region9
    $region8: #{stabc_forward.3} parent=1 // pred_region
      _
    $region9: #{stabc_forward.3} parent=1 // pred_fallthru
      _
    // Predicated region
    $region10: #{stabc_forward.3} parent=1 // pred_check
      _
    $region11: #{stabc_forward.3} parent=1 // pred_check_branch
      %31 = sbr.rel (0) target = $region13
    $region12: #{stabc_forward.3} parent=1 // pred_region
      %33 = vsyncadd [#allocation3], 0
      %s35 = sshll.u32 %s2, 4
      %s36 = int_to_ptr.hbm [resolvable:$true] %s35
      %s37 = sshll.u32 [#allocation2], 4
      %s38 = int_to_ptr.vmem [resolvable:$true] %s37
      %40 = dma.hbm_to_vmem [thread:$0]  %s36, 16, %s38, [#allocation3]
    $region13: #{stabc_forward.3} parent=1 // pred_fallthru
      _
    // Predicated region
    $region14: #{stabc_forward.3} parent=1 // pred_check
      _
    $region15: #{stabc_forward.3} parent=1 // pred_check_branch
      %42 = sbr.rel (0) target = $region17
    $region16: #{stabc_forward.3} parent=1 // pred_region
      %44 = vsyncadd [#allocation6], 0
      %s46 = sshll.u32 %s3, 4
      %s47 = int_to_ptr.hbm [resolvable:$true] %s46
      %s48 = sshll.u32 [#allocation5], 4
      %s49 = int_to_ptr.vmem [resolvable:$true] %s48
      %51 = dma.hbm_to_vmem [thread:$0]  %s47, 16, %s49, [#allocation6]
    $region17: #{stabc_forward.3} parent=1 // pred_fallthru
      _
    // Predicated region
    $region18: #{stabc_forward.3} parent=1 // pred_check
      _
    $region19: #{stabc_forward.3} parent=1 // pred_check_branch
      %53 = sbr.rel (0) target = $region21
    $region20: #{stabc_forward.3} parent=1 // pred_region
      _
    $region21: #{stabc_forward.3} parent=1 // pred_fallthru
      _
    // Predicated region
    $region22: #{stabc_forward.3} parent=1 // pred_check
      _
    $region23: #{stabc_forward.3} parent=1 // pred_check_branch
      %55 = sbr.rel (0) target = $region25
    $region24: #{stabc_forward.3} parent=1 // pred_region
      _
    $region25: #{stabc_forward.3} parent=1 // pred_fallthru
      _
    // Predicated region
    $region26: #{stabc_forward.3} parent=1 // pred_check
      _
    $region27: #{stabc_forward.3} parent=1 // pred_check_branch
      %57 = sbr.rel (0) target = $region29
    $region28: #{stabc_forward.3} parent=1 // pred_region
      _
    $region29: #{stabc_forward.3} parent=1 // pred_fallthru
      _
    // Predicated region
    $region30: #{stabc_forward.3} parent=1 // pred_check
      _
    $region31: #{stabc_forward.3} parent=1 // pred_check_branch
      %59 = sbr.rel (0) target = $region33
    $region32: #{stabc_forward.3} parent=1 // pred_region
      _
    $region33: #{stabc_forward.3} parent=1 // pred_fallthru
      _
    // Predicated region
    $region34: #{stabc_forward.3} parent=1 // pred_check
      _
    $region35: #{stabc_forward.3} parent=1 // pred_check_branch
      %61 = sbr.rel (0) target = $region37
    $region36: #{stabc_forward.3} parent=1 // pred_region
      _
    $region37: #{stabc_forward.3} parent=1 // pred_fallthru
      _
    // Predicated region
    $region38: #{stabc_forward.3} parent=1 // pred_check
      _
    $region39: #{stabc_forward.3} parent=1 // pred_check_branch
      %63 = sbr.rel (0) target = $region41
    $region40: #{stabc_forward.3} parent=1 // pred_region
      _
    $region41: #{stabc_forward.3} parent=1 // pred_fallthru
      _
    // Predicated region
    $region42: #{stabc_forward.3} parent=1 // pred_check
      _
    $region43: #{stabc_forward.3} parent=1 // pred_check_branch
      %65 = sbr.rel (0) target = $region45
    $region44: #{stabc_forward.3} parent=1 // pred_region
      _
    $region45: #{stabc_forward.3} parent=1 // pred_fallthru
      _
    // Predicated region
    $region46: #{stabc_forward.3} parent=1 // pred_check
      _
    $region47: #{stabc_forward.3} parent=1 // pred_check_branch
      %67 = sbr.rel (0) target = $region49
    $region48: #{stabc_forward.3} parent=1 // pred_region
      _
    $region49: #{stabc_forward.3} parent=1 // pred_fallthru
      _
    // Predicated region
    $region50: #{stabc_forward.3} parent=1 // pred_check
      _
    $region51: #{stabc_forward.3} parent=1 // pred_check_branch
      %69 = sbr.rel (0) target = $region53
    $region52: #{stabc_forward.3} parent=1 // pred_region
      _
    $region53: #{stabc_forward.3} parent=1 // pred_fallthru
      _
    // Predicated region
    $region54: #{stabc_forward.3} parent=1 // pred_check
      _
    $region55: #{stabc_forward.3} parent=1 // pred_check_branch
      %71 = sbr.rel (0) target = $region57
    $region56: #{stabc_forward.3} parent=1 // pred_region
      %73 = vsyncadd [#allocation6], 0
      %s74 = sshll.u32 %s13, 4
      %s75 = int_to_ptr.hbm [resolvable:$true] %s74
      %s76 = sshll.u32 [#allocation7], 4
      %s77 = int_to_ptr.vmem [resolvable:$true] %s76
      %82 = dma.hbm_to_vmem [thread:$0]  %s75, 1024, %s77, [#allocation6], 128, 128, 8
    $region57: #{stabc_forward.3} parent=1 // pred_fallthru
      _
    // Predicated region
    $region58: #{stabc_forward.3} parent=1 // pred_check
      _
    $region59: #{stabc_forward.3} parent=1 // pred_check_branch
      %84 = sbr.rel (0) target = $region61
    $region60: #{stabc_forward.3} parent=1 // pred_region
      %86 = vsyncadd [#allocation9], 0
      %s88 = sshll.u32 %s14, 4
      %s89 = int_to_ptr.hbm [resolvable:$true] %s88
      %s90 = sshll.u32 [#allocation8], 4
      %s91 = int_to_ptr.vmem [resolvable:$true] %s90
      %93 = dma.hbm_to_vmem [thread:$0]  %s89, 16, %s91, [#allocation9]
    $region61: #{stabc_forward.3} parent=1 // pred_fallthru
      _
    // Predicated region
    $region62: #{stabc_forward.3} parent=1 // pred_check
      _
    $region63: #{stabc_forward.3} parent=1 // pred_check_branch
      %95 = sbr.rel (0) target = $region65
    $region64: #{stabc_forward.3} parent=1 // pred_region
      _
    $region65: #{stabc_forward.3} parent=1 // pred_fallthru
      _
    // Predicated region
    $region66: #{stabc_forward.3} parent=1 // pred_check
      _
    $region67: #{stabc_forward.3} parent=1 // pred_check_branch
      %97 = sbr.rel (0) target = $region69
    $region68: #{stabc_forward.3} parent=1 // pred_region
      %99 = vsyncadd [#allocation9], 0
      %s101 = sshll.u32 %s16, 4
      %s102 = int_to_ptr.hbm [resolvable:$true] %s101
      %s103 = sshll.u32 [#allocation10], 4
      %s104 = int_to_ptr.vmem [resolvable:$true] %s103
      %106 = dma.hbm_to_vmem [thread:$0]  %s102, 16, %s104, [#allocation9]
    $region69: #{stabc_forward.3} parent=1 // pred_fallthru
      _
    // Predicated region
    $region70: #{stabc_forward.3} parent=1 // pred_check
      _
    $region71: #{stabc_forward.3} parent=1 // pred_check_branch
      %108 = sbr.rel (0) target = $region73
    $region72: #{stabc_forward.3} parent=1 // pred_region
      %110 = dma.done [#allocation3], 16
    $region73: #{stabc_forward.3} parent=1 // pred_fallthru
      _
    // Predicated region
    $region74: #{stabc_forward.3} parent=1 // pred_check
      _
    $region75: #{stabc_forward.3} parent=1 // pred_check_branch
      %112 = sbr.rel (0) target = $region77
    $region76: #{stabc_forward.3} parent=1 // pred_region
      %114 = dma.done [#allocation6], 16
    $region77: #{stabc_forward.3} parent=1 // pred_fallthru
      _
    // Predicated region
    $region78: #{stabc_forward.3} parent=1 // pred_check
      _
    $region79: #{stabc_forward.3} parent=1 // pred_check_branch
      %116 = sbr.rel (0) target = $region81
    $region80: #{stabc_forward.3} parent=1 // pred_region
      %118 = dma.done [#allocation6], 1024
    $region81: #{stabc_forward.3} parent=1 // pred_fallthru
      _
    // Predicated region
    $region82: #{stabc_forward.3} parent=1 // pred_check
      _
    $region83: #{stabc_forward.3} parent=1 // pred_check_branch
      %120 = sbr.rel (0) target = $region85
    $region84: #{stabc_forward.3} parent=1 // pred_region
      %122 = dma.done [#allocation9], 16
    $region85: #{stabc_forward.3} parent=1 // pred_fallthru
      _
    // Predicated region
    $region86: #{stabc_forward.3} parent=1 // pred_check
      _
    $region87: #{stabc_forward.3} parent=1 // pred_check_branch
      %124 = sbr.rel (0) target = $region89
    $region88: #{stabc_forward.3} parent=1 // pred_region
      %126 = dma.done [#allocation9], 16
    $region89: #{stabc_forward.3} parent=1 // pred_fallthru
      _
    %v127 = vld [vmem:[%s0] sm:$0xff]
    %v128 = vld [vmem:[%s0 + $0x8] sm:$0xff]
    %v129 = vld [vmem:[%s0 + $0x10] sm:$0xff]
    %v130 = vld [vmem:[%s0 + $0x18] sm:$0xff]
    %v131 = vld [vmem:[%s0 + $0x20] sm:$0xff]
    %v132 = vld [vmem:[%s0 + $0x28] sm:$0xff]
    %v133 = vld [vmem:[%s0 + $0x30] sm:$0xff]
    %v134 = vld [vmem:[%s0 + $0x38] sm:$0xff]
    %v135 = vld [vmem:[%s0 + $0x40] sm:$0xff]
    %v136 = vld [vmem:[%s0 + $0x48] sm:$0xff]
    %v137 = vld [vmem:[%s0 + $0x50] sm:$0xff]
    %v138 = vld [vmem:[%s0 + $0x58] sm:$0xff]
    %v139 = vld [vmem:[%s0 + $0x60] sm:$0xff]
    %v140 = vld [vmem:[%s0 + $0x68] sm:$0xff]
    %v141 = vld [vmem:[%s0 + $0x70] sm:$0xff]
    %v142 = vld [vmem:[%s0 + $0x78] sm:$0xff]
    %v143 = vld [vmem:[%s0 + $0x80] sm:$0xff]
    %v144 = vld [vmem:[%s0 + $0x88] sm:$0xff]
    %v145 = vld [vmem:[%s0 + $0x90] sm:$0xff]
    %v146 = vld [vmem:[%s0 + $0x98] sm:$0xff]
    %v147 = vld [vmem:[%s0 + $0xa0] sm:$0xff]
    %v148 = vld [vmem:[%s0 + $0xa8] sm:$0xff]
    %v149 = vld [vmem:[%s0 + $0xb0] sm:$0xff]
    %v150 = vld [vmem:[%s0 + $0xb8] sm:$0xff]
    %v151 = vld [vmem:[%s0 + $0xc0] sm:$0xff]
    %v152 = vld [vmem:[%s0 + $0xc8] sm:$0xff]
    %v153 = vld [vmem:[#allocation2] sm:$0x1]
    %155 = vset.pattern.permute.xlu0 0
    %156 = vperm.xlu0 %155, %v127
    %v157 = vpop.permute.xlu0 %156
    %160 = vset.pattern.permute.xlu0 0
    %161 = vperm.xlu0 %160, %v128
    %v162 = vpop.permute.xlu0 %161
    %165 = vset.pattern.permute.xlu0 0
    %166 = vperm.xlu0 %165, %v129
    %v167 = vpop.permute.xlu0 %166
    %170 = vset.pattern.permute.xlu0 0
    %171 = vperm.xlu0 %170, %v130
    %v172 = vpop.permute.xlu0 %171
    %175 = vset.pattern.permute.xlu0 0
    %176 = vperm.xlu0 %175, %v131
    %v177 = vpop.permute.xlu0 %176
    %180 = vset.pattern.permute.xlu0 0
    %181 = vperm.xlu0 %180, %v132
    %v182 = vpop.permute.xlu0 %181
    %185 = vset.pattern.permute.xlu0 0
    %186 = vperm.xlu0 %185, %v133
    %v187 = vpop.permute.xlu0 %186
    %190 = vset.pattern.permute.xlu0 0
    %191 = vperm.xlu0 %190, %v134
    %v192 = vpop.permute.xlu0 %191
    %195 = vset.pattern.permute.xlu0 0
    %196 = vperm.xlu0 %195, %v135
    %v197 = vpop.permute.xlu0 %196
    %200 = vset.pattern.permute.xlu0 0
    %201 = vperm.xlu0 %200, %v136
    %v202 = vpop.permute.xlu0 %201
    %205 = vset.pattern.permute.xlu0 0
    %206 = vperm.xlu0 %205, %v137
    %v207 = vpop.permute.xlu0 %206
    %210 = vset.pattern.permute.xlu0 0
    %211 = vperm.xlu0 %210, %v138
    %v212 = vpop.permute.xlu0 %211
    %215 = vset.pattern.permute.xlu0 0
    %216 = vperm.xlu0 %215, %v139
    %v217 = vpop.permute.xlu0 %216
    %220 = vset.pattern.permute.xlu0 0
    %221 = vperm.xlu0 %220, %v140
    %v222 = vpop.permute.xlu0 %221
    %225 = vset.pattern.permute.xlu0 0
    %226 = vperm.xlu0 %225, %v141
    %v227 = vpop.permute.xlu0 %226
    %230 = vset.pattern.permute.xlu0 0
    %231 = vperm.xlu0 %230, %v142
    %v232 = vpop.permute.xlu0 %231
    %235 = vset.pattern.permute.xlu0 0
    %236 = vperm.xlu0 %235, %v143
    %v237 = vpop.permute.xlu0 %236
    %240 = vset.pattern.permute.xlu0 0
    %241 = vperm.xlu0 %240, %v144
    %v242 = vpop.permute.xlu0 %241
    %245 = vset.pattern.permute.xlu0 0
    %246 = vperm.xlu0 %245, %v145
    %v247 = vpop.permute.xlu0 %246
    %250 = vset.pattern.permute.xlu0 0
    %251 = vperm.xlu0 %250, %v146
    %v252 = vpop.permute.xlu0 %251
    %255 = vset.pattern.permute.xlu0 0
    %256 = vperm.xlu0 %255, %v147
    %v257 = vpop.permute.xlu0 %256
    %260 = vset.pattern.permute.xlu0 0
    %261 = vperm.xlu0 %260, %v148
    %v262 = vpop.permute.xlu0 %261
    %265 = vset.pattern.permute.xlu0 0
    %266 = vperm.xlu0 %265, %v149
    %v267 = vpop.permute.xlu0 %266
    %270 = vset.pattern.permute.xlu0 0
    %271 = vperm.xlu0 %270, %v150
    %v272 = vpop.permute.xlu0 %271
    %275 = vset.pattern.permute.xlu0 0
    %276 = vperm.xlu0 %275, %v151
    %v277 = vpop.permute.xlu0 %276
    %280 = vset.pattern.permute.xlu0 0
    %281 = vperm.xlu0 %280, %v152
    %v282 = vpop.permute.xlu0 %281
    %v285 = vperm.slane %v153, 0
    %v287 = vmul.f32 %v157, %v285
    %v288 = vmul.f32 %v162, %v285
    %v289 = vmul.f32 %v167, %v285
    %v290 = vmul.f32 %v172, %v285
    %v291 = vmul.f32 %v177, %v285
    %v292 = vmul.f32 %v182, %v285
    %v293 = vmul.f32 %v187, %v285
    %v294 = vmul.f32 %v192, %v285
    %v295 = vmul.f32 %v197, %v285
    %v296 = vmul.f32 %v202, %v285
    %v297 = vmul.f32 %v207, %v285
    %v298 = vmul.f32 %v212, %v285
    %v299 = vmul.f32 %v217, %v285
    %v300 = vmul.f32 %v222, %v285
    %v301 = vmul.f32 %v227, %v285
    %v302 = vmul.f32 %v232, %v285
    %v303 = vmul.f32 %v237, %v285
    %v304 = vmul.f32 %v242, %v285
    %v305 = vmul.f32 %v247, %v285
    %v306 = vmul.f32 %v252, %v285
    %v307 = vmul.f32 %v257, %v285
    %v308 = vmul.f32 %v262, %v285
    %v309 = vmul.f32 %v267, %v285
    %v310 = vmul.f32 %v272, %v285
    %v311 = vmul.f32 %v277, %v285
    %v312 = vmul.f32 %v282, %v285
    %v313 = vld [vmem:[#allocation5] sm:$0x1]
    %v315 = vperm.slane %v313, 0
    %v317 = vadd.f32 %v287, %v315
    %v318 = vadd.f32 %v288, %v315
    %v319 = vadd.f32 %v289, %v315
    %v320 = vadd.f32 %v290, %v315
    %v321 = vadd.f32 %v291, %v315
    %v322 = vadd.f32 %v292, %v315
    %v323 = vadd.f32 %v293, %v315
    %v324 = vadd.f32 %v294, %v315
    %v325 = vadd.f32 %v295, %v315
    %v326 = vadd.f32 %v296, %v315
    %v327 = vadd.f32 %v297, %v315
    %v328 = vadd.f32 %v298, %v315
    %v329 = vadd.f32 %v299, %v315
    %v330 = vadd.f32 %v300, %v315
    %v331 = vadd.f32 %v301, %v315
    %v332 = vadd.f32 %v302, %v315
    %v333 = vadd.f32 %v303, %v315
    %v334 = vadd.f32 %v304, %v315
    %v335 = vadd.f32 %v305, %v315
    %v336 = vadd.f32 %v306, %v315
    %v337 = vadd.f32 %v307, %v315
    %v338 = vadd.f32 %v308, %v315
    %v339 = vadd.f32 %v309, %v315
    %v340 = vadd.f32 %v310, %v315
    %v341 = vadd.f32 %v311, %v315
    %v342 = vadd.f32 %v312, %v315
    %v343 = vld [vmem:[%s4] sm:$0xff]
    %v344 = vld [vmem:[%s4 + $0x8] sm:$0xff]
    %v345 = vld [vmem:[%s4 + $0x10] sm:$0xff]
    %v346 = vld [vmem:[%s4 + $0x18] sm:$0xff]
    %v347 = vld [vmem:[%s5] sm:$0xff]
    %v348 = vld [vmem:[%s5 + $0x8] sm:$0xff]
    %v349 = vld [vmem:[%s5 + $0x10] sm:$0xff]
    %v350 = vld [vmem:[%s5 + $0x18] sm:$0xff]
    %vm351 = vcmask 261120
    %v353 = vsel %vm351, %v319, 0
    %v356 = vsel %vm351, %v320, 0
    %v359 = vsel %vm351, %v321, 0
    %v362 = vsel %vm351, %v322, 0
    %v365 = vsel %vm351, %v323, 0
    %v368 = vsel %vm351, %v324, 0
    %v371 = vsel %vm351, %v325, 0
    %v374 = vsel %vm351, %v326, 0
    %v377 = vsel %vm351, %v327, 0
    %v380 = vsel %vm351, %v328, 0
    %v383 = vsel %vm351, %v329, 0
    %v386 = vsel %vm351, %v330, 0
    %v389 = vsel %vm351, %v331, 0
    %v392 = vsel %vm351, %v332, 0
    %v395 = vsel %vm351, %v333, 0
    %v398 = vsel %vm351, %v334, 0
    %v401 = vsel %vm351, %v335, 0
    %v404 = vsel %vm351, %v336, 0
    %v407 = vsel %vm351, %v337, 0
    %v410 = vsel %vm351, %v338, 0
    %v413 = vsel %vm351, %v339, 0
    %v416 = vsel %vm351, %v340, 0
    %v419 = vsel %vm351, %v341, 0
    %v422 = vsel %vm351, %v342, 0
    %424 = vmatpush.msra.mxu0 0.0
    %425 = vmatpush.msra.mxu0 0.0
    %426 = vmatpush.msra.mxu0 0.0
    %427 = vmatpush.msra.mxu0 0.0
    %428 = vmatpush.msra.mxu0 0.0
    %429 = vmatpush.msra.mxu0 0.0
    %430 = vmatpush.msra.mxu0 0.0
    %431 = vmatpush.msra.mxu0 0.0
    %432 = vmatpush.msra.mxu0 0.0
    %433 = vmatpush.msra.mxu0 0.0
    %434 = vmatpush.msra.mxu0 0.0
    %435 = vmatpush.msra.mxu0 0.0
    %436 = vmatpush.msra.mxu0 %v350
    %437 = vmatpush.msra.mxu0 %v349
    %438 = vmatpush.msra.mxu0 %v348
    %439 = vmatpush.msra.mxu0 %v347
    %440 = vmatmul.f32.gmra.mxu0 %v353
    %v441 = vpop.f32.mrf.mxu0
    %v442 = vadd.f32 0.0, %v441
    %443 = vmatmul.f32.gmra.mxu0 %v356
    %v444 = vpop.f32.mrf.mxu0
    %v445 = vadd.f32 0.0, %v444
    %446 = vmatmul.f32.gmra.mxu0 %v359
    %v447 = vpop.f32.mrf.mxu0
    %v448 = vadd.f32 0.0, %v447
    %449 = vmatmul.f32.gmra.mxu0 %v362
    %v450 = vpop.f32.mrf.mxu0
    %v451 = vadd.f32 0.0, %v450
    %452 = vmatmul.f32.gmra.mxu0 %v365
    %v453 = vpop.f32.mrf.mxu0
    %v454 = vadd.f32 0.0, %v453
    %455 = vmatmul.f32.gmra.mxu0 %v368
    %v456 = vpop.f32.mrf.mxu0
    %v457 = vadd.f32 0.0, %v456
    %458 = vmatmul.f32.gmra.mxu0 %v371
    %v459 = vpop.f32.mrf.mxu0
    %v460 = vadd.f32 0.0, %v459
    %461 = vmatmul.f32.gmra.mxu0 %v374
    %v462 = vpop.f32.mrf.mxu0
    %v463 = vadd.f32 0.0, %v462
    %464 = vmatmul.f32.gmra.mxu0 %v377
    %v465 = vpop.f32.mrf.mxu0
    %v466 = vadd.f32 0.0, %v465
    %467 = vmatmul.f32.gmra.mxu0 %v380
    %v468 = vpop.f32.mrf.mxu0
    %v469 = vadd.f32 0.0, %v468
    %470 = vmatmul.f32.gmra.mxu0 %v383
    %v471 = vpop.f32.mrf.mxu0
    %v472 = vadd.f32 0.0, %v471
    %473 = vmatmul.f32.gmra.mxu0 %v386
    %v474 = vpop.f32.mrf.mxu0
    %v475 = vadd.f32 0.0, %v474
    %476 = vmatmul.f32.gmra.mxu0 %v389
    %v477 = vpop.f32.mrf.mxu0
    %v478 = vadd.f32 0.0, %v477
    %479 = vmatmul.f32.gmra.mxu0 %v392
    %v480 = vpop.f32.mrf.mxu0
    %v481 = vadd.f32 0.0, %v480
    %482 = vmatmul.f32.gmra.mxu0 %v395
    %v483 = vpop.f32.mrf.mxu0
    %v484 = vadd.f32 0.0, %v483
    %485 = vmatmul.f32.gmra.mxu0 %v398
    %v486 = vpop.f32.mrf.mxu0
    %v487 = vadd.f32 0.0, %v486
    %488 = vmatmul.f32.gmra.mxu0 %v401
    %v489 = vpop.f32.mrf.mxu0
    %v490 = vadd.f32 0.0, %v489
    %491 = vmatmul.f32.gmra.mxu0 %v404
    %v492 = vpop.f32.mrf.mxu0
    %v493 = vadd.f32 0.0, %v492
    %494 = vmatmul.f32.gmra.mxu0 %v407
    %v495 = vpop.f32.mrf.mxu0
    %v496 = vadd.f32 0.0, %v495
    %497 = vmatmul.f32.gmra.mxu0 %v410
    %v498 = vpop.f32.mrf.mxu0
    %v499 = vadd.f32 0.0, %v498
    %500 = vmatmul.f32.gmra.mxu0 %v413
    %v501 = vpop.f32.mrf.mxu0
    %v502 = vadd.f32 0.0, %v501
    %503 = vmatmul.f32.gmra.mxu0 %v416
    %v504 = vpop.f32.mrf.mxu0
    %v505 = vadd.f32 0.0, %v504
    %506 = vmatmul.f32.gmra.mxu0 %v419
    %v507 = vpop.f32.mrf.mxu0
    %v508 = vadd.f32 0.0, %v507
    %509 = vmatmul.f32.gmra.mxu0 %v422
    %v510 = vpop.f32.mrf.mxu0
    %v511 = vadd.f32 0.0, %v510
    %512 = vdwg.mxu0
    %v514 = vsel %vm351, %v317, 0
    %v517 = vsel %vm351, %v318, 0
    %519 = vmatpush.msra.mxu0 0.0
    %520 = vmatpush.msra.mxu0 0.0
    %521 = vmatpush.msra.mxu0 0.0
    %522 = vmatpush.msra.mxu0 0.0
    %523 = vmatpush.msra.mxu0 0.0
    %524 = vmatpush.msra.mxu0 0.0
    %525 = vmatpush.msra.mxu0 0.0
    %526 = vmatpush.msra.mxu0 0.0
    %527 = vmatpush.msra.mxu0 0.0
    %528 = vmatpush.msra.mxu0 0.0
    %529 = vmatpush.msra.mxu0 0.0
    %530 = vmatpush.msra.mxu0 0.0
    %531 = vmatpush.msra.mxu0 %v346
    %532 = vmatpush.msra.mxu0 %v345
    %533 = vmatpush.msra.mxu0 %v344
    %534 = vmatpush.msra.mxu0 %v343
    %535 = vmatmul.f32.gmra.mxu0 %v514
    %v536 = vpop.f32.mrf.mxu0
    %v537 = vadd.f32 %v442, %v536
    %538 = vmatmul.f32.gmra.mxu0 %v517
    %v539 = vpop.f32.mrf.mxu0
    %v540 = vadd.f32 %v445, %v539
    %541 = vmatmul.f32.gmra.mxu0 %v353
    %v542 = vpop.f32.mrf.mxu0
    %v543 = vadd.f32 %v448, %v542
    %544 = vmatmul.f32.gmra.mxu0 %v356
    %v545 = vpop.f32.mrf.mxu0
    %v546 = vadd.f32 %v451, %v545
    %547 = vmatmul.f32.gmra.mxu0 %v359
    %v548 = vpop.f32.mrf.mxu0
    %v549 = vadd.f32 %v454, %v548
    %550 = vmatmul.f32.gmra.mxu0 %v362
    %v551 = vpop.f32.mrf.mxu0
    %v552 = vadd.f32 %v457, %v551
    %553 = vmatmul.f32.gmra.mxu0 %v365
    %v554 = vpop.f32.mrf.mxu0
    %v555 = vadd.f32 %v460, %v554
    %556 = vmatmul.f32.gmra.mxu0 %v368
    %v557 = vpop.f32.mrf.mxu0
    %v558 = vadd.f32 %v463, %v557
    %559 = vmatmul.f32.gmra.mxu0 %v371
    %v560 = vpop.f32.mrf.mxu0
    %v561 = vadd.f32 %v466, %v560
    %562 = vmatmul.f32.gmra.mxu0 %v374
    %v563 = vpop.f32.mrf.mxu0
    %v564 = vadd.f32 %v469, %v563
    %565 = vmatmul.f32.gmra.mxu0 %v377
    %v566 = vpop.f32.mrf.mxu0
    %v567 = vadd.f32 %v472, %v566
    %568 = vmatmul.f32.gmra.mxu0 %v380
    %v569 = vpop.f32.mrf.mxu0
    %v570 = vadd.f32 %v475, %v569
    %571 = vmatmul.f32.gmra.mxu0 %v383
    %v572 = vpop.f32.mrf.mxu0
    %v573 = vadd.f32 %v478, %v572
    %574 = vmatmul.f32.gmra.mxu0 %v386
    %v575 = vpop.f32.mrf.mxu0
    %v576 = vadd.f32 %v481, %v575
    %577 = vmatmul.f32.gmra.mxu0 %v389
    %v578 = vpop.f32.mrf.mxu0
    %v579 = vadd.f32 %v484, %v578
    %580 = vmatmul.f32.gmra.mxu0 %v392
    %v581 = vpop.f32.mrf.mxu0
    %v582 = vadd.f32 %v487, %v581
    %583 = vmatmul.f32.gmra.mxu0 %v395
    %v584 = vpop.f32.mrf.mxu0
    %v585 = vadd.f32 %v490, %v584
    %586 = vmatmul.f32.gmra.mxu0 %v398
    %v587 = vpop.f32.mrf.mxu0
    %v588 = vadd.f32 %v493, %v587
    %589 = vmatmul.f32.gmra.mxu0 %v401
    %v590 = vpop.f32.mrf.mxu0
    %v591 = vadd.f32 %v496, %v590
    %592 = vmatmul.f32.gmra.mxu0 %v404
    %v593 = vpop.f32.mrf.mxu0
    %v594 = vadd.f32 %v499, %v593
    %595 = vmatmul.f32.gmra.mxu0 %v407
    %v596 = vpop.f32.mrf.mxu0
    %v597 = vadd.f32 %v502, %v596
    %598 = vmatmul.f32.gmra.mxu0 %v410
    %v599 = vpop.f32.mrf.mxu0
    %v600 = vadd.f32 %v505, %v599
    %601 = vmatmul.f32.gmra.mxu0 %v413
    %v602 = vpop.f32.mrf.mxu0
    %v603 = vadd.f32 %v508, %v602
    %604 = vmatmul.f32.gmra.mxu0 %v416
    %v605 = vpop.f32.mrf.mxu0
    %v606 = vadd.f32 %v511, %v605
    %607 = vdwg.mxu0
    %v608 = vld [vmem:[%s6] sm:$0x1]
    %v610 = vperm.slane %v608, 0
    %v612 = vadd.f32 %v537, %v610
    %v613 = vadd.f32 %v540, %v610
    %v614 = vadd.f32 %v543, %v610
    %v615 = vadd.f32 %v546, %v610
    %v616 = vadd.f32 %v549, %v610
    %v617 = vadd.f32 %v552, %v610
    %v618 = vadd.f32 %v555, %v610
    %v619 = vadd.f32 %v558, %v610
    %v620 = vadd.f32 %v561, %v610
    %v621 = vadd.f32 %v564, %v610
    %v622 = vadd.f32 %v567, %v610
    %v623 = vadd.f32 %v570, %v610
    %v624 = vadd.f32 %v573, %v610
    %v625 = vadd.f32 %v576, %v610
    %v626 = vadd.f32 %v579, %v610
    %v627 = vadd.f32 %v582, %v610
    %v628 = vadd.f32 %v585, %v610
    %v629 = vadd.f32 %v588, %v610
    %v630 = vadd.f32 %v591, %v610
    %v631 = vadd.f32 %v594, %v610
    %v632 = vadd.f32 %v597, %v610
    %v633 = vadd.f32 %v600, %v610
    %v634 = vadd.f32 %v603, %v610
    %v635 = vadd.f32 %v606, %v610
    %v636 = vtanh.pop %v612
    %v637 = vtanh.pop %v613
    %v638 = vtanh.pop %v614
    %v639 = vtanh.pop %v615
    %v640 = vtanh.pop %v616
    %v641 = vtanh.pop %v617
    %v642 = vtanh.pop %v618
    %v643 = vtanh.pop %v619
    %v644 = vtanh.pop %v620
    %v645 = vtanh.pop %v621
    %v646 = vtanh.pop %v622
    %v647 = vtanh.pop %v623
    %v648 = vtanh.pop %v624
    %v649 = vtanh.pop %v625
    %v650 = vtanh.pop %v626
    %v651 = vtanh.pop %v627
    %v652 = vtanh.pop %v628
    %v653 = vtanh.pop %v629
    %v654 = vtanh.pop %v630
    %v655 = vtanh.pop %v631
    %v656 = vtanh.pop %v632
    %v657 = vtanh.pop %v633
    %v658 = vtanh.pop %v634
    %v659 = vtanh.pop %v635
    %v660 = vxor.u32 %v612, 2147483648
    %v661 = vxor.u32 %v613, 2147483648
    %v662 = vxor.u32 %v614, 2147483648
    %v663 = vxor.u32 %v615, 2147483648
    %v664 = vxor.u32 %v616, 2147483648
    %v665 = vxor.u32 %v617, 2147483648
    %v666 = vxor.u32 %v618, 2147483648
    %v667 = vxor.u32 %v619, 2147483648
    %v668 = vxor.u32 %v620, 2147483648
    %v669 = vxor.u32 %v621, 2147483648
    %v670 = vxor.u32 %v622, 2147483648
    %v671 = vxor.u32 %v623, 2147483648
    %v672 = vxor.u32 %v624, 2147483648
    %v673 = vxor.u32 %v625, 2147483648
    %v674 = vxor.u32 %v626, 2147483648
    %v675 = vxor.u32 %v627, 2147483648
    %v676 = vxor.u32 %v628, 2147483648
    %v677 = vxor.u32 %v629, 2147483648
    %v678 = vxor.u32 %v630, 2147483648
    %v679 = vxor.u32 %v631, 2147483648
    %v680 = vxor.u32 %v632, 2147483648
    %v681 = vxor.u32 %v633, 2147483648
    %v682 = vxor.u32 %v634, 2147483648
    %v683 = vxor.u32 %v635, 2147483648
    %v684 = vmul.f32 %v660, 1.442695
    %v685 = vpow.pop %v684
    %v686 = vmul.f32 %v661, 1.442695
    %v687 = vpow.pop %v686
    %v688 = vmul.f32 %v662, 1.442695
    %v689 = vpow.pop %v688
    %v690 = vmul.f32 %v663, 1.442695
    %v691 = vpow.pop %v690
    %v692 = vmul.f32 %v664, 1.442695
    %v693 = vpow.pop %v692
    %v694 = vmul.f32 %v665, 1.442695
    %v695 = vpow.pop %v694
    %v696 = vmul.f32 %v666, 1.442695
    %v697 = vpow.pop %v696
    %v698 = vmul.f32 %v667, 1.442695
    %v699 = vpow.pop %v698
    %v700 = vmul.f32 %v668, 1.442695
    %v701 = vpow.pop %v700
    %v702 = vmul.f32 %v669, 1.442695
    %v703 = vpow.pop %v702
    %v704 = vmul.f32 %v670, 1.442695
    %v705 = vpow.pop %v704
    %v706 = vmul.f32 %v671, 1.442695
    %v707 = vpow.pop %v706
    %v708 = vmul.f32 %v672, 1.442695
    %v709 = vpow.pop %v708
    %v710 = vmul.f32 %v673, 1.442695
    %v711 = vpow.pop %v710
    %v712 = vmul.f32 %v674, 1.442695
    %v713 = vpow.pop %v712
    %v714 = vmul.f32 %v675, 1.442695
    %v715 = vpow.pop %v714
    %v716 = vmul.f32 %v676, 1.442695
    %v717 = vpow.pop %v716
    %v718 = vmul.f32 %v677, 1.442695
    %v719 = vpow.pop %v718
    %v720 = vmul.f32 %v678, 1.442695
    %v721 = vpow.pop %v720
    %v722 = vmul.f32 %v679, 1.442695
    %v723 = vpow.pop %v722
    %v724 = vmul.f32 %v680, 1.442695
    %v725 = vpow.pop %v724
    %v726 = vmul.f32 %v681, 1.442695
    %v727 = vpow.pop %v726
    %v728 = vmul.f32 %v682, 1.442695
    %v729 = vpow.pop %v728
    %v730 = vmul.f32 %v683, 1.442695
    %v731 = vpow.pop %v730
    %v732 = vadd.f32 %v685, 1.0
    %v733 = vadd.f32 %v687, 1.0
    %v734 = vadd.f32 %v689, 1.0
    %v735 = vadd.f32 %v691, 1.0
    %v736 = vadd.f32 %v693, 1.0
    %v737 = vadd.f32 %v695, 1.0
    %v738 = vadd.f32 %v697, 1.0
    %v739 = vadd.f32 %v699, 1.0
    %v740 = vadd.f32 %v701, 1.0
    %v741 = vadd.f32 %v703, 1.0
    %v742 = vadd.f32 %v705, 1.0
    %v743 = vadd.f32 %v707, 1.0
    %v744 = vadd.f32 %v709, 1.0
    %v745 = vadd.f32 %v711, 1.0
    %v746 = vadd.f32 %v713, 1.0
    %v747 = vadd.f32 %v715, 1.0
    %v748 = vadd.f32 %v717, 1.0
    %v749 = vadd.f32 %v719, 1.0
    %v750 = vadd.f32 %v721, 1.0
    %v751 = vadd.f32 %v723, 1.0
    %v752 = vadd.f32 %v725, 1.0
    %v753 = vadd.f32 %v727, 1.0
    %v754 = vadd.f32 %v729, 1.0
    %v755 = vadd.f32 %v731, 1.0
    %v756 = vrcp.pop %v732
    %v757 = vmul.f32 %v732, %v756
    %v758 = vsub.f32 1.0, %v757
    %v759 = vmul.f32 %v756, %v758
    %v760 = vadd.f32 %v756, %v759
    %vm761 = vweird.f32 %v732
    %vm762 = vweird.f32 %v756
    %vm763 = vmor %vm761, %vm762
    %v764 = vsel %vm763, %v756, %v760
    %v765 = vand.u32 2147483647, %v732
    %vm766 = vcmp.eq.f32.partialorder %v765, 8.507059e+37
    %v767 = vand.u32 %v732, 2147483648
    %v768 = vor.u32 1.1754944e-38, %v767
    %v769 = vsel %vm766, %v768, %v764
    %v770 = vmul.f32 1.0, %v769
    %v771 = vrcp.pop %v733
    %v772 = vmul.f32 %v733, %v771
    %v773 = vsub.f32 1.0, %v772
    %v774 = vmul.f32 %v771, %v773
    %v775 = vadd.f32 %v771, %v774
    %vm776 = vweird.f32 %v733
    %vm777 = vweird.f32 %v771
    %vm778 = vmor %vm776, %vm777
    %v779 = vsel %vm778, %v771, %v775
    %v780 = vand.u32 2147483647, %v733
    %vm781 = vcmp.eq.f32.partialorder %v780, 8.507059e+37
    %v782 = vand.u32 %v733, 2147483648
    %v783 = vor.u32 1.1754944e-38, %v782
    %v784 = vsel %vm781, %v783, %v779
    %v785 = vmul.f32 1.0, %v784
    %v786 = vrcp.pop %v734
    %v787 = vmul.f32 %v734, %v786
    %v788 = vsub.f32 1.0, %v787
    %v789 = vmul.f32 %v786, %v788
    %v790 = vadd.f32 %v786, %v789
    %vm791 = vweird.f32 %v734
    %vm792 = vweird.f32 %v786
    %vm793 = vmor %vm791, %vm792
    %v794 = vsel %vm793, %v786, %v790
    %v795 = vand.u32 2147483647, %v734
    %vm796 = vcmp.eq.f32.partialorder %v795, 8.507059e+37
    %v797 = vand.u32 %v734, 2147483648
    %v798 = vor.u32 1.1754944e-38, %v797
    %v799 = vsel %vm796, %v798, %v794
    %v800 = vmul.f32 1.0, %v799
    %v801 = vrcp.pop %v735
    %v802 = vmul.f32 %v735, %v801
    %v803 = vsub.f32 1.0, %v802
    %v804 = vmul.f32 %v801, %v803
    %v805 = vadd.f32 %v801, %v804
    %vm806 = vweird.f32 %v735
    %vm807 = vweird.f32 %v801
    %vm808 = vmor %vm806, %vm807
    %v809 = vsel %vm808, %v801, %v805
    %v810 = vand.u32 2147483647, %v735
    %vm811 = vcmp.eq.f32.partialorder %v810, 8.507059e+37
    %v812 = vand.u32 %v735, 2147483648
    %v813 = vor.u32 1.1754944e-38, %v812
    %v814 = vsel %vm811, %v813, %v809
    %v815 = vmul.f32 1.0, %v814
    %v816 = vrcp.pop %v736
    %v817 = vmul.f32 %v736, %v816
    %v818 = vsub.f32 1.0, %v817
    %v819 = vmul.f32 %v816, %v818
    %v820 = vadd.f32 %v816, %v819
    %vm821 = vweird.f32 %v736
    %vm822 = vweird.f32 %v816
    %vm823 = vmor %vm821, %vm822
    %v824 = vsel %vm823, %v816, %v820
    %v825 = vand.u32 2147483647, %v736
    %vm826 = vcmp.eq.f32.partialorder %v825, 8.507059e+37
    %v827 = vand.u32 %v736, 2147483648
    %v828 = vor.u32 1.1754944e-38, %v827
    %v829 = vsel %vm826, %v828, %v824
    %v830 = vmul.f32 1.0, %v829
    %v831 = vrcp.pop %v737
    %v832 = vmul.f32 %v737, %v831
    %v833 = vsub.f32 1.0, %v832
    %v834 = vmul.f32 %v831, %v833
    %v835 = vadd.f32 %v831, %v834
    %vm836 = vweird.f32 %v737
    %vm837 = vweird.f32 %v831
    %vm838 = vmor %vm836, %vm837
    %v839 = vsel %vm838, %v831, %v835
    %v840 = vand.u32 2147483647, %v737
    %vm841 = vcmp.eq.f32.partialorder %v840, 8.507059e+37
    %v842 = vand.u32 %v737, 2147483648
    %v843 = vor.u32 1.1754944e-38, %v842
    %v844 = vsel %vm841, %v843, %v839
    %v845 = vmul.f32 1.0, %v844
    %v846 = vrcp.pop %v738
    %v847 = vmul.f32 %v738, %v846
    %v848 = vsub.f32 1.0, %v847
    %v849 = vmul.f32 %v846, %v848
    %v850 = vadd.f32 %v846, %v849
    %vm851 = vweird.f32 %v738
    %vm852 = vweird.f32 %v846
    %vm853 = vmor %vm851, %vm852
    %v854 = vsel %vm853, %v846, %v850
    %v855 = vand.u32 2147483647, %v738
    %vm856 = vcmp.eq.f32.partialorder %v855, 8.507059e+37
    %v857 = vand.u32 %v738, 2147483648
    %v858 = vor.u32 1.1754944e-38, %v857
    %v859 = vsel %vm856, %v858, %v854
    %v860 = vmul.f32 1.0, %v859
    %v861 = vrcp.pop %v739
    %v862 = vmul.f32 %v739, %v861
    %v863 = vsub.f32 1.0, %v862
    %v864 = vmul.f32 %v861, %v863
    %v865 = vadd.f32 %v861, %v864
    %vm866 = vweird.f32 %v739
    %vm867 = vweird.f32 %v861
    %vm868 = vmor %vm866, %vm867
    %v869 = vsel %vm868, %v861, %v865
    %v870 = vand.u32 2147483647, %v739
    %vm871 = vcmp.eq.f32.partialorder %v870, 8.507059e+37
    %v872 = vand.u32 %v739, 2147483648
    %v873 = vor.u32 1.1754944e-38, %v872
    %v874 = vsel %vm871, %v873, %v869
    %v875 = vmul.f32 1.0, %v874
    %v876 = vrcp.pop %v740
    %v877 = vmul.f32 %v740, %v876
    %v878 = vsub.f32 1.0, %v877
    %v879 = vmul.f32 %v876, %v878
    %v880 = vadd.f32 %v876, %v879
    %vm881 = vweird.f32 %v740
    %vm882 = vweird.f32 %v876
    %vm883 = vmor %vm881, %vm882
    %v884 = vsel %vm883, %v876, %v880
    %v885 = vand.u32 2147483647, %v740
    %vm886 = vcmp.eq.f32.partialorder %v885, 8.507059e+37
    %v887 = vand.u32 %v740, 2147483648
    %v888 = vor.u32 1.1754944e-38, %v887
    %v889 = vsel %vm886, %v888, %v884
    %v890 = vmul.f32 1.0, %v889
    %v891 = vrcp.pop %v741
    %v892 = vmul.f32 %v741, %v891
    %v893 = vsub.f32 1.0, %v892
    %v894 = vmul.f32 %v891, %v893
    %v895 = vadd.f32 %v891, %v894
    %vm896 = vweird.f32 %v741
    %vm897 = vweird.f32 %v891
    %vm898 = vmor %vm896, %vm897
    %v899 = vsel %vm898, %v891, %v895
    %v900 = vand.u32 2147483647, %v741
    %vm901 = vcmp.eq.f32.partialorder %v900, 8.507059e+37
    %v902 = vand.u32 %v741, 2147483648
    %v903 = vor.u32 1.1754944e-38, %v902
    %v904 = vsel %vm901, %v903, %v899
    %v905 = vmul.f32 1.0, %v904
    %v906 = vrcp.pop %v742
    %v907 = vmul.f32 %v742, %v906
    %v908 = vsub.f32 1.0, %v907
    %v909 = vmul.f32 %v906, %v908
    %v910 = vadd.f32 %v906, %v909
    %vm911 = vweird.f32 %v742
    %vm912 = vweird.f32 %v906
    %vm913 = vmor %vm911, %vm912
    %v914 = vsel %vm913, %v906, %v910
    %v915 = vand.u32 2147483647, %v742
    %vm916 = vcmp.eq.f32.partialorder %v915, 8.507059e+37
    %v917 = vand.u32 %v742, 2147483648
    %v918 = vor.u32 1.1754944e-38, %v917
    %v919 = vsel %vm916, %v918, %v914
    %v920 = vmul.f32 1.0, %v919
    %v921 = vrcp.pop %v743
    %v922 = vmul.f32 %v743, %v921
    %v923 = vsub.f32 1.0, %v922
    %v924 = vmul.f32 %v921, %v923
    %v925 = vadd.f32 %v921, %v924
    %vm926 = vweird.f32 %v743
    %vm927 = vweird.f32 %v921
    %vm928 = vmor %vm926, %vm927
    %v929 = vsel %vm928, %v921, %v925
    %v930 = vand.u32 2147483647, %v743
    %vm931 = vcmp.eq.f32.partialorder %v930, 8.507059e+37
    %v932 = vand.u32 %v743, 2147483648
    %v933 = vor.u32 1.1754944e-38, %v932
    %v934 = vsel %vm931, %v933, %v929
    %v935 = vmul.f32 1.0, %v934
    %v936 = vrcp.pop %v744
    %v937 = vmul.f32 %v744, %v936
    %v938 = vsub.f32 1.0, %v937
    %v939 = vmul.f32 %v936, %v938
    %v940 = vadd.f32 %v936, %v939
    %vm941 = vweird.f32 %v744
    %vm942 = vweird.f32 %v936
    %vm943 = vmor %vm941, %vm942
    %v944 = vsel %vm943, %v936, %v940
    %v945 = vand.u32 2147483647, %v744
    %vm946 = vcmp.eq.f32.partialorder %v945, 8.507059e+37
    %v947 = vand.u32 %v744, 2147483648
    %v948 = vor.u32 1.1754944e-38, %v947
    %v949 = vsel %vm946, %v948, %v944
    %v950 = vmul.f32 1.0, %v949
    %v951 = vrcp.pop %v745
    %v952 = vmul.f32 %v745, %v951
    %v953 = vsub.f32 1.0, %v952
    %v954 = vmul.f32 %v951, %v953
    %v955 = vadd.f32 %v951, %v954
    %vm956 = vweird.f32 %v745
    %vm957 = vweird.f32 %v951
    %vm958 = vmor %vm956, %vm957
    %v959 = vsel %vm958, %v951, %v955
    %v960 = vand.u32 2147483647, %v745
    %vm961 = vcmp.eq.f32.partialorder %v960, 8.507059e+37
    %v962 = vand.u32 %v745, 2147483648
    %v963 = vor.u32 1.1754944e-38, %v962
    %v964 = vsel %vm961, %v963, %v959
    %v965 = vmul.f32 1.0, %v964
    %v966 = vrcp.pop %v746
    %v967 = vmul.f32 %v746, %v966
    %v968 = vsub.f32 1.0, %v967
    %v969 = vmul.f32 %v966, %v968
    %v970 = vadd.f32 %v966, %v969
    %vm971 = vweird.f32 %v746
    %vm972 = vweird.f32 %v966
    %vm973 = vmor %vm971, %vm972
    %v974 = vsel %vm973, %v966, %v970
    %v975 = vand.u32 2147483647, %v746
    %vm976 = vcmp.eq.f32.partialorder %v975, 8.507059e+37
    %v977 = vand.u32 %v746, 2147483648
    %v978 = vor.u32 1.1754944e-38, %v977
    %v979 = vsel %vm976, %v978, %v974
    %v980 = vmul.f32 1.0, %v979
    %v981 = vrcp.pop %v747
    %v982 = vmul.f32 %v747, %v981
    %v983 = vsub.f32 1.0, %v982
    %v984 = vmul.f32 %v981, %v983
    %v985 = vadd.f32 %v981, %v984
    %vm986 = vweird.f32 %v747
    %vm987 = vweird.f32 %v981
    %vm988 = vmor %vm986, %vm987
    %v989 = vsel %vm988, %v981, %v985
    %v990 = vand.u32 2147483647, %v747
    %vm991 = vcmp.eq.f32.partialorder %v990, 8.507059e+37
    %v992 = vand.u32 %v747, 2147483648
    %v993 = vor.u32 1.1754944e-38, %v992
    %v994 = vsel %vm991, %v993, %v989
    %v995 = vmul.f32 1.0, %v994
    %v996 = vrcp.pop %v748
    %v997 = vmul.f32 %v748, %v996
    %v998 = vsub.f32 1.0, %v997
    %v999 = vmul.f32 %v996, %v998
    %v1000 = vadd.f32 %v996, %v999
    %vm1001 = vweird.f32 %v748
    %vm1002 = vweird.f32 %v996
    %vm1003 = vmor %vm1001, %vm1002
    %v1004 = vsel %vm1003, %v996, %v1000
    %v1005 = vand.u32 2147483647, %v748
    %vm1006 = vcmp.eq.f32.partialorder %v1005, 8.507059e+37
    %v1007 = vand.u32 %v748, 2147483648
    %v1008 = vor.u32 1.1754944e-38, %v1007
    %v1009 = vsel %vm1006, %v1008, %v1004
    %v1010 = vmul.f32 1.0, %v1009
    %v1011 = vrcp.pop %v749
    %v1012 = vmul.f32 %v749, %v1011
    %v1013 = vsub.f32 1.0, %v1012
    %v1014 = vmul.f32 %v1011, %v1013
    %v1015 = vadd.f32 %v1011, %v1014
    %vm1016 = vweird.f32 %v749
    %vm1017 = vweird.f32 %v1011
    %vm1018 = vmor %vm1016, %vm1017
    %v1019 = vsel %vm1018, %v1011, %v1015
    %v1020 = vand.u32 2147483647, %v749
    %vm1021 = vcmp.eq.f32.partialorder %v1020, 8.507059e+37
    %v1022 = vand.u32 %v749, 2147483648
    %v1023 = vor.u32 1.1754944e-38, %v1022
    %v1024 = vsel %vm1021, %v1023, %v1019
    %v1025 = vmul.f32 1.0, %v1024
    %v1026 = vrcp.pop %v750
    %v1027 = vmul.f32 %v750, %v1026
    %v1028 = vsub.f32 1.0, %v1027
    %v1029 = vmul.f32 %v1026, %v1028
    %v1030 = vadd.f32 %v1026, %v1029
    %vm1031 = vweird.f32 %v750
    %vm1032 = vweird.f32 %v1026
    %vm1033 = vmor %vm1031, %vm1032
    %v1034 = vsel %vm1033, %v1026, %v1030
    %v1035 = vand.u32 2147483647, %v750
    %vm1036 = vcmp.eq.f32.partialorder %v1035, 8.507059e+37
    %v1037 = vand.u32 %v750, 2147483648
    %v1038 = vor.u32 1.1754944e-38, %v1037
    %v1039 = vsel %vm1036, %v1038, %v1034
    %v1040 = vmul.f32 1.0, %v1039
    %v1041 = vrcp.pop %v751
    %v1042 = vmul.f32 %v751, %v1041
    %v1043 = vsub.f32 1.0, %v1042
    %v1044 = vmul.f32 %v1041, %v1043
    %v1045 = vadd.f32 %v1041, %v1044
    %vm1046 = vweird.f32 %v751
    %vm1047 = vweird.f32 %v1041
    %vm1048 = vmor %vm1046, %vm1047
    %v1049 = vsel %vm1048, %v1041, %v1045
    %v1050 = vand.u32 2147483647, %v751
    %vm1051 = vcmp.eq.f32.partialorder %v1050, 8.507059e+37
    %v1052 = vand.u32 %v751, 2147483648
    %v1053 = vor.u32 1.1754944e-38, %v1052
    %v1054 = vsel %vm1051, %v1053, %v1049
    %v1055 = vmul.f32 1.0, %v1054
    %v1056 = vrcp.pop %v752
    %v1057 = vmul.f32 %v752, %v1056
    %v1058 = vsub.f32 1.0, %v1057
    %v1059 = vmul.f32 %v1056, %v1058
    %v1060 = vadd.f32 %v1056, %v1059
    %vm1061 = vweird.f32 %v752
    %vm1062 = vweird.f32 %v1056
    %vm1063 = vmor %vm1061, %vm1062
    %v1064 = vsel %vm1063, %v1056, %v1060
    %v1065 = vand.u32 2147483647, %v752
    %vm1066 = vcmp.eq.f32.partialorder %v1065, 8.507059e+37
    %v1067 = vand.u32 %v752, 2147483648
    %v1068 = vor.u32 1.1754944e-38, %v1067
    %v1069 = vsel %vm1066, %v1068, %v1064
    %v1070 = vmul.f32 1.0, %v1069
    %v1071 = vrcp.pop %v753
    %v1072 = vmul.f32 %v753, %v1071
    %v1073 = vsub.f32 1.0, %v1072
    %v1074 = vmul.f32 %v1071, %v1073
    %v1075 = vadd.f32 %v1071, %v1074
    %vm1076 = vweird.f32 %v753
    %vm1077 = vweird.f32 %v1071
    %vm1078 = vmor %vm1076, %vm1077
    %v1079 = vsel %vm1078, %v1071, %v1075
    %v1080 = vand.u32 2147483647, %v753
    %vm1081 = vcmp.eq.f32.partialorder %v1080, 8.507059e+37
    %v1082 = vand.u32 %v753, 2147483648
    %v1083 = vor.u32 1.1754944e-38, %v1082
    %v1084 = vsel %vm1081, %v1083, %v1079
    %v1085 = vmul.f32 1.0, %v1084
    %v1086 = vrcp.pop %v754
    %v1087 = vmul.f32 %v754, %v1086
    %v1088 = vsub.f32 1.0, %v1087
    %v1089 = vmul.f32 %v1086, %v1088
    %v1090 = vadd.f32 %v1086, %v1089
    %vm1091 = vweird.f32 %v754
    %vm1092 = vweird.f32 %v1086
    %vm1093 = vmor %vm1091, %vm1092
    %v1094 = vsel %vm1093, %v1086, %v1090
    %v1095 = vand.u32 2147483647, %v754
    %vm1096 = vcmp.eq.f32.partialorder %v1095, 8.507059e+37
    %v1097 = vand.u32 %v754, 2147483648
    %v1098 = vor.u32 1.1754944e-38, %v1097
    %v1099 = vsel %vm1096, %v1098, %v1094
    %v1100 = vmul.f32 1.0, %v1099
    %v1101 = vrcp.pop %v755
    %v1102 = vmul.f32 %v755, %v1101
    %v1103 = vsub.f32 1.0, %v1102
    %v1104 = vmul.f32 %v1101, %v1103
    %v1105 = vadd.f32 %v1101, %v1104
    %vm1106 = vweird.f32 %v755
    %vm1107 = vweird.f32 %v1101
    %vm1108 = vmor %vm1106, %vm1107
    %v1109 = vsel %vm1108, %v1101, %v1105
    %v1110 = vand.u32 2147483647, %v755
    %vm1111 = vcmp.eq.f32.partialorder %v1110, 8.507059e+37
    %v1112 = vand.u32 %v755, 2147483648
    %v1113 = vor.u32 1.1754944e-38, %v1112
    %v1114 = vsel %vm1111, %v1113, %v1109
    %v1115 = vmul.f32 1.0, %v1114
    %1140 = vrot.lane.b32.xlu0 %v770, 96
    %v1141 = vpop.permute.xlu0 %1140
    %1142 = vrot.lane.b32.xlu0 %v785, 96
    %v1143 = vpop.permute.xlu0 %1142
    %1144 = vrot.lane.b32.xlu0 %v800, 96
    %v1145 = vpop.permute.xlu0 %1144
    %1146 = vrot.lane.b32.xlu0 %v815, 96
    %v1147 = vpop.permute.xlu0 %1146
    %1148 = vrot.lane.b32.xlu0 %v830, 96
    %v1149 = vpop.permute.xlu0 %1148
    %1150 = vrot.lane.b32.xlu0 %v845, 96
    %v1151 = vpop.permute.xlu0 %1150
    %1152 = vrot.lane.b32.xlu0 %v860, 96
    %v1153 = vpop.permute.xlu0 %1152
    %1154 = vrot.lane.b32.xlu0 %v875, 96
    %v1155 = vpop.permute.xlu0 %1154
    %1156 = vrot.lane.b32.xlu0 %v890, 96
    %v1157 = vpop.permute.xlu0 %1156
    %1158 = vrot.lane.b32.xlu0 %v905, 96
    %v1159 = vpop.permute.xlu0 %1158
    %1160 = vrot.lane.b32.xlu0 %v920, 96
    %v1161 = vpop.permute.xlu0 %1160
    %1162 = vrot.lane.b32.xlu0 %v935, 96
    %v1163 = vpop.permute.xlu0 %1162
    %1164 = vrot.lane.b32.xlu0 %v950, 96
    %v1165 = vpop.permute.xlu0 %1164
    %1166 = vrot.lane.b32.xlu0 %v965, 96
    %v1167 = vpop.permute.xlu0 %1166
    %1168 = vrot.lane.b32.xlu0 %v980, 96
    %v1169 = vpop.permute.xlu0 %1168
    %1170 = vrot.lane.b32.xlu0 %v995, 96
    %v1171 = vpop.permute.xlu0 %1170
    %1172 = vrot.lane.b32.xlu0 %v1010, 96
    %v1173 = vpop.permute.xlu0 %1172
    %1174 = vrot.lane.b32.xlu0 %v1025, 96
    %v1175 = vpop.permute.xlu0 %1174
    %1176 = vrot.lane.b32.xlu0 %v1040, 96
    %v1177 = vpop.permute.xlu0 %1176
    %1178 = vrot.lane.b32.xlu0 %v1055, 96
    %v1179 = vpop.permute.xlu0 %1178
    %1180 = vrot.lane.b32.xlu0 %v1070, 96
    %v1181 = vpop.permute.xlu0 %1180
    %1182 = vrot.lane.b32.xlu0 %v1085, 96
    %v1183 = vpop.permute.xlu0 %1182
    %1184 = vrot.lane.b32.xlu0 %v1100, 96
    %v1185 = vpop.permute.xlu0 %1184
    %1186 = vrot.lane.b32.xlu0 %v1115, 96
    %v1187 = vpop.permute.xlu0 %1186
    %v1212 = vmul.f32 %v636, %v1141
    %v1213 = vmul.f32 %v637, %v1143
    %v1214 = vmul.f32 %v638, %v1145
    %v1215 = vmul.f32 %v639, %v1147
    %v1216 = vmul.f32 %v640, %v1149
    %v1217 = vmul.f32 %v641, %v1151
    %v1218 = vmul.f32 %v642, %v1153
    %v1219 = vmul.f32 %v643, %v1155
    %v1220 = vmul.f32 %v644, %v1157
    %v1221 = vmul.f32 %v645, %v1159
    %v1222 = vmul.f32 %v646, %v1161
    %v1223 = vmul.f32 %v647, %v1163
    %v1224 = vmul.f32 %v648, %v1165
    %v1225 = vmul.f32 %v649, %v1167
    %v1226 = vmul.f32 %v650, %v1169
    %v1227 = vmul.f32 %v651, %v1171
    %v1228 = vmul.f32 %v652, %v1173
    %v1229 = vmul.f32 %v653, %v1175
    %v1230 = vmul.f32 %v654, %v1177
    %v1231 = vmul.f32 %v655, %v1179
    %v1232 = vmul.f32 %v656, %v1181
    %v1233 = vmul.f32 %v657, %v1183
    %v1234 = vmul.f32 %v658, %v1185
    %v1235 = vmul.f32 %v659, %v1187
    %v1236 = vld [vmem:[%s7] sm:$0xff]
    %v1237 = vld [vmem:[%s7 + $0x8] sm:$0xff]
    %v1238 = vld [vmem:[%s7 + $0x10] sm:$0xff]
    %v1239 = vld [vmem:[%s7 + $0x18] sm:$0xff]
    %v1240 = vld [vmem:[%s8] sm:$0x1]
    %v1242 = vperm.slane %v1240, 0
    %v1245 = vsel %vm351, %v1212, 0
    %v1248 = vsel %vm351, %v1213, 0
    %v1251 = vsel %vm351, %v1214, 0
    %v1254 = vsel %vm351, %v1215, 0
    %v1257 = vsel %vm351, %v1216, 0
    %v1260 = vsel %vm351, %v1217, 0
    %v1263 = vsel %vm351, %v1218, 0
    %v1266 = vsel %vm351, %v1219, 0
    %v1269 = vsel %vm351, %v1220, 0
    %v1272 = vsel %vm351, %v1221, 0
    %v1275 = vsel %vm351, %v1222, 0
    %v1278 = vsel %vm351, %v1223, 0
    %v1281 = vsel %vm351, %v1224, 0
    %v1284 = vsel %vm351, %v1225, 0
    %v1287 = vsel %vm351, %v1226, 0
    %v1290 = vsel %vm351, %v1227, 0
    %v1293 = vsel %vm351, %v1228, 0
    %v1296 = vsel %vm351, %v1229, 0
    %v1299 = vsel %vm351, %v1230, 0
    %v1302 = vsel %vm351, %v1231, 0
    %v1305 = vsel %vm351, %v1232, 0
    %v1308 = vsel %vm351, %v1233, 0
    %v1311 = vsel %vm351, %v1234, 0
    %v1314 = vsel %vm351, %v1235, 0
    %1316 = vmatpush.msra.mxu0 0.0
    %1317 = vmatpush.msra.mxu0 0.0
    %1318 = vmatpush.msra.mxu0 0.0
    %1319 = vmatpush.msra.mxu0 0.0
    %1320 = vmatpush.msra.mxu0 0.0
    %1321 = vmatpush.msra.mxu0 0.0
    %1322 = vmatpush.msra.mxu0 0.0
    %1323 = vmatpush.msra.mxu0 0.0
    %1324 = vmatpush.msra.mxu0 0.0
    %1325 = vmatpush.msra.mxu0 0.0
    %1326 = vmatpush.msra.mxu0 0.0
    %1327 = vmatpush.msra.mxu0 0.0
    %1328 = vmatpush.msra.mxu0 %v1239
    %1329 = vmatpush.msra.mxu0 %v1238
    %1330 = vmatpush.msra.mxu0 %v1237
    %1331 = vmatpush.msra.mxu0 %v1236
    %1332 = vmatmul.f32.gmra.mxu0 %v1245
    %v1333 = vpop.f32.mrf.mxu0
    %1334 = vmatmul.f32.gmra.mxu0 %v1248
    %v1335 = vpop.f32.mrf.mxu0
    %1336 = vmatmul.f32.gmra.mxu0 %v1251
    %v1337 = vpop.f32.mrf.mxu0
    %1338 = vmatmul.f32.gmra.mxu0 %v1254
    %v1339 = vpop.f32.mrf.mxu0
    %1340 = vmatmul.f32.gmra.mxu0 %v1257
    %v1341 = vpop.f32.mrf.mxu0
    %1342 = vmatmul.f32.gmra.mxu0 %v1260
    %v1343 = vpop.f32.mrf.mxu0
    %1344 = vmatmul.f32.gmra.mxu0 %v1263
    %v1345 = vpop.f32.mrf.mxu0
    %1346 = vmatmul.f32.gmra.mxu0 %v1266
    %v1347 = vpop.f32.mrf.mxu0
    %1348 = vmatmul.f32.gmra.mxu0 %v1269
    %v1349 = vpop.f32.mrf.mxu0
    %1350 = vmatmul.f32.gmra.mxu0 %v1272
    %v1351 = vpop.f32.mrf.mxu0
    %1352 = vmatmul.f32.gmra.mxu0 %v1275
    %v1353 = vpop.f32.mrf.mxu0
    %1354 = vmatmul.f32.gmra.mxu0 %v1278
    %v1355 = vpop.f32.mrf.mxu0
    %1356 = vmatmul.f32.gmra.mxu0 %v1281
    %v1357 = vpop.f32.mrf.mxu0
    %1358 = vmatmul.f32.gmra.mxu0 %v1284
    %v1359 = vpop.f32.mrf.mxu0
    %1360 = vmatmul.f32.gmra.mxu0 %v1287
    %v1361 = vpop.f32.mrf.mxu0
    %1362 = vmatmul.f32.gmra.mxu0 %v1290
    %v1363 = vpop.f32.mrf.mxu0
    %1364 = vmatmul.f32.gmra.mxu0 %v1293
    %v1365 = vpop.f32.mrf.mxu0
    %1366 = vmatmul.f32.gmra.mxu0 %v1296
    %v1367 = vpop.f32.mrf.mxu0
    %1368 = vmatmul.f32.gmra.mxu0 %v1299
    %v1369 = vpop.f32.mrf.mxu0
    %1370 = vmatmul.f32.gmra.mxu0 %v1302
    %v1371 = vpop.f32.mrf.mxu0
    %1372 = vmatmul.f32.gmra.mxu0 %v1305
    %v1373 = vpop.f32.mrf.mxu0
    %1374 = vmatmul.f32.gmra.mxu0 %v1308
    %v1375 = vpop.f32.mrf.mxu0
    %1376 = vmatmul.f32.gmra.mxu0 %v1311
    %v1377 = vpop.f32.mrf.mxu0
    %v1378 = vadd.f32 %v1242, %v1377
    %1379 = vmatmul.f32.gmra.mxu0 %v1314
    %v1380 = vpop.f32.mrf.mxu0
    %v1381 = vadd.f32 %v1242, %v1380
    %1382 = vdwg.mxu0
    %v1383 = vld [vmem:[%s1] sm:$0xff]
    %v1384 = vld [vmem:[%s1 + $0x8] sm:$0xff]
    %v1385 = vld [vmem:[%s1 + $0x10] sm:$0xff]
    %v1386 = vld [vmem:[%s1 + $0x18] sm:$0xff]
    %v1387 = vld [vmem:[%s1 + $0x20] sm:$0xff]
    %v1388 = vld [vmem:[%s1 + $0x28] sm:$0xff]
    %v1389 = vld [vmem:[%s1 + $0x30] sm:$0xff]
    %v1390 = vld [vmem:[%s1 + $0x38] sm:$0xff]
    %v1391 = vld [vmem:[%s1 + $0x40] sm:$0xff]
    %v1392 = vld [vmem:[%s1 + $0x48] sm:$0xff]
    %v1393 = vld [vmem:[%s1 + $0x50] sm:$0xff]
    %v1394 = vld [vmem:[%s1 + $0x58] sm:$0xff]
    %v1395 = vld [vmem:[%s1 + $0x60] sm:$0xff]
    %v1396 = vld [vmem:[%s1 + $0x68] sm:$0xff]
    %v1397 = vld [vmem:[%s1 + $0x70] sm:$0xff]
    %v1398 = vld [vmem:[%s1 + $0x78] sm:$0xff]
    %v1399 = vld [vmem:[%s1 + $0x80] sm:$0xff]
    %v1400 = vld [vmem:[%s1 + $0x88] sm:$0xff]
    %v1401 = vld [vmem:[%s1 + $0x90] sm:$0xff]
    %v1402 = vld [vmem:[%s1 + $0x98] sm:$0xff]
    %v1403 = vld [vmem:[%s1 + $0xa0] sm:$0xff]
    %v1404 = vld [vmem:[%s1 + $0xa8] sm:$0xff]
    %v1405 = vld [vmem:[%s1 + $0xb0] sm:$0xff]
    %v1406 = vld [vmem:[%s1 + $0xb8] sm:$0xff]
    %v1407 = vld [vmem:[%s1 + $0xc0] sm:$0xff]
    %v1408 = vld [vmem:[%s1 + $0xc8] sm:$0xff]
    %v1409 = vld [vmem:[%s1 + $0xd0] sm:$0xff]
    %v1410 = vld [vmem:[%s1 + $0xd8] sm:$0xff]
    %v1411 = vld [vmem:[%s1 + $0xe0] sm:$0xff]
    %v1412 = vld [vmem:[%s1 + $0xe8] sm:$0xff]
    %v1413 = vld [vmem:[%s1 + $0xf0] sm:$0xff]
    %v1414 = vld [vmem:[%s1 + $0xf8] sm:$0xff]
    %v1415 = vld [vmem:[%s1 + $0x100] sm:$0xff]
    %v1416 = vld [vmem:[%s1 + $0x108] sm:$0xff]
    %v1417 = vld [vmem:[%s1 + $0x110] sm:$0xff]
    %v1418 = vld [vmem:[%s1 + $0x118] sm:$0xff]
    %v1419 = vld [vmem:[%s1 + $0x120] sm:$0xff]
    %v1420 = vld [vmem:[%s1 + $0x128] sm:$0xff]
    %v1421 = vld [vmem:[%s1 + $0x130] sm:$0xff]
    %v1422 = vld [vmem:[%s1 + $0x138] sm:$0xff]
    %v1423 = vld [vmem:[%s1 + $0x140] sm:$0xff]
    %v1424 = vld [vmem:[%s1 + $0x148] sm:$0xff]
    %v1425 = vld [vmem:[%s1 + $0x150] sm:$0xff]
    %v1426 = vld [vmem:[%s1 + $0x158] sm:$0xff]
    %v1427 = vld [vmem:[%s1 + $0x160] sm:$0xff]
    %v1428 = vld [vmem:[%s1 + $0x168] sm:$0xff]
    %v1429 = vld [vmem:[%s1 + $0x170] sm:$0xff]
    %v1430 = vld [vmem:[%s1 + $0x178] sm:$0xff]
    %vm1431 = vcmask 523264
    %v1433 = vsel %vm1431, %v1384, 0
    %v1436 = vsel %vm1431, %v1386, 0
    %v1439 = vsel %vm1431, %v1388, 0
    %v1442 = vsel %vm1431, %v1390, 0
    %v1445 = vsel %vm1431, %v1392, 0
    %v1448 = vsel %vm1431, %v1394, 0
    %v1451 = vsel %vm1431, %v1396, 0
    %v1454 = vsel %vm1431, %v1398, 0
    %v1457 = vsel %vm1431, %v1400, 0
    %v1460 = vsel %vm1431, %v1402, 0
    %v1463 = vsel %vm1431, %v1404, 0
    %v1466 = vsel %vm1431, %v1406, 0
    %v1469 = vsel %vm1431, %v1408, 0
    %v1472 = vsel %vm1431, %v1410, 0
    %v1475 = vsel %vm1431, %v1412, 0
    %v1478 = vsel %vm1431, %v1414, 0
    %v1481 = vsel %vm1431, %v1416, 0
    %v1484 = vsel %vm1431, %v1418, 0
    %v1487 = vsel %vm1431, %v1420, 0
    %v1490 = vsel %vm1431, %v1422, 0
    %v1493 = vsel %vm1431, %v1424, 0
    %v1496 = vsel %vm1431, %v1426, 0
    %v1499 = vsel %vm1431, %v1428, 0
    %v1502 = vsel %vm1431, %v1430, 0
    %1504 = vmatpush.msra.mxu0 %v1227
    %1505 = vmatpush.msra.mxu0 %v1226
    %1506 = vmatpush.msra.mxu0 %v1225
    %1507 = vmatpush.msra.mxu0 %v1224
    %1508 = vmatpush.msra.mxu0 %v1223
    %1509 = vmatpush.msra.mxu0 %v1222
    %1510 = vmatpush.msra.mxu0 %v1221
    %1511 = vmatpush.msra.mxu0 %v1220
    %1512 = vmatpush.msra.mxu0 %v1219
    %1513 = vmatpush.msra.mxu0 %v1218
    %1514 = vmatpush.msra.mxu0 %v1217
    %1515 = vmatpush.msra.mxu0 %v1216
    %1516 = vmatpush.msra.mxu0 %v1215
    %1517 = vmatpush.msra.mxu0 %v1214
    %1518 = vmatpush.msra.mxu0 %v1213
    %1519 = vmatpush.msra.mxu0 %v1212
    %1520 = vmatmul.f32.gmra.mxu0 %v1383
    %v1521 = vpop.f32.mrf.mxu0
    %v1522 = vadd.f32 0.0, %v1521
    %1523 = vmatmul.f32.gmra.mxu0 %v1385
    %v1524 = vpop.f32.mrf.mxu0
    %v1525 = vadd.f32 0.0, %v1524
    %1526 = vmatmul.f32.gmra.mxu0 %v1387
    %v1527 = vpop.f32.mrf.mxu0
    %v1528 = vadd.f32 0.0, %v1527
    %1529 = vmatmul.f32.gmra.mxu0 %v1389
    %v1530 = vpop.f32.mrf.mxu0
    %v1531 = vadd.f32 0.0, %v1530
    %1532 = vmatmul.f32.gmra.mxu0 %v1391
    %v1533 = vpop.f32.mrf.mxu0
    %v1534 = vadd.f32 0.0, %v1533
    %1535 = vmatmul.f32.gmra.mxu0 %v1393
    %v1536 = vpop.f32.mrf.mxu0
    %v1537 = vadd.f32 0.0, %v1536
    %1538 = vmatmul.f32.gmra.mxu0 %v1395
    %v1539 = vpop.f32.mrf.mxu0
    %v1540 = vadd.f32 0.0, %v1539
    %1541 = vmatmul.f32.gmra.mxu0 %v1397
    %v1542 = vpop.f32.mrf.mxu0
    %v1543 = vadd.f32 0.0, %v1542
    %1544 = vmatmul.f32.gmra.mxu0 %v1399
    %v1545 = vpop.f32.mrf.mxu0
    %v1546 = vadd.f32 0.0, %v1545
    %1547 = vmatmul.f32.gmra.mxu0 %v1401
    %v1548 = vpop.f32.mrf.mxu0
    %v1549 = vadd.f32 0.0, %v1548
    %1550 = vmatmul.f32.gmra.mxu0 %v1403
    %v1551 = vpop.f32.mrf.mxu0
    %v1552 = vadd.f32 0.0, %v1551
    %1553 = vmatmul.f32.gmra.mxu0 %v1405
    %v1554 = vpop.f32.mrf.mxu0
    %v1555 = vadd.f32 0.0, %v1554
    %1556 = vmatmul.f32.gmra.mxu0 %v1407
    %v1557 = vpop.f32.mrf.mxu0
    %v1558 = vadd.f32 0.0, %v1557
    %1559 = vmatmul.f32.gmra.mxu0 %v1409
    %v1560 = vpop.f32.mrf.mxu0
    %v1561 = vadd.f32 0.0, %v1560
    %1562 = vmatmul.f32.gmra.mxu0 %v1411
    %v1563 = vpop.f32.mrf.mxu0
    %v1564 = vadd.f32 0.0, %v1563
    %1565 = vmatmul.f32.gmra.mxu0 %v1413
    %v1566 = vpop.f32.mrf.mxu0
    %v1567 = vadd.f32 0.0, %v1566
    %1568 = vmatmul.f32.gmra.mxu0 %v1415
    %v1569 = vpop.f32.mrf.mxu0
    %v1570 = vadd.f32 0.0, %v1569
    %1571 = vmatmul.f32.gmra.mxu0 %v1417
    %v1572 = vpop.f32.mrf.mxu0
    %v1573 = vadd.f32 0.0, %v1572
    %1574 = vmatmul.f32.gmra.mxu0 %v1419
    %v1575 = vpop.f32.mrf.mxu0
    %v1576 = vadd.f32 0.0, %v1575
    %1577 = vmatmul.f32.gmra.mxu0 %v1421
    %v1578 = vpop.f32.mrf.mxu0
    %v1579 = vadd.f32 0.0, %v1578
    %1580 = vmatmul.f32.gmra.mxu0 %v1423
    %v1581 = vpop.f32.mrf.mxu0
    %v1582 = vadd.f32 0.0, %v1581
    %1583 = vmatmul.f32.gmra.mxu0 %v1425
    %v1584 = vpop.f32.mrf.mxu0
    %v1585 = vadd.f32 0.0, %v1584
    %1586 = vmatmul.f32.gmra.mxu0 %v1427
    %v1587 = vpop.f32.mrf.mxu0
    %v1588 = vadd.f32 0.0, %v1587
    %1589 = vmatmul.f32.gmra.mxu0 %v1429
    %v1590 = vpop.f32.mrf.mxu0
    %v1591 = vadd.f32 0.0, %v1590
    %1592 = vdwg.mxu0
    %1593 = vmatpush.msra.mxu0 0.0
    %1594 = vmatpush.msra.mxu0 0.0
    %1595 = vmatpush.msra.mxu0 0.0
    %1596 = vmatpush.msra.mxu0 0.0
    %1597 = vmatpush.msra.mxu0 0.0
    %1598 = vmatpush.msra.mxu0 0.0
    %1599 = vmatpush.msra.mxu0 0.0
    %1600 = vmatpush.msra.mxu0 0.0
    %1601 = vmatpush.msra.mxu0 %v1235
    %1602 = vmatpush.msra.mxu0 %v1234
    %1603 = vmatpush.msra.mxu0 %v1233
    %1604 = vmatpush.msra.mxu0 %v1232
    %1605 = vmatpush.msra.mxu0 %v1231
    %1606 = vmatpush.msra.mxu0 %v1230
    %1607 = vmatpush.msra.mxu0 %v1229
    %1608 = vmatpush.msra.mxu0 %v1228
    %1609 = vmatmul.f32.gmra.mxu0 %v1433
    %v1610 = vpop.f32.mrf.mxu0
    %v1611 = vadd.f32 %v1522, %v1610
    %1612 = vmatmul.f32.gmra.mxu0 %v1436
    %v1613 = vpop.f32.mrf.mxu0
    %v1614 = vadd.f32 %v1525, %v1613
    %1615 = vmatmul.f32.gmra.mxu0 %v1439
    %v1616 = vpop.f32.mrf.mxu0
    %v1617 = vadd.f32 %v1528, %v1616
    %1618 = vmatmul.f32.gmra.mxu0 %v1442
    %v1619 = vpop.f32.mrf.mxu0
    %v1620 = vadd.f32 %v1531, %v1619
    %1621 = vmatmul.f32.gmra.mxu0 %v1445
    %v1622 = vpop.f32.mrf.mxu0
    %v1623 = vadd.f32 %v1534, %v1622
    %1624 = vmatmul.f32.gmra.mxu0 %v1448
    %v1625 = vpop.f32.mrf.mxu0
    %v1626 = vadd.f32 %v1537, %v1625
    %1627 = vmatmul.f32.gmra.mxu0 %v1451
    %v1628 = vpop.f32.mrf.mxu0
    %v1629 = vadd.f32 %v1540, %v1628
    %1630 = vmatmul.f32.gmra.mxu0 %v1454
    %v1631 = vpop.f32.mrf.mxu0
    %v1632 = vadd.f32 %v1543, %v1631
    %1633 = vmatmul.f32.gmra.mxu0 %v1457
    %v1634 = vpop.f32.mrf.mxu0
    %v1635 = vadd.f32 %v1546, %v1634
    %1636 = vmatmul.f32.gmra.mxu0 %v1460
    %v1637 = vpop.f32.mrf.mxu0
    %v1638 = vadd.f32 %v1549, %v1637
    %1639 = vmatmul.f32.gmra.mxu0 %v1463
    %v1640 = vpop.f32.mrf.mxu0
    %v1641 = vadd.f32 %v1552, %v1640
    %1642 = vmatmul.f32.gmra.mxu0 %v1466
    %v1643 = vpop.f32.mrf.mxu0
    %v1644 = vadd.f32 %v1555, %v1643
    %1645 = vmatmul.f32.gmra.mxu0 %v1469
    %v1646 = vpop.f32.mrf.mxu0
    %v1647 = vadd.f32 %v1558, %v1646
    %1648 = vmatmul.f32.gmra.mxu0 %v1472
    %v1649 = vpop.f32.mrf.mxu0
    %v1650 = vadd.f32 %v1561, %v1649
    %1651 = vmatmul.f32.gmra.mxu0 %v1475
    %v1652 = vpop.f32.mrf.mxu0
    %v1653 = vadd.f32 %v1564, %v1652
    %1654 = vmatmul.f32.gmra.mxu0 %v1478
    %v1655 = vpop.f32.mrf.mxu0
    %v1656 = vadd.f32 %v1567, %v1655
    %1657 = vmatmul.f32.gmra.mxu0 %v1481
    %v1658 = vpop.f32.mrf.mxu0
    %v1659 = vadd.f32 %v1570, %v1658
    %1660 = vmatmul.f32.gmra.mxu0 %v1484
    %v1661 = vpop.f32.mrf.mxu0
    %v1662 = vadd.f32 %v1573, %v1661
    %1663 = vmatmul.f32.gmra.mxu0 %v1487
    %v1664 = vpop.f32.mrf.mxu0
    %v1665 = vadd.f32 %v1576, %v1664
    %1666 = vmatmul.f32.gmra.mxu0 %v1490
    %v1667 = vpop.f32.mrf.mxu0
    %v1668 = vadd.f32 %v1579, %v1667
    %1669 = vmatmul.f32.gmra.mxu0 %v1493
    %v1670 = vpop.f32.mrf.mxu0
    %v1671 = vadd.f32 %v1582, %v1670
    %1672 = vmatmul.f32.gmra.mxu0 %v1496
    %v1673 = vpop.f32.mrf.mxu0
    %v1674 = vadd.f32 %v1585, %v1673
    %1675 = vmatmul.f32.gmra.mxu0 %v1499
    %v1676 = vpop.f32.mrf.mxu0
    %v1677 = vadd.f32 %v1588, %v1676
    %1678 = vmatmul.f32.gmra.mxu0 %v1502
    %v1679 = vpop.f32.mrf.mxu0
    %v1680 = vadd.f32 %v1591, %v1679
    %1681 = vdwg.mxu0
    %1682 = vmatpush.msra.mxu0 %v1656
    %1683 = vmatpush.msra.mxu0 %v1653
    %1684 = vmatpush.msra.mxu0 %v1650
    %1685 = vmatpush.msra.mxu0 %v1647
    %1686 = vmatpush.msra.mxu0 %v1644
    %1687 = vmatpush.msra.mxu0 %v1641
    %1688 = vmatpush.msra.mxu0 %v1638
    %1689 = vmatpush.msra.mxu0 %v1635
    %1690 = vmatpush.msra.mxu0 %v1632
    %1691 = vmatpush.msra.mxu0 %v1629
    %1692 = vmatpush.msra.mxu0 %v1626
    %1693 = vmatpush.msra.mxu0 %v1623
    %1694 = vmatpush.msra.mxu0 %v1620
    %1695 = vmatpush.msra.mxu0 %v1617
    %1696 = vmatpush.msra.mxu0 %v1614
    %1697 = vmatpush.msra.mxu0 %v1611
    %1698 = vmatmul.f32.gmra.mxu0 %v1383
    %v1699 = vpop.f32.mrf.mxu0
    %v1700 = vadd.f32 0.0, %v1699
    %1701 = vmatmul.f32.gmra.mxu0 %v1385
    %v1702 = vpop.f32.mrf.mxu0
    %v1703 = vadd.f32 0.0, %v1702
    %1704 = vmatmul.f32.gmra.mxu0 %v1387
    %v1705 = vpop.f32.mrf.mxu0
    %v1706 = vadd.f32 0.0, %v1705
    %1707 = vmatmul.f32.gmra.mxu0 %v1389
    %v1708 = vpop.f32.mrf.mxu0
    %v1709 = vadd.f32 0.0, %v1708
    %1710 = vmatmul.f32.gmra.mxu0 %v1391
    %v1711 = vpop.f32.mrf.mxu0
    %v1712 = vadd.f32 0.0, %v1711
    %1713 = vmatmul.f32.gmra.mxu0 %v1393
    %v1714 = vpop.f32.mrf.mxu0
    %v1715 = vadd.f32 0.0, %v1714
    %1716 = vmatmul.f32.gmra.mxu0 %v1395
    %v1717 = vpop.f32.mrf.mxu0
    %v1718 = vadd.f32 0.0, %v1717
    %1719 = vmatmul.f32.gmra.mxu0 %v1397
    %v1720 = vpop.f32.mrf.mxu0
    %v1721 = vadd.f32 0.0, %v1720
    %1722 = vmatmul.f32.gmra.mxu0 %v1399
    %v1723 = vpop.f32.mrf.mxu0
    %v1724 = vadd.f32 0.0, %v1723
    %1725 = vmatmul.f32.gmra.mxu0 %v1401
    %v1726 = vpop.f32.mrf.mxu0
    %v1727 = vadd.f32 0.0, %v1726
    %1728 = vmatmul.f32.gmra.mxu0 %v1403
    %v1729 = vpop.f32.mrf.mxu0
    %v1730 = vadd.f32 0.0, %v1729
    %1731 = vmatmul.f32.gmra.mxu0 %v1405
    %v1732 = vpop.f32.mrf.mxu0
    %v1733 = vadd.f32 0.0, %v1732
    %1734 = vmatmul.f32.gmra.mxu0 %v1407
    %v1735 = vpop.f32.mrf.mxu0
    %v1736 = vadd.f32 0.0, %v1735
    %1737 = vmatmul.f32.gmra.mxu0 %v1409
    %v1738 = vpop.f32.mrf.mxu0
    %v1739 = vadd.f32 0.0, %v1738
    %1740 = vmatmul.f32.gmra.mxu0 %v1411
    %v1741 = vpop.f32.mrf.mxu0
    %v1742 = vadd.f32 0.0, %v1741
    %1743 = vmatmul.f32.gmra.mxu0 %v1413
    %v1744 = vpop.f32.mrf.mxu0
    %v1745 = vadd.f32 0.0, %v1744
    %1746 = vmatmul.f32.gmra.mxu0 %v1415
    %v1747 = vpop.f32.mrf.mxu0
    %v1748 = vadd.f32 0.0, %v1747
    %1749 = vmatmul.f32.gmra.mxu0 %v1417
    %v1750 = vpop.f32.mrf.mxu0
    %v1751 = vadd.f32 0.0, %v1750
    %1752 = vmatmul.f32.gmra.mxu0 %v1419
    %v1753 = vpop.f32.mrf.mxu0
    %v1754 = vadd.f32 0.0, %v1753
    %1755 = vmatmul.f32.gmra.mxu0 %v1421
    %v1756 = vpop.f32.mrf.mxu0
    %v1757 = vadd.f32 0.0, %v1756
    %1758 = vmatmul.f32.gmra.mxu0 %v1423
    %v1759 = vpop.f32.mrf.mxu0
    %v1760 = vadd.f32 0.0, %v1759
    %1761 = vmatmul.f32.gmra.mxu0 %v1425
    %v1762 = vpop.f32.mrf.mxu0
    %v1763 = vadd.f32 0.0, %v1762
    %1764 = vmatmul.f32.gmra.mxu0 %v1427
    %v1765 = vpop.f32.mrf.mxu0
    %v1766 = vadd.f32 0.0, %v1765
    %1767 = vmatmul.f32.gmra.mxu0 %v1429
    %v1768 = vpop.f32.mrf.mxu0
    %v1769 = vadd.f32 0.0, %v1768
    %1770 = vdwg.mxu0
    %1771 = vmatpush.msra.mxu0 0.0
    %1772 = vmatpush.msra.mxu0 0.0
    %1773 = vmatpush.msra.mxu0 0.0
    %1774 = vmatpush.msra.mxu0 0.0
    %1775 = vmatpush.msra.mxu0 0.0
    %1776 = vmatpush.msra.mxu0 0.0
    %1777 = vmatpush.msra.mxu0 0.0
    %1778 = vmatpush.msra.mxu0 0.0
    %1779 = vmatpush.msra.mxu0 %v1680
    %1780 = vmatpush.msra.mxu0 %v1677
    %1781 = vmatpush.msra.mxu0 %v1674
    %1782 = vmatpush.msra.mxu0 %v1671
    %1783 = vmatpush.msra.mxu0 %v1668
    %1784 = vmatpush.msra.mxu0 %v1665
    %1785 = vmatpush.msra.mxu0 %v1662
    %1786 = vmatpush.msra.mxu0 %v1659
    %1787 = vmatmul.f32.gmra.mxu0 %v1433
    %v1788 = vpop.f32.mrf.mxu0
    %v1789 = vadd.f32 %v1700, %v1788
    %1790 = vmatmul.f32.gmra.mxu0 %v1436
    %v1791 = vpop.f32.mrf.mxu0
    %v1792 = vadd.f32 %v1703, %v1791
    %1793 = vmatmul.f32.gmra.mxu0 %v1439
    %v1794 = vpop.f32.mrf.mxu0
    %v1795 = vadd.f32 %v1706, %v1794
    %1796 = vmatmul.f32.gmra.mxu0 %v1442
    %v1797 = vpop.f32.mrf.mxu0
    %v1798 = vadd.f32 %v1709, %v1797
    %1799 = vmatmul.f32.gmra.mxu0 %v1445
    %v1800 = vpop.f32.mrf.mxu0
    %v1801 = vadd.f32 %v1712, %v1800
    %1802 = vmatmul.f32.gmra.mxu0 %v1448
    %v1803 = vpop.f32.mrf.mxu0
    %v1804 = vadd.f32 %v1715, %v1803
    %1805 = vmatmul.f32.gmra.mxu0 %v1451
    %v1806 = vpop.f32.mrf.mxu0
    %v1807 = vadd.f32 %v1718, %v1806
    %1808 = vmatmul.f32.gmra.mxu0 %v1454
    %v1809 = vpop.f32.mrf.mxu0
    %v1810 = vadd.f32 %v1721, %v1809
    %1811 = vmatmul.f32.gmra.mxu0 %v1457
    %v1812 = vpop.f32.mrf.mxu0
    %v1813 = vadd.f32 %v1724, %v1812
    %1814 = vmatmul.f32.gmra.mxu0 %v1460
    %v1815 = vpop.f32.mrf.mxu0
    %v1816 = vadd.f32 %v1727, %v1815
    %1817 = vmatmul.f32.gmra.mxu0 %v1463
    %v1818 = vpop.f32.mrf.mxu0
    %v1819 = vadd.f32 %v1730, %v1818
    %1820 = vmatmul.f32.gmra.mxu0 %v1466
    %v1821 = vpop.f32.mrf.mxu0
    %v1822 = vadd.f32 %v1733, %v1821
    %1823 = vmatmul.f32.gmra.mxu0 %v1469
    %v1824 = vpop.f32.mrf.mxu0
    %v1825 = vadd.f32 %v1736, %v1824
    %1826 = vmatmul.f32.gmra.mxu0 %v1472
    %v1827 = vpop.f32.mrf.mxu0
    %v1828 = vadd.f32 %v1739, %v1827
    %1829 = vmatmul.f32.gmra.mxu0 %v1475
    %v1830 = vpop.f32.mrf.mxu0
    %v1831 = vadd.f32 %v1742, %v1830
    %1832 = vmatmul.f32.gmra.mxu0 %v1478
    %v1833 = vpop.f32.mrf.mxu0
    %v1834 = vadd.f32 %v1745, %v1833
    %1835 = vmatmul.f32.gmra.mxu0 %v1481
    %v1836 = vpop.f32.mrf.mxu0
    %v1837 = vadd.f32 %v1748, %v1836
    %1838 = vmatmul.f32.gmra.mxu0 %v1484
    %v1839 = vpop.f32.mrf.mxu0
    %v1840 = vadd.f32 %v1751, %v1839
    %1841 = vmatmul.f32.gmra.mxu0 %v1487
    %v1842 = vpop.f32.mrf.mxu0
    %v1843 = vadd.f32 %v1754, %v1842
    %1844 = vmatmul.f32.gmra.mxu0 %v1490
    %v1845 = vpop.f32.mrf.mxu0
    %v1846 = vadd.f32 %v1757, %v1845
    %1847 = vmatmul.f32.gmra.mxu0 %v1493
    %v1848 = vpop.f32.mrf.mxu0
    %v1849 = vadd.f32 %v1760, %v1848
    %1850 = vmatmul.f32.gmra.mxu0 %v1496
    %v1851 = vpop.f32.mrf.mxu0
    %v1852 = vadd.f32 %v1763, %v1851
    %1853 = vmatmul.f32.gmra.mxu0 %v1499
    %v1854 = vpop.f32.mrf.mxu0
    %v1855 = vadd.f32 %v1766, %v1854
    %1856 = vmatmul.f32.gmra.mxu0 %v1502
    %v1857 = vpop.f32.mrf.mxu0
    %v1858 = vadd.f32 %v1769, %v1857
    %1859 = vdwg.mxu0
    %v1860 = vld [vmem:[%s9] sm:$0xff]
    %v1861 = vld [vmem:[%s9 + $0x8] sm:$0xff]
    %v1862 = vld [vmem:[%s9 + $0x10] sm:$0xff]
    %v1863 = vld [vmem:[%s9 + $0x18] sm:$0xff]
    %v1864 = vld [vmem:[%s9 + $0x20] sm:$0xff]
    %v1865 = vld [vmem:[%s9 + $0x28] sm:$0xff]
    %v1866 = vld [vmem:[%s9 + $0x30] sm:$0xff]
    %v1867 = vld [vmem:[%s9 + $0x38] sm:$0xff]
    %v1868 = vld [vmem:[%s9 + $0x40] sm:$0xff]
    %v1869 = vld [vmem:[%s9 + $0x48] sm:$0xff]
    %v1870 = vld [vmem:[%s9 + $0x50] sm:$0xff]
    %v1871 = vld [vmem:[%s9 + $0x58] sm:$0xff]
    %v1873 = vsel %vm351, %v1611, 0
    %v1876 = vsel %vm351, %v1614, 0
    %v1879 = vsel %vm351, %v1617, 0
    %v1882 = vsel %vm351, %v1620, 0
    %v1885 = vsel %vm351, %v1623, 0
    %v1888 = vsel %vm351, %v1626, 0
    %v1891 = vsel %vm351, %v1629, 0
    %v1894 = vsel %vm351, %v1632, 0
    %v1897 = vsel %vm351, %v1635, 0
    %v1900 = vsel %vm351, %v1638, 0
    %v1903 = vsel %vm351, %v1641, 0
    %v1906 = vsel %vm351, %v1644, 0
    %v1909 = vsel %vm351, %v1647, 0
    %v1912 = vsel %vm351, %v1650, 0
    %v1915 = vsel %vm351, %v1653, 0
    %v1918 = vsel %vm351, %v1656, 0
    %v1921 = vsel %vm351, %v1659, 0
    %v1924 = vsel %vm351, %v1662, 0
    %v1927 = vsel %vm351, %v1665, 0
    %v1930 = vsel %vm351, %v1668, 0
    %v1933 = vsel %vm351, %v1671, 0
    %v1936 = vsel %vm351, %v1674, 0
    %v1939 = vsel %vm351, %v1677, 0
    %v1942 = vsel %vm351, %v1680, 0
    %1944 = vmatpush.msra.mxu0 0.0
    %1945 = vmatpush.msra.mxu0 0.0
    %1946 = vmatpush.msra.mxu0 0.0
    %1947 = vmatpush.msra.mxu0 0.0
    %1948 = vmatpush.msra.mxu0 0.0
    %1949 = vmatpush.msra.mxu0 0.0
    %1950 = vmatpush.msra.mxu0 0.0
    %1951 = vmatpush.msra.mxu0 0.0
    %1952 = vmatpush.msra.mxu0 0.0
    %1953 = vmatpush.msra.mxu0 0.0
    %1954 = vmatpush.msra.mxu0 0.0
    %1955 = vmatpush.msra.mxu0 0.0
    %1956 = vmatpush.msra.mxu0 %v1867
    %1957 = vmatpush.msra.mxu0 %v1866
    %1958 = vmatpush.msra.mxu0 %v1865
    %1959 = vmatpush.msra.mxu0 %v1864
    %1960 = vmatmul.f32.gmra.mxu0 %v1873
    %v1961 = vpop.f32.mrf.mxu0
    %v1962 = vadd.f32 0.0, %v1961
    %1963 = vmatmul.f32.gmra.mxu0 %v1876
    %v1964 = vpop.f32.mrf.mxu0
    %v1965 = vadd.f32 0.0, %v1964
    %1966 = vmatmul.f32.gmra.mxu0 %v1879
    %v1967 = vpop.f32.mrf.mxu0
    %v1968 = vadd.f32 0.0, %v1967
    %1969 = vmatmul.f32.gmra.mxu0 %v1882
    %v1970 = vpop.f32.mrf.mxu0
    %v1971 = vadd.f32 0.0, %v1970
    %1972 = vmatmul.f32.gmra.mxu0 %v1885
    %v1973 = vpop.f32.mrf.mxu0
    %v1974 = vadd.f32 0.0, %v1973
    %1975 = vmatmul.f32.gmra.mxu0 %v1888
    %v1976 = vpop.f32.mrf.mxu0
    %v1977 = vadd.f32 0.0, %v1976
    %1978 = vmatmul.f32.gmra.mxu0 %v1891
    %v1979 = vpop.f32.mrf.mxu0
    %v1980 = vadd.f32 0.0, %v1979
    %1981 = vmatmul.f32.gmra.mxu0 %v1894
    %v1982 = vpop.f32.mrf.mxu0
    %v1983 = vadd.f32 0.0, %v1982
    %1984 = vmatmul.f32.gmra.mxu0 %v1897
    %v1985 = vpop.f32.mrf.mxu0
    %v1986 = vadd.f32 0.0, %v1985
    %1987 = vmatmul.f32.gmra.mxu0 %v1900
    %v1988 = vpop.f32.mrf.mxu0
    %v1989 = vadd.f32 0.0, %v1988
    %1990 = vmatmul.f32.gmra.mxu0 %v1903
    %v1991 = vpop.f32.mrf.mxu0
    %v1992 = vadd.f32 0.0, %v1991
    %1993 = vmatmul.f32.gmra.mxu0 %v1906
    %v1994 = vpop.f32.mrf.mxu0
    %v1995 = vadd.f32 0.0, %v1994
    %1996 = vmatmul.f32.gmra.mxu0 %v1909
    %v1997 = vpop.f32.mrf.mxu0
    %v1998 = vadd.f32 0.0, %v1997
    %1999 = vmatmul.f32.gmra.mxu0 %v1912
    %v2000 = vpop.f32.mrf.mxu0
    %v2001 = vadd.f32 0.0, %v2000
    %2002 = vmatmul.f32.gmra.mxu0 %v1915
    %v2003 = vpop.f32.mrf.mxu0
    %v2004 = vadd.f32 0.0, %v2003
    %2005 = vmatmul.f32.gmra.mxu0 %v1918
    %v2006 = vpop.f32.mrf.mxu0
    %v2007 = vadd.f32 0.0, %v2006
    %2008 = vmatmul.f32.gmra.mxu0 %v1921
    %v2009 = vpop.f32.mrf.mxu0
    %v2010 = vadd.f32 0.0, %v2009
    %2011 = vmatmul.f32.gmra.mxu0 %v1924
    %v2012 = vpop.f32.mrf.mxu0
    %v2013 = vadd.f32 0.0, %v2012
    %2014 = vmatmul.f32.gmra.mxu0 %v1927
    %v2015 = vpop.f32.mrf.mxu0
    %v2016 = vadd.f32 0.0, %v2015
    %2017 = vmatmul.f32.gmra.mxu0 %v1930
    %v2018 = vpop.f32.mrf.mxu0
    %v2019 = vadd.f32 0.0, %v2018
    %2020 = vmatmul.f32.gmra.mxu0 %v1933
    %v2021 = vpop.f32.mrf.mxu0
    %v2022 = vadd.f32 0.0, %v2021
    %2023 = vmatmul.f32.gmra.mxu0 %v1936
    %v2024 = vpop.f32.mrf.mxu0
    %v2025 = vadd.f32 0.0, %v2024
    %2026 = vmatmul.f32.gmra.mxu0 %v1939
    %v2027 = vpop.f32.mrf.mxu0
    %v2028 = vadd.f32 0.0, %v2027
    %2029 = vmatmul.f32.gmra.mxu0 %v1942
    %v2030 = vpop.f32.mrf.mxu0
    %v2031 = vadd.f32 0.0, %v2030
    %2032 = vdwg.mxu0
    %2033 = vmatpush.msra.mxu0 0.0
    %2034 = vmatpush.msra.mxu0 0.0
    %2035 = vmatpush.msra.mxu0 0.0
    %2036 = vmatpush.msra.mxu0 0.0
    %2037 = vmatpush.msra.mxu0 0.0
    %2038 = vmatpush.msra.mxu0 0.0
    %2039 = vmatpush.msra.mxu0 0.0
    %2040 = vmatpush.msra.mxu0 0.0
    %2041 = vmatpush.msra.mxu0 0.0
    %2042 = vmatpush.msra.mxu0 0.0
    %2043 = vmatpush.msra.mxu0 0.0
    %2044 = vmatpush.msra.mxu0 0.0
    %2045 = vmatpush.msra.mxu0 %v1863
    %2046 = vmatpush.msra.mxu0 %v1862
    %2047 = vmatpush.msra.mxu0 %v1861
    %2048 = vmatpush.msra.mxu0 %v1860
    %2049 = vmatmul.f32.gmra.mxu0 %v1245
    %v2050 = vpop.f32.mrf.mxu0
    %v2051 = vadd.f32 %v1962, %v2050
    %2052 = vmatmul.f32.gmra.mxu0 %v1248
    %v2053 = vpop.f32.mrf.mxu0
    %v2054 = vadd.f32 %v1965, %v2053
    %2055 = vmatmul.f32.gmra.mxu0 %v1251
    %v2056 = vpop.f32.mrf.mxu0
    %v2057 = vadd.f32 %v1968, %v2056
    %2058 = vmatmul.f32.gmra.mxu0 %v1254
    %v2059 = vpop.f32.mrf.mxu0
    %v2060 = vadd.f32 %v1971, %v2059
    %2061 = vmatmul.f32.gmra.mxu0 %v1257
    %v2062 = vpop.f32.mrf.mxu0
    %v2063 = vadd.f32 %v1974, %v2062
    %2064 = vmatmul.f32.gmra.mxu0 %v1260
    %v2065 = vpop.f32.mrf.mxu0
    %v2066 = vadd.f32 %v1977, %v2065
    %2067 = vmatmul.f32.gmra.mxu0 %v1263
    %v2068 = vpop.f32.mrf.mxu0
    %v2069 = vadd.f32 %v1980, %v2068
    %2070 = vmatmul.f32.gmra.mxu0 %v1266
    %v2071 = vpop.f32.mrf.mxu0
    %v2072 = vadd.f32 %v1983, %v2071
    %2073 = vmatmul.f32.gmra.mxu0 %v1269
    %v2074 = vpop.f32.mrf.mxu0
    %v2075 = vadd.f32 %v1986, %v2074
    %2076 = vmatmul.f32.gmra.mxu0 %v1272
    %v2077 = vpop.f32.mrf.mxu0
    %v2078 = vadd.f32 %v1989, %v2077
    %2079 = vmatmul.f32.gmra.mxu0 %v1275
    %v2080 = vpop.f32.mrf.mxu0
    %v2081 = vadd.f32 %v1992, %v2080
    %2082 = vmatmul.f32.gmra.mxu0 %v1278
    %v2083 = vpop.f32.mrf.mxu0
    %v2084 = vadd.f32 %v1995, %v2083
    %2085 = vmatmul.f32.gmra.mxu0 %v1281
    %v2086 = vpop.f32.mrf.mxu0
    %v2087 = vadd.f32 %v1998, %v2086
    %2088 = vmatmul.f32.gmra.mxu0 %v1284
    %v2089 = vpop.f32.mrf.mxu0
    %v2090 = vadd.f32 %v2001, %v2089
    %2091 = vmatmul.f32.gmra.mxu0 %v1287
    %v2092 = vpop.f32.mrf.mxu0
    %v2093 = vadd.f32 %v2004, %v2092
    %2094 = vmatmul.f32.gmra.mxu0 %v1290
    %v2095 = vpop.f32.mrf.mxu0
    %v2096 = vadd.f32 %v2007, %v2095
    %2097 = vmatmul.f32.gmra.mxu0 %v1293
    %v2098 = vpop.f32.mrf.mxu0
    %v2099 = vadd.f32 %v2010, %v2098
    %2100 = vmatmul.f32.gmra.mxu0 %v1296
    %v2101 = vpop.f32.mrf.mxu0
    %v2102 = vadd.f32 %v2013, %v2101
    %2103 = vmatmul.f32.gmra.mxu0 %v1299
    %v2104 = vpop.f32.mrf.mxu0
    %v2105 = vadd.f32 %v2016, %v2104
    %2106 = vmatmul.f32.gmra.mxu0 %v1302
    %v2107 = vpop.f32.mrf.mxu0
    %v2108 = vadd.f32 %v2019, %v2107
    %2109 = vmatmul.f32.gmra.mxu0 %v1305
    %v2110 = vpop.f32.mrf.mxu0
    %v2111 = vadd.f32 %v2022, %v2110
    %2112 = vmatmul.f32.gmra.mxu0 %v1308
    %v2113 = vpop.f32.mrf.mxu0
    %v2114 = vadd.f32 %v2025, %v2113
    %2115 = vmatmul.f32.gmra.mxu0 %v1311
    %v2116 = vpop.f32.mrf.mxu0
    %v2117 = vadd.f32 %v2028, %v2116
    %2118 = vmatmul.f32.gmra.mxu0 %v1314
    %v2119 = vpop.f32.mrf.mxu0
    %v2120 = vadd.f32 %v2031, %v2119
    %2121 = vdwg.mxu0
    %v2123 = vsel %vm351, %v1789, 0
    %v2126 = vsel %vm351, %v1792, 0
    %v2129 = vsel %vm351, %v1795, 0
    %v2132 = vsel %vm351, %v1798, 0
    %v2135 = vsel %vm351, %v1801, 0
    %v2138 = vsel %vm351, %v1804, 0
    %v2141 = vsel %vm351, %v1807, 0
    %v2144 = vsel %vm351, %v1810, 0
    %v2147 = vsel %vm351, %v1813, 0
    %v2150 = vsel %vm351, %v1816, 0
    %v2153 = vsel %vm351, %v1819, 0
    %v2156 = vsel %vm351, %v1822, 0
    %v2159 = vsel %vm351, %v1825, 0
    %v2162 = vsel %vm351, %v1828, 0
    %v2165 = vsel %vm351, %v1831, 0
    %v2168 = vsel %vm351, %v1834, 0
    %v2171 = vsel %vm351, %v1837, 0
    %v2174 = vsel %vm351, %v1840, 0
    %v2177 = vsel %vm351, %v1843, 0
    %v2180 = vsel %vm351, %v1846, 0
    %v2183 = vsel %vm351, %v1849, 0
    %v2186 = vsel %vm351, %v1852, 0
    %v2189 = vsel %vm351, %v1855, 0
    %v2192 = vsel %vm351, %v1858, 0
    %2194 = vmatpush.msra.mxu0 0.0
    %2195 = vmatpush.msra.mxu0 0.0
    %2196 = vmatpush.msra.mxu0 0.0
    %2197 = vmatpush.msra.mxu0 0.0
    %2198 = vmatpush.msra.mxu0 0.0
    %2199 = vmatpush.msra.mxu0 0.0
    %2200 = vmatpush.msra.mxu0 0.0
    %2201 = vmatpush.msra.mxu0 0.0
    %2202 = vmatpush.msra.mxu0 0.0
    %2203 = vmatpush.msra.mxu0 0.0
    %2204 = vmatpush.msra.mxu0 0.0
    %2205 = vmatpush.msra.mxu0 0.0
    %2206 = vmatpush.msra.mxu0 %v1871
    %2207 = vmatpush.msra.mxu0 %v1870
    %2208 = vmatpush.msra.mxu0 %v1869
    %2209 = vmatpush.msra.mxu0 %v1868
    %2210 = vmatmul.f32.gmra.mxu0 %v2123
    %v2211 = vpop.f32.mrf.mxu0
    %v2212 = vadd.f32 0.0, %v2211
    %2213 = vmatmul.f32.gmra.mxu0 %v2126
    %v2214 = vpop.f32.mrf.mxu0
    %v2215 = vadd.f32 0.0, %v2214
    %2216 = vmatmul.f32.gmra.mxu0 %v2129
    %v2217 = vpop.f32.mrf.mxu0
    %v2218 = vadd.f32 0.0, %v2217
    %2219 = vmatmul.f32.gmra.mxu0 %v2132
    %v2220 = vpop.f32.mrf.mxu0
    %v2221 = vadd.f32 0.0, %v2220
    %2222 = vmatmul.f32.gmra.mxu0 %v2135
    %v2223 = vpop.f32.mrf.mxu0
    %v2224 = vadd.f32 0.0, %v2223
    %2225 = vmatmul.f32.gmra.mxu0 %v2138
    %v2226 = vpop.f32.mrf.mxu0
    %v2227 = vadd.f32 0.0, %v2226
    %2228 = vmatmul.f32.gmra.mxu0 %v2141
    %v2229 = vpop.f32.mrf.mxu0
    %v2230 = vadd.f32 0.0, %v2229
    %2231 = vmatmul.f32.gmra.mxu0 %v2144
    %v2232 = vpop.f32.mrf.mxu0
    %v2233 = vadd.f32 0.0, %v2232
    %2234 = vmatmul.f32.gmra.mxu0 %v2147
    %v2235 = vpop.f32.mrf.mxu0
    %v2236 = vadd.f32 0.0, %v2235
    %2237 = vmatmul.f32.gmra.mxu0 %v2150
    %v2238 = vpop.f32.mrf.mxu0
    %v2239 = vadd.f32 0.0, %v2238
    %2240 = vmatmul.f32.gmra.mxu0 %v2153
    %v2241 = vpop.f32.mrf.mxu0
    %v2242 = vadd.f32 0.0, %v2241
    %2243 = vmatmul.f32.gmra.mxu0 %v2156
    %v2244 = vpop.f32.mrf.mxu0
    %v2245 = vadd.f32 0.0, %v2244
    %2246 = vmatmul.f32.gmra.mxu0 %v2159
    %v2247 = vpop.f32.mrf.mxu0
    %v2248 = vadd.f32 0.0, %v2247
    %2249 = vmatmul.f32.gmra.mxu0 %v2162
    %v2250 = vpop.f32.mrf.mxu0
    %v2251 = vadd.f32 0.0, %v2250
    %2252 = vmatmul.f32.gmra.mxu0 %v2165
    %v2253 = vpop.f32.mrf.mxu0
    %v2254 = vadd.f32 0.0, %v2253
    %2255 = vmatmul.f32.gmra.mxu0 %v2168
    %v2256 = vpop.f32.mrf.mxu0
    %v2257 = vadd.f32 0.0, %v2256
    %2258 = vmatmul.f32.gmra.mxu0 %v2171
    %v2259 = vpop.f32.mrf.mxu0
    %v2260 = vadd.f32 0.0, %v2259
    %2261 = vmatmul.f32.gmra.mxu0 %v2174
    %v2262 = vpop.f32.mrf.mxu0
    %v2263 = vadd.f32 0.0, %v2262
    %2264 = vmatmul.f32.gmra.mxu0 %v2177
    %v2265 = vpop.f32.mrf.mxu0
    %v2266 = vadd.f32 0.0, %v2265
    %2267 = vmatmul.f32.gmra.mxu0 %v2180
    %v2268 = vpop.f32.mrf.mxu0
    %v2269 = vadd.f32 0.0, %v2268
    %2270 = vmatmul.f32.gmra.mxu0 %v2183
    %v2271 = vpop.f32.mrf.mxu0
    %v2272 = vadd.f32 0.0, %v2271
    %2273 = vmatmul.f32.gmra.mxu0 %v2186
    %v2274 = vpop.f32.mrf.mxu0
    %v2275 = vadd.f32 0.0, %v2274
    %2276 = vmatmul.f32.gmra.mxu0 %v2189
    %v2277 = vpop.f32.mrf.mxu0
    %v2278 = vadd.f32 0.0, %v2277
    %2279 = vmatmul.f32.gmra.mxu0 %v2192
    %v2280 = vpop.f32.mrf.mxu0
    %v2281 = vadd.f32 0.0, %v2280
    %2282 = vdwg.mxu0
    %v2283 = vadd.f32 %v2051, %v2212
    %v2284 = vadd.f32 %v2054, %v2215
    %v2285 = vadd.f32 %v2057, %v2218
    %v2286 = vadd.f32 %v2060, %v2221
    %v2287 = vadd.f32 %v2063, %v2224
    %v2288 = vadd.f32 %v2066, %v2227
    %v2289 = vadd.f32 %v2069, %v2230
    %v2290 = vadd.f32 %v2072, %v2233
    %v2291 = vadd.f32 %v2075, %v2236
    %v2292 = vadd.f32 %v2078, %v2239
    %v2293 = vadd.f32 %v2081, %v2242
    %v2294 = vadd.f32 %v2084, %v2245
    %v2295 = vadd.f32 %v2087, %v2248
    %v2296 = vadd.f32 %v2090, %v2251
    %v2297 = vadd.f32 %v2093, %v2254
    %v2298 = vadd.f32 %v2096, %v2257
    %v2299 = vadd.f32 %v2099, %v2260
    %v2300 = vadd.f32 %v2102, %v2263
    %v2301 = vadd.f32 %v2105, %v2266
    %v2302 = vadd.f32 %v2108, %v2269
    %v2303 = vadd.f32 %v2111, %v2272
    %v2304 = vadd.f32 %v2114, %v2275
    %v2305 = vadd.f32 %v2117, %v2278
    %v2306 = vadd.f32 %v2120, %v2281
    %v2307 = vld [vmem:[%s10] sm:$0x1]
    %v2309 = vperm.slane %v2307, 0
    %v2311 = vadd.f32 %v2283, %v2309
    %v2312 = vadd.f32 %v2284, %v2309
    %v2313 = vadd.f32 %v2285, %v2309
    %v2314 = vadd.f32 %v2286, %v2309
    %v2315 = vadd.f32 %v2287, %v2309
    %v2316 = vadd.f32 %v2288, %v2309
    %v2317 = vadd.f32 %v2289, %v2309
    %v2318 = vadd.f32 %v2290, %v2309
    %v2319 = vadd.f32 %v2291, %v2309
    %v2320 = vadd.f32 %v2292, %v2309
    %v2321 = vadd.f32 %v2293, %v2309
    %v2322 = vadd.f32 %v2294, %v2309
    %v2323 = vadd.f32 %v2295, %v2309
    %v2324 = vadd.f32 %v2296, %v2309
    %v2325 = vadd.f32 %v2297, %v2309
    %v2326 = vadd.f32 %v2298, %v2309
    %v2327 = vadd.f32 %v2299, %v2309
    %v2328 = vadd.f32 %v2300, %v2309
    %v2329 = vadd.f32 %v2301, %v2309
    %v2330 = vadd.f32 %v2302, %v2309
    %v2331 = vadd.f32 %v2303, %v2309
    %v2332 = vadd.f32 %v2304, %v2309
    %v2333 = vadd.f32 %v2305, %v2309
    %v2334 = vadd.f32 %v2306, %v2309
    %v2335 = vadd.f32 %v2311, %v319
    %v2336 = vadd.f32 %v2312, %v320
    %v2337 = vadd.f32 %v2313, %v321
    %v2338 = vadd.f32 %v2314, %v322
    %v2339 = vadd.f32 %v2315, %v323
    %v2340 = vadd.f32 %v2316, %v324
    %v2341 = vadd.f32 %v2317, %v325
    %v2342 = vadd.f32 %v2318, %v326
    %v2343 = vadd.f32 %v2319, %v327
    %v2344 = vadd.f32 %v2320, %v328
    %v2345 = vadd.f32 %v2321, %v329
    %v2346 = vadd.f32 %v2322, %v330
    %v2347 = vadd.f32 %v2323, %v331
    %v2348 = vadd.f32 %v2324, %v332
    %v2349 = vadd.f32 %v2325, %v333
    %v2350 = vadd.f32 %v2326, %v334
    %v2351 = vadd.f32 %v2327, %v335
    %v2352 = vadd.f32 %v2328, %v336
    %v2353 = vadd.f32 %v2329, %v337
    %v2354 = vadd.f32 %v2330, %v338
    %v2355 = vadd.f32 %v2331, %v339
    %v2356 = vadd.f32 %v2332, %v340
    %v2357 = vadd.f32 %v2333, %v341
    %v2358 = vadd.f32 %v2334, %v342
    %v2359 = vld [vmem:[%s11] sm:$0x1]
    %v2361 = vperm.slane %v2359, 0
    %v2363 = vmul.f32 %v2335, %v2361
    %v2364 = vmul.f32 %v2336, %v2361
    %v2365 = vmul.f32 %v2337, %v2361
    %v2366 = vmul.f32 %v2338, %v2361
    %v2367 = vmul.f32 %v2339, %v2361
    %v2368 = vmul.f32 %v2340, %v2361
    %v2369 = vmul.f32 %v2341, %v2361
    %v2370 = vmul.f32 %v2342, %v2361
    %v2371 = vmul.f32 %v2343, %v2361
    %v2372 = vmul.f32 %v2344, %v2361
    %v2373 = vmul.f32 %v2345, %v2361
    %v2374 = vmul.f32 %v2346, %v2361
    %v2375 = vmul.f32 %v2347, %v2361
    %v2376 = vmul.f32 %v2348, %v2361
    %v2377 = vmul.f32 %v2349, %v2361
    %v2378 = vmul.f32 %v2350, %v2361
    %v2379 = vmul.f32 %v2351, %v2361
    %v2380 = vmul.f32 %v2352, %v2361
    %v2381 = vmul.f32 %v2353, %v2361
    %v2382 = vmul.f32 %v2354, %v2361
    %v2383 = vmul.f32 %v2355, %v2361
    %v2384 = vmul.f32 %v2356, %v2361
    %v2385 = vmul.f32 %v2357, %v2361
    %v2386 = vmul.f32 %v2358, %v2361
    %v2387 = vld [vmem:[%s12] sm:$0x1]
    %v2389 = vperm.slane %v2387, 0
    %v2391 = vadd.f32 %v2363, %v2389
    %v2392 = vadd.f32 %v2364, %v2389
    %v2393 = vadd.f32 %v2365, %v2389
    %v2394 = vadd.f32 %v2366, %v2389
    %v2395 = vadd.f32 %v2367, %v2389
    %v2396 = vadd.f32 %v2368, %v2389
    %v2397 = vadd.f32 %v2369, %v2389
    %v2398 = vadd.f32 %v2370, %v2389
    %v2399 = vadd.f32 %v2371, %v2389
    %v2400 = vadd.f32 %v2372, %v2389
    %v2401 = vadd.f32 %v2373, %v2389
    %v2402 = vadd.f32 %v2374, %v2389
    %v2403 = vadd.f32 %v2375, %v2389
    %v2404 = vadd.f32 %v2376, %v2389
    %v2405 = vadd.f32 %v2377, %v2389
    %v2406 = vadd.f32 %v2378, %v2389
    %v2407 = vadd.f32 %v2379, %v2389
    %v2408 = vadd.f32 %v2380, %v2389
    %v2409 = vadd.f32 %v2381, %v2389
    %v2410 = vadd.f32 %v2382, %v2389
    %v2411 = vadd.f32 %v2383, %v2389
    %v2412 = vadd.f32 %v2384, %v2389
    %v2413 = vadd.f32 %v2385, %v2389
    %v2414 = vadd.f32 %v2386, %v2389
    %s2415 = scalar_lea.vmem %s4, 32
    %v2416 = vld [vmem:[%s2415] sm:$0xff]
    %v2417 = vld [vmem:[%s2415 + $0x8] sm:$0xff]
    %v2418 = vld [vmem:[%s2415 + $0x10] sm:$0xff]
    %v2419 = vld [vmem:[%s2415 + $0x18] sm:$0xff]
    %s2420 = scalar_lea.vmem %s5, 32
    %v2421 = vld [vmem:[%s2420] sm:$0xff]
    %v2422 = vld [vmem:[%s2420 + $0x8] sm:$0xff]
    %v2423 = vld [vmem:[%s2420 + $0x10] sm:$0xff]
    %v2424 = vld [vmem:[%s2420 + $0x18] sm:$0xff]
    %v2426 = vsel %vm351, %v2395, 0
    %v2429 = vsel %vm351, %v2396, 0
    %v2432 = vsel %vm351, %v2397, 0
    %v2435 = vsel %vm351, %v2398, 0
    %v2438 = vsel %vm351, %v2399, 0
    %v2441 = vsel %vm351, %v2400, 0
    %v2444 = vsel %vm351, %v2401, 0
    %v2447 = vsel %vm351, %v2402, 0
    %v2450 = vsel %vm351, %v2403, 0
    %v2453 = vsel %vm351, %v2404, 0
    %v2456 = vsel %vm351, %v2405, 0
    %v2459 = vsel %vm351, %v2406, 0
    %v2462 = vsel %vm351, %v2407, 0
    %v2465 = vsel %vm351, %v2408, 0
    %v2468 = vsel %vm351, %v2409, 0
    %v2471 = vsel %vm351, %v2410, 0
    %v2474 = vsel %vm351, %v2411, 0
    %v2477 = vsel %vm351, %v2412, 0
    %v2480 = vsel %vm351, %v2413, 0
    %v2483 = vsel %vm351, %v2414, 0
    %2485 = vmatpush.msra.mxu0 0.0
    %2486 = vmatpush.msra.mxu0 0.0
    %2487 = vmatpush.msra.mxu0 0.0
    %2488 = vmatpush.msra.mxu0 0.0
    %2489 = vmatpush.msra.mxu0 0.0
    %2490 = vmatpush.msra.mxu0 0.0
    %2491 = vmatpush.msra.mxu0 0.0
    %2492 = vmatpush.msra.mxu0 0.0
    %2493 = vmatpush.msra.mxu0 0.0
    %2494 = vmatpush.msra.mxu0 0.0
    %2495 = vmatpush.msra.mxu0 0.0
    %2496 = vmatpush.msra.mxu0 0.0
    %2497 = vmatpush.msra.mxu0 %v2424
    %2498 = vmatpush.msra.mxu0 %v2423
    %2499 = vmatpush.msra.mxu0 %v2422
    %2500 = vmatpush.msra.mxu0 %v2421
    %2501 = vmatmul.f32.gmra.mxu0 %v2426
    %v2502 = vpop.f32.mrf.mxu0
    %v2503 = vadd.f32 0.0, %v2502
    %2504 = vmatmul.f32.gmra.mxu0 %v2429
    %v2505 = vpop.f32.mrf.mxu0
    %v2506 = vadd.f32 0.0, %v2505
    %2507 = vmatmul.f32.gmra.mxu0 %v2432
    %v2508 = vpop.f32.mrf.mxu0
    %v2509 = vadd.f32 0.0, %v2508
    %2510 = vmatmul.f32.gmra.mxu0 %v2435
    %v2511 = vpop.f32.mrf.mxu0
    %v2512 = vadd.f32 0.0, %v2511
    %2513 = vmatmul.f32.gmra.mxu0 %v2438
    %v2514 = vpop.f32.mrf.mxu0
    %v2515 = vadd.f32 0.0, %v2514
    %2516 = vmatmul.f32.gmra.mxu0 %v2441
    %v2517 = vpop.f32.mrf.mxu0
    %v2518 = vadd.f32 0.0, %v2517
    %2519 = vmatmul.f32.gmra.mxu0 %v2444
    %v2520 = vpop.f32.mrf.mxu0
    %v2521 = vadd.f32 0.0, %v2520
    %2522 = vmatmul.f32.gmra.mxu0 %v2447
    %v2523 = vpop.f32.mrf.mxu0
    %v2524 = vadd.f32 0.0, %v2523
    %2525 = vmatmul.f32.gmra.mxu0 %v2450
    %v2526 = vpop.f32.mrf.mxu0
    %v2527 = vadd.f32 0.0, %v2526
    %2528 = vmatmul.f32.gmra.mxu0 %v2453
    %v2529 = vpop.f32.mrf.mxu0
    %v2530 = vadd.f32 0.0, %v2529
    %2531 = vmatmul.f32.gmra.mxu0 %v2456
    %v2532 = vpop.f32.mrf.mxu0
    %v2533 = vadd.f32 0.0, %v2532
    %2534 = vmatmul.f32.gmra.mxu0 %v2459
    %v2535 = vpop.f32.mrf.mxu0
    %v2536 = vadd.f32 0.0, %v2535
    %2537 = vmatmul.f32.gmra.mxu0 %v2462
    %v2538 = vpop.f32.mrf.mxu0
    %v2539 = vadd.f32 0.0, %v2538
    %2540 = vmatmul.f32.gmra.mxu0 %v2465
    %v2541 = vpop.f32.mrf.mxu0
    %v2542 = vadd.f32 0.0, %v2541
    %2543 = vmatmul.f32.gmra.mxu0 %v2468
    %v2544 = vpop.f32.mrf.mxu0
    %v2545 = vadd.f32 0.0, %v2544
    %2546 = vmatmul.f32.gmra.mxu0 %v2471
    %v2547 = vpop.f32.mrf.mxu0
    %v2548 = vadd.f32 0.0, %v2547
    %2549 = vmatmul.f32.gmra.mxu0 %v2474
    %v2550 = vpop.f32.mrf.mxu0
    %v2551 = vadd.f32 0.0, %v2550
    %2552 = vmatmul.f32.gmra.mxu0 %v2477
    %v2553 = vpop.f32.mrf.mxu0
    %v2554 = vadd.f32 0.0, %v2553
    %2555 = vmatmul.f32.gmra.mxu0 %v2480
    %v2556 = vpop.f32.mrf.mxu0
    %v2557 = vadd.f32 0.0, %v2556
    %2558 = vmatmul.f32.gmra.mxu0 %v2483
    %v2559 = vpop.f32.mrf.mxu0
    %v2560 = vadd.f32 0.0, %v2559
    %2561 = vdwg.mxu0
    %v2563 = vsel %vm351, %v2391, 0
    %v2566 = vsel %vm351, %v2392, 0
    %v2569 = vsel %vm351, %v2393, 0
    %v2572 = vsel %vm351, %v2394, 0
    %2574 = vmatpush.msra.mxu0 0.0
    %2575 = vmatpush.msra.mxu0 0.0
    %2576 = vmatpush.msra.mxu0 0.0
    %2577 = vmatpush.msra.mxu0 0.0
    %2578 = vmatpush.msra.mxu0 0.0
    %2579 = vmatpush.msra.mxu0 0.0
    %2580 = vmatpush.msra.mxu0 0.0
    %2581 = vmatpush.msra.mxu0 0.0
    %2582 = vmatpush.msra.mxu0 0.0
    %2583 = vmatpush.msra.mxu0 0.0
    %2584 = vmatpush.msra.mxu0 0.0
    %2585 = vmatpush.msra.mxu0 0.0
    %2586 = vmatpush.msra.mxu0 %v2419
    %2587 = vmatpush.msra.mxu0 %v2418
    %2588 = vmatpush.msra.mxu0 %v2417
    %2589 = vmatpush.msra.mxu0 %v2416
    %2590 = vmatmul.f32.gmra.mxu0 %v2563
    %v2591 = vpop.f32.mrf.mxu0
    %v2592 = vadd.f32 %v2503, %v2591
    %2593 = vmatmul.f32.gmra.mxu0 %v2566
    %v2594 = vpop.f32.mrf.mxu0
    %v2595 = vadd.f32 %v2506, %v2594
    %2596 = vmatmul.f32.gmra.mxu0 %v2569
    %v2597 = vpop.f32.mrf.mxu0
    %v2598 = vadd.f32 %v2509, %v2597
    %2599 = vmatmul.f32.gmra.mxu0 %v2572
    %v2600 = vpop.f32.mrf.mxu0
    %v2601 = vadd.f32 %v2512, %v2600
    %2602 = vmatmul.f32.gmra.mxu0 %v2426
    %v2603 = vpop.f32.mrf.mxu0
    %v2604 = vadd.f32 %v2515, %v2603
    %2605 = vmatmul.f32.gmra.mxu0 %v2429
    %v2606 = vpop.f32.mrf.mxu0
    %v2607 = vadd.f32 %v2518, %v2606
    %2608 = vmatmul.f32.gmra.mxu0 %v2432
    %v2609 = vpop.f32.mrf.mxu0
    %v2610 = vadd.f32 %v2521, %v2609
    %2611 = vmatmul.f32.gmra.mxu0 %v2435
    %v2612 = vpop.f32.mrf.mxu0
    %v2613 = vadd.f32 %v2524, %v2612
    %2614 = vmatmul.f32.gmra.mxu0 %v2438
    %v2615 = vpop.f32.mrf.mxu0
    %v2616 = vadd.f32 %v2527, %v2615
    %2617 = vmatmul.f32.gmra.mxu0 %v2441
    %v2618 = vpop.f32.mrf.mxu0
    %v2619 = vadd.f32 %v2530, %v2618
    %2620 = vmatmul.f32.gmra.mxu0 %v2444
    %v2621 = vpop.f32.mrf.mxu0
    %v2622 = vadd.f32 %v2533, %v2621
    %2623 = vmatmul.f32.gmra.mxu0 %v2447
    %v2624 = vpop.f32.mrf.mxu0
    %v2625 = vadd.f32 %v2536, %v2624
    %2626 = vmatmul.f32.gmra.mxu0 %v2450
    %v2627 = vpop.f32.mrf.mxu0
    %v2628 = vadd.f32 %v2539, %v2627
    %2629 = vmatmul.f32.gmra.mxu0 %v2453
    %v2630 = vpop.f32.mrf.mxu0
    %v2631 = vadd.f32 %v2542, %v2630
    %2632 = vmatmul.f32.gmra.mxu0 %v2456
    %v2633 = vpop.f32.mrf.mxu0
    %v2634 = vadd.f32 %v2545, %v2633
    %2635 = vmatmul.f32.gmra.mxu0 %v2459
    %v2636 = vpop.f32.mrf.mxu0
    %v2637 = vadd.f32 %v2548, %v2636
    %2638 = vmatmul.f32.gmra.mxu0 %v2462
    %v2639 = vpop.f32.mrf.mxu0
    %v2640 = vadd.f32 %v2551, %v2639
    %2641 = vmatmul.f32.gmra.mxu0 %v2465
    %v2642 = vpop.f32.mrf.mxu0
    %v2643 = vadd.f32 %v2554, %v2642
    %2644 = vmatmul.f32.gmra.mxu0 %v2468
    %v2645 = vpop.f32.mrf.mxu0
    %v2646 = vadd.f32 %v2557, %v2645
    %2647 = vmatmul.f32.gmra.mxu0 %v2471
    %v2648 = vpop.f32.mrf.mxu0
    %v2649 = vadd.f32 %v2560, %v2648
    %2650 = vdwg.mxu0
    %s2651 = scalar_lea.vmem %s6, 1
    %v2652 = vld [vmem:[%s2651] sm:$0x1]
    %v2654 = vperm.slane %v2652, 0
    %v2656 = vadd.f32 %v2592, %v2654
    %v2657 = vadd.f32 %v2595, %v2654
    %v2658 = vadd.f32 %v2598, %v2654
    %v2659 = vadd.f32 %v2601, %v2654
    %v2660 = vadd.f32 %v2604, %v2654
    %v2661 = vadd.f32 %v2607, %v2654
    %v2662 = vadd.f32 %v2610, %v2654
    %v2663 = vadd.f32 %v2613, %v2654
    %v2664 = vadd.f32 %v2616, %v2654
    %v2665 = vadd.f32 %v2619, %v2654
    %v2666 = vadd.f32 %v2622, %v2654
    %v2667 = vadd.f32 %v2625, %v2654
    %v2668 = vadd.f32 %v2628, %v2654
    %v2669 = vadd.f32 %v2631, %v2654
    %v2670 = vadd.f32 %v2634, %v2654
    %v2671 = vadd.f32 %v2637, %v2654
    %v2672 = vadd.f32 %v2640, %v2654
    %v2673 = vadd.f32 %v2643, %v2654
    %v2674 = vadd.f32 %v2646, %v2654
    %v2675 = vadd.f32 %v2649, %v2654
    %v2676 = vtanh.pop %v2656
    %v2677 = vtanh.pop %v2657
    %v2678 = vtanh.pop %v2658
    %v2679 = vtanh.pop %v2659
    %v2680 = vtanh.pop %v2660
    %v2681 = vtanh.pop %v2661
    %v2682 = vtanh.pop %v2662
    %v2683 = vtanh.pop %v2663
    %v2684 = vtanh.pop %v2664
    %v2685 = vtanh.pop %v2665
    %v2686 = vtanh.pop %v2666
    %v2687 = vtanh.pop %v2667
    %v2688 = vtanh.pop %v2668
    %v2689 = vtanh.pop %v2669
    %v2690 = vtanh.pop %v2670
    %v2691 = vtanh.pop %v2671
    %v2692 = vtanh.pop %v2672
    %v2693 = vtanh.pop %v2673
    %v2694 = vtanh.pop %v2674
    %v2695 = vtanh.pop %v2675
    %v2696 = vxor.u32 %v2656, 2147483648
    %v2697 = vxor.u32 %v2657, 2147483648
    %v2698 = vxor.u32 %v2658, 2147483648
    %v2699 = vxor.u32 %v2659, 2147483648
    %v2700 = vxor.u32 %v2660, 2147483648
    %v2701 = vxor.u32 %v2661, 2147483648
    %v2702 = vxor.u32 %v2662, 2147483648
    %v2703 = vxor.u32 %v2663, 2147483648
    %v2704 = vxor.u32 %v2664, 2147483648
    %v2705 = vxor.u32 %v2665, 2147483648
    %v2706 = vxor.u32 %v2666, 2147483648
    %v2707 = vxor.u32 %v2667, 2147483648
    %v2708 = vxor.u32 %v2668, 2147483648
    %v2709 = vxor.u32 %v2669, 2147483648
    %v2710 = vxor.u32 %v2670, 2147483648
    %v2711 = vxor.u32 %v2671, 2147483648
    %v2712 = vxor.u32 %v2672, 2147483648
    %v2713 = vxor.u32 %v2673, 2147483648
    %v2714 = vxor.u32 %v2674, 2147483648
    %v2715 = vxor.u32 %v2675, 2147483648
    %v2716 = vmul.f32 %v2696, 1.442695
    %v2717 = vpow.pop %v2716
    %v2718 = vmul.f32 %v2697, 1.442695
    %v2719 = vpow.pop %v2718
    %v2720 = vmul.f32 %v2698, 1.442695
    %v2721 = vpow.pop %v2720
    %v2722 = vmul.f32 %v2699, 1.442695
    %v2723 = vpow.pop %v2722
    %v2724 = vmul.f32 %v2700, 1.442695
    %v2725 = vpow.pop %v2724
    %v2726 = vmul.f32 %v2701, 1.442695
    %v2727 = vpow.pop %v2726
    %v2728 = vmul.f32 %v2702, 1.442695
    %v2729 = vpow.pop %v2728
    %v2730 = vmul.f32 %v2703, 1.442695
    %v2731 = vpow.pop %v2730
    %v2732 = vmul.f32 %v2704, 1.442695
    %v2733 = vpow.pop %v2732
    %v2734 = vmul.f32 %v2705, 1.442695
    %v2735 = vpow.pop %v2734
    %v2736 = vmul.f32 %v2706, 1.442695
    %v2737 = vpow.pop %v2736
    %v2738 = vmul.f32 %v2707, 1.442695
    %v2739 = vpow.pop %v2738
    %v2740 = vmul.f32 %v2708, 1.442695
    %v2741 = vpow.pop %v2740
    %v2742 = vmul.f32 %v2709, 1.442695
    %v2743 = vpow.pop %v2742
    %v2744 = vmul.f32 %v2710, 1.442695
    %v2745 = vpow.pop %v2744
    %v2746 = vmul.f32 %v2711, 1.442695
    %v2747 = vpow.pop %v2746
    %v2748 = vmul.f32 %v2712, 1.442695
    %v2749 = vpow.pop %v2748
    %v2750 = vmul.f32 %v2713, 1.442695
    %v2751 = vpow.pop %v2750
    %v2752 = vmul.f32 %v2714, 1.442695
    %v2753 = vpow.pop %v2752
    %v2754 = vmul.f32 %v2715, 1.442695
    %v2755 = vpow.pop %v2754
    %v2756 = vadd.f32 %v2717, 1.0
    %v2757 = vadd.f32 %v2719, 1.0
    %v2758 = vadd.f32 %v2721, 1.0
    %v2759 = vadd.f32 %v2723, 1.0
    %v2760 = vadd.f32 %v2725, 1.0
    %v2761 = vadd.f32 %v2727, 1.0
    %v2762 = vadd.f32 %v2729, 1.0
    %v2763 = vadd.f32 %v2731, 1.0
    %v2764 = vadd.f32 %v2733, 1.0
    %v2765 = vadd.f32 %v2735, 1.0
    %v2766 = vadd.f32 %v2737, 1.0
    %v2767 = vadd.f32 %v2739, 1.0
    %v2768 = vadd.f32 %v2741, 1.0
    %v2769 = vadd.f32 %v2743, 1.0
    %v2770 = vadd.f32 %v2745, 1.0
    %v2771 = vadd.f32 %v2747, 1.0
    %v2772 = vadd.f32 %v2749, 1.0
    %v2773 = vadd.f32 %v2751, 1.0
    %v2774 = vadd.f32 %v2753, 1.0
    %v2775 = vadd.f32 %v2755, 1.0
    %v2776 = vrcp.pop %v2756
    %v2777 = vmul.f32 %v2756, %v2776
    %v2778 = vsub.f32 1.0, %v2777
    %v2779 = vmul.f32 %v2776, %v2778
    %v2780 = vadd.f32 %v2776, %v2779
    %vm2781 = vweird.f32 %v2756
    %vm2782 = vweird.f32 %v2776
    %vm2783 = vmor %vm2781, %vm2782
    %v2784 = vsel %vm2783, %v2776, %v2780
    %v2785 = vand.u32 2147483647, %v2756
    %vm2786 = vcmp.eq.f32.partialorder %v2785, 8.507059e+37
    %v2787 = vand.u32 %v2756, 2147483648
    %v2788 = vor.u32 1.1754944e-38, %v2787
    %v2789 = vsel %vm2786, %v2788, %v2784
    %v2790 = vmul.f32 1.0, %v2789
    %v2791 = vrcp.pop %v2757
    %v2792 = vmul.f32 %v2757, %v2791
    %v2793 = vsub.f32 1.0, %v2792
    %v2794 = vmul.f32 %v2791, %v2793
    %v2795 = vadd.f32 %v2791, %v2794
    %vm2796 = vweird.f32 %v2757
    %vm2797 = vweird.f32 %v2791
    %vm2798 = vmor %vm2796, %vm2797
    %v2799 = vsel %vm2798, %v2791, %v2795
    %v2800 = vand.u32 2147483647, %v2757
    %vm2801 = vcmp.eq.f32.partialorder %v2800, 8.507059e+37
    %v2802 = vand.u32 %v2757, 2147483648
    %v2803 = vor.u32 1.1754944e-38, %v2802
    %v2804 = vsel %vm2801, %v2803, %v2799
    %v2805 = vmul.f32 1.0, %v2804
    %v2806 = vrcp.pop %v2758
    %v2807 = vmul.f32 %v2758, %v2806
    %v2808 = vsub.f32 1.0, %v2807
    %v2809 = vmul.f32 %v2806, %v2808
    %v2810 = vadd.f32 %v2806, %v2809
    %vm2811 = vweird.f32 %v2758
    %vm2812 = vweird.f32 %v2806
    %vm2813 = vmor %vm2811, %vm2812
    %v2814 = vsel %vm2813, %v2806, %v2810
    %v2815 = vand.u32 2147483647, %v2758
    %vm2816 = vcmp.eq.f32.partialorder %v2815, 8.507059e+37
    %v2817 = vand.u32 %v2758, 2147483648
    %v2818 = vor.u32 1.1754944e-38, %v2817
    %v2819 = vsel %vm2816, %v2818, %v2814
    %v2820 = vmul.f32 1.0, %v2819
    %v2821 = vrcp.pop %v2759
    %v2822 = vmul.f32 %v2759, %v2821
    %v2823 = vsub.f32 1.0, %v2822
    %v2824 = vmul.f32 %v2821, %v2823
    %v2825 = vadd.f32 %v2821, %v2824
    %vm2826 = vweird.f32 %v2759
    %vm2827 = vweird.f32 %v2821
    %vm2828 = vmor %vm2826, %vm2827
    %v2829 = vsel %vm2828, %v2821, %v2825
    %v2830 = vand.u32 2147483647, %v2759
    %vm2831 = vcmp.eq.f32.partialorder %v2830, 8.507059e+37
    %v2832 = vand.u32 %v2759, 2147483648
    %v2833 = vor.u32 1.1754944e-38, %v2832
    %v2834 = vsel %vm2831, %v2833, %v2829
    %v2835 = vmul.f32 1.0, %v2834
    %v2836 = vrcp.pop %v2760
    %v2837 = vmul.f32 %v2760, %v2836
    %v2838 = vsub.f32 1.0, %v2837
    %v2839 = vmul.f32 %v2836, %v2838
    %v2840 = vadd.f32 %v2836, %v2839
    %vm2841 = vweird.f32 %v2760
    %vm2842 = vweird.f32 %v2836
    %vm2843 = vmor %vm2841, %vm2842
    %v2844 = vsel %vm2843, %v2836, %v2840
    %v2845 = vand.u32 2147483647, %v2760
    %vm2846 = vcmp.eq.f32.partialorder %v2845, 8.507059e+37
    %v2847 = vand.u32 %v2760, 2147483648
    %v2848 = vor.u32 1.1754944e-38, %v2847
    %v2849 = vsel %vm2846, %v2848, %v2844
    %v2850 = vmul.f32 1.0, %v2849
    %v2851 = vrcp.pop %v2761
    %v2852 = vmul.f32 %v2761, %v2851
    %v2853 = vsub.f32 1.0, %v2852
    %v2854 = vmul.f32 %v2851, %v2853
    %v2855 = vadd.f32 %v2851, %v2854
    %vm2856 = vweird.f32 %v2761
    %vm2857 = vweird.f32 %v2851
    %vm2858 = vmor %vm2856, %vm2857
    %v2859 = vsel %vm2858, %v2851, %v2855
    %v2860 = vand.u32 2147483647, %v2761
    %vm2861 = vcmp.eq.f32.partialorder %v2860, 8.507059e+37
    %v2862 = vand.u32 %v2761, 2147483648
    %v2863 = vor.u32 1.1754944e-38, %v2862
    %v2864 = vsel %vm2861, %v2863, %v2859
    %v2865 = vmul.f32 1.0, %v2864
    %v2866 = vrcp.pop %v2762
    %v2867 = vmul.f32 %v2762, %v2866
    %v2868 = vsub.f32 1.0, %v2867
    %v2869 = vmul.f32 %v2866, %v2868
    %v2870 = vadd.f32 %v2866, %v2869
    %vm2871 = vweird.f32 %v2762
    %vm2872 = vweird.f32 %v2866
    %vm2873 = vmor %vm2871, %vm2872
    %v2874 = vsel %vm2873, %v2866, %v2870
    %v2875 = vand.u32 2147483647, %v2762
    %vm2876 = vcmp.eq.f32.partialorder %v2875, 8.507059e+37
    %v2877 = vand.u32 %v2762, 2147483648
    %v2878 = vor.u32 1.1754944e-38, %v2877
    %v2879 = vsel %vm2876, %v2878, %v2874
    %v2880 = vmul.f32 1.0, %v2879
    %v2881 = vrcp.pop %v2763
    %v2882 = vmul.f32 %v2763, %v2881
    %v2883 = vsub.f32 1.0, %v2882
    %v2884 = vmul.f32 %v2881, %v2883
    %v2885 = vadd.f32 %v2881, %v2884
    %vm2886 = vweird.f32 %v2763
    %vm2887 = vweird.f32 %v2881
    %vm2888 = vmor %vm2886, %vm2887
    %v2889 = vsel %vm2888, %v2881, %v2885
    %v2890 = vand.u32 2147483647, %v2763
    %vm2891 = vcmp.eq.f32.partialorder %v2890, 8.507059e+37
    %v2892 = vand.u32 %v2763, 2147483648
    %v2893 = vor.u32 1.1754944e-38, %v2892
    %v2894 = vsel %vm2891, %v2893, %v2889
    %v2895 = vmul.f32 1.0, %v2894
    %v2896 = vrcp.pop %v2764
    %v2897 = vmul.f32 %v2764, %v2896
    %v2898 = vsub.f32 1.0, %v2897
    %v2899 = vmul.f32 %v2896, %v2898
    %v2900 = vadd.f32 %v2896, %v2899
    %vm2901 = vweird.f32 %v2764
    %vm2902 = vweird.f32 %v2896
    %vm2903 = vmor %vm2901, %vm2902
    %v2904 = vsel %vm2903, %v2896, %v2900
    %v2905 = vand.u32 2147483647, %v2764
    %vm2906 = vcmp.eq.f32.partialorder %v2905, 8.507059e+37
    %v2907 = vand.u32 %v2764, 2147483648
    %v2908 = vor.u32 1.1754944e-38, %v2907
    %v2909 = vsel %vm2906, %v2908, %v2904
    %v2910 = vmul.f32 1.0, %v2909
    %v2911 = vrcp.pop %v2765
    %v2912 = vmul.f32 %v2765, %v2911
    %v2913 = vsub.f32 1.0, %v2912
    %v2914 = vmul.f32 %v2911, %v2913
    %v2915 = vadd.f32 %v2911, %v2914
    %vm2916 = vweird.f32 %v2765
    %vm2917 = vweird.f32 %v2911
    %vm2918 = vmor %vm2916, %vm2917
    %v2919 = vsel %vm2918, %v2911, %v2915
    %v2920 = vand.u32 2147483647, %v2765
    %vm2921 = vcmp.eq.f32.partialorder %v2920, 8.507059e+37
    %v2922 = vand.u32 %v2765, 2147483648
    %v2923 = vor.u32 1.1754944e-38, %v2922
    %v2924 = vsel %vm2921, %v2923, %v2919
    %v2925 = vmul.f32 1.0, %v2924
    %v2926 = vrcp.pop %v2766
    %v2927 = vmul.f32 %v2766, %v2926
    %v2928 = vsub.f32 1.0, %v2927
    %v2929 = vmul.f32 %v2926, %v2928
    %v2930 = vadd.f32 %v2926, %v2929
    %vm2931 = vweird.f32 %v2766
    %vm2932 = vweird.f32 %v2926
    %vm2933 = vmor %vm2931, %vm2932
    %v2934 = vsel %vm2933, %v2926, %v2930
    %v2935 = vand.u32 2147483647, %v2766
    %vm2936 = vcmp.eq.f32.partialorder %v2935, 8.507059e+37
    %v2937 = vand.u32 %v2766, 2147483648
    %v2938 = vor.u32 1.1754944e-38, %v2937
    %v2939 = vsel %vm2936, %v2938, %v2934
    %v2940 = vmul.f32 1.0, %v2939
    %v2941 = vrcp.pop %v2767
    %v2942 = vmul.f32 %v2767, %v2941
    %v2943 = vsub.f32 1.0, %v2942
    %v2944 = vmul.f32 %v2941, %v2943
    %v2945 = vadd.f32 %v2941, %v2944
    %vm2946 = vweird.f32 %v2767
    %vm2947 = vweird.f32 %v2941
    %vm2948 = vmor %vm2946, %vm2947
    %v2949 = vsel %vm2948, %v2941, %v2945
    %v2950 = vand.u32 2147483647, %v2767
    %vm2951 = vcmp.eq.f32.partialorder %v2950, 8.507059e+37
    %v2952 = vand.u32 %v2767, 2147483648
    %v2953 = vor.u32 1.1754944e-38, %v2952
    %v2954 = vsel %vm2951, %v2953, %v2949
    %v2955 = vmul.f32 1.0, %v2954
    %v2956 = vrcp.pop %v2768
    %v2957 = vmul.f32 %v2768, %v2956
    %v2958 = vsub.f32 1.0, %v2957
    %v2959 = vmul.f32 %v2956, %v2958
    %v2960 = vadd.f32 %v2956, %v2959
    %vm2961 = vweird.f32 %v2768
    %vm2962 = vweird.f32 %v2956
    %vm2963 = vmor %vm2961, %vm2962
    %v2964 = vsel %vm2963, %v2956, %v2960
    %v2965 = vand.u32 2147483647, %v2768
    %vm2966 = vcmp.eq.f32.partialorder %v2965, 8.507059e+37
    %v2967 = vand.u32 %v2768, 2147483648
    %v2968 = vor.u32 1.1754944e-38, %v2967
    %v2969 = vsel %vm2966, %v2968, %v2964
    %v2970 = vmul.f32 1.0, %v2969
    %v2971 = vrcp.pop %v2769
    %v2972 = vmul.f32 %v2769, %v2971
    %v2973 = vsub.f32 1.0, %v2972
    %v2974 = vmul.f32 %v2971, %v2973
    %v2975 = vadd.f32 %v2971, %v2974
    %vm2976 = vweird.f32 %v2769
    %vm2977 = vweird.f32 %v2971
    %vm2978 = vmor %vm2976, %vm2977
    %v2979 = vsel %vm2978, %v2971, %v2975
    %v2980 = vand.u32 2147483647, %v2769
    %vm2981 = vcmp.eq.f32.partialorder %v2980, 8.507059e+37
    %v2982 = vand.u32 %v2769, 2147483648
    %v2983 = vor.u32 1.1754944e-38, %v2982
    %v2984 = vsel %vm2981, %v2983, %v2979
    %v2985 = vmul.f32 1.0, %v2984
    %v2986 = vrcp.pop %v2770
    %v2987 = vmul.f32 %v2770, %v2986
    %v2988 = vsub.f32 1.0, %v2987
    %v2989 = vmul.f32 %v2986, %v2988
    %v2990 = vadd.f32 %v2986, %v2989
    %vm2991 = vweird.f32 %v2770
    %vm2992 = vweird.f32 %v2986
    %vm2993 = vmor %vm2991, %vm2992
    %v2994 = vsel %vm2993, %v2986, %v2990
    %v2995 = vand.u32 2147483647, %v2770
    %vm2996 = vcmp.eq.f32.partialorder %v2995, 8.507059e+37
    %v2997 = vand.u32 %v2770, 2147483648
    %v2998 = vor.u32 1.1754944e-38, %v2997
    %v2999 = vsel %vm2996, %v2998, %v2994
    %v3000 = vmul.f32 1.0, %v2999
    %v3001 = vrcp.pop %v2771
    %v3002 = vmul.f32 %v2771, %v3001
    %v3003 = vsub.f32 1.0, %v3002
    %v3004 = vmul.f32 %v3001, %v3003
    %v3005 = vadd.f32 %v3001, %v3004
    %vm3006 = vweird.f32 %v2771
    %vm3007 = vweird.f32 %v3001
    %vm3008 = vmor %vm3006, %vm3007
    %v3009 = vsel %vm3008, %v3001, %v3005
    %v3010 = vand.u32 2147483647, %v2771
    %vm3011 = vcmp.eq.f32.partialorder %v3010, 8.507059e+37
    %v3012 = vand.u32 %v2771, 2147483648
    %v3013 = vor.u32 1.1754944e-38, %v3012
    %v3014 = vsel %vm3011, %v3013, %v3009
    %v3015 = vmul.f32 1.0, %v3014
    %v3016 = vrcp.pop %v2772
    %v3017 = vmul.f32 %v2772, %v3016
    %v3018 = vsub.f32 1.0, %v3017
    %v3019 = vmul.f32 %v3016, %v3018
    %v3020 = vadd.f32 %v3016, %v3019
    %vm3021 = vweird.f32 %v2772
    %vm3022 = vweird.f32 %v3016
    %vm3023 = vmor %vm3021, %vm3022
    %v3024 = vsel %vm3023, %v3016, %v3020
    %v3025 = vand.u32 2147483647, %v2772
    %vm3026 = vcmp.eq.f32.partialorder %v3025, 8.507059e+37
    %v3027 = vand.u32 %v2772, 2147483648
    %v3028 = vor.u32 1.1754944e-38, %v3027
    %v3029 = vsel %vm3026, %v3028, %v3024
    %v3030 = vmul.f32 1.0, %v3029
    %v3031 = vrcp.pop %v2773
    %v3032 = vmul.f32 %v2773, %v3031
    %v3033 = vsub.f32 1.0, %v3032
    %v3034 = vmul.f32 %v3031, %v3033
    %v3035 = vadd.f32 %v3031, %v3034
    %vm3036 = vweird.f32 %v2773
    %vm3037 = vweird.f32 %v3031
    %vm3038 = vmor %vm3036, %vm3037
    %v3039 = vsel %vm3038, %v3031, %v3035
    %v3040 = vand.u32 2147483647, %v2773
    %vm3041 = vcmp.eq.f32.partialorder %v3040, 8.507059e+37
    %v3042 = vand.u32 %v2773, 2147483648
    %v3043 = vor.u32 1.1754944e-38, %v3042
    %v3044 = vsel %vm3041, %v3043, %v3039
    %v3045 = vmul.f32 1.0, %v3044
    %v3046 = vrcp.pop %v2774
    %v3047 = vmul.f32 %v2774, %v3046
    %v3048 = vsub.f32 1.0, %v3047
    %v3049 = vmul.f32 %v3046, %v3048
    %v3050 = vadd.f32 %v3046, %v3049
    %vm3051 = vweird.f32 %v2774
    %vm3052 = vweird.f32 %v3046
    %vm3053 = vmor %vm3051, %vm3052
    %v3054 = vsel %vm3053, %v3046, %v3050
    %v3055 = vand.u32 2147483647, %v2774
    %vm3056 = vcmp.eq.f32.partialorder %v3055, 8.507059e+37
    %v3057 = vand.u32 %v2774, 2147483648
    %v3058 = vor.u32 1.1754944e-38, %v3057
    %v3059 = vsel %vm3056, %v3058, %v3054
    %v3060 = vmul.f32 1.0, %v3059
    %v3061 = vrcp.pop %v2775
    %v3062 = vmul.f32 %v2775, %v3061
    %v3063 = vsub.f32 1.0, %v3062
    %v3064 = vmul.f32 %v3061, %v3063
    %v3065 = vadd.f32 %v3061, %v3064
    %vm3066 = vweird.f32 %v2775
    %vm3067 = vweird.f32 %v3061
    %vm3068 = vmor %vm3066, %vm3067
    %v3069 = vsel %vm3068, %v3061, %v3065
    %v3070 = vand.u32 2147483647, %v2775
    %vm3071 = vcmp.eq.f32.partialorder %v3070, 8.507059e+37
    %v3072 = vand.u32 %v2775, 2147483648
    %v3073 = vor.u32 1.1754944e-38, %v3072
    %v3074 = vsel %vm3071, %v3073, %v3069
    %v3075 = vmul.f32 1.0, %v3074
    %3096 = vrot.lane.b32.xlu0 %v2790, 96
    %v3097 = vpop.permute.xlu0 %3096
    %3098 = vrot.lane.b32.xlu0 %v2805, 96
    %v3099 = vpop.permute.xlu0 %3098
    %3100 = vrot.lane.b32.xlu0 %v2820, 96
    %v3101 = vpop.permute.xlu0 %3100
    %3102 = vrot.lane.b32.xlu0 %v2835, 96
    %v3103 = vpop.permute.xlu0 %3102
    %3104 = vrot.lane.b32.xlu0 %v2850, 96
    %v3105 = vpop.permute.xlu0 %3104
    %3106 = vrot.lane.b32.xlu0 %v2865, 96
    %v3107 = vpop.permute.xlu0 %3106
    %3108 = vrot.lane.b32.xlu0 %v2880, 96
    %v3109 = vpop.permute.xlu0 %3108
    %3110 = vrot.lane.b32.xlu0 %v2895, 96
    %v3111 = vpop.permute.xlu0 %3110
    %3112 = vrot.lane.b32.xlu0 %v2910, 96
    %v3113 = vpop.permute.xlu0 %3112
    %3114 = vrot.lane.b32.xlu0 %v2925, 96
    %v3115 = vpop.permute.xlu0 %3114
    %3116 = vrot.lane.b32.xlu0 %v2940, 96
    %v3117 = vpop.permute.xlu0 %3116
    %3118 = vrot.lane.b32.xlu0 %v2955, 96
    %v3119 = vpop.permute.xlu0 %3118
    %3120 = vrot.lane.b32.xlu0 %v2970, 96
    %v3121 = vpop.permute.xlu0 %3120
    %3122 = vrot.lane.b32.xlu0 %v2985, 96
    %v3123 = vpop.permute.xlu0 %3122
    %3124 = vrot.lane.b32.xlu0 %v3000, 96
    %v3125 = vpop.permute.xlu0 %3124
    %3126 = vrot.lane.b32.xlu0 %v3015, 96
    %v3127 = vpop.permute.xlu0 %3126
    %3128 = vrot.lane.b32.xlu0 %v3030, 96
    %v3129 = vpop.permute.xlu0 %3128
    %3130 = vrot.lane.b32.xlu0 %v3045, 96
    %v3131 = vpop.permute.xlu0 %3130
    %3132 = vrot.lane.b32.xlu0 %v3060, 96
    %v3133 = vpop.permute.xlu0 %3132
    %3134 = vrot.lane.b32.xlu0 %v3075, 96
    %v3135 = vpop.permute.xlu0 %3134
    %v3156 = vmul.f32 %v2676, %v3097
    %v3157 = vmul.f32 %v2677, %v3099
    %v3158 = vmul.f32 %v2678, %v3101
    %v3159 = vmul.f32 %v2679, %v3103
    %v3160 = vmul.f32 %v2680, %v3105
    %v3161 = vmul.f32 %v2681, %v3107
    %v3162 = vmul.f32 %v2682, %v3109
    %v3163 = vmul.f32 %v2683, %v3111
    %v3164 = vmul.f32 %v2684, %v3113
    %v3165 = vmul.f32 %v2685, %v3115
    %v3166 = vmul.f32 %v2686, %v3117
    %v3167 = vmul.f32 %v2687, %v3119
    %v3168 = vmul.f32 %v2688, %v3121
    %v3169 = vmul.f32 %v2689, %v3123
    %v3170 = vmul.f32 %v2690, %v3125
    %v3171 = vmul.f32 %v2691, %v3127
    %v3172 = vmul.f32 %v2692, %v3129
    %v3173 = vmul.f32 %v2693, %v3131
    %v3174 = vmul.f32 %v2694, %v3133
    %v3175 = vmul.f32 %v2695, %v3135
    %s3176 = scalar_lea.vmem %s7, 32
    %v3177 = vld [vmem:[%s3176] sm:$0xff]
    %v3178 = vld [vmem:[%s3176 + $0x8] sm:$0xff]
    %v3179 = vld [vmem:[%s3176 + $0x10] sm:$0xff]
    %v3180 = vld [vmem:[%s3176 + $0x18] sm:$0xff]
    %s3181 = scalar_lea.vmem %s8, 1
    %v3182 = vld [vmem:[%s3181] sm:$0x1]
    %v3184 = vperm.slane %v3182, 0
    %v3187 = vsel %vm351, %v3156, 0
    %v3190 = vsel %vm351, %v3157, 0
    %v3193 = vsel %vm351, %v3158, 0
    %v3196 = vsel %vm351, %v3159, 0
    %v3199 = vsel %vm351, %v3160, 0
    %v3202 = vsel %vm351, %v3161, 0
    %v3205 = vsel %vm351, %v3162, 0
    %v3208 = vsel %vm351, %v3163, 0
    %v3211 = vsel %vm351, %v3164, 0
    %v3214 = vsel %vm351, %v3165, 0
    %v3217 = vsel %vm351, %v3166, 0
    %v3220 = vsel %vm351, %v3167, 0
    %v3223 = vsel %vm351, %v3168, 0
    %v3226 = vsel %vm351, %v3169, 0
    %v3229 = vsel %vm351, %v3170, 0
    %v3232 = vsel %vm351, %v3171, 0
    %v3235 = vsel %vm351, %v3172, 0
    %v3238 = vsel %vm351, %v3173, 0
    %v3241 = vsel %vm351, %v3174, 0
    %v3244 = vsel %vm351, %v3175, 0
    %3246 = vmatpush.msra.mxu0 0.0
    %3247 = vmatpush.msra.mxu0 0.0
    %3248 = vmatpush.msra.mxu0 0.0
    %3249 = vmatpush.msra.mxu0 0.0
    %3250 = vmatpush.msra.mxu0 0.0
    %3251 = vmatpush.msra.mxu0 0.0
    %3252 = vmatpush.msra.mxu0 0.0
    %3253 = vmatpush.msra.mxu0 0.0
    %3254 = vmatpush.msra.mxu0 0.0
    %3255 = vmatpush.msra.mxu0 0.0
    %3256 = vmatpush.msra.mxu0 0.0
    %3257 = vmatpush.msra.mxu0 0.0
    %3258 = vmatpush.msra.mxu0 %v3180
    %3259 = vmatpush.msra.mxu0 %v3179
    %3260 = vmatpush.msra.mxu0 %v3178
    %3261 = vmatpush.msra.mxu0 %v3177
    %3262 = vmatmul.f32.gmra.mxu0 %v3187
    %v3263 = vpop.f32.mrf.mxu0
    %3264 = vmatmul.f32.gmra.mxu0 %v3190
    %v3265 = vpop.f32.mrf.mxu0
    %3266 = vmatmul.f32.gmra.mxu0 %v3193
    %v3267 = vpop.f32.mrf.mxu0
    %3268 = vmatmul.f32.gmra.mxu0 %v3196
    %v3269 = vpop.f32.mrf.mxu0
    %3270 = vmatmul.f32.gmra.mxu0 %v3199
    %v3271 = vpop.f32.mrf.mxu0
    %3272 = vmatmul.f32.gmra.mxu0 %v3202
    %v3273 = vpop.f32.mrf.mxu0
    %3274 = vmatmul.f32.gmra.mxu0 %v3205
    %v3275 = vpop.f32.mrf.mxu0
    %3276 = vmatmul.f32.gmra.mxu0 %v3208
    %v3277 = vpop.f32.mrf.mxu0
    %3278 = vmatmul.f32.gmra.mxu0 %v3211
    %v3279 = vpop.f32.mrf.mxu0
    %3280 = vmatmul.f32.gmra.mxu0 %v3214
    %v3281 = vpop.f32.mrf.mxu0
    %3282 = vmatmul.f32.gmra.mxu0 %v3217
    %v3283 = vpop.f32.mrf.mxu0
    %3284 = vmatmul.f32.gmra.mxu0 %v3220
    %v3285 = vpop.f32.mrf.mxu0
    %3286 = vmatmul.f32.gmra.mxu0 %v3223
    %v3287 = vpop.f32.mrf.mxu0
    %3288 = vmatmul.f32.gmra.mxu0 %v3226
    %v3289 = vpop.f32.mrf.mxu0
    %3290 = vmatmul.f32.gmra.mxu0 %v3229
    %v3291 = vpop.f32.mrf.mxu0
    %3292 = vmatmul.f32.gmra.mxu0 %v3232
    %v3293 = vpop.f32.mrf.mxu0
    %3294 = vmatmul.f32.gmra.mxu0 %v3235
    %v3295 = vpop.f32.mrf.mxu0
    %3296 = vmatmul.f32.gmra.mxu0 %v3238
    %v3297 = vpop.f32.mrf.mxu0
    %3298 = vmatmul.f32.gmra.mxu0 %v3241
    %v3299 = vpop.f32.mrf.mxu0
    %v3300 = vadd.f32 %v3184, %v3299
    %3301 = vmatmul.f32.gmra.mxu0 %v3244
    %v3302 = vpop.f32.mrf.mxu0
    %v3303 = vadd.f32 %v3184, %v3302
    %3304 = vdwg.mxu0
    %v3305 = vadd.f32 %v3300, %v1378
    %v3306 = vadd.f32 %v3303, %v1381
    %v3307 = vld [vmem:[%s1] sm:$0xff]
    %v3308 = vld [vmem:[%s1 + $0x8] sm:$0xff]
    %v3309 = vld [vmem:[%s1 + $0x10] sm:$0xff]
    %v3310 = vld [vmem:[%s1 + $0x18] sm:$0xff]
    %v3311 = vld [vmem:[%s1 + $0x20] sm:$0xff]
    %v3312 = vld [vmem:[%s1 + $0x28] sm:$0xff]
    %v3313 = vld [vmem:[%s1 + $0x30] sm:$0xff]
    %v3314 = vld [vmem:[%s1 + $0x38] sm:$0xff]
    %v3315 = vld [vmem:[%s1 + $0x40] sm:$0xff]
    %v3316 = vld [vmem:[%s1 + $0x48] sm:$0xff]
    %v3317 = vld [vmem:[%s1 + $0x50] sm:$0xff]
    %v3318 = vld [vmem:[%s1 + $0x58] sm:$0xff]
    %v3319 = vld [vmem:[%s1 + $0x60] sm:$0xff]
    %v3320 = vld [vmem:[%s1 + $0x68] sm:$0xff]
    %v3321 = vld [vmem:[%s1 + $0x70] sm:$0xff]
    %v3322 = vld [vmem:[%s1 + $0x78] sm:$0xff]
    %v3323 = vld [vmem:[%s1 + $0x80] sm:$0xff]
    %v3324 = vld [vmem:[%s1 + $0x88] sm:$0xff]
    %v3325 = vld [vmem:[%s1 + $0x90] sm:$0xff]
    %v3326 = vld [vmem:[%s1 + $0x98] sm:$0xff]
    %v3327 = vld [vmem:[%s1 + $0xa0] sm:$0xff]
    %v3328 = vld [vmem:[%s1 + $0xa8] sm:$0xff]
    %v3329 = vld [vmem:[%s1 + $0xb0] sm:$0xff]
    %v3330 = vld [vmem:[%s1 + $0xb8] sm:$0xff]
    %v3331 = vld [vmem:[%s1 + $0xc0] sm:$0xff]
    %v3332 = vld [vmem:[%s1 + $0xc8] sm:$0xff]
    %v3333 = vld [vmem:[%s1 + $0xd0] sm:$0xff]
    %v3334 = vld [vmem:[%s1 + $0xd8] sm:$0xff]
    %v3335 = vld [vmem:[%s1 + $0xe0] sm:$0xff]
    %v3336 = vld [vmem:[%s1 + $0xe8] sm:$0xff]
    %v3337 = vld [vmem:[%s1 + $0xf0] sm:$0xff]
    %v3338 = vld [vmem:[%s1 + $0xf8] sm:$0xff]
    %v3339 = vld [vmem:[%s1 + $0x100] sm:$0xff]
    %v3340 = vld [vmem:[%s1 + $0x108] sm:$0xff]
    %v3341 = vld [vmem:[%s1 + $0x110] sm:$0xff]
    %v3342 = vld [vmem:[%s1 + $0x118] sm:$0xff]
    %v3343 = vld [vmem:[%s1 + $0x120] sm:$0xff]
    %v3344 = vld [vmem:[%s1 + $0x128] sm:$0xff]
    %v3345 = vld [vmem:[%s1 + $0x130] sm:$0xff]
    %v3346 = vld [vmem:[%s1 + $0x138] sm:$0xff]
    %v3348 = vsel %vm351, %v3308, 0
    %v3351 = vsel %vm351, %v3310, 0
    %v3354 = vsel %vm351, %v3312, 0
    %v3357 = vsel %vm351, %v3314, 0
    %v3360 = vsel %vm351, %v3316, 0
    %v3363 = vsel %vm351, %v3318, 0
    %v3366 = vsel %vm351, %v3320, 0
    %v3369 = vsel %vm351, %v3322, 0
    %v3372 = vsel %vm351, %v3324, 0
    %v3375 = vsel %vm351, %v3326, 0
    %v3378 = vsel %vm351, %v3328, 0
    %v3381 = vsel %vm351, %v3330, 0
    %v3384 = vsel %vm351, %v3332, 0
    %v3387 = vsel %vm351, %v3334, 0
    %v3390 = vsel %vm351, %v3336, 0
    %v3393 = vsel %vm351, %v3338, 0
    %v3396 = vsel %vm351, %v3340, 0
    %v3399 = vsel %vm351, %v3342, 0
    %v3402 = vsel %vm351, %v3344, 0
    %v3405 = vsel %vm351, %v3346, 0
    %3407 = vmatpush.msra.mxu0 %v3171
    %3408 = vmatpush.msra.mxu0 %v3170
    %3409 = vmatpush.msra.mxu0 %v3169
    %3410 = vmatpush.msra.mxu0 %v3168
    %3411 = vmatpush.msra.mxu0 %v3167
    %3412 = vmatpush.msra.mxu0 %v3166
    %3413 = vmatpush.msra.mxu0 %v3165
    %3414 = vmatpush.msra.mxu0 %v3164
    %3415 = vmatpush.msra.mxu0 %v3163
    %3416 = vmatpush.msra.mxu0 %v3162
    %3417 = vmatpush.msra.mxu0 %v3161
    %3418 = vmatpush.msra.mxu0 %v3160
    %3419 = vmatpush.msra.mxu0 %v3159
    %3420 = vmatpush.msra.mxu0 %v3158
    %3421 = vmatpush.msra.mxu0 %v3157
    %3422 = vmatpush.msra.mxu0 %v3156
    %3423 = vmatmul.f32.gmra.mxu0 %v3307
    %v3424 = vpop.f32.mrf.mxu0
    %v3425 = vadd.f32 0.0, %v3424
    %3426 = vmatmul.f32.gmra.mxu0 %v3309
    %v3427 = vpop.f32.mrf.mxu0
    %v3428 = vadd.f32 0.0, %v3427
    %3429 = vmatmul.f32.gmra.mxu0 %v3311
    %v3430 = vpop.f32.mrf.mxu0
    %v3431 = vadd.f32 0.0, %v3430
    %3432 = vmatmul.f32.gmra.mxu0 %v3313
    %v3433 = vpop.f32.mrf.mxu0
    %v3434 = vadd.f32 0.0, %v3433
    %3435 = vmatmul.f32.gmra.mxu0 %v3315
    %v3436 = vpop.f32.mrf.mxu0
    %v3437 = vadd.f32 0.0, %v3436
    %3438 = vmatmul.f32.gmra.mxu0 %v3317
    %v3439 = vpop.f32.mrf.mxu0
    %v3440 = vadd.f32 0.0, %v3439
    %3441 = vmatmul.f32.gmra.mxu0 %v3319
    %v3442 = vpop.f32.mrf.mxu0
    %v3443 = vadd.f32 0.0, %v3442
    %3444 = vmatmul.f32.gmra.mxu0 %v3321
    %v3445 = vpop.f32.mrf.mxu0
    %v3446 = vadd.f32 0.0, %v3445
    %3447 = vmatmul.f32.gmra.mxu0 %v3323
    %v3448 = vpop.f32.mrf.mxu0
    %v3449 = vadd.f32 0.0, %v3448
    %3450 = vmatmul.f32.gmra.mxu0 %v3325
    %v3451 = vpop.f32.mrf.mxu0
    %v3452 = vadd.f32 0.0, %v3451
    %3453 = vmatmul.f32.gmra.mxu0 %v3327
    %v3454 = vpop.f32.mrf.mxu0
    %v3455 = vadd.f32 0.0, %v3454
    %3456 = vmatmul.f32.gmra.mxu0 %v3329
    %v3457 = vpop.f32.mrf.mxu0
    %v3458 = vadd.f32 0.0, %v3457
    %3459 = vmatmul.f32.gmra.mxu0 %v3331
    %v3460 = vpop.f32.mrf.mxu0
    %v3461 = vadd.f32 0.0, %v3460
    %3462 = vmatmul.f32.gmra.mxu0 %v3333
    %v3463 = vpop.f32.mrf.mxu0
    %v3464 = vadd.f32 0.0, %v3463
    %3465 = vmatmul.f32.gmra.mxu0 %v3335
    %v3466 = vpop.f32.mrf.mxu0
    %v3467 = vadd.f32 0.0, %v3466
    %3468 = vmatmul.f32.gmra.mxu0 %v3337
    %v3469 = vpop.f32.mrf.mxu0
    %v3470 = vadd.f32 0.0, %v3469
    %3471 = vmatmul.f32.gmra.mxu0 %v3339
    %v3472 = vpop.f32.mrf.mxu0
    %v3473 = vadd.f32 0.0, %v3472
    %3474 = vmatmul.f32.gmra.mxu0 %v3341
    %v3475 = vpop.f32.mrf.mxu0
    %v3476 = vadd.f32 0.0, %v3475
    %3477 = vmatmul.f32.gmra.mxu0 %v3343
    %v3478 = vpop.f32.mrf.mxu0
    %v3479 = vadd.f32 0.0, %v3478
    %3480 = vmatmul.f32.gmra.mxu0 %v3345
    %v3481 = vpop.f32.mrf.mxu0
    %v3482 = vadd.f32 0.0, %v3481
    %3483 = vdwg.mxu0
    %3484 = vmatpush.msra.mxu0 0.0
    %3485 = vmatpush.msra.mxu0 0.0
    %3486 = vmatpush.msra.mxu0 0.0
    %3487 = vmatpush.msra.mxu0 0.0
    %3488 = vmatpush.msra.mxu0 0.0
    %3489 = vmatpush.msra.mxu0 0.0
    %3490 = vmatpush.msra.mxu0 0.0
    %3491 = vmatpush.msra.mxu0 0.0
    %3492 = vmatpush.msra.mxu0 0.0
    %3493 = vmatpush.msra.mxu0 0.0
    %3494 = vmatpush.msra.mxu0 0.0
    %3495 = vmatpush.msra.mxu0 0.0
    %3496 = vmatpush.msra.mxu0 %v3175
    %3497 = vmatpush.msra.mxu0 %v3174
    %3498 = vmatpush.msra.mxu0 %v3173
    %3499 = vmatpush.msra.mxu0 %v3172
    %3500 = vmatmul.f32.gmra.mxu0 %v3348
    %v3501 = vpop.f32.mrf.mxu0
    %v3502 = vadd.f32 %v3425, %v3501
    %3503 = vmatmul.f32.gmra.mxu0 %v3351
    %v3504 = vpop.f32.mrf.mxu0
    %v3505 = vadd.f32 %v3428, %v3504
    %3506 = vmatmul.f32.gmra.mxu0 %v3354
    %v3507 = vpop.f32.mrf.mxu0
    %v3508 = vadd.f32 %v3431, %v3507
    %3509 = vmatmul.f32.gmra.mxu0 %v3357
    %v3510 = vpop.f32.mrf.mxu0
    %v3511 = vadd.f32 %v3434, %v3510
    %3512 = vmatmul.f32.gmra.mxu0 %v3360
    %v3513 = vpop.f32.mrf.mxu0
    %v3514 = vadd.f32 %v3437, %v3513
    %3515 = vmatmul.f32.gmra.mxu0 %v3363
    %v3516 = vpop.f32.mrf.mxu0
    %v3517 = vadd.f32 %v3440, %v3516
    %3518 = vmatmul.f32.gmra.mxu0 %v3366
    %v3519 = vpop.f32.mrf.mxu0
    %v3520 = vadd.f32 %v3443, %v3519
    %3521 = vmatmul.f32.gmra.mxu0 %v3369
    %v3522 = vpop.f32.mrf.mxu0
    %v3523 = vadd.f32 %v3446, %v3522
    %3524 = vmatmul.f32.gmra.mxu0 %v3372
    %v3525 = vpop.f32.mrf.mxu0
    %v3526 = vadd.f32 %v3449, %v3525
    %3527 = vmatmul.f32.gmra.mxu0 %v3375
    %v3528 = vpop.f32.mrf.mxu0
    %v3529 = vadd.f32 %v3452, %v3528
    %3530 = vmatmul.f32.gmra.mxu0 %v3378
    %v3531 = vpop.f32.mrf.mxu0
    %v3532 = vadd.f32 %v3455, %v3531
    %3533 = vmatmul.f32.gmra.mxu0 %v3381
    %v3534 = vpop.f32.mrf.mxu0
    %v3535 = vadd.f32 %v3458, %v3534
    %3536 = vmatmul.f32.gmra.mxu0 %v3384
    %v3537 = vpop.f32.mrf.mxu0
    %v3538 = vadd.f32 %v3461, %v3537
    %3539 = vmatmul.f32.gmra.mxu0 %v3387
    %v3540 = vpop.f32.mrf.mxu0
    %v3541 = vadd.f32 %v3464, %v3540
    %3542 = vmatmul.f32.gmra.mxu0 %v3390
    %v3543 = vpop.f32.mrf.mxu0
    %v3544 = vadd.f32 %v3467, %v3543
    %3545 = vmatmul.f32.gmra.mxu0 %v3393
    %v3546 = vpop.f32.mrf.mxu0
    %v3547 = vadd.f32 %v3470, %v3546
    %3548 = vmatmul.f32.gmra.mxu0 %v3396
    %v3549 = vpop.f32.mrf.mxu0
    %v3550 = vadd.f32 %v3473, %v3549
    %3551 = vmatmul.f32.gmra.mxu0 %v3399
    %v3552 = vpop.f32.mrf.mxu0
    %v3553 = vadd.f32 %v3476, %v3552
    %3554 = vmatmul.f32.gmra.mxu0 %v3402
    %v3555 = vpop.f32.mrf.mxu0
    %v3556 = vadd.f32 %v3479, %v3555
    %3557 = vmatmul.f32.gmra.mxu0 %v3405
    %v3558 = vpop.f32.mrf.mxu0
    %v3559 = vadd.f32 %v3482, %v3558
    %3560 = vdwg.mxu0
    %3561 = vmatpush.msra.mxu0 %v3547
    %3562 = vmatpush.msra.mxu0 %v3544
    %3563 = vmatpush.msra.mxu0 %v3541
    %3564 = vmatpush.msra.mxu0 %v3538
    %3565 = vmatpush.msra.mxu0 %v3535
    %3566 = vmatpush.msra.mxu0 %v3532
    %3567 = vmatpush.msra.mxu0 %v3529
    %3568 = vmatpush.msra.mxu0 %v3526
    %3569 = vmatpush.msra.mxu0 %v3523
    %3570 = vmatpush.msra.mxu0 %v3520
    %3571 = vmatpush.msra.mxu0 %v3517
    %3572 = vmatpush.msra.mxu0 %v3514
    %3573 = vmatpush.msra.mxu0 %v3511
    %3574 = vmatpush.msra.mxu0 %v3508
    %3575 = vmatpush.msra.mxu0 %v3505
    %3576 = vmatpush.msra.mxu0 %v3502
    %3577 = vmatmul.f32.gmra.mxu0 %v3307
    %v3578 = vpop.f32.mrf.mxu0
    %v3579 = vadd.f32 0.0, %v3578
    %3580 = vmatmul.f32.gmra.mxu0 %v3309
    %v3581 = vpop.f32.mrf.mxu0
    %v3582 = vadd.f32 0.0, %v3581
    %3583 = vmatmul.f32.gmra.mxu0 %v3311
    %v3584 = vpop.f32.mrf.mxu0
    %v3585 = vadd.f32 0.0, %v3584
    %3586 = vmatmul.f32.gmra.mxu0 %v3313
    %v3587 = vpop.f32.mrf.mxu0
    %v3588 = vadd.f32 0.0, %v3587
    %3589 = vmatmul.f32.gmra.mxu0 %v3315
    %v3590 = vpop.f32.mrf.mxu0
    %v3591 = vadd.f32 0.0, %v3590
    %3592 = vmatmul.f32.gmra.mxu0 %v3317
    %v3593 = vpop.f32.mrf.mxu0
    %v3594 = vadd.f32 0.0, %v3593
    %3595 = vmatmul.f32.gmra.mxu0 %v3319
    %v3596 = vpop.f32.mrf.mxu0
    %v3597 = vadd.f32 0.0, %v3596
    %3598 = vmatmul.f32.gmra.mxu0 %v3321
    %v3599 = vpop.f32.mrf.mxu0
    %v3600 = vadd.f32 0.0, %v3599
    %3601 = vmatmul.f32.gmra.mxu0 %v3323
    %v3602 = vpop.f32.mrf.mxu0
    %v3603 = vadd.f32 0.0, %v3602
    %3604 = vmatmul.f32.gmra.mxu0 %v3325
    %v3605 = vpop.f32.mrf.mxu0
    %v3606 = vadd.f32 0.0, %v3605
    %3607 = vmatmul.f32.gmra.mxu0 %v3327
    %v3608 = vpop.f32.mrf.mxu0
    %v3609 = vadd.f32 0.0, %v3608
    %3610 = vmatmul.f32.gmra.mxu0 %v3329
    %v3611 = vpop.f32.mrf.mxu0
    %v3612 = vadd.f32 0.0, %v3611
    %3613 = vmatmul.f32.gmra.mxu0 %v3331
    %v3614 = vpop.f32.mrf.mxu0
    %v3615 = vadd.f32 0.0, %v3614
    %3616 = vmatmul.f32.gmra.mxu0 %v3333
    %v3617 = vpop.f32.mrf.mxu0
    %v3618 = vadd.f32 0.0, %v3617
    %3619 = vmatmul.f32.gmra.mxu0 %v3335
    %v3620 = vpop.f32.mrf.mxu0
    %v3621 = vadd.f32 0.0, %v3620
    %3622 = vmatmul.f32.gmra.mxu0 %v3337
    %v3623 = vpop.f32.mrf.mxu0
    %v3624 = vadd.f32 0.0, %v3623
    %3625 = vmatmul.f32.gmra.mxu0 %v3339
    %v3626 = vpop.f32.mrf.mxu0
    %v3627 = vadd.f32 0.0, %v3626
    %3628 = vmatmul.f32.gmra.mxu0 %v3341
    %v3629 = vpop.f32.mrf.mxu0
    %v3630 = vadd.f32 0.0, %v3629
    %3631 = vmatmul.f32.gmra.mxu0 %v3343
    %v3632 = vpop.f32.mrf.mxu0
    %v3633 = vadd.f32 0.0, %v3632
    %3634 = vmatmul.f32.gmra.mxu0 %v3345
    %v3635 = vpop.f32.mrf.mxu0
    %v3636 = vadd.f32 0.0, %v3635
    %3637 = vdwg.mxu0
    %3638 = vmatpush.msra.mxu0 0.0
    %3639 = vmatpush.msra.mxu0 0.0
    %3640 = vmatpush.msra.mxu0 0.0
    %3641 = vmatpush.msra.mxu0 0.0
    %3642 = vmatpush.msra.mxu0 0.0
    %3643 = vmatpush.msra.mxu0 0.0
    %3644 = vmatpush.msra.mxu0 0.0
    %3645 = vmatpush.msra.mxu0 0.0
    %3646 = vmatpush.msra.mxu0 0.0
    %3647 = vmatpush.msra.mxu0 0.0
    %3648 = vmatpush.msra.mxu0 0.0
    %3649 = vmatpush.msra.mxu0 0.0
    %3650 = vmatpush.msra.mxu0 %v3559
    %3651 = vmatpush.msra.mxu0 %v3556
    %3652 = vmatpush.msra.mxu0 %v3553
    %3653 = vmatpush.msra.mxu0 %v3550
    %3654 = vmatmul.f32.gmra.mxu0 %v3348
    %v3655 = vpop.f32.mrf.mxu0
    %v3656 = vadd.f32 %v3579, %v3655
    %3657 = vmatmul.f32.gmra.mxu0 %v3351
    %v3658 = vpop.f32.mrf.mxu0
    %v3659 = vadd.f32 %v3582, %v3658
    %3660 = vmatmul.f32.gmra.mxu0 %v3354
    %v3661 = vpop.f32.mrf.mxu0
    %v3662 = vadd.f32 %v3585, %v3661
    %3663 = vmatmul.f32.gmra.mxu0 %v3357
    %v3664 = vpop.f32.mrf.mxu0
    %v3665 = vadd.f32 %v3588, %v3664
    %3666 = vmatmul.f32.gmra.mxu0 %v3360
    %v3667 = vpop.f32.mrf.mxu0
    %v3668 = vadd.f32 %v3591, %v3667
    %3669 = vmatmul.f32.gmra.mxu0 %v3363
    %v3670 = vpop.f32.mrf.mxu0
    %v3671 = vadd.f32 %v3594, %v3670
    %3672 = vmatmul.f32.gmra.mxu0 %v3366
    %v3673 = vpop.f32.mrf.mxu0
    %v3674 = vadd.f32 %v3597, %v3673
    %3675 = vmatmul.f32.gmra.mxu0 %v3369
    %v3676 = vpop.f32.mrf.mxu0
    %v3677 = vadd.f32 %v3600, %v3676
    %3678 = vmatmul.f32.gmra.mxu0 %v3372
    %v3679 = vpop.f32.mrf.mxu0
    %v3680 = vadd.f32 %v3603, %v3679
    %3681 = vmatmul.f32.gmra.mxu0 %v3375
    %v3682 = vpop.f32.mrf.mxu0
    %v3683 = vadd.f32 %v3606, %v3682
    %3684 = vmatmul.f32.gmra.mxu0 %v3378
    %v3685 = vpop.f32.mrf.mxu0
    %v3686 = vadd.f32 %v3609, %v3685
    %3687 = vmatmul.f32.gmra.mxu0 %v3381
    %v3688 = vpop.f32.mrf.mxu0
    %v3689 = vadd.f32 %v3612, %v3688
    %3690 = vmatmul.f32.gmra.mxu0 %v3384
    %v3691 = vpop.f32.mrf.mxu0
    %v3692 = vadd.f32 %v3615, %v3691
    %3693 = vmatmul.f32.gmra.mxu0 %v3387
    %v3694 = vpop.f32.mrf.mxu0
    %v3695 = vadd.f32 %v3618, %v3694
    %3696 = vmatmul.f32.gmra.mxu0 %v3390
    %v3697 = vpop.f32.mrf.mxu0
    %v3698 = vadd.f32 %v3621, %v3697
    %3699 = vmatmul.f32.gmra.mxu0 %v3393
    %v3700 = vpop.f32.mrf.mxu0
    %v3701 = vadd.f32 %v3624, %v3700
    %3702 = vmatmul.f32.gmra.mxu0 %v3396
    %v3703 = vpop.f32.mrf.mxu0
    %v3704 = vadd.f32 %v3627, %v3703
    %3705 = vmatmul.f32.gmra.mxu0 %v3399
    %v3706 = vpop.f32.mrf.mxu0
    %v3707 = vadd.f32 %v3630, %v3706
    %3708 = vmatmul.f32.gmra.mxu0 %v3402
    %v3709 = vpop.f32.mrf.mxu0
    %v3710 = vadd.f32 %v3633, %v3709
    %3711 = vmatmul.f32.gmra.mxu0 %v3405
    %v3712 = vpop.f32.mrf.mxu0
    %v3713 = vadd.f32 %v3636, %v3712
    %3714 = vdwg.mxu0
    %s3715 = scalar_lea.vmem %s9, 96
    %v3716 = vld [vmem:[%s3715] sm:$0xff]
    %v3717 = vld [vmem:[%s3715 + $0x8] sm:$0xff]
    %v3718 = vld [vmem:[%s3715 + $0x10] sm:$0xff]
    %v3719 = vld [vmem:[%s3715 + $0x18] sm:$0xff]
    %v3720 = vld [vmem:[%s3715 + $0x20] sm:$0xff]
    %v3721 = vld [vmem:[%s3715 + $0x28] sm:$0xff]
    %v3722 = vld [vmem:[%s3715 + $0x30] sm:$0xff]
    %v3723 = vld [vmem:[%s3715 + $0x38] sm:$0xff]
    %v3724 = vld [vmem:[%s3715 + $0x40] sm:$0xff]
    %v3725 = vld [vmem:[%s3715 + $0x48] sm:$0xff]
    %v3726 = vld [vmem:[%s3715 + $0x50] sm:$0xff]
    %v3727 = vld [vmem:[%s3715 + $0x58] sm:$0xff]
    %v3729 = vsel %vm351, %v3502, 0
    %v3732 = vsel %vm351, %v3505, 0
    %v3735 = vsel %vm351, %v3508, 0
    %v3738 = vsel %vm351, %v3511, 0
    %v3741 = vsel %vm351, %v3514, 0
    %v3744 = vsel %vm351, %v3517, 0
    %v3747 = vsel %vm351, %v3520, 0
    %v3750 = vsel %vm351, %v3523, 0
    %v3753 = vsel %vm351, %v3526, 0
    %v3756 = vsel %vm351, %v3529, 0
    %v3759 = vsel %vm351, %v3532, 0
    %v3762 = vsel %vm351, %v3535, 0
    %v3765 = vsel %vm351, %v3538, 0
    %v3768 = vsel %vm351, %v3541, 0
    %v3771 = vsel %vm351, %v3544, 0
    %v3774 = vsel %vm351, %v3547, 0
    %v3777 = vsel %vm351, %v3550, 0
    %v3780 = vsel %vm351, %v3553, 0
    %v3783 = vsel %vm351, %v3556, 0
    %v3786 = vsel %vm351, %v3559, 0
    %3788 = vmatpush.msra.mxu0 0.0
    %3789 = vmatpush.msra.mxu0 0.0
    %3790 = vmatpush.msra.mxu0 0.0
    %3791 = vmatpush.msra.mxu0 0.0
    %3792 = vmatpush.msra.mxu0 0.0
    %3793 = vmatpush.msra.mxu0 0.0
    %3794 = vmatpush.msra.mxu0 0.0
    %3795 = vmatpush.msra.mxu0 0.0
    %3796 = vmatpush.msra.mxu0 0.0
    %3797 = vmatpush.msra.mxu0 0.0
    %3798 = vmatpush.msra.mxu0 0.0
    %3799 = vmatpush.msra.mxu0 0.0
    %3800 = vmatpush.msra.mxu0 %v3723
    %3801 = vmatpush.msra.mxu0 %v3722
    %3802 = vmatpush.msra.mxu0 %v3721
    %3803 = vmatpush.msra.mxu0 %v3720
    %3804 = vmatmul.f32.gmra.mxu0 %v3729
    %v3805 = vpop.f32.mrf.mxu0
    %v3806 = vadd.f32 0.0, %v3805
    %3807 = vmatmul.f32.gmra.mxu0 %v3732
    %v3808 = vpop.f32.mrf.mxu0
    %v3809 = vadd.f32 0.0, %v3808
    %3810 = vmatmul.f32.gmra.mxu0 %v3735
    %v3811 = vpop.f32.mrf.mxu0
    %v3812 = vadd.f32 0.0, %v3811
    %3813 = vmatmul.f32.gmra.mxu0 %v3738
    %v3814 = vpop.f32.mrf.mxu0
    %v3815 = vadd.f32 0.0, %v3814
    %3816 = vmatmul.f32.gmra.mxu0 %v3741
    %v3817 = vpop.f32.mrf.mxu0
    %v3818 = vadd.f32 0.0, %v3817
    %3819 = vmatmul.f32.gmra.mxu0 %v3744
    %v3820 = vpop.f32.mrf.mxu0
    %v3821 = vadd.f32 0.0, %v3820
    %3822 = vmatmul.f32.gmra.mxu0 %v3747
    %v3823 = vpop.f32.mrf.mxu0
    %v3824 = vadd.f32 0.0, %v3823
    %3825 = vmatmul.f32.gmra.mxu0 %v3750
    %v3826 = vpop.f32.mrf.mxu0
    %v3827 = vadd.f32 0.0, %v3826
    %3828 = vmatmul.f32.gmra.mxu0 %v3753
    %v3829 = vpop.f32.mrf.mxu0
    %v3830 = vadd.f32 0.0, %v3829
    %3831 = vmatmul.f32.gmra.mxu0 %v3756
    %v3832 = vpop.f32.mrf.mxu0
    %v3833 = vadd.f32 0.0, %v3832
    %3834 = vmatmul.f32.gmra.mxu0 %v3759
    %v3835 = vpop.f32.mrf.mxu0
    %v3836 = vadd.f32 0.0, %v3835
    %3837 = vmatmul.f32.gmra.mxu0 %v3762
    %v3838 = vpop.f32.mrf.mxu0
    %v3839 = vadd.f32 0.0, %v3838
    %3840 = vmatmul.f32.gmra.mxu0 %v3765
    %v3841 = vpop.f32.mrf.mxu0
    %v3842 = vadd.f32 0.0, %v3841
    %3843 = vmatmul.f32.gmra.mxu0 %v3768
    %v3844 = vpop.f32.mrf.mxu0
    %v3845 = vadd.f32 0.0, %v3844
    %3846 = vmatmul.f32.gmra.mxu0 %v3771
    %v3847 = vpop.f32.mrf.mxu0
    %v3848 = vadd.f32 0.0, %v3847
    %3849 = vmatmul.f32.gmra.mxu0 %v3774
    %v3850 = vpop.f32.mrf.mxu0
    %v3851 = vadd.f32 0.0, %v3850
    %3852 = vmatmul.f32.gmra.mxu0 %v3777
    %v3853 = vpop.f32.mrf.mxu0
    %v3854 = vadd.f32 0.0, %v3853
    %3855 = vmatmul.f32.gmra.mxu0 %v3780
    %v3856 = vpop.f32.mrf.mxu0
    %v3857 = vadd.f32 0.0, %v3856
    %3858 = vmatmul.f32.gmra.mxu0 %v3783
    %v3859 = vpop.f32.mrf.mxu0
    %v3860 = vadd.f32 0.0, %v3859
    %3861 = vmatmul.f32.gmra.mxu0 %v3786
    %v3862 = vpop.f32.mrf.mxu0
    %v3863 = vadd.f32 0.0, %v3862
    %3864 = vdwg.mxu0
    %3865 = vmatpush.msra.mxu0 0.0
    %3866 = vmatpush.msra.mxu0 0.0
    %3867 = vmatpush.msra.mxu0 0.0
    %3868 = vmatpush.msra.mxu0 0.0
    %3869 = vmatpush.msra.mxu0 0.0
    %3870 = vmatpush.msra.mxu0 0.0
    %3871 = vmatpush.msra.mxu0 0.0
    %3872 = vmatpush.msra.mxu0 0.0
    %3873 = vmatpush.msra.mxu0 0.0
    %3874 = vmatpush.msra.mxu0 0.0
    %3875 = vmatpush.msra.mxu0 0.0
    %3876 = vmatpush.msra.mxu0 0.0
    %3877 = vmatpush.msra.mxu0 %v3719
    %3878 = vmatpush.msra.mxu0 %v3718
    %3879 = vmatpush.msra.mxu0 %v3717
    %3880 = vmatpush.msra.mxu0 %v3716
    %3881 = vmatmul.f32.gmra.mxu0 %v3187
    %v3882 = vpop.f32.mrf.mxu0
    %v3883 = vadd.f32 %v3806, %v3882
    %3884 = vmatmul.f32.gmra.mxu0 %v3190
    %v3885 = vpop.f32.mrf.mxu0
    %v3886 = vadd.f32 %v3809, %v3885
    %3887 = vmatmul.f32.gmra.mxu0 %v3193
    %v3888 = vpop.f32.mrf.mxu0
    %v3889 = vadd.f32 %v3812, %v3888
    %3890 = vmatmul.f32.gmra.mxu0 %v3196
    %v3891 = vpop.f32.mrf.mxu0
    %v3892 = vadd.f32 %v3815, %v3891
    %3893 = vmatmul.f32.gmra.mxu0 %v3199
    %v3894 = vpop.f32.mrf.mxu0
    %v3895 = vadd.f32 %v3818, %v3894
    %3896 = vmatmul.f32.gmra.mxu0 %v3202
    %v3897 = vpop.f32.mrf.mxu0
    %v3898 = vadd.f32 %v3821, %v3897
    %3899 = vmatmul.f32.gmra.mxu0 %v3205
    %v3900 = vpop.f32.mrf.mxu0
    %v3901 = vadd.f32 %v3824, %v3900
    %3902 = vmatmul.f32.gmra.mxu0 %v3208
    %v3903 = vpop.f32.mrf.mxu0
    %v3904 = vadd.f32 %v3827, %v3903
    %3905 = vmatmul.f32.gmra.mxu0 %v3211
    %v3906 = vpop.f32.mrf.mxu0
    %v3907 = vadd.f32 %v3830, %v3906
    %3908 = vmatmul.f32.gmra.mxu0 %v3214
    %v3909 = vpop.f32.mrf.mxu0
    %v3910 = vadd.f32 %v3833, %v3909
    %3911 = vmatmul.f32.gmra.mxu0 %v3217
    %v3912 = vpop.f32.mrf.mxu0
    %v3913 = vadd.f32 %v3836, %v3912
    %3914 = vmatmul.f32.gmra.mxu0 %v3220
    %v3915 = vpop.f32.mrf.mxu0
    %v3916 = vadd.f32 %v3839, %v3915
    %3917 = vmatmul.f32.gmra.mxu0 %v3223
    %v3918 = vpop.f32.mrf.mxu0
    %v3919 = vadd.f32 %v3842, %v3918
    %3920 = vmatmul.f32.gmra.mxu0 %v3226
    %v3921 = vpop.f32.mrf.mxu0
    %v3922 = vadd.f32 %v3845, %v3921
    %3923 = vmatmul.f32.gmra.mxu0 %v3229
    %v3924 = vpop.f32.mrf.mxu0
    %v3925 = vadd.f32 %v3848, %v3924
    %3926 = vmatmul.f32.gmra.mxu0 %v3232
    %v3927 = vpop.f32.mrf.mxu0
    %v3928 = vadd.f32 %v3851, %v3927
    %3929 = vmatmul.f32.gmra.mxu0 %v3235
    %v3930 = vpop.f32.mrf.mxu0
    %v3931 = vadd.f32 %v3854, %v3930
    %3932 = vmatmul.f32.gmra.mxu0 %v3238
    %v3933 = vpop.f32.mrf.mxu0
    %v3934 = vadd.f32 %v3857, %v3933
    %3935 = vmatmul.f32.gmra.mxu0 %v3241
    %v3936 = vpop.f32.mrf.mxu0
    %v3937 = vadd.f32 %v3860, %v3936
    %3938 = vmatmul.f32.gmra.mxu0 %v3244
    %v3939 = vpop.f32.mrf.mxu0
    %v3940 = vadd.f32 %v3863, %v3939
    %3941 = vdwg.mxu0
    %v3943 = vsel %vm351, %v3656, 0
    %v3946 = vsel %vm351, %v3659, 0
    %v3949 = vsel %vm351, %v3662, 0
    %v3952 = vsel %vm351, %v3665, 0
    %v3955 = vsel %vm351, %v3668, 0
    %v3958 = vsel %vm351, %v3671, 0
    %v3961 = vsel %vm351, %v3674, 0
    %v3964 = vsel %vm351, %v3677, 0
    %v3967 = vsel %vm351, %v3680, 0
    %v3970 = vsel %vm351, %v3683, 0
    %v3973 = vsel %vm351, %v3686, 0
    %v3976 = vsel %vm351, %v3689, 0
    %v3979 = vsel %vm351, %v3692, 0
    %v3982 = vsel %vm351, %v3695, 0
    %v3985 = vsel %vm351, %v3698, 0
    %v3988 = vsel %vm351, %v3701, 0
    %v3991 = vsel %vm351, %v3704, 0
    %v3994 = vsel %vm351, %v3707, 0
    %v3997 = vsel %vm351, %v3710, 0
    %v4000 = vsel %vm351, %v3713, 0
    %4002 = vmatpush.msra.mxu0 0.0
    %4003 = vmatpush.msra.mxu0 0.0
    %4004 = vmatpush.msra.mxu0 0.0
    %4005 = vmatpush.msra.mxu0 0.0
    %4006 = vmatpush.msra.mxu0 0.0
    %4007 = vmatpush.msra.mxu0 0.0
    %4008 = vmatpush.msra.mxu0 0.0
    %4009 = vmatpush.msra.mxu0 0.0
    %4010 = vmatpush.msra.mxu0 0.0
    %4011 = vmatpush.msra.mxu0 0.0
    %4012 = vmatpush.msra.mxu0 0.0
    %4013 = vmatpush.msra.mxu0 0.0
    %4014 = vmatpush.msra.mxu0 %v3727
    %4015 = vmatpush.msra.mxu0 %v3726
    %4016 = vmatpush.msra.mxu0 %v3725
    %4017 = vmatpush.msra.mxu0 %v3724
    %4018 = vmatmul.f32.gmra.mxu0 %v3943
    %v4019 = vpop.f32.mrf.mxu0
    %v4020 = vadd.f32 0.0, %v4019
    %4021 = vmatmul.f32.gmra.mxu0 %v3946
    %v4022 = vpop.f32.mrf.mxu0
    %v4023 = vadd.f32 0.0, %v4022
    %4024 = vmatmul.f32.gmra.mxu0 %v3949
    %v4025 = vpop.f32.mrf.mxu0
    %v4026 = vadd.f32 0.0, %v4025
    %4027 = vmatmul.f32.gmra.mxu0 %v3952
    %v4028 = vpop.f32.mrf.mxu0
    %v4029 = vadd.f32 0.0, %v4028
    %4030 = vmatmul.f32.gmra.mxu0 %v3955
    %v4031 = vpop.f32.mrf.mxu0
    %v4032 = vadd.f32 0.0, %v4031
    %4033 = vmatmul.f32.gmra.mxu0 %v3958
    %v4034 = vpop.f32.mrf.mxu0
    %v4035 = vadd.f32 0.0, %v4034
    %4036 = vmatmul.f32.gmra.mxu0 %v3961
    %v4037 = vpop.f32.mrf.mxu0
    %v4038 = vadd.f32 0.0, %v4037
    %4039 = vmatmul.f32.gmra.mxu0 %v3964
    %v4040 = vpop.f32.mrf.mxu0
    %v4041 = vadd.f32 0.0, %v4040
    %4042 = vmatmul.f32.gmra.mxu0 %v3967
    %v4043 = vpop.f32.mrf.mxu0
    %v4044 = vadd.f32 0.0, %v4043
    %4045 = vmatmul.f32.gmra.mxu0 %v3970
    %v4046 = vpop.f32.mrf.mxu0
    %v4047 = vadd.f32 0.0, %v4046
    %4048 = vmatmul.f32.gmra.mxu0 %v3973
    %v4049 = vpop.f32.mrf.mxu0
    %v4050 = vadd.f32 0.0, %v4049
    %4051 = vmatmul.f32.gmra.mxu0 %v3976
    %v4052 = vpop.f32.mrf.mxu0
    %v4053 = vadd.f32 0.0, %v4052
    %4054 = vmatmul.f32.gmra.mxu0 %v3979
    %v4055 = vpop.f32.mrf.mxu0
    %v4056 = vadd.f32 0.0, %v4055
    %4057 = vmatmul.f32.gmra.mxu0 %v3982
    %v4058 = vpop.f32.mrf.mxu0
    %v4059 = vadd.f32 0.0, %v4058
    %4060 = vmatmul.f32.gmra.mxu0 %v3985
    %v4061 = vpop.f32.mrf.mxu0
    %v4062 = vadd.f32 0.0, %v4061
    %4063 = vmatmul.f32.gmra.mxu0 %v3988
    %v4064 = vpop.f32.mrf.mxu0
    %v4065 = vadd.f32 0.0, %v4064
    %4066 = vmatmul.f32.gmra.mxu0 %v3991
    %v4067 = vpop.f32.mrf.mxu0
    %v4068 = vadd.f32 0.0, %v4067
    %4069 = vmatmul.f32.gmra.mxu0 %v3994
    %v4070 = vpop.f32.mrf.mxu0
    %v4071 = vadd.f32 0.0, %v4070
    %4072 = vmatmul.f32.gmra.mxu0 %v3997
    %v4073 = vpop.f32.mrf.mxu0
    %v4074 = vadd.f32 0.0, %v4073
    %4075 = vmatmul.f32.gmra.mxu0 %v4000
    %v4076 = vpop.f32.mrf.mxu0
    %v4077 = vadd.f32 0.0, %v4076
    %4078 = vdwg.mxu0
    %v4079 = vadd.f32 %v3883, %v4020
    %v4080 = vadd.f32 %v3886, %v4023
    %v4081 = vadd.f32 %v3889, %v4026
    %v4082 = vadd.f32 %v3892, %v4029
    %v4083 = vadd.f32 %v3895, %v4032
    %v4084 = vadd.f32 %v3898, %v4035
    %v4085 = vadd.f32 %v3901, %v4038
    %v4086 = vadd.f32 %v3904, %v4041
    %v4087 = vadd.f32 %v3907, %v4044
    %v4088 = vadd.f32 %v3910, %v4047
    %v4089 = vadd.f32 %v3913, %v4050
    %v4090 = vadd.f32 %v3916, %v4053
    %v4091 = vadd.f32 %v3919, %v4056
    %v4092 = vadd.f32 %v3922, %v4059
    %v4093 = vadd.f32 %v3925, %v4062
    %v4094 = vadd.f32 %v3928, %v4065
    %v4095 = vadd.f32 %v3931, %v4068
    %v4096 = vadd.f32 %v3934, %v4071
    %v4097 = vadd.f32 %v3937, %v4074
    %v4098 = vadd.f32 %v3940, %v4077
    %s4099 = scalar_lea.vmem %s10, 1
    %v4100 = vld [vmem:[%s4099] sm:$0x1]
    %v4102 = vperm.slane %v4100, 0
    %v4104 = vadd.f32 %v4079, %v4102
    %v4105 = vadd.f32 %v4080, %v4102
    %v4106 = vadd.f32 %v4081, %v4102
    %v4107 = vadd.f32 %v4082, %v4102
    %v4108 = vadd.f32 %v4083, %v4102
    %v4109 = vadd.f32 %v4084, %v4102
    %v4110 = vadd.f32 %v4085, %v4102
    %v4111 = vadd.f32 %v4086, %v4102
    %v4112 = vadd.f32 %v4087, %v4102
    %v4113 = vadd.f32 %v4088, %v4102
    %v4114 = vadd.f32 %v4089, %v4102
    %v4115 = vadd.f32 %v4090, %v4102
    %v4116 = vadd.f32 %v4091, %v4102
    %v4117 = vadd.f32 %v4092, %v4102
    %v4118 = vadd.f32 %v4093, %v4102
    %v4119 = vadd.f32 %v4094, %v4102
    %v4120 = vadd.f32 %v4095, %v4102
    %v4121 = vadd.f32 %v4096, %v4102
    %v4122 = vadd.f32 %v4097, %v4102
    %v4123 = vadd.f32 %v4098, %v4102
    %v4124 = vadd.f32 %v4104, %v2395
    %v4125 = vadd.f32 %v4105, %v2396
    %v4126 = vadd.f32 %v4106, %v2397
    %v4127 = vadd.f32 %v4107, %v2398
    %v4128 = vadd.f32 %v4108, %v2399
    %v4129 = vadd.f32 %v4109, %v2400
    %v4130 = vadd.f32 %v4110, %v2401
    %v4131 = vadd.f32 %v4111, %v2402
    %v4132 = vadd.f32 %v4112, %v2403
    %v4133 = vadd.f32 %v4113, %v2404
    %v4134 = vadd.f32 %v4114, %v2405
    %v4135 = vadd.f32 %v4115, %v2406
    %v4136 = vadd.f32 %v4116, %v2407
    %v4137 = vadd.f32 %v4117, %v2408
    %v4138 = vadd.f32 %v4118, %v2409
    %v4139 = vadd.f32 %v4119, %v2410
    %v4140 = vadd.f32 %v4120, %v2411
    %v4141 = vadd.f32 %v4121, %v2412
    %v4142 = vadd.f32 %v4122, %v2413
    %v4143 = vadd.f32 %v4123, %v2414
    %s4144 = scalar_lea.vmem %s11, 1
    %v4145 = vld [vmem:[%s4144] sm:$0x1]
    %v4147 = vperm.slane %v4145, 0
    %v4149 = vmul.f32 %v4124, %v4147
    %v4150 = vmul.f32 %v4125, %v4147
    %v4151 = vmul.f32 %v4126, %v4147
    %v4152 = vmul.f32 %v4127, %v4147
    %v4153 = vmul.f32 %v4128, %v4147
    %v4154 = vmul.f32 %v4129, %v4147
    %v4155 = vmul.f32 %v4130, %v4147
    %v4156 = vmul.f32 %v4131, %v4147
    %v4157 = vmul.f32 %v4132, %v4147
    %v4158 = vmul.f32 %v4133, %v4147
    %v4159 = vmul.f32 %v4134, %v4147
    %v4160 = vmul.f32 %v4135, %v4147
    %v4161 = vmul.f32 %v4136, %v4147
    %v4162 = vmul.f32 %v4137, %v4147
    %v4163 = vmul.f32 %v4138, %v4147
    %v4164 = vmul.f32 %v4139, %v4147
    %v4165 = vmul.f32 %v4140, %v4147
    %v4166 = vmul.f32 %v4141, %v4147
    %v4167 = vmul.f32 %v4142, %v4147
    %v4168 = vmul.f32 %v4143, %v4147
    %s4169 = scalar_lea.vmem %s12, 1
    %v4170 = vld [vmem:[%s4169] sm:$0x1]
    %v4172 = vperm.slane %v4170, 0
    %v4174 = vadd.f32 %v4149, %v4172
    %v4175 = vadd.f32 %v4150, %v4172
    %v4176 = vadd.f32 %v4151, %v4172
    %v4177 = vadd.f32 %v4152, %v4172
    %v4178 = vadd.f32 %v4153, %v4172
    %v4179 = vadd.f32 %v4154, %v4172
    %v4180 = vadd.f32 %v4155, %v4172
    %v4181 = vadd.f32 %v4156, %v4172
    %v4182 = vadd.f32 %v4157, %v4172
    %v4183 = vadd.f32 %v4158, %v4172
    %v4184 = vadd.f32 %v4159, %v4172
    %v4185 = vadd.f32 %v4160, %v4172
    %v4186 = vadd.f32 %v4161, %v4172
    %v4187 = vadd.f32 %v4162, %v4172
    %v4188 = vadd.f32 %v4163, %v4172
    %v4189 = vadd.f32 %v4164, %v4172
    %v4190 = vadd.f32 %v4165, %v4172
    %v4191 = vadd.f32 %v4166, %v4172
    %v4192 = vadd.f32 %v4167, %v4172
    %v4193 = vadd.f32 %v4168, %v4172
    %s4194 = scalar_lea.vmem %s4, 64
    %v4195 = vld [vmem:[%s4194] sm:$0xff]
    %v4196 = vld [vmem:[%s4194 + $0x8] sm:$0xff]
    %v4197 = vld [vmem:[%s4194 + $0x10] sm:$0xff]
    %v4198 = vld [vmem:[%s4194 + $0x18] sm:$0xff]
    %s4199 = scalar_lea.vmem %s5, 64
    %v4200 = vld [vmem:[%s4199] sm:$0xff]
    %v4201 = vld [vmem:[%s4199 + $0x8] sm:$0xff]
    %v4202 = vld [vmem:[%s4199 + $0x10] sm:$0xff]
    %v4203 = vld [vmem:[%s4199 + $0x18] sm:$0xff]
    %v4205 = vsel %vm351, %v4176, 0
    %v4208 = vsel %vm351, %v4177, 0
    %v4211 = vsel %vm351, %v4178, 0
    %v4214 = vsel %vm351, %v4179, 0
    %v4217 = vsel %vm351, %v4180, 0
    %v4220 = vsel %vm351, %v4181, 0
    %v4223 = vsel %vm351, %v4182, 0
    %v4226 = vsel %vm351, %v4183, 0
    %v4229 = vsel %vm351, %v4184, 0
    %v4232 = vsel %vm351, %v4185, 0
    %v4235 = vsel %vm351, %v4186, 0
    %v4238 = vsel %vm351, %v4187, 0
    %v4241 = vsel %vm351, %v4188, 0
    %v4244 = vsel %vm351, %v4189, 0
    %v4247 = vsel %vm351, %v4190, 0
    %v4250 = vsel %vm351, %v4191, 0
    %v4253 = vsel %vm351, %v4192, 0
    %v4256 = vsel %vm351, %v4193, 0
    %4258 = vmatpush.msra.mxu0 0.0
    %4259 = vmatpush.msra.mxu0 0.0
    %4260 = vmatpush.msra.mxu0 0.0
    %4261 = vmatpush.msra.mxu0 0.0
    %4262 = vmatpush.msra.mxu0 0.0
    %4263 = vmatpush.msra.mxu0 0.0
    %4264 = vmatpush.msra.mxu0 0.0
    %4265 = vmatpush.msra.mxu0 0.0
    %4266 = vmatpush.msra.mxu0 0.0
    %4267 = vmatpush.msra.mxu0 0.0
    %4268 = vmatpush.msra.mxu0 0.0
    %4269 = vmatpush.msra.mxu0 0.0
    %4270 = vmatpush.msra.mxu0 %v4203
    %4271 = vmatpush.msra.mxu0 %v4202
    %4272 = vmatpush.msra.mxu0 %v4201
    %4273 = vmatpush.msra.mxu0 %v4200
    %4274 = vmatmul.f32.gmra.mxu0 %v4205
    %v4275 = vpop.f32.mrf.mxu0
    %v4276 = vadd.f32 0.0, %v4275
    %4277 = vmatmul.f32.gmra.mxu0 %v4208
    %v4278 = vpop.f32.mrf.mxu0
    %v4279 = vadd.f32 0.0, %v4278
    %4280 = vmatmul.f32.gmra.mxu0 %v4211
    %v4281 = vpop.f32.mrf.mxu0
    %v4282 = vadd.f32 0.0, %v4281
    %4283 = vmatmul.f32.gmra.mxu0 %v4214
    %v4284 = vpop.f32.mrf.mxu0
    %v4285 = vadd.f32 0.0, %v4284
    %4286 = vmatmul.f32.gmra.mxu0 %v4217
    %v4287 = vpop.f32.mrf.mxu0
    %v4288 = vadd.f32 0.0, %v4287
    %4289 = vmatmul.f32.gmra.mxu0 %v4220
    %v4290 = vpop.f32.mrf.mxu0
    %v4291 = vadd.f32 0.0, %v4290
    %4292 = vmatmul.f32.gmra.mxu0 %v4223
    %v4293 = vpop.f32.mrf.mxu0
    %v4294 = vadd.f32 0.0, %v4293
    %4295 = vmatmul.f32.gmra.mxu0 %v4226
    %v4296 = vpop.f32.mrf.mxu0
    %v4297 = vadd.f32 0.0, %v4296
    %4298 = vmatmul.f32.gmra.mxu0 %v4229
    %v4299 = vpop.f32.mrf.mxu0
    %v4300 = vadd.f32 0.0, %v4299
    %4301 = vmatmul.f32.gmra.mxu0 %v4232
    %v4302 = vpop.f32.mrf.mxu0
    %v4303 = vadd.f32 0.0, %v4302
    %4304 = vmatmul.f32.gmra.mxu0 %v4235
    %v4305 = vpop.f32.mrf.mxu0
    %v4306 = vadd.f32 0.0, %v4305
    %4307 = vmatmul.f32.gmra.mxu0 %v4238
    %v4308 = vpop.f32.mrf.mxu0
    %v4309 = vadd.f32 0.0, %v4308
    %4310 = vmatmul.f32.gmra.mxu0 %v4241
    %v4311 = vpop.f32.mrf.mxu0
    %v4312 = vadd.f32 0.0, %v4311
    %4313 = vmatmul.f32.gmra.mxu0 %v4244
    %v4314 = vpop.f32.mrf.mxu0
    %v4315 = vadd.f32 0.0, %v4314
    %4316 = vmatmul.f32.gmra.mxu0 %v4247
    %v4317 = vpop.f32.mrf.mxu0
    %v4318 = vadd.f32 0.0, %v4317
    %4319 = vmatmul.f32.gmra.mxu0 %v4250
    %v4320 = vpop.f32.mrf.mxu0
    %v4321 = vadd.f32 0.0, %v4320
    %4322 = vmatmul.f32.gmra.mxu0 %v4253
    %v4323 = vpop.f32.mrf.mxu0
    %v4324 = vadd.f32 0.0, %v4323
    %4325 = vmatmul.f32.gmra.mxu0 %v4256
    %v4326 = vpop.f32.mrf.mxu0
    %v4327 = vadd.f32 0.0, %v4326
    %4328 = vdwg.mxu0
    %v4330 = vsel %vm351, %v4174, 0
    %v4333 = vsel %vm351, %v4175, 0
    %4335 = vmatpush.msra.mxu0 0.0
    %4336 = vmatpush.msra.mxu0 0.0
    %4337 = vmatpush.msra.mxu0 0.0
    %4338 = vmatpush.msra.mxu0 0.0
    %4339 = vmatpush.msra.mxu0 0.0
    %4340 = vmatpush.msra.mxu0 0.0
    %4341 = vmatpush.msra.mxu0 0.0
    %4342 = vmatpush.msra.mxu0 0.0
    %4343 = vmatpush.msra.mxu0 0.0
    %4344 = vmatpush.msra.mxu0 0.0
    %4345 = vmatpush.msra.mxu0 0.0
    %4346 = vmatpush.msra.mxu0 0.0
    %4347 = vmatpush.msra.mxu0 %v4198
    %4348 = vmatpush.msra.mxu0 %v4197
    %4349 = vmatpush.msra.mxu0 %v4196
    %4350 = vmatpush.msra.mxu0 %v4195
    %4351 = vmatmul.f32.gmra.mxu0 %v4330
    %v4352 = vpop.f32.mrf.mxu0
    %v4353 = vadd.f32 %v4276, %v4352
    %4354 = vmatmul.f32.gmra.mxu0 %v4333
    %v4355 = vpop.f32.mrf.mxu0
    %v4356 = vadd.f32 %v4279, %v4355
    %4357 = vmatmul.f32.gmra.mxu0 %v4205
    %v4358 = vpop.f32.mrf.mxu0
    %v4359 = vadd.f32 %v4282, %v4358
    %4360 = vmatmul.f32.gmra.mxu0 %v4208
    %v4361 = vpop.f32.mrf.mxu0
    %v4362 = vadd.f32 %v4285, %v4361
    %4363 = vmatmul.f32.gmra.mxu0 %v4211
    %v4364 = vpop.f32.mrf.mxu0
    %v4365 = vadd.f32 %v4288, %v4364
    %4366 = vmatmul.f32.gmra.mxu0 %v4214
    %v4367 = vpop.f32.mrf.mxu0
    %v4368 = vadd.f32 %v4291, %v4367
    %4369 = vmatmul.f32.gmra.mxu0 %v4217
    %v4370 = vpop.f32.mrf.mxu0
    %v4371 = vadd.f32 %v4294, %v4370
    %4372 = vmatmul.f32.gmra.mxu0 %v4220
    %v4373 = vpop.f32.mrf.mxu0
    %v4374 = vadd.f32 %v4297, %v4373
    %4375 = vmatmul.f32.gmra.mxu0 %v4223
    %v4376 = vpop.f32.mrf.mxu0
    %v4377 = vadd.f32 %v4300, %v4376
    %4378 = vmatmul.f32.gmra.mxu0 %v4226
    %v4379 = vpop.f32.mrf.mxu0
    %v4380 = vadd.f32 %v4303, %v4379
    %4381 = vmatmul.f32.gmra.mxu0 %v4229
    %v4382 = vpop.f32.mrf.mxu0
    %v4383 = vadd.f32 %v4306, %v4382
    %4384 = vmatmul.f32.gmra.mxu0 %v4232
    %v4385 = vpop.f32.mrf.mxu0
    %v4386 = vadd.f32 %v4309, %v4385
    %4387 = vmatmul.f32.gmra.mxu0 %v4235
    %v4388 = vpop.f32.mrf.mxu0
    %v4389 = vadd.f32 %v4312, %v4388
    %4390 = vmatmul.f32.gmra.mxu0 %v4238
    %v4391 = vpop.f32.mrf.mxu0
    %v4392 = vadd.f32 %v4315, %v4391
    %4393 = vmatmul.f32.gmra.mxu0 %v4241
    %v4394 = vpop.f32.mrf.mxu0
    %v4395 = vadd.f32 %v4318, %v4394
    %4396 = vmatmul.f32.gmra.mxu0 %v4244
    %v4397 = vpop.f32.mrf.mxu0
    %v4398 = vadd.f32 %v4321, %v4397
    %4399 = vmatmul.f32.gmra.mxu0 %v4247
    %v4400 = vpop.f32.mrf.mxu0
    %v4401 = vadd.f32 %v4324, %v4400
    %4402 = vmatmul.f32.gmra.mxu0 %v4250
    %v4403 = vpop.f32.mrf.mxu0
    %v4404 = vadd.f32 %v4327, %v4403
    %4405 = vdwg.mxu0
    %s4406 = scalar_lea.vmem %s6, 2
    %v4407 = vld [vmem:[%s4406] sm:$0x1]
    %v4409 = vperm.slane %v4407, 0
    %v4411 = vadd.f32 %v4353, %v4409
    %v4412 = vadd.f32 %v4356, %v4409
    %v4413 = vadd.f32 %v4359, %v4409
    %v4414 = vadd.f32 %v4362, %v4409
    %v4415 = vadd.f32 %v4365, %v4409
    %v4416 = vadd.f32 %v4368, %v4409
    %v4417 = vadd.f32 %v4371, %v4409
    %v4418 = vadd.f32 %v4374, %v4409
    %v4419 = vadd.f32 %v4377, %v4409
    %v4420 = vadd.f32 %v4380, %v4409
    %v4421 = vadd.f32 %v4383, %v4409
    %v4422 = vadd.f32 %v4386, %v4409
    %v4423 = vadd.f32 %v4389, %v4409
    %v4424 = vadd.f32 %v4392, %v4409
    %v4425 = vadd.f32 %v4395, %v4409
    %v4426 = vadd.f32 %v4398, %v4409
    %v4427 = vadd.f32 %v4401, %v4409
    %v4428 = vadd.f32 %v4404, %v4409
    %v4429 = vtanh.pop %v4411
    %v4430 = vtanh.pop %v4412
    %v4431 = vtanh.pop %v4413
    %v4432 = vtanh.pop %v4414
    %v4433 = vtanh.pop %v4415
    %v4434 = vtanh.pop %v4416
    %v4435 = vtanh.pop %v4417
    %v4436 = vtanh.pop %v4418
    %v4437 = vtanh.pop %v4419
    %v4438 = vtanh.pop %v4420
    %v4439 = vtanh.pop %v4421
    %v4440 = vtanh.pop %v4422
    %v4441 = vtanh.pop %v4423
    %v4442 = vtanh.pop %v4424
    %v4443 = vtanh.pop %v4425
    %v4444 = vtanh.pop %v4426
    %v4445 = vtanh.pop %v4427
    %v4446 = vtanh.pop %v4428
    %v4447 = vxor.u32 %v4411, 2147483648
    %v4448 = vxor.u32 %v4412, 2147483648
    %v4449 = vxor.u32 %v4413, 2147483648
    %v4450 = vxor.u32 %v4414, 2147483648
    %v4451 = vxor.u32 %v4415, 2147483648
    %v4452 = vxor.u32 %v4416, 2147483648
    %v4453 = vxor.u32 %v4417, 2147483648
    %v4454 = vxor.u32 %v4418, 2147483648
    %v4455 = vxor.u32 %v4419, 2147483648
    %v4456 = vxor.u32 %v4420, 2147483648
    %v4457 = vxor.u32 %v4421, 2147483648
    %v4458 = vxor.u32 %v4422, 2147483648
    %v4459 = vxor.u32 %v4423, 2147483648
    %v4460 = vxor.u32 %v4424, 2147483648
    %v4461 = vxor.u32 %v4425, 2147483648
    %v4462 = vxor.u32 %v4426, 2147483648
    %v4463 = vxor.u32 %v4427, 2147483648
    %v4464 = vxor.u32 %v4428, 2147483648
    %v4465 = vmul.f32 %v4447, 1.442695
    %v4466 = vpow.pop %v4465
    %v4467 = vmul.f32 %v4448, 1.442695
    %v4468 = vpow.pop %v4467
    %v4469 = vmul.f32 %v4449, 1.442695
    %v4470 = vpow.pop %v4469
    %v4471 = vmul.f32 %v4450, 1.442695
    %v4472 = vpow.pop %v4471
    %v4473 = vmul.f32 %v4451, 1.442695
    %v4474 = vpow.pop %v4473
    %v4475 = vmul.f32 %v4452, 1.442695
    %v4476 = vpow.pop %v4475
    %v4477 = vmul.f32 %v4453, 1.442695
    %v4478 = vpow.pop %v4477
    %v4479 = vmul.f32 %v4454, 1.442695
    %v4480 = vpow.pop %v4479
    %v4481 = vmul.f32 %v4455, 1.442695
    %v4482 = vpow.pop %v4481
    %v4483 = vmul.f32 %v4456, 1.442695
    %v4484 = vpow.pop %v4483
    %v4485 = vmul.f32 %v4457, 1.442695
    %v4486 = vpow.pop %v4485
    %v4487 = vmul.f32 %v4458, 1.442695
    %v4488 = vpow.pop %v4487
    %v4489 = vmul.f32 %v4459, 1.442695
    %v4490 = vpow.pop %v4489
    %v4491 = vmul.f32 %v4460, 1.442695
    %v4492 = vpow.pop %v4491
    %v4493 = vmul.f32 %v4461, 1.442695
    %v4494 = vpow.pop %v4493
    %v4495 = vmul.f32 %v4462, 1.442695
    %v4496 = vpow.pop %v4495
    %v4497 = vmul.f32 %v4463, 1.442695
    %v4498 = vpow.pop %v4497
    %v4499 = vmul.f32 %v4464, 1.442695
    %v4500 = vpow.pop %v4499
    %v4501 = vadd.f32 %v4466, 1.0
    %v4502 = vadd.f32 %v4468, 1.0
    %v4503 = vadd.f32 %v4470, 1.0
    %v4504 = vadd.f32 %v4472, 1.0
    %v4505 = vadd.f32 %v4474, 1.0
    %v4506 = vadd.f32 %v4476, 1.0
    %v4507 = vadd.f32 %v4478, 1.0
    %v4508 = vadd.f32 %v4480, 1.0
    %v4509 = vadd.f32 %v4482, 1.0
    %v4510 = vadd.f32 %v4484, 1.0
    %v4511 = vadd.f32 %v4486, 1.0
    %v4512 = vadd.f32 %v4488, 1.0
    %v4513 = vadd.f32 %v4490, 1.0
    %v4514 = vadd.f32 %v4492, 1.0
    %v4515 = vadd.f32 %v4494, 1.0
    %v4516 = vadd.f32 %v4496, 1.0
    %v4517 = vadd.f32 %v4498, 1.0
    %v4518 = vadd.f32 %v4500, 1.0
    %v4519 = vrcp.pop %v4501
    %v4520 = vmul.f32 %v4501, %v4519
    %v4521 = vsub.f32 1.0, %v4520
    %v4522 = vmul.f32 %v4519, %v4521
    %v4523 = vadd.f32 %v4519, %v4522
    %vm4524 = vweird.f32 %v4501
    %vm4525 = vweird.f32 %v4519
    %vm4526 = vmor %vm4524, %vm4525
    %v4527 = vsel %vm4526, %v4519, %v4523
    %v4528 = vand.u32 2147483647, %v4501
    %vm4529 = vcmp.eq.f32.partialorder %v4528, 8.507059e+37
    %v4530 = vand.u32 %v4501, 2147483648
    %v4531 = vor.u32 1.1754944e-38, %v4530
    %v4532 = vsel %vm4529, %v4531, %v4527
    %v4533 = vmul.f32 1.0, %v4532
    %v4534 = vrcp.pop %v4502
    %v4535 = vmul.f32 %v4502, %v4534
    %v4536 = vsub.f32 1.0, %v4535
    %v4537 = vmul.f32 %v4534, %v4536
    %v4538 = vadd.f32 %v4534, %v4537
    %vm4539 = vweird.f32 %v4502
    %vm4540 = vweird.f32 %v4534
    %vm4541 = vmor %vm4539, %vm4540
    %v4542 = vsel %vm4541, %v4534, %v4538
    %v4543 = vand.u32 2147483647, %v4502
    %vm4544 = vcmp.eq.f32.partialorder %v4543, 8.507059e+37
    %v4545 = vand.u32 %v4502, 2147483648
    %v4546 = vor.u32 1.1754944e-38, %v4545
    %v4547 = vsel %vm4544, %v4546, %v4542
    %v4548 = vmul.f32 1.0, %v4547
    %v4549 = vrcp.pop %v4503
    %v4550 = vmul.f32 %v4503, %v4549
    %v4551 = vsub.f32 1.0, %v4550
    %v4552 = vmul.f32 %v4549, %v4551
    %v4553 = vadd.f32 %v4549, %v4552
    %vm4554 = vweird.f32 %v4503
    %vm4555 = vweird.f32 %v4549
    %vm4556 = vmor %vm4554, %vm4555
    %v4557 = vsel %vm4556, %v4549, %v4553
    %v4558 = vand.u32 2147483647, %v4503
    %vm4559 = vcmp.eq.f32.partialorder %v4558, 8.507059e+37
    %v4560 = vand.u32 %v4503, 2147483648
    %v4561 = vor.u32 1.1754944e-38, %v4560
    %v4562 = vsel %vm4559, %v4561, %v4557
    %v4563 = vmul.f32 1.0, %v4562
    %v4564 = vrcp.pop %v4504
    %v4565 = vmul.f32 %v4504, %v4564
    %v4566 = vsub.f32 1.0, %v4565
    %v4567 = vmul.f32 %v4564, %v4566
    %v4568 = vadd.f32 %v4564, %v4567
    %vm4569 = vweird.f32 %v4504
    %vm4570 = vweird.f32 %v4564
    %vm4571 = vmor %vm4569, %vm4570
    %v4572 = vsel %vm4571, %v4564, %v4568
    %v4573 = vand.u32 2147483647, %v4504
    %vm4574 = vcmp.eq.f32.partialorder %v4573, 8.507059e+37
    %v4575 = vand.u32 %v4504, 2147483648
    %v4576 = vor.u32 1.1754944e-38, %v4575
    %v4577 = vsel %vm4574, %v4576, %v4572
    %v4578 = vmul.f32 1.0, %v4577
    %v4579 = vrcp.pop %v4505
    %v4580 = vmul.f32 %v4505, %v4579
    %v4581 = vsub.f32 1.0, %v4580
    %v4582 = vmul.f32 %v4579, %v4581
    %v4583 = vadd.f32 %v4579, %v4582
    %vm4584 = vweird.f32 %v4505
    %vm4585 = vweird.f32 %v4579
    %vm4586 = vmor %vm4584, %vm4585
    %v4587 = vsel %vm4586, %v4579, %v4583
    %v4588 = vand.u32 2147483647, %v4505
    %vm4589 = vcmp.eq.f32.partialorder %v4588, 8.507059e+37
    %v4590 = vand.u32 %v4505, 2147483648
    %v4591 = vor.u32 1.1754944e-38, %v4590
    %v4592 = vsel %vm4589, %v4591, %v4587
    %v4593 = vmul.f32 1.0, %v4592
    %v4594 = vrcp.pop %v4506
    %v4595 = vmul.f32 %v4506, %v4594
    %v4596 = vsub.f32 1.0, %v4595
    %v4597 = vmul.f32 %v4594, %v4596
    %v4598 = vadd.f32 %v4594, %v4597
    %vm4599 = vweird.f32 %v4506
    %vm4600 = vweird.f32 %v4594
    %vm4601 = vmor %vm4599, %vm4600
    %v4602 = vsel %vm4601, %v4594, %v4598
    %v4603 = vand.u32 2147483647, %v4506
    %vm4604 = vcmp.eq.f32.partialorder %v4603, 8.507059e+37
    %v4605 = vand.u32 %v4506, 2147483648
    %v4606 = vor.u32 1.1754944e-38, %v4605
    %v4607 = vsel %vm4604, %v4606, %v4602
    %v4608 = vmul.f32 1.0, %v4607
    %v4609 = vrcp.pop %v4507
    %v4610 = vmul.f32 %v4507, %v4609
    %v4611 = vsub.f32 1.0, %v4610
    %v4612 = vmul.f32 %v4609, %v4611
    %v4613 = vadd.f32 %v4609, %v4612
    %vm4614 = vweird.f32 %v4507
    %vm4615 = vweird.f32 %v4609
    %vm4616 = vmor %vm4614, %vm4615
    %v4617 = vsel %vm4616, %v4609, %v4613
    %v4618 = vand.u32 2147483647, %v4507
    %vm4619 = vcmp.eq.f32.partialorder %v4618, 8.507059e+37
    %v4620 = vand.u32 %v4507, 2147483648
    %v4621 = vor.u32 1.1754944e-38, %v4620
    %v4622 = vsel %vm4619, %v4621, %v4617
    %v4623 = vmul.f32 1.0, %v4622
    %v4624 = vrcp.pop %v4508
    %v4625 = vmul.f32 %v4508, %v4624
    %v4626 = vsub.f32 1.0, %v4625
    %v4627 = vmul.f32 %v4624, %v4626
    %v4628 = vadd.f32 %v4624, %v4627
    %vm4629 = vweird.f32 %v4508
    %vm4630 = vweird.f32 %v4624
    %vm4631 = vmor %vm4629, %vm4630
    %v4632 = vsel %vm4631, %v4624, %v4628
    %v4633 = vand.u32 2147483647, %v4508
    %vm4634 = vcmp.eq.f32.partialorder %v4633, 8.507059e+37
    %v4635 = vand.u32 %v4508, 2147483648
    %v4636 = vor.u32 1.1754944e-38, %v4635
    %v4637 = vsel %vm4634, %v4636, %v4632
    %v4638 = vmul.f32 1.0, %v4637
    %v4639 = vrcp.pop %v4509
    %v4640 = vmul.f32 %v4509, %v4639
    %v4641 = vsub.f32 1.0, %v4640
    %v4642 = vmul.f32 %v4639, %v4641
    %v4643 = vadd.f32 %v4639, %v4642
    %vm4644 = vweird.f32 %v4509
    %vm4645 = vweird.f32 %v4639
    %vm4646 = vmor %vm4644, %vm4645
    %v4647 = vsel %vm4646, %v4639, %v4643
    %v4648 = vand.u32 2147483647, %v4509
    %vm4649 = vcmp.eq.f32.partialorder %v4648, 8.507059e+37
    %v4650 = vand.u32 %v4509, 2147483648
    %v4651 = vor.u32 1.1754944e-38, %v4650
    %v4652 = vsel %vm4649, %v4651, %v4647
    %v4653 = vmul.f32 1.0, %v4652
    %v4654 = vrcp.pop %v4510
    %v4655 = vmul.f32 %v4510, %v4654
    %v4656 = vsub.f32 1.0, %v4655
    %v4657 = vmul.f32 %v4654, %v4656
    %v4658 = vadd.f32 %v4654, %v4657
    %vm4659 = vweird.f32 %v4510
    %vm4660 = vweird.f32 %v4654
    %vm4661 = vmor %vm4659, %vm4660
    %v4662 = vsel %vm4661, %v4654, %v4658
    %v4663 = vand.u32 2147483647, %v4510
    %vm4664 = vcmp.eq.f32.partialorder %v4663, 8.507059e+37
    %v4665 = vand.u32 %v4510, 2147483648
    %v4666 = vor.u32 1.1754944e-38, %v4665
    %v4667 = vsel %vm4664, %v4666, %v4662
    %v4668 = vmul.f32 1.0, %v4667
    %v4669 = vrcp.pop %v4511
    %v4670 = vmul.f32 %v4511, %v4669
    %v4671 = vsub.f32 1.0, %v4670
    %v4672 = vmul.f32 %v4669, %v4671
    %v4673 = vadd.f32 %v4669, %v4672
    %vm4674 = vweird.f32 %v4511
    %vm4675 = vweird.f32 %v4669
    %vm4676 = vmor %vm4674, %vm4675
    %v4677 = vsel %vm4676, %v4669, %v4673
    %v4678 = vand.u32 2147483647, %v4511
    %vm4679 = vcmp.eq.f32.partialorder %v4678, 8.507059e+37
    %v4680 = vand.u32 %v4511, 2147483648
    %v4681 = vor.u32 1.1754944e-38, %v4680
    %v4682 = vsel %vm4679, %v4681, %v4677
    %v4683 = vmul.f32 1.0, %v4682
    %v4684 = vrcp.pop %v4512
    %v4685 = vmul.f32 %v4512, %v4684
    %v4686 = vsub.f32 1.0, %v4685
    %v4687 = vmul.f32 %v4684, %v4686
    %v4688 = vadd.f32 %v4684, %v4687
    %vm4689 = vweird.f32 %v4512
    %vm4690 = vweird.f32 %v4684
    %vm4691 = vmor %vm4689, %vm4690
    %v4692 = vsel %vm4691, %v4684, %v4688
    %v4693 = vand.u32 2147483647, %v4512
    %vm4694 = vcmp.eq.f32.partialorder %v4693, 8.507059e+37
    %v4695 = vand.u32 %v4512, 2147483648
    %v4696 = vor.u32 1.1754944e-38, %v4695
    %v4697 = vsel %vm4694, %v4696, %v4692
    %v4698 = vmul.f32 1.0, %v4697
    %v4699 = vrcp.pop %v4513
    %v4700 = vmul.f32 %v4513, %v4699
    %v4701 = vsub.f32 1.0, %v4700
    %v4702 = vmul.f32 %v4699, %v4701
    %v4703 = vadd.f32 %v4699, %v4702
    %vm4704 = vweird.f32 %v4513
    %vm4705 = vweird.f32 %v4699
    %vm4706 = vmor %vm4704, %vm4705
    %v4707 = vsel %vm4706, %v4699, %v4703
    %v4708 = vand.u32 2147483647, %v4513
    %vm4709 = vcmp.eq.f32.partialorder %v4708, 8.507059e+37
    %v4710 = vand.u32 %v4513, 2147483648
    %v4711 = vor.u32 1.1754944e-38, %v4710
    %v4712 = vsel %vm4709, %v4711, %v4707
    %v4713 = vmul.f32 1.0, %v4712
    %v4714 = vrcp.pop %v4514
    %v4715 = vmul.f32 %v4514, %v4714
    %v4716 = vsub.f32 1.0, %v4715
    %v4717 = vmul.f32 %v4714, %v4716
    %v4718 = vadd.f32 %v4714, %v4717
    %vm4719 = vweird.f32 %v4514
    %vm4720 = vweird.f32 %v4714
    %vm4721 = vmor %vm4719, %vm4720
    %v4722 = vsel %vm4721, %v4714, %v4718
    %v4723 = vand.u32 2147483647, %v4514
    %vm4724 = vcmp.eq.f32.partialorder %v4723, 8.507059e+37
    %v4725 = vand.u32 %v4514, 2147483648
    %v4726 = vor.u32 1.1754944e-38, %v4725
    %v4727 = vsel %vm4724, %v4726, %v4722
    %v4728 = vmul.f32 1.0, %v4727
    %v4729 = vrcp.pop %v4515
    %v4730 = vmul.f32 %v4515, %v4729
    %v4731 = vsub.f32 1.0, %v4730
    %v4732 = vmul.f32 %v4729, %v4731
    %v4733 = vadd.f32 %v4729, %v4732
    %vm4734 = vweird.f32 %v4515
    %vm4735 = vweird.f32 %v4729
    %vm4736 = vmor %vm4734, %vm4735
    %v4737 = vsel %vm4736, %v4729, %v4733
    %v4738 = vand.u32 2147483647, %v4515
    %vm4739 = vcmp.eq.f32.partialorder %v4738, 8.507059e+37
    %v4740 = vand.u32 %v4515, 2147483648
    %v4741 = vor.u32 1.1754944e-38, %v4740
    %v4742 = vsel %vm4739, %v4741, %v4737
    %v4743 = vmul.f32 1.0, %v4742
    %v4744 = vrcp.pop %v4516
    %v4745 = vmul.f32 %v4516, %v4744
    %v4746 = vsub.f32 1.0, %v4745
    %v4747 = vmul.f32 %v4744, %v4746
    %v4748 = vadd.f32 %v4744, %v4747
    %vm4749 = vweird.f32 %v4516
    %vm4750 = vweird.f32 %v4744
    %vm4751 = vmor %vm4749, %vm4750
    %v4752 = vsel %vm4751, %v4744, %v4748
    %v4753 = vand.u32 2147483647, %v4516
    %vm4754 = vcmp.eq.f32.partialorder %v4753, 8.507059e+37
    %v4755 = vand.u32 %v4516, 2147483648
    %v4756 = vor.u32 1.1754944e-38, %v4755
    %v4757 = vsel %vm4754, %v4756, %v4752
    %v4758 = vmul.f32 1.0, %v4757
    %v4759 = vrcp.pop %v4517
    %v4760 = vmul.f32 %v4517, %v4759
    %v4761 = vsub.f32 1.0, %v4760
    %v4762 = vmul.f32 %v4759, %v4761
    %v4763 = vadd.f32 %v4759, %v4762
    %vm4764 = vweird.f32 %v4517
    %vm4765 = vweird.f32 %v4759
    %vm4766 = vmor %vm4764, %vm4765
    %v4767 = vsel %vm4766, %v4759, %v4763
    %v4768 = vand.u32 2147483647, %v4517
    %vm4769 = vcmp.eq.f32.partialorder %v4768, 8.507059e+37
    %v4770 = vand.u32 %v4517, 2147483648
    %v4771 = vor.u32 1.1754944e-38, %v4770
    %v4772 = vsel %vm4769, %v4771, %v4767
    %v4773 = vmul.f32 1.0, %v4772
    %v4774 = vrcp.pop %v4518
    %v4775 = vmul.f32 %v4518, %v4774
    %v4776 = vsub.f32 1.0, %v4775
    %v4777 = vmul.f32 %v4774, %v4776
    %v4778 = vadd.f32 %v4774, %v4777
    %vm4779 = vweird.f32 %v4518
    %vm4780 = vweird.f32 %v4774
    %vm4781 = vmor %vm4779, %vm4780
    %v4782 = vsel %vm4781, %v4774, %v4778
    %v4783 = vand.u32 2147483647, %v4518
    %vm4784 = vcmp.eq.f32.partialorder %v4783, 8.507059e+37
    %v4785 = vand.u32 %v4518, 2147483648
    %v4786 = vor.u32 1.1754944e-38, %v4785
    %v4787 = vsel %vm4784, %v4786, %v4782
    %v4788 = vmul.f32 1.0, %v4787
    %4807 = vrot.lane.b32.xlu0 %v4533, 96
    %v4808 = vpop.permute.xlu0 %4807
    %4809 = vrot.lane.b32.xlu0 %v4548, 96
    %v4810 = vpop.permute.xlu0 %4809
    %4811 = vrot.lane.b32.xlu0 %v4563, 96
    %v4812 = vpop.permute.xlu0 %4811
    %4813 = vrot.lane.b32.xlu0 %v4578, 96
    %v4814 = vpop.permute.xlu0 %4813
    %4815 = vrot.lane.b32.xlu0 %v4593, 96
    %v4816 = vpop.permute.xlu0 %4815
    %4817 = vrot.lane.b32.xlu0 %v4608, 96
    %v4818 = vpop.permute.xlu0 %4817
    %4819 = vrot.lane.b32.xlu0 %v4623, 96
    %v4820 = vpop.permute.xlu0 %4819
    %4821 = vrot.lane.b32.xlu0 %v4638, 96
    %v4822 = vpop.permute.xlu0 %4821
    %4823 = vrot.lane.b32.xlu0 %v4653, 96
    %v4824 = vpop.permute.xlu0 %4823
    %4825 = vrot.lane.b32.xlu0 %v4668, 96
    %v4826 = vpop.permute.xlu0 %4825
    %4827 = vrot.lane.b32.xlu0 %v4683, 96
    %v4828 = vpop.permute.xlu0 %4827
    %4829 = vrot.lane.b32.xlu0 %v4698, 96
    %v4830 = vpop.permute.xlu0 %4829
    %4831 = vrot.lane.b32.xlu0 %v4713, 96
    %v4832 = vpop.permute.xlu0 %4831
    %4833 = vrot.lane.b32.xlu0 %v4728, 96
    %v4834 = vpop.permute.xlu0 %4833
    %4835 = vrot.lane.b32.xlu0 %v4743, 96
    %v4836 = vpop.permute.xlu0 %4835
    %4837 = vrot.lane.b32.xlu0 %v4758, 96
    %v4838 = vpop.permute.xlu0 %4837
    %4839 = vrot.lane.b32.xlu0 %v4773, 96
    %v4840 = vpop.permute.xlu0 %4839
    %4841 = vrot.lane.b32.xlu0 %v4788, 96
    %v4842 = vpop.permute.xlu0 %4841
    %v4861 = vmul.f32 %v4429, %v4808
    %v4862 = vmul.f32 %v4430, %v4810
    %v4863 = vmul.f32 %v4431, %v4812
    %v4864 = vmul.f32 %v4432, %v4814
    %v4865 = vmul.f32 %v4433, %v4816
    %v4866 = vmul.f32 %v4434, %v4818
    %v4867 = vmul.f32 %v4435, %v4820
    %v4868 = vmul.f32 %v4436, %v4822
    %v4869 = vmul.f32 %v4437, %v4824
    %v4870 = vmul.f32 %v4438, %v4826
    %v4871 = vmul.f32 %v4439, %v4828
    %v4872 = vmul.f32 %v4440, %v4830
    %v4873 = vmul.f32 %v4441, %v4832
    %v4874 = vmul.f32 %v4442, %v4834
    %v4875 = vmul.f32 %v4443, %v4836
    %v4876 = vmul.f32 %v4444, %v4838
    %v4877 = vmul.f32 %v4445, %v4840
    %v4878 = vmul.f32 %v4446, %v4842
    %s4879 = scalar_lea.vmem %s7, 64
    %v4880 = vld [vmem:[%s4879] sm:$0xff]
    %v4881 = vld [vmem:[%s4879 + $0x8] sm:$0xff]
    %v4882 = vld [vmem:[%s4879 + $0x10] sm:$0xff]
    %v4883 = vld [vmem:[%s4879 + $0x18] sm:$0xff]
    %s4884 = scalar_lea.vmem %s8, 2
    %v4885 = vld [vmem:[%s4884] sm:$0x1]
    %v4887 = vperm.slane %v4885, 0
    %v4890 = vsel %vm351, %v4861, 0
    %v4893 = vsel %vm351, %v4862, 0
    %v4896 = vsel %vm351, %v4863, 0
    %v4899 = vsel %vm351, %v4864, 0
    %v4902 = vsel %vm351, %v4865, 0
    %v4905 = vsel %vm351, %v4866, 0
    %v4908 = vsel %vm351, %v4867, 0
    %v4911 = vsel %vm351, %v4868, 0
    %v4914 = vsel %vm351, %v4869, 0
    %v4917 = vsel %vm351, %v4870, 0
    %v4920 = vsel %vm351, %v4871, 0
    %v4923 = vsel %vm351, %v4872, 0
    %v4926 = vsel %vm351, %v4873, 0
    %v4929 = vsel %vm351, %v4874, 0
    %v4932 = vsel %vm351, %v4875, 0
    %v4935 = vsel %vm351, %v4876, 0
    %v4938 = vsel %vm351, %v4877, 0
    %v4941 = vsel %vm351, %v4878, 0
    %4943 = vmatpush.msra.mxu0 0.0
    %4944 = vmatpush.msra.mxu0 0.0
    %4945 = vmatpush.msra.mxu0 0.0
    %4946 = vmatpush.msra.mxu0 0.0
    %4947 = vmatpush.msra.mxu0 0.0
    %4948 = vmatpush.msra.mxu0 0.0
    %4949 = vmatpush.msra.mxu0 0.0
    %4950 = vmatpush.msra.mxu0 0.0
    %4951 = vmatpush.msra.mxu0 0.0
    %4952 = vmatpush.msra.mxu0 0.0
    %4953 = vmatpush.msra.mxu0 0.0
    %4954 = vmatpush.msra.mxu0 0.0
    %4955 = vmatpush.msra.mxu0 %v4883
    %4956 = vmatpush.msra.mxu0 %v4882
    %4957 = vmatpush.msra.mxu0 %v4881
    %4958 = vmatpush.msra.mxu0 %v4880
    %4959 = vmatmul.f32.gmra.mxu0 %v4890
    %v4960 = vpop.f32.mrf.mxu0
    %4961 = vmatmul.f32.gmra.mxu0 %v4893
    %v4962 = vpop.f32.mrf.mxu0
    %4963 = vmatmul.f32.gmra.mxu0 %v4896
    %v4964 = vpop.f32.mrf.mxu0
    %4965 = vmatmul.f32.gmra.mxu0 %v4899
    %v4966 = vpop.f32.mrf.mxu0
    %4967 = vmatmul.f32.gmra.mxu0 %v4902
    %v4968 = vpop.f32.mrf.mxu0
    %4969 = vmatmul.f32.gmra.mxu0 %v4905
    %v4970 = vpop.f32.mrf.mxu0
    %4971 = vmatmul.f32.gmra.mxu0 %v4908
    %v4972 = vpop.f32.mrf.mxu0
    %4973 = vmatmul.f32.gmra.mxu0 %v4911
    %v4974 = vpop.f32.mrf.mxu0
    %4975 = vmatmul.f32.gmra.mxu0 %v4914
    %v4976 = vpop.f32.mrf.mxu0
    %4977 = vmatmul.f32.gmra.mxu0 %v4917
    %v4978 = vpop.f32.mrf.mxu0
    %4979 = vmatmul.f32.gmra.mxu0 %v4920
    %v4980 = vpop.f32.mrf.mxu0
    %4981 = vmatmul.f32.gmra.mxu0 %v4923
    %v4982 = vpop.f32.mrf.mxu0
    %4983 = vmatmul.f32.gmra.mxu0 %v4926
    %v4984 = vpop.f32.mrf.mxu0
    %4985 = vmatmul.f32.gmra.mxu0 %v4929
    %v4986 = vpop.f32.mrf.mxu0
    %4987 = vmatmul.f32.gmra.mxu0 %v4932
    %v4988 = vpop.f32.mrf.mxu0
    %4989 = vmatmul.f32.gmra.mxu0 %v4935
    %v4990 = vpop.f32.mrf.mxu0
    %4991 = vmatmul.f32.gmra.mxu0 %v4938
    %v4992 = vpop.f32.mrf.mxu0
    %v4993 = vadd.f32 %v4887, %v4992
    %4994 = vmatmul.f32.gmra.mxu0 %v4941
    %v4995 = vpop.f32.mrf.mxu0
    %v4996 = vadd.f32 %v4887, %v4995
    %4997 = vdwg.mxu0
    %v4998 = vadd.f32 %v4993, %v3305
    %v4999 = vadd.f32 %v4996, %v3306
    %v5000 = vld [vmem:[%s1] sm:$0xff]
    %v5001 = vld [vmem:[%s1 + $0x8] sm:$0xff]
    %v5002 = vld [vmem:[%s1 + $0x10] sm:$0xff]
    %v5003 = vld [vmem:[%s1 + $0x18] sm:$0xff]
    %v5004 = vld [vmem:[%s1 + $0x20] sm:$0xff]
    %v5005 = vld [vmem:[%s1 + $0x28] sm:$0xff]
    %v5006 = vld [vmem:[%s1 + $0x30] sm:$0xff]
    %v5007 = vld [vmem:[%s1 + $0x38] sm:$0xff]
    %v5008 = vld [vmem:[%s1 + $0x40] sm:$0xff]
    %v5009 = vld [vmem:[%s1 + $0x48] sm:$0xff]
    %v5010 = vld [vmem:[%s1 + $0x50] sm:$0xff]
    %v5011 = vld [vmem:[%s1 + $0x58] sm:$0xff]
    %v5012 = vld [vmem:[%s1 + $0x60] sm:$0xff]
    %v5013 = vld [vmem:[%s1 + $0x68] sm:$0xff]
    %v5014 = vld [vmem:[%s1 + $0x70] sm:$0xff]
    %v5015 = vld [vmem:[%s1 + $0x78] sm:$0xff]
    %v5016 = vld [vmem:[%s1 + $0x80] sm:$0xff]
    %v5017 = vld [vmem:[%s1 + $0x88] sm:$0xff]
    %v5018 = vld [vmem:[%s1 + $0x90] sm:$0xff]
    %v5019 = vld [vmem:[%s1 + $0x98] sm:$0xff]
    %v5020 = vld [vmem:[%s1 + $0xa0] sm:$0xff]
    %v5021 = vld [vmem:[%s1 + $0xa8] sm:$0xff]
    %v5022 = vld [vmem:[%s1 + $0xb0] sm:$0xff]
    %v5023 = vld [vmem:[%s1 + $0xb8] sm:$0xff]
    %v5024 = vld [vmem:[%s1 + $0xc0] sm:$0xff]
    %v5025 = vld [vmem:[%s1 + $0xc8] sm:$0xff]
    %v5026 = vld [vmem:[%s1 + $0xd0] sm:$0xff]
    %v5027 = vld [vmem:[%s1 + $0xd8] sm:$0xff]
    %v5028 = vld [vmem:[%s1 + $0xe0] sm:$0xff]
    %v5029 = vld [vmem:[%s1 + $0xe8] sm:$0xff]
    %v5030 = vld [vmem:[%s1 + $0xf0] sm:$0xff]
    %v5031 = vld [vmem:[%s1 + $0xf8] sm:$0xff]
    %v5032 = vld [vmem:[%s1 + $0x100] sm:$0xff]
    %v5033 = vld [vmem:[%s1 + $0x108] sm:$0xff]
    %v5034 = vld [vmem:[%s1 + $0x110] sm:$0xff]
    %v5035 = vld [vmem:[%s1 + $0x118] sm:$0xff]
    %vm5036 = vcmask 130048
    %v5038 = vsel %vm5036, %v5001, 0
    %v5041 = vsel %vm5036, %v5003, 0
    %v5044 = vsel %vm5036, %v5005, 0
    %v5047 = vsel %vm5036, %v5007, 0
    %v5050 = vsel %vm5036, %v5009, 0
    %v5053 = vsel %vm5036, %v5011, 0
    %v5056 = vsel %vm5036, %v5013, 0
    %v5059 = vsel %vm5036, %v5015, 0
    %v5062 = vsel %vm5036, %v5017, 0
    %v5065 = vsel %vm5036, %v5019, 0
    %v5068 = vsel %vm5036, %v5021, 0
    %v5071 = vsel %vm5036, %v5023, 0
    %v5074 = vsel %vm5036, %v5025, 0
    %v5077 = vsel %vm5036, %v5027, 0
    %v5080 = vsel %vm5036, %v5029, 0
    %v5083 = vsel %vm5036, %v5031, 0
    %v5086 = vsel %vm5036, %v5033, 0
    %v5089 = vsel %vm5036, %v5035, 0
    %5091 = vmatpush.msra.mxu0 %v4876
    %5092 = vmatpush.msra.mxu0 %v4875
    %5093 = vmatpush.msra.mxu0 %v4874
    %5094 = vmatpush.msra.mxu0 %v4873
    %5095 = vmatpush.msra.mxu0 %v4872
    %5096 = vmatpush.msra.mxu0 %v4871
    %5097 = vmatpush.msra.mxu0 %v4870
    %5098 = vmatpush.msra.mxu0 %v4869
    %5099 = vmatpush.msra.mxu0 %v4868
    %5100 = vmatpush.msra.mxu0 %v4867
    %5101 = vmatpush.msra.mxu0 %v4866
    %5102 = vmatpush.msra.mxu0 %v4865
    %5103 = vmatpush.msra.mxu0 %v4864
    %5104 = vmatpush.msra.mxu0 %v4863
    %5105 = vmatpush.msra.mxu0 %v4862
    %5106 = vmatpush.msra.mxu0 %v4861
    %5107 = vmatmul.f32.gmra.mxu0 %v5000
    %v5108 = vpop.f32.mrf.mxu0
    %v5109 = vadd.f32 0.0, %v5108
    %5110 = vmatmul.f32.gmra.mxu0 %v5002
    %v5111 = vpop.f32.mrf.mxu0
    %v5112 = vadd.f32 0.0, %v5111
    %5113 = vmatmul.f32.gmra.mxu0 %v5004
    %v5114 = vpop.f32.mrf.mxu0
    %v5115 = vadd.f32 0.0, %v5114
    %5116 = vmatmul.f32.gmra.mxu0 %v5006
    %v5117 = vpop.f32.mrf.mxu0
    %v5118 = vadd.f32 0.0, %v5117
    %5119 = vmatmul.f32.gmra.mxu0 %v5008
    %v5120 = vpop.f32.mrf.mxu0
    %v5121 = vadd.f32 0.0, %v5120
    %5122 = vmatmul.f32.gmra.mxu0 %v5010
    %v5123 = vpop.f32.mrf.mxu0
    %v5124 = vadd.f32 0.0, %v5123
    %5125 = vmatmul.f32.gmra.mxu0 %v5012
    %v5126 = vpop.f32.mrf.mxu0
    %v5127 = vadd.f32 0.0, %v5126
    %5128 = vmatmul.f32.gmra.mxu0 %v5014
    %v5129 = vpop.f32.mrf.mxu0
    %v5130 = vadd.f32 0.0, %v5129
    %5131 = vmatmul.f32.gmra.mxu0 %v5016
    %v5132 = vpop.f32.mrf.mxu0
    %v5133 = vadd.f32 0.0, %v5132
    %5134 = vmatmul.f32.gmra.mxu0 %v5018
    %v5135 = vpop.f32.mrf.mxu0
    %v5136 = vadd.f32 0.0, %v5135
    %5137 = vmatmul.f32.gmra.mxu0 %v5020
    %v5138 = vpop.f32.mrf.mxu0
    %v5139 = vadd.f32 0.0, %v5138
    %5140 = vmatmul.f32.gmra.mxu0 %v5022
    %v5141 = vpop.f32.mrf.mxu0
    %v5142 = vadd.f32 0.0, %v5141
    %5143 = vmatmul.f32.gmra.mxu0 %v5024
    %v5144 = vpop.f32.mrf.mxu0
    %v5145 = vadd.f32 0.0, %v5144
    %5146 = vmatmul.f32.gmra.mxu0 %v5026
    %v5147 = vpop.f32.mrf.mxu0
    %v5148 = vadd.f32 0.0, %v5147
    %5149 = vmatmul.f32.gmra.mxu0 %v5028
    %v5150 = vpop.f32.mrf.mxu0
    %v5151 = vadd.f32 0.0, %v5150
    %5152 = vmatmul.f32.gmra.mxu0 %v5030
    %v5153 = vpop.f32.mrf.mxu0
    %v5154 = vadd.f32 0.0, %v5153
    %5155 = vmatmul.f32.gmra.mxu0 %v5032
    %v5156 = vpop.f32.mrf.mxu0
    %v5157 = vadd.f32 0.0, %v5156
    %5158 = vmatmul.f32.gmra.mxu0 %v5034
    %v5159 = vpop.f32.mrf.mxu0
    %v5160 = vadd.f32 0.0, %v5159
    %5161 = vdwg.mxu0
    %5162 = vmatpush.msra.mxu0 0.0
    %5163 = vmatpush.msra.mxu0 0.0
    %5164 = vmatpush.msra.mxu0 0.0
    %5165 = vmatpush.msra.mxu0 0.0
    %5166 = vmatpush.msra.mxu0 0.0
    %5167 = vmatpush.msra.mxu0 0.0
    %5168 = vmatpush.msra.mxu0 0.0
    %5169 = vmatpush.msra.mxu0 0.0
    %5170 = vmatpush.msra.mxu0 0.0
    %5171 = vmatpush.msra.mxu0 0.0
    %5172 = vmatpush.msra.mxu0 0.0
    %5173 = vmatpush.msra.mxu0 0.0
    %5174 = vmatpush.msra.mxu0 0.0
    %5175 = vmatpush.msra.mxu0 0.0
    %5176 = vmatpush.msra.mxu0 %v4878
    %5177 = vmatpush.msra.mxu0 %v4877
    %5178 = vmatmul.f32.gmra.mxu0 %v5038
    %v5179 = vpop.f32.mrf.mxu0
    %v5180 = vadd.f32 %v5109, %v5179
    %5181 = vmatmul.f32.gmra.mxu0 %v5041
    %v5182 = vpop.f32.mrf.mxu0
    %v5183 = vadd.f32 %v5112, %v5182
    %5184 = vmatmul.f32.gmra.mxu0 %v5044
    %v5185 = vpop.f32.mrf.mxu0
    %v5186 = vadd.f32 %v5115, %v5185
    %5187 = vmatmul.f32.gmra.mxu0 %v5047
    %v5188 = vpop.f32.mrf.mxu0
    %v5189 = vadd.f32 %v5118, %v5188
    %5190 = vmatmul.f32.gmra.mxu0 %v5050
    %v5191 = vpop.f32.mrf.mxu0
    %v5192 = vadd.f32 %v5121, %v5191
    %5193 = vmatmul.f32.gmra.mxu0 %v5053
    %v5194 = vpop.f32.mrf.mxu0
    %v5195 = vadd.f32 %v5124, %v5194
    %5196 = vmatmul.f32.gmra.mxu0 %v5056
    %v5197 = vpop.f32.mrf.mxu0
    %v5198 = vadd.f32 %v5127, %v5197
    %5199 = vmatmul.f32.gmra.mxu0 %v5059
    %v5200 = vpop.f32.mrf.mxu0
    %v5201 = vadd.f32 %v5130, %v5200
    %5202 = vmatmul.f32.gmra.mxu0 %v5062
    %v5203 = vpop.f32.mrf.mxu0
    %v5204 = vadd.f32 %v5133, %v5203
    %5205 = vmatmul.f32.gmra.mxu0 %v5065
    %v5206 = vpop.f32.mrf.mxu0
    %v5207 = vadd.f32 %v5136, %v5206
    %5208 = vmatmul.f32.gmra.mxu0 %v5068
    %v5209 = vpop.f32.mrf.mxu0
    %v5210 = vadd.f32 %v5139, %v5209
    %5211 = vmatmul.f32.gmra.mxu0 %v5071
    %v5212 = vpop.f32.mrf.mxu0
    %v5213 = vadd.f32 %v5142, %v5212
    %5214 = vmatmul.f32.gmra.mxu0 %v5074
    %v5215 = vpop.f32.mrf.mxu0
    %v5216 = vadd.f32 %v5145, %v5215
    %5217 = vmatmul.f32.gmra.mxu0 %v5077
    %v5218 = vpop.f32.mrf.mxu0
    %v5219 = vadd.f32 %v5148, %v5218
    %5220 = vmatmul.f32.gmra.mxu0 %v5080
    %v5221 = vpop.f32.mrf.mxu0
    %v5222 = vadd.f32 %v5151, %v5221
    %5223 = vmatmul.f32.gmra.mxu0 %v5083
    %v5224 = vpop.f32.mrf.mxu0
    %v5225 = vadd.f32 %v5154, %v5224
    %5226 = vmatmul.f32.gmra.mxu0 %v5086
    %v5227 = vpop.f32.mrf.mxu0
    %v5228 = vadd.f32 %v5157, %v5227
    %5229 = vmatmul.f32.gmra.mxu0 %v5089
    %v5230 = vpop.f32.mrf.mxu0
    %v5231 = vadd.f32 %v5160, %v5230
    %5232 = vdwg.mxu0
    %5233 = vmatpush.msra.mxu0 %v5225
    %5234 = vmatpush.msra.mxu0 %v5222
    %5235 = vmatpush.msra.mxu0 %v5219
    %5236 = vmatpush.msra.mxu0 %v5216
    %5237 = vmatpush.msra.mxu0 %v5213
    %5238 = vmatpush.msra.mxu0 %v5210
    %5239 = vmatpush.msra.mxu0 %v5207
    %5240 = vmatpush.msra.mxu0 %v5204
    %5241 = vmatpush.msra.mxu0 %v5201
    %5242 = vmatpush.msra.mxu0 %v5198
    %5243 = vmatpush.msra.mxu0 %v5195
    %5244 = vmatpush.msra.mxu0 %v5192
    %5245 = vmatpush.msra.mxu0 %v5189
    %5246 = vmatpush.msra.mxu0 %v5186
    %5247 = vmatpush.msra.mxu0 %v5183
    %5248 = vmatpush.msra.mxu0 %v5180
    %5249 = vmatmul.f32.gmra.mxu0 %v5000
    %v5250 = vpop.f32.mrf.mxu0
    %v5251 = vadd.f32 0.0, %v5250
    %5252 = vmatmul.f32.gmra.mxu0 %v5002
    %v5253 = vpop.f32.mrf.mxu0
    %v5254 = vadd.f32 0.0, %v5253
    %5255 = vmatmul.f32.gmra.mxu0 %v5004
    %v5256 = vpop.f32.mrf.mxu0
    %v5257 = vadd.f32 0.0, %v5256
    %5258 = vmatmul.f32.gmra.mxu0 %v5006
    %v5259 = vpop.f32.mrf.mxu0
    %v5260 = vadd.f32 0.0, %v5259
    %5261 = vmatmul.f32.gmra.mxu0 %v5008
    %v5262 = vpop.f32.mrf.mxu0
    %v5263 = vadd.f32 0.0, %v5262
    %5264 = vmatmul.f32.gmra.mxu0 %v5010
    %v5265 = vpop.f32.mrf.mxu0
    %v5266 = vadd.f32 0.0, %v5265
    %5267 = vmatmul.f32.gmra.mxu0 %v5012
    %v5268 = vpop.f32.mrf.mxu0
    %v5269 = vadd.f32 0.0, %v5268
    %5270 = vmatmul.f32.gmra.mxu0 %v5014
    %v5271 = vpop.f32.mrf.mxu0
    %v5272 = vadd.f32 0.0, %v5271
    %5273 = vmatmul.f32.gmra.mxu0 %v5016
    %v5274 = vpop.f32.mrf.mxu0
    %v5275 = vadd.f32 0.0, %v5274
    %5276 = vmatmul.f32.gmra.mxu0 %v5018
    %v5277 = vpop.f32.mrf.mxu0
    %v5278 = vadd.f32 0.0, %v5277
    %5279 = vmatmul.f32.gmra.mxu0 %v5020
    %v5280 = vpop.f32.mrf.mxu0
    %v5281 = vadd.f32 0.0, %v5280
    %5282 = vmatmul.f32.gmra.mxu0 %v5022
    %v5283 = vpop.f32.mrf.mxu0
    %v5284 = vadd.f32 0.0, %v5283
    %5285 = vmatmul.f32.gmra.mxu0 %v5024
    %v5286 = vpop.f32.mrf.mxu0
    %v5287 = vadd.f32 0.0, %v5286
    %5288 = vmatmul.f32.gmra.mxu0 %v5026
    %v5289 = vpop.f32.mrf.mxu0
    %v5290 = vadd.f32 0.0, %v5289
    %5291 = vmatmul.f32.gmra.mxu0 %v5028
    %v5292 = vpop.f32.mrf.mxu0
    %v5293 = vadd.f32 0.0, %v5292
    %5294 = vmatmul.f32.gmra.mxu0 %v5030
    %v5295 = vpop.f32.mrf.mxu0
    %v5296 = vadd.f32 0.0, %v5295
    %5297 = vmatmul.f32.gmra.mxu0 %v5032
    %v5298 = vpop.f32.mrf.mxu0
    %v5299 = vadd.f32 0.0, %v5298
    %5300 = vmatmul.f32.gmra.mxu0 %v5034
    %v5301 = vpop.f32.mrf.mxu0
    %v5302 = vadd.f32 0.0, %v5301
    %5303 = vdwg.mxu0
    %5304 = vmatpush.msra.mxu0 0.0
    %5305 = vmatpush.msra.mxu0 0.0
    %5306 = vmatpush.msra.mxu0 0.0
    %5307 = vmatpush.msra.mxu0 0.0
    %5308 = vmatpush.msra.mxu0 0.0
    %5309 = vmatpush.msra.mxu0 0.0
    %5310 = vmatpush.msra.mxu0 0.0
    %5311 = vmatpush.msra.mxu0 0.0
    %5312 = vmatpush.msra.mxu0 0.0
    %5313 = vmatpush.msra.mxu0 0.0
    %5314 = vmatpush.msra.mxu0 0.0
    %5315 = vmatpush.msra.mxu0 0.0
    %5316 = vmatpush.msra.mxu0 0.0
    %5317 = vmatpush.msra.mxu0 0.0
    %5318 = vmatpush.msra.mxu0 %v5231
    %5319 = vmatpush.msra.mxu0 %v5228
    %5320 = vmatmul.f32.gmra.mxu0 %v5038
    %v5321 = vpop.f32.mrf.mxu0
    %v5322 = vadd.f32 %v5251, %v5321
    %5323 = vmatmul.f32.gmra.mxu0 %v5041
    %v5324 = vpop.f32.mrf.mxu0
    %v5325 = vadd.f32 %v5254, %v5324
    %5326 = vmatmul.f32.gmra.mxu0 %v5044
    %v5327 = vpop.f32.mrf.mxu0
    %v5328 = vadd.f32 %v5257, %v5327
    %5329 = vmatmul.f32.gmra.mxu0 %v5047
    %v5330 = vpop.f32.mrf.mxu0
    %v5331 = vadd.f32 %v5260, %v5330
    %5332 = vmatmul.f32.gmra.mxu0 %v5050
    %v5333 = vpop.f32.mrf.mxu0
    %v5334 = vadd.f32 %v5263, %v5333
    %5335 = vmatmul.f32.gmra.mxu0 %v5053
    %v5336 = vpop.f32.mrf.mxu0
    %v5337 = vadd.f32 %v5266, %v5336
    %5338 = vmatmul.f32.gmra.mxu0 %v5056
    %v5339 = vpop.f32.mrf.mxu0
    %v5340 = vadd.f32 %v5269, %v5339
    %5341 = vmatmul.f32.gmra.mxu0 %v5059
    %v5342 = vpop.f32.mrf.mxu0
    %v5343 = vadd.f32 %v5272, %v5342
    %5344 = vmatmul.f32.gmra.mxu0 %v5062
    %v5345 = vpop.f32.mrf.mxu0
    %v5346 = vadd.f32 %v5275, %v5345
    %5347 = vmatmul.f32.gmra.mxu0 %v5065
    %v5348 = vpop.f32.mrf.mxu0
    %v5349 = vadd.f32 %v5278, %v5348
    %5350 = vmatmul.f32.gmra.mxu0 %v5068
    %v5351 = vpop.f32.mrf.mxu0
    %v5352 = vadd.f32 %v5281, %v5351
    %5353 = vmatmul.f32.gmra.mxu0 %v5071
    %v5354 = vpop.f32.mrf.mxu0
    %v5355 = vadd.f32 %v5284, %v5354
    %5356 = vmatmul.f32.gmra.mxu0 %v5074
    %v5357 = vpop.f32.mrf.mxu0
    %v5358 = vadd.f32 %v5287, %v5357
    %5359 = vmatmul.f32.gmra.mxu0 %v5077
    %v5360 = vpop.f32.mrf.mxu0
    %v5361 = vadd.f32 %v5290, %v5360
    %5362 = vmatmul.f32.gmra.mxu0 %v5080
    %v5363 = vpop.f32.mrf.mxu0
    %v5364 = vadd.f32 %v5293, %v5363
    %5365 = vmatmul.f32.gmra.mxu0 %v5083
    %v5366 = vpop.f32.mrf.mxu0
    %v5367 = vadd.f32 %v5296, %v5366
    %5368 = vmatmul.f32.gmra.mxu0 %v5086
    %v5369 = vpop.f32.mrf.mxu0
    %v5370 = vadd.f32 %v5299, %v5369
    %5371 = vmatmul.f32.gmra.mxu0 %v5089
    %v5372 = vpop.f32.mrf.mxu0
    %v5373 = vadd.f32 %v5302, %v5372
    %5374 = vdwg.mxu0
    %s5375 = scalar_lea.vmem %s9, 192
    %v5376 = vld [vmem:[%s5375] sm:$0xff]
    %v5377 = vld [vmem:[%s5375 + $0x8] sm:$0xff]
    %v5378 = vld [vmem:[%s5375 + $0x10] sm:$0xff]
    %v5379 = vld [vmem:[%s5375 + $0x18] sm:$0xff]
    %v5380 = vld [vmem:[%s5375 + $0x20] sm:$0xff]
    %v5381 = vld [vmem:[%s5375 + $0x28] sm:$0xff]
    %v5382 = vld [vmem:[%s5375 + $0x30] sm:$0xff]
    %v5383 = vld [vmem:[%s5375 + $0x38] sm:$0xff]
    %v5384 = vld [vmem:[%s5375 + $0x40] sm:$0xff]
    %v5385 = vld [vmem:[%s5375 + $0x48] sm:$0xff]
    %v5386 = vld [vmem:[%s5375 + $0x50] sm:$0xff]
    %v5387 = vld [vmem:[%s5375 + $0x58] sm:$0xff]
    %v5389 = vsel %vm351, %v5180, 0
    %v5392 = vsel %vm351, %v5183, 0
    %v5395 = vsel %vm351, %v5186, 0
    %v5398 = vsel %vm351, %v5189, 0
    %v5401 = vsel %vm351, %v5192, 0
    %v5404 = vsel %vm351, %v5195, 0
    %v5407 = vsel %vm351, %v5198, 0
    %v5410 = vsel %vm351, %v5201, 0
    %v5413 = vsel %vm351, %v5204, 0
    %v5416 = vsel %vm351, %v5207, 0
    %v5419 = vsel %vm351, %v5210, 0
    %v5422 = vsel %vm351, %v5213, 0
    %v5425 = vsel %vm351, %v5216, 0
    %v5428 = vsel %vm351, %v5219, 0
    %v5431 = vsel %vm351, %v5222, 0
    %v5434 = vsel %vm351, %v5225, 0
    %v5437 = vsel %vm351, %v5228, 0
    %v5440 = vsel %vm351, %v5231, 0
    %5442 = vmatpush.msra.mxu0 0.0
    %5443 = vmatpush.msra.mxu0 0.0
    %5444 = vmatpush.msra.mxu0 0.0
    %5445 = vmatpush.msra.mxu0 0.0
    %5446 = vmatpush.msra.mxu0 0.0
    %5447 = vmatpush.msra.mxu0 0.0
    %5448 = vmatpush.msra.mxu0 0.0
    %5449 = vmatpush.msra.mxu0 0.0
    %5450 = vmatpush.msra.mxu0 0.0
    %5451 = vmatpush.msra.mxu0 0.0
    %5452 = vmatpush.msra.mxu0 0.0
    %5453 = vmatpush.msra.mxu0 0.0
    %5454 = vmatpush.msra.mxu0 %v5383
    %5455 = vmatpush.msra.mxu0 %v5382
    %5456 = vmatpush.msra.mxu0 %v5381
    %5457 = vmatpush.msra.mxu0 %v5380
    %5458 = vmatmul.f32.gmra.mxu0 %v5389
    %v5459 = vpop.f32.mrf.mxu0
    %v5460 = vadd.f32 0.0, %v5459
    %5461 = vmatmul.f32.gmra.mxu0 %v5392
    %v5462 = vpop.f32.mrf.mxu0
    %v5463 = vadd.f32 0.0, %v5462
    %5464 = vmatmul.f32.gmra.mxu0 %v5395
    %v5465 = vpop.f32.mrf.mxu0
    %v5466 = vadd.f32 0.0, %v5465
    %5467 = vmatmul.f32.gmra.mxu0 %v5398
    %v5468 = vpop.f32.mrf.mxu0
    %v5469 = vadd.f32 0.0, %v5468
    %5470 = vmatmul.f32.gmra.mxu0 %v5401
    %v5471 = vpop.f32.mrf.mxu0
    %v5472 = vadd.f32 0.0, %v5471
    %5473 = vmatmul.f32.gmra.mxu0 %v5404
    %v5474 = vpop.f32.mrf.mxu0
    %v5475 = vadd.f32 0.0, %v5474
    %5476 = vmatmul.f32.gmra.mxu0 %v5407
    %v5477 = vpop.f32.mrf.mxu0
    %v5478 = vadd.f32 0.0, %v5477
    %5479 = vmatmul.f32.gmra.mxu0 %v5410
    %v5480 = vpop.f32.mrf.mxu0
    %v5481 = vadd.f32 0.0, %v5480
    %5482 = vmatmul.f32.gmra.mxu0 %v5413
    %v5483 = vpop.f32.mrf.mxu0
    %v5484 = vadd.f32 0.0, %v5483
    %5485 = vmatmul.f32.gmra.mxu0 %v5416
    %v5486 = vpop.f32.mrf.mxu0
    %v5487 = vadd.f32 0.0, %v5486
    %5488 = vmatmul.f32.gmra.mxu0 %v5419
    %v5489 = vpop.f32.mrf.mxu0
    %v5490 = vadd.f32 0.0, %v5489
    %5491 = vmatmul.f32.gmra.mxu0 %v5422
    %v5492 = vpop.f32.mrf.mxu0
    %v5493 = vadd.f32 0.0, %v5492
    %5494 = vmatmul.f32.gmra.mxu0 %v5425
    %v5495 = vpop.f32.mrf.mxu0
    %v5496 = vadd.f32 0.0, %v5495
    %5497 = vmatmul.f32.gmra.mxu0 %v5428
    %v5498 = vpop.f32.mrf.mxu0
    %v5499 = vadd.f32 0.0, %v5498
    %5500 = vmatmul.f32.gmra.mxu0 %v5431
    %v5501 = vpop.f32.mrf.mxu0
    %v5502 = vadd.f32 0.0, %v5501
    %5503 = vmatmul.f32.gmra.mxu0 %v5434
    %v5504 = vpop.f32.mrf.mxu0
    %v5505 = vadd.f32 0.0, %v5504
    %5506 = vmatmul.f32.gmra.mxu0 %v5437
    %v5507 = vpop.f32.mrf.mxu0
    %v5508 = vadd.f32 0.0, %v5507
    %5509 = vmatmul.f32.gmra.mxu0 %v5440
    %v5510 = vpop.f32.mrf.mxu0
    %v5511 = vadd.f32 0.0, %v5510
    %5512 = vdwg.mxu0
    %5513 = vmatpush.msra.mxu0 0.0
    %5514 = vmatpush.msra.mxu0 0.0
    %5515 = vmatpush.msra.mxu0 0.0
    %5516 = vmatpush.msra.mxu0 0.0
    %5517 = vmatpush.msra.mxu0 0.0
    %5518 = vmatpush.msra.mxu0 0.0
    %5519 = vmatpush.msra.mxu0 0.0
    %5520 = vmatpush.msra.mxu0 0.0
    %5521 = vmatpush.msra.mxu0 0.0
    %5522 = vmatpush.msra.mxu0 0.0
    %5523 = vmatpush.msra.mxu0 0.0
    %5524 = vmatpush.msra.mxu0 0.0
    %5525 = vmatpush.msra.mxu0 %v5379
    %5526 = vmatpush.msra.mxu0 %v5378
    %5527 = vmatpush.msra.mxu0 %v5377
    %5528 = vmatpush.msra.mxu0 %v5376
    %5529 = vmatmul.f32.gmra.mxu0 %v4890
    %v5530 = vpop.f32.mrf.mxu0
    %v5531 = vadd.f32 %v5460, %v5530
    %5532 = vmatmul.f32.gmra.mxu0 %v4893
    %v5533 = vpop.f32.mrf.mxu0
    %v5534 = vadd.f32 %v5463, %v5533
    %5535 = vmatmul.f32.gmra.mxu0 %v4896
    %v5536 = vpop.f32.mrf.mxu0
    %v5537 = vadd.f32 %v5466, %v5536
    %5538 = vmatmul.f32.gmra.mxu0 %v4899
    %v5539 = vpop.f32.mrf.mxu0
    %v5540 = vadd.f32 %v5469, %v5539
    %5541 = vmatmul.f32.gmra.mxu0 %v4902
    %v5542 = vpop.f32.mrf.mxu0
    %v5543 = vadd.f32 %v5472, %v5542
    %5544 = vmatmul.f32.gmra.mxu0 %v4905
    %v5545 = vpop.f32.mrf.mxu0
    %v5546 = vadd.f32 %v5475, %v5545
    %5547 = vmatmul.f32.gmra.mxu0 %v4908
    %v5548 = vpop.f32.mrf.mxu0
    %v5549 = vadd.f32 %v5478, %v5548
    %5550 = vmatmul.f32.gmra.mxu0 %v4911
    %v5551 = vpop.f32.mrf.mxu0
    %v5552 = vadd.f32 %v5481, %v5551
    %5553 = vmatmul.f32.gmra.mxu0 %v4914
    %v5554 = vpop.f32.mrf.mxu0
    %v5555 = vadd.f32 %v5484, %v5554
    %5556 = vmatmul.f32.gmra.mxu0 %v4917
    %v5557 = vpop.f32.mrf.mxu0
    %v5558 = vadd.f32 %v5487, %v5557
    %5559 = vmatmul.f32.gmra.mxu0 %v4920
    %v5560 = vpop.f32.mrf.mxu0
    %v5561 = vadd.f32 %v5490, %v5560
    %5562 = vmatmul.f32.gmra.mxu0 %v4923
    %v5563 = vpop.f32.mrf.mxu0
    %v5564 = vadd.f32 %v5493, %v5563
    %5565 = vmatmul.f32.gmra.mxu0 %v4926
    %v5566 = vpop.f32.mrf.mxu0
    %v5567 = vadd.f32 %v5496, %v5566
    %5568 = vmatmul.f32.gmra.mxu0 %v4929
    %v5569 = vpop.f32.mrf.mxu0
    %v5570 = vadd.f32 %v5499, %v5569
    %5571 = vmatmul.f32.gmra.mxu0 %v4932
    %v5572 = vpop.f32.mrf.mxu0
    %v5573 = vadd.f32 %v5502, %v5572
    %5574 = vmatmul.f32.gmra.mxu0 %v4935
    %v5575 = vpop.f32.mrf.mxu0
    %v5576 = vadd.f32 %v5505, %v5575
    %5577 = vmatmul.f32.gmra.mxu0 %v4938
    %v5578 = vpop.f32.mrf.mxu0
    %v5579 = vadd.f32 %v5508, %v5578
    %5580 = vmatmul.f32.gmra.mxu0 %v4941
    %v5581 = vpop.f32.mrf.mxu0
    %v5582 = vadd.f32 %v5511, %v5581
    %5583 = vdwg.mxu0
    %v5585 = vsel %vm351, %v5322, 0
    %v5588 = vsel %vm351, %v5325, 0
    %v5591 = vsel %vm351, %v5328, 0
    %v5594 = vsel %vm351, %v5331, 0
    %v5597 = vsel %vm351, %v5334, 0
    %v5600 = vsel %vm351, %v5337, 0
    %v5603 = vsel %vm351, %v5340, 0
    %v5606 = vsel %vm351, %v5343, 0
    %v5609 = vsel %vm351, %v5346, 0
    %v5612 = vsel %vm351, %v5349, 0
    %v5615 = vsel %vm351, %v5352, 0
    %v5618 = vsel %vm351, %v5355, 0
    %v5621 = vsel %vm351, %v5358, 0
    %v5624 = vsel %vm351, %v5361, 0
    %v5627 = vsel %vm351, %v5364, 0
    %v5630 = vsel %vm351, %v5367, 0
    %v5633 = vsel %vm351, %v5370, 0
    %v5636 = vsel %vm351, %v5373, 0
    %5638 = vmatpush.msra.mxu0 0.0
    %5639 = vmatpush.msra.mxu0 0.0
    %5640 = vmatpush.msra.mxu0 0.0
    %5641 = vmatpush.msra.mxu0 0.0
    %5642 = vmatpush.msra.mxu0 0.0
    %5643 = vmatpush.msra.mxu0 0.0
    %5644 = vmatpush.msra.mxu0 0.0
    %5645 = vmatpush.msra.mxu0 0.0
    %5646 = vmatpush.msra.mxu0 0.0
    %5647 = vmatpush.msra.mxu0 0.0
    %5648 = vmatpush.msra.mxu0 0.0
    %5649 = vmatpush.msra.mxu0 0.0
    %5650 = vmatpush.msra.mxu0 %v5387
    %5651 = vmatpush.msra.mxu0 %v5386
    %5652 = vmatpush.msra.mxu0 %v5385
    %5653 = vmatpush.msra.mxu0 %v5384
    %5654 = vmatmul.f32.gmra.mxu0 %v5585
    %v5655 = vpop.f32.mrf.mxu0
    %v5656 = vadd.f32 0.0, %v5655
    %5657 = vmatmul.f32.gmra.mxu0 %v5588
    %v5658 = vpop.f32.mrf.mxu0
    %v5659 = vadd.f32 0.0, %v5658
    %5660 = vmatmul.f32.gmra.mxu0 %v5591
    %v5661 = vpop.f32.mrf.mxu0
    %v5662 = vadd.f32 0.0, %v5661
    %5663 = vmatmul.f32.gmra.mxu0 %v5594
    %v5664 = vpop.f32.mrf.mxu0
    %v5665 = vadd.f32 0.0, %v5664
    %5666 = vmatmul.f32.gmra.mxu0 %v5597
    %v5667 = vpop.f32.mrf.mxu0
    %v5668 = vadd.f32 0.0, %v5667
    %5669 = vmatmul.f32.gmra.mxu0 %v5600
    %v5670 = vpop.f32.mrf.mxu0
    %v5671 = vadd.f32 0.0, %v5670
    %5672 = vmatmul.f32.gmra.mxu0 %v5603
    %v5673 = vpop.f32.mrf.mxu0
    %v5674 = vadd.f32 0.0, %v5673
    %5675 = vmatmul.f32.gmra.mxu0 %v5606
    %v5676 = vpop.f32.mrf.mxu0
    %v5677 = vadd.f32 0.0, %v5676
    %5678 = vmatmul.f32.gmra.mxu0 %v5609
    %v5679 = vpop.f32.mrf.mxu0
    %v5680 = vadd.f32 0.0, %v5679
    %5681 = vmatmul.f32.gmra.mxu0 %v5612
    %v5682 = vpop.f32.mrf.mxu0
    %v5683 = vadd.f32 0.0, %v5682
    %5684 = vmatmul.f32.gmra.mxu0 %v5615
    %v5685 = vpop.f32.mrf.mxu0
    %v5686 = vadd.f32 0.0, %v5685
    %5687 = vmatmul.f32.gmra.mxu0 %v5618
    %v5688 = vpop.f32.mrf.mxu0
    %v5689 = vadd.f32 0.0, %v5688
    %5690 = vmatmul.f32.gmra.mxu0 %v5621
    %v5691 = vpop.f32.mrf.mxu0
    %v5692 = vadd.f32 0.0, %v5691
    %5693 = vmatmul.f32.gmra.mxu0 %v5624
    %v5694 = vpop.f32.mrf.mxu0
    %v5695 = vadd.f32 0.0, %v5694
    %5696 = vmatmul.f32.gmra.mxu0 %v5627
    %v5697 = vpop.f32.mrf.mxu0
    %v5698 = vadd.f32 0.0, %v5697
    %5699 = vmatmul.f32.gmra.mxu0 %v5630
    %v5700 = vpop.f32.mrf.mxu0
    %v5701 = vadd.f32 0.0, %v5700
    %5702 = vmatmul.f32.gmra.mxu0 %v5633
    %v5703 = vpop.f32.mrf.mxu0
    %v5704 = vadd.f32 0.0, %v5703
    %5705 = vmatmul.f32.gmra.mxu0 %v5636
    %v5706 = vpop.f32.mrf.mxu0
    %v5707 = vadd.f32 0.0, %v5706
    %5708 = vdwg.mxu0
    %v5709 = vadd.f32 %v5531, %v5656
    %v5710 = vadd.f32 %v5534, %v5659
    %v5711 = vadd.f32 %v5537, %v5662
    %v5712 = vadd.f32 %v5540, %v5665
    %v5713 = vadd.f32 %v5543, %v5668
    %v5714 = vadd.f32 %v5546, %v5671
    %v5715 = vadd.f32 %v5549, %v5674
    %v5716 = vadd.f32 %v5552, %v5677
    %v5717 = vadd.f32 %v5555, %v5680
    %v5718 = vadd.f32 %v5558, %v5683
    %v5719 = vadd.f32 %v5561, %v5686
    %v5720 = vadd.f32 %v5564, %v5689
    %v5721 = vadd.f32 %v5567, %v5692
    %v5722 = vadd.f32 %v5570, %v5695
    %v5723 = vadd.f32 %v5573, %v5698
    %v5724 = vadd.f32 %v5576, %v5701
    %v5725 = vadd.f32 %v5579, %v5704
    %v5726 = vadd.f32 %v5582, %v5707
    %s5727 = scalar_lea.vmem %s10, 2
    %v5728 = vld [vmem:[%s5727] sm:$0x1]
    %v5730 = vperm.slane %v5728, 0
    %v5732 = vadd.f32 %v5709, %v5730
    %v5733 = vadd.f32 %v5710, %v5730
    %v5734 = vadd.f32 %v5711, %v5730
    %v5735 = vadd.f32 %v5712, %v5730
    %v5736 = vadd.f32 %v5713, %v5730
    %v5737 = vadd.f32 %v5714, %v5730
    %v5738 = vadd.f32 %v5715, %v5730
    %v5739 = vadd.f32 %v5716, %v5730
    %v5740 = vadd.f32 %v5717, %v5730
    %v5741 = vadd.f32 %v5718, %v5730
    %v5742 = vadd.f32 %v5719, %v5730
    %v5743 = vadd.f32 %v5720, %v5730
    %v5744 = vadd.f32 %v5721, %v5730
    %v5745 = vadd.f32 %v5722, %v5730
    %v5746 = vadd.f32 %v5723, %v5730
    %v5747 = vadd.f32 %v5724, %v5730
    %v5748 = vadd.f32 %v5725, %v5730
    %v5749 = vadd.f32 %v5726, %v5730
    %v5750 = vadd.f32 %v5732, %v4176
    %v5751 = vadd.f32 %v5733, %v4177
    %v5752 = vadd.f32 %v5734, %v4178
    %v5753 = vadd.f32 %v5735, %v4179
    %v5754 = vadd.f32 %v5736, %v4180
    %v5755 = vadd.f32 %v5737, %v4181
    %v5756 = vadd.f32 %v5738, %v4182
    %v5757 = vadd.f32 %v5739, %v4183
    %v5758 = vadd.f32 %v5740, %v4184
    %v5759 = vadd.f32 %v5741, %v4185
    %v5760 = vadd.f32 %v5742, %v4186
    %v5761 = vadd.f32 %v5743, %v4187
    %v5762 = vadd.f32 %v5744, %v4188
    %v5763 = vadd.f32 %v5745, %v4189
    %v5764 = vadd.f32 %v5746, %v4190
    %v5765 = vadd.f32 %v5747, %v4191
    %v5766 = vadd.f32 %v5748, %v4192
    %v5767 = vadd.f32 %v5749, %v4193
    %s5768 = scalar_lea.vmem %s11, 2
    %v5769 = vld [vmem:[%s5768] sm:$0x1]
    %v5771 = vperm.slane %v5769, 0
    %v5773 = vmul.f32 %v5750, %v5771
    %v5774 = vmul.f32 %v5751, %v5771
    %v5775 = vmul.f32 %v5752, %v5771
    %v5776 = vmul.f32 %v5753, %v5771
    %v5777 = vmul.f32 %v5754, %v5771
    %v5778 = vmul.f32 %v5755, %v5771
    %v5779 = vmul.f32 %v5756, %v5771
    %v5780 = vmul.f32 %v5757, %v5771
    %v5781 = vmul.f32 %v5758, %v5771
    %v5782 = vmul.f32 %v5759, %v5771
    %v5783 = vmul.f32 %v5760, %v5771
    %v5784 = vmul.f32 %v5761, %v5771
    %v5785 = vmul.f32 %v5762, %v5771
    %v5786 = vmul.f32 %v5763, %v5771
    %v5787 = vmul.f32 %v5764, %v5771
    %v5788 = vmul.f32 %v5765, %v5771
    %v5789 = vmul.f32 %v5766, %v5771
    %v5790 = vmul.f32 %v5767, %v5771
    %s5791 = scalar_lea.vmem %s12, 2
    %v5792 = vld [vmem:[%s5791] sm:$0x1]
    %v5794 = vperm.slane %v5792, 0
    %v5796 = vadd.f32 %v5773, %v5794
    %v5797 = vadd.f32 %v5774, %v5794
    %v5798 = vadd.f32 %v5775, %v5794
    %v5799 = vadd.f32 %v5776, %v5794
    %v5800 = vadd.f32 %v5777, %v5794
    %v5801 = vadd.f32 %v5778, %v5794
    %v5802 = vadd.f32 %v5779, %v5794
    %v5803 = vadd.f32 %v5780, %v5794
    %v5804 = vadd.f32 %v5781, %v5794
    %v5805 = vadd.f32 %v5782, %v5794
    %v5806 = vadd.f32 %v5783, %v5794
    %v5807 = vadd.f32 %v5784, %v5794
    %v5808 = vadd.f32 %v5785, %v5794
    %v5809 = vadd.f32 %v5786, %v5794
    %v5810 = vadd.f32 %v5787, %v5794
    %v5811 = vadd.f32 %v5788, %v5794
    %v5812 = vadd.f32 %v5789, %v5794
    %v5813 = vadd.f32 %v5790, %v5794
    %s5814 = scalar_lea.vmem %s4, 96
    %v5815 = vld [vmem:[%s5814] sm:$0xff]
    %v5816 = vld [vmem:[%s5814 + $0x8] sm:$0xff]
    %v5817 = vld [vmem:[%s5814 + $0x10] sm:$0xff]
    %v5818 = vld [vmem:[%s5814 + $0x18] sm:$0xff]
    %s5819 = scalar_lea.vmem %s5, 96
    %v5820 = vld [vmem:[%s5819] sm:$0xff]
    %v5821 = vld [vmem:[%s5819 + $0x8] sm:$0xff]
    %v5822 = vld [vmem:[%s5819 + $0x10] sm:$0xff]
    %v5823 = vld [vmem:[%s5819 + $0x18] sm:$0xff]
    %v5825 = vsel %vm351, %v5800, 0
    %v5828 = vsel %vm351, %v5801, 0
    %v5831 = vsel %vm351, %v5802, 0
    %v5834 = vsel %vm351, %v5803, 0
    %v5837 = vsel %vm351, %v5804, 0
    %v5840 = vsel %vm351, %v5805, 0
    %v5843 = vsel %vm351, %v5806, 0
    %v5846 = vsel %vm351, %v5807, 0
    %v5849 = vsel %vm351, %v5808, 0
    %v5852 = vsel %vm351, %v5809, 0
    %v5855 = vsel %vm351, %v5810, 0
    %v5858 = vsel %vm351, %v5811, 0
    %v5861 = vsel %vm351, %v5812, 0
    %v5864 = vsel %vm351, %v5813, 0
    %5866 = vmatpush.msra.mxu0 0.0
    %5867 = vmatpush.msra.mxu0 0.0
    %5868 = vmatpush.msra.mxu0 0.0
    %5869 = vmatpush.msra.mxu0 0.0
    %5870 = vmatpush.msra.mxu0 0.0
    %5871 = vmatpush.msra.mxu0 0.0
    %5872 = vmatpush.msra.mxu0 0.0
    %5873 = vmatpush.msra.mxu0 0.0
    %5874 = vmatpush.msra.mxu0 0.0
    %5875 = vmatpush.msra.mxu0 0.0
    %5876 = vmatpush.msra.mxu0 0.0
    %5877 = vmatpush.msra.mxu0 0.0
    %5878 = vmatpush.msra.mxu0 %v5823
    %5879 = vmatpush.msra.mxu0 %v5822
    %5880 = vmatpush.msra.mxu0 %v5821
    %5881 = vmatpush.msra.mxu0 %v5820
    %5882 = vmatmul.f32.gmra.mxu0 %v5825
    %v5883 = vpop.f32.mrf.mxu0
    %v5884 = vadd.f32 0.0, %v5883
    %5885 = vmatmul.f32.gmra.mxu0 %v5828
    %v5886 = vpop.f32.mrf.mxu0
    %v5887 = vadd.f32 0.0, %v5886
    %5888 = vmatmul.f32.gmra.mxu0 %v5831
    %v5889 = vpop.f32.mrf.mxu0
    %v5890 = vadd.f32 0.0, %v5889
    %5891 = vmatmul.f32.gmra.mxu0 %v5834
    %v5892 = vpop.f32.mrf.mxu0
    %v5893 = vadd.f32 0.0, %v5892
    %5894 = vmatmul.f32.gmra.mxu0 %v5837
    %v5895 = vpop.f32.mrf.mxu0
    %v5896 = vadd.f32 0.0, %v5895
    %5897 = vmatmul.f32.gmra.mxu0 %v5840
    %v5898 = vpop.f32.mrf.mxu0
    %v5899 = vadd.f32 0.0, %v5898
    %5900 = vmatmul.f32.gmra.mxu0 %v5843
    %v5901 = vpop.f32.mrf.mxu0
    %v5902 = vadd.f32 0.0, %v5901
    %5903 = vmatmul.f32.gmra.mxu0 %v5846
    %v5904 = vpop.f32.mrf.mxu0
    %v5905 = vadd.f32 0.0, %v5904
    %5906 = vmatmul.f32.gmra.mxu0 %v5849
    %v5907 = vpop.f32.mrf.mxu0
    %v5908 = vadd.f32 0.0, %v5907
    %5909 = vmatmul.f32.gmra.mxu0 %v5852
    %v5910 = vpop.f32.mrf.mxu0
    %v5911 = vadd.f32 0.0, %v5910
    %5912 = vmatmul.f32.gmra.mxu0 %v5855
    %v5913 = vpop.f32.mrf.mxu0
    %v5914 = vadd.f32 0.0, %v5913
    %5915 = vmatmul.f32.gmra.mxu0 %v5858
    %v5916 = vpop.f32.mrf.mxu0
    %v5917 = vadd.f32 0.0, %v5916
    %5918 = vmatmul.f32.gmra.mxu0 %v5861
    %v5919 = vpop.f32.mrf.mxu0
    %v5920 = vadd.f32 0.0, %v5919
    %5921 = vmatmul.f32.gmra.mxu0 %v5864
    %v5922 = vpop.f32.mrf.mxu0
    %v5923 = vadd.f32 0.0, %v5922
    %5924 = vdwg.mxu0
    %v5926 = vsel %vm351, %v5796, 0
    %v5929 = vsel %vm351, %v5797, 0
    %v5932 = vsel %vm351, %v5798, 0
    %v5935 = vsel %vm351, %v5799, 0
    %5937 = vmatpush.msra.mxu0 0.0
    %5938 = vmatpush.msra.mxu0 0.0
    %5939 = vmatpush.msra.mxu0 0.0
    %5940 = vmatpush.msra.mxu0 0.0
    %5941 = vmatpush.msra.mxu0 0.0
    %5942 = vmatpush.msra.mxu0 0.0
    %5943 = vmatpush.msra.mxu0 0.0
    %5944 = vmatpush.msra.mxu0 0.0
    %5945 = vmatpush.msra.mxu0 0.0
    %5946 = vmatpush.msra.mxu0 0.0
    %5947 = vmatpush.msra.mxu0 0.0
    %5948 = vmatpush.msra.mxu0 0.0
    %5949 = vmatpush.msra.mxu0 %v5818
    %5950 = vmatpush.msra.mxu0 %v5817
    %5951 = vmatpush.msra.mxu0 %v5816
    %5952 = vmatpush.msra.mxu0 %v5815
    %5953 = vmatmul.f32.gmra.mxu0 %v5926
    %v5954 = vpop.f32.mrf.mxu0
    %v5955 = vadd.f32 %v5884, %v5954
    %5956 = vmatmul.f32.gmra.mxu0 %v5929
    %v5957 = vpop.f32.mrf.mxu0
    %v5958 = vadd.f32 %v5887, %v5957
    %5959 = vmatmul.f32.gmra.mxu0 %v5932
    %v5960 = vpop.f32.mrf.mxu0
    %v5961 = vadd.f32 %v5890, %v5960
    %5962 = vmatmul.f32.gmra.mxu0 %v5935
    %v5963 = vpop.f32.mrf.mxu0
    %v5964 = vadd.f32 %v5893, %v5963
    %5965 = vmatmul.f32.gmra.mxu0 %v5825
    %v5966 = vpop.f32.mrf.mxu0
    %v5967 = vadd.f32 %v5896, %v5966
    %5968 = vmatmul.f32.gmra.mxu0 %v5828
    %v5969 = vpop.f32.mrf.mxu0
    %v5970 = vadd.f32 %v5899, %v5969
    %5971 = vmatmul.f32.gmra.mxu0 %v5831
    %v5972 = vpop.f32.mrf.mxu0
    %v5973 = vadd.f32 %v5902, %v5972
    %5974 = vmatmul.f32.gmra.mxu0 %v5834
    %v5975 = vpop.f32.mrf.mxu0
    %v5976 = vadd.f32 %v5905, %v5975
    %5977 = vmatmul.f32.gmra.mxu0 %v5837
    %v5978 = vpop.f32.mrf.mxu0
    %v5979 = vadd.f32 %v5908, %v5978
    %5980 = vmatmul.f32.gmra.mxu0 %v5840
    %v5981 = vpop.f32.mrf.mxu0
    %v5982 = vadd.f32 %v5911, %v5981
    %5983 = vmatmul.f32.gmra.mxu0 %v5843
    %v5984 = vpop.f32.mrf.mxu0
    %v5985 = vadd.f32 %v5914, %v5984
    %5986 = vmatmul.f32.gmra.mxu0 %v5846
    %v5987 = vpop.f32.mrf.mxu0
    %v5988 = vadd.f32 %v5917, %v5987
    %5989 = vmatmul.f32.gmra.mxu0 %v5849
    %v5990 = vpop.f32.mrf.mxu0
    %v5991 = vadd.f32 %v5920, %v5990
    %5992 = vmatmul.f32.gmra.mxu0 %v5852
    %v5993 = vpop.f32.mrf.mxu0
    %v5994 = vadd.f32 %v5923, %v5993
    %5995 = vdwg.mxu0
    %s5996 = scalar_lea.vmem %s6, 3
    %v5997 = vld [vmem:[%s5996] sm:$0x1]
    %v5999 = vperm.slane %v5997, 0
    %v6001 = vadd.f32 %v5955, %v5999
    %v6002 = vadd.f32 %v5958, %v5999
    %v6003 = vadd.f32 %v5961, %v5999
    %v6004 = vadd.f32 %v5964, %v5999
    %v6005 = vadd.f32 %v5967, %v5999
    %v6006 = vadd.f32 %v5970, %v5999
    %v6007 = vadd.f32 %v5973, %v5999
    %v6008 = vadd.f32 %v5976, %v5999
    %v6009 = vadd.f32 %v5979, %v5999
    %v6010 = vadd.f32 %v5982, %v5999
    %v6011 = vadd.f32 %v5985, %v5999
    %v6012 = vadd.f32 %v5988, %v5999
    %v6013 = vadd.f32 %v5991, %v5999
    %v6014 = vadd.f32 %v5994, %v5999
    %v6015 = vtanh.pop %v6001
    %v6016 = vtanh.pop %v6002
    %v6017 = vtanh.pop %v6003
    %v6018 = vtanh.pop %v6004
    %v6019 = vtanh.pop %v6005
    %v6020 = vtanh.pop %v6006
    %v6021 = vtanh.pop %v6007
    %v6022 = vtanh.pop %v6008
    %v6023 = vtanh.pop %v6009
    %v6024 = vtanh.pop %v6010
    %v6025 = vtanh.pop %v6011
    %v6026 = vtanh.pop %v6012
    %v6027 = vtanh.pop %v6013
    %v6028 = vtanh.pop %v6014
    %v6029 = vxor.u32 %v6001, 2147483648
    %v6030 = vxor.u32 %v6002, 2147483648
    %v6031 = vxor.u32 %v6003, 2147483648
    %v6032 = vxor.u32 %v6004, 2147483648
    %v6033 = vxor.u32 %v6005, 2147483648
    %v6034 = vxor.u32 %v6006, 2147483648
    %v6035 = vxor.u32 %v6007, 2147483648
    %v6036 = vxor.u32 %v6008, 2147483648
    %v6037 = vxor.u32 %v6009, 2147483648
    %v6038 = vxor.u32 %v6010, 2147483648
    %v6039 = vxor.u32 %v6011, 2147483648
    %v6040 = vxor.u32 %v6012, 2147483648
    %v6041 = vxor.u32 %v6013, 2147483648
    %v6042 = vxor.u32 %v6014, 2147483648
    %v6043 = vmul.f32 %v6029, 1.442695
    %v6044 = vpow.pop %v6043
    %v6045 = vmul.f32 %v6030, 1.442695
    %v6046 = vpow.pop %v6045
    %v6047 = vmul.f32 %v6031, 1.442695
    %v6048 = vpow.pop %v6047
    %v6049 = vmul.f32 %v6032, 1.442695
    %v6050 = vpow.pop %v6049
    %v6051 = vmul.f32 %v6033, 1.442695
    %v6052 = vpow.pop %v6051
    %v6053 = vmul.f32 %v6034, 1.442695
    %v6054 = vpow.pop %v6053
    %v6055 = vmul.f32 %v6035, 1.442695
    %v6056 = vpow.pop %v6055
    %v6057 = vmul.f32 %v6036, 1.442695
    %v6058 = vpow.pop %v6057
    %v6059 = vmul.f32 %v6037, 1.442695
    %v6060 = vpow.pop %v6059
    %v6061 = vmul.f32 %v6038, 1.442695
    %v6062 = vpow.pop %v6061
    %v6063 = vmul.f32 %v6039, 1.442695
    %v6064 = vpow.pop %v6063
    %v6065 = vmul.f32 %v6040, 1.442695
    %v6066 = vpow.pop %v6065
    %v6067 = vmul.f32 %v6041, 1.442695
    %v6068 = vpow.pop %v6067
    %v6069 = vmul.f32 %v6042, 1.442695
    %v6070 = vpow.pop %v6069
    %v6071 = vadd.f32 %v6044, 1.0
    %v6072 = vadd.f32 %v6046, 1.0
    %v6073 = vadd.f32 %v6048, 1.0
    %v6074 = vadd.f32 %v6050, 1.0
    %v6075 = vadd.f32 %v6052, 1.0
    %v6076 = vadd.f32 %v6054, 1.0
    %v6077 = vadd.f32 %v6056, 1.0
    %v6078 = vadd.f32 %v6058, 1.0
    %v6079 = vadd.f32 %v6060, 1.0
    %v6080 = vadd.f32 %v6062, 1.0
    %v6081 = vadd.f32 %v6064, 1.0
    %v6082 = vadd.f32 %v6066, 1.0
    %v6083 = vadd.f32 %v6068, 1.0
    %v6084 = vadd.f32 %v6070, 1.0
    %v6085 = vrcp.pop %v6071
    %v6086 = vmul.f32 %v6071, %v6085
    %v6087 = vsub.f32 1.0, %v6086
    %v6088 = vmul.f32 %v6085, %v6087
    %v6089 = vadd.f32 %v6085, %v6088
    %vm6090 = vweird.f32 %v6071
    %vm6091 = vweird.f32 %v6085
    %vm6092 = vmor %vm6090, %vm6091
    %v6093 = vsel %vm6092, %v6085, %v6089
    %v6094 = vand.u32 2147483647, %v6071
    %vm6095 = vcmp.eq.f32.partialorder %v6094, 8.507059e+37
    %v6096 = vand.u32 %v6071, 2147483648
    %v6097 = vor.u32 1.1754944e-38, %v6096
    %v6098 = vsel %vm6095, %v6097, %v6093
    %v6099 = vmul.f32 1.0, %v6098
    %v6100 = vrcp.pop %v6072
    %v6101 = vmul.f32 %v6072, %v6100
    %v6102 = vsub.f32 1.0, %v6101
    %v6103 = vmul.f32 %v6100, %v6102
    %v6104 = vadd.f32 %v6100, %v6103
    %vm6105 = vweird.f32 %v6072
    %vm6106 = vweird.f32 %v6100
    %vm6107 = vmor %vm6105, %vm6106
    %v6108 = vsel %vm6107, %v6100, %v6104
    %v6109 = vand.u32 2147483647, %v6072
    %vm6110 = vcmp.eq.f32.partialorder %v6109, 8.507059e+37
    %v6111 = vand.u32 %v6072, 2147483648
    %v6112 = vor.u32 1.1754944e-38, %v6111
    %v6113 = vsel %vm6110, %v6112, %v6108
    %v6114 = vmul.f32 1.0, %v6113
    %v6115 = vrcp.pop %v6073
    %v6116 = vmul.f32 %v6073, %v6115
    %v6117 = vsub.f32 1.0, %v6116
    %v6118 = vmul.f32 %v6115, %v6117
    %v6119 = vadd.f32 %v6115, %v6118
    %vm6120 = vweird.f32 %v6073
    %vm6121 = vweird.f32 %v6115
    %vm6122 = vmor %vm6120, %vm6121
    %v6123 = vsel %vm6122, %v6115, %v6119
    %v6124 = vand.u32 2147483647, %v6073
    %vm6125 = vcmp.eq.f32.partialorder %v6124, 8.507059e+37
    %v6126 = vand.u32 %v6073, 2147483648
    %v6127 = vor.u32 1.1754944e-38, %v6126
    %v6128 = vsel %vm6125, %v6127, %v6123
    %v6129 = vmul.f32 1.0, %v6128
    %v6130 = vrcp.pop %v6074
    %v6131 = vmul.f32 %v6074, %v6130
    %v6132 = vsub.f32 1.0, %v6131
    %v6133 = vmul.f32 %v6130, %v6132
    %v6134 = vadd.f32 %v6130, %v6133
    %vm6135 = vweird.f32 %v6074
    %vm6136 = vweird.f32 %v6130
    %vm6137 = vmor %vm6135, %vm6136
    %v6138 = vsel %vm6137, %v6130, %v6134
    %v6139 = vand.u32 2147483647, %v6074
    %vm6140 = vcmp.eq.f32.partialorder %v6139, 8.507059e+37
    %v6141 = vand.u32 %v6074, 2147483648
    %v6142 = vor.u32 1.1754944e-38, %v6141
    %v6143 = vsel %vm6140, %v6142, %v6138
    %v6144 = vmul.f32 1.0, %v6143
    %v6145 = vrcp.pop %v6075
    %v6146 = vmul.f32 %v6075, %v6145
    %v6147 = vsub.f32 1.0, %v6146
    %v6148 = vmul.f32 %v6145, %v6147
    %v6149 = vadd.f32 %v6145, %v6148
    %vm6150 = vweird.f32 %v6075
    %vm6151 = vweird.f32 %v6145
    %vm6152 = vmor %vm6150, %vm6151
    %v6153 = vsel %vm6152, %v6145, %v6149
    %v6154 = vand.u32 2147483647, %v6075
    %vm6155 = vcmp.eq.f32.partialorder %v6154, 8.507059e+37
    %v6156 = vand.u32 %v6075, 2147483648
    %v6157 = vor.u32 1.1754944e-38, %v6156
    %v6158 = vsel %vm6155, %v6157, %v6153
    %v6159 = vmul.f32 1.0, %v6158
    %v6160 = vrcp.pop %v6076
    %v6161 = vmul.f32 %v6076, %v6160
    %v6162 = vsub.f32 1.0, %v6161
    %v6163 = vmul.f32 %v6160, %v6162
    %v6164 = vadd.f32 %v6160, %v6163
    %vm6165 = vweird.f32 %v6076
    %vm6166 = vweird.f32 %v6160
    %vm6167 = vmor %vm6165, %vm6166
    %v6168 = vsel %vm6167, %v6160, %v6164
    %v6169 = vand.u32 2147483647, %v6076
    %vm6170 = vcmp.eq.f32.partialorder %v6169, 8.507059e+37
    %v6171 = vand.u32 %v6076, 2147483648
    %v6172 = vor.u32 1.1754944e-38, %v6171
    %v6173 = vsel %vm6170, %v6172, %v6168
    %v6174 = vmul.f32 1.0, %v6173
    %v6175 = vrcp.pop %v6077
    %v6176 = vmul.f32 %v6077, %v6175
    %v6177 = vsub.f32 1.0, %v6176
    %v6178 = vmul.f32 %v6175, %v6177
    %v6179 = vadd.f32 %v6175, %v6178
    %vm6180 = vweird.f32 %v6077
    %vm6181 = vweird.f32 %v6175
    %vm6182 = vmor %vm6180, %vm6181
    %v6183 = vsel %vm6182, %v6175, %v6179
    %v6184 = vand.u32 2147483647, %v6077
    %vm6185 = vcmp.eq.f32.partialorder %v6184, 8.507059e+37
    %v6186 = vand.u32 %v6077, 2147483648
    %v6187 = vor.u32 1.1754944e-38, %v6186
    %v6188 = vsel %vm6185, %v6187, %v6183
    %v6189 = vmul.f32 1.0, %v6188
    %v6190 = vrcp.pop %v6078
    %v6191 = vmul.f32 %v6078, %v6190
    %v6192 = vsub.f32 1.0, %v6191
    %v6193 = vmul.f32 %v6190, %v6192
    %v6194 = vadd.f32 %v6190, %v6193
    %vm6195 = vweird.f32 %v6078
    %vm6196 = vweird.f32 %v6190
    %vm6197 = vmor %vm6195, %vm6196
    %v6198 = vsel %vm6197, %v6190, %v6194
    %v6199 = vand.u32 2147483647, %v6078
    %vm6200 = vcmp.eq.f32.partialorder %v6199, 8.507059e+37
    %v6201 = vand.u32 %v6078, 2147483648
    %v6202 = vor.u32 1.1754944e-38, %v6201
    %v6203 = vsel %vm6200, %v6202, %v6198
    %v6204 = vmul.f32 1.0, %v6203
    %v6205 = vrcp.pop %v6079
    %v6206 = vmul.f32 %v6079, %v6205
    %v6207 = vsub.f32 1.0, %v6206
    %v6208 = vmul.f32 %v6205, %v6207
    %v6209 = vadd.f32 %v6205, %v6208
    %vm6210 = vweird.f32 %v6079
    %vm6211 = vweird.f32 %v6205
    %vm6212 = vmor %vm6210, %vm6211
    %v6213 = vsel %vm6212, %v6205, %v6209
    %v6214 = vand.u32 2147483647, %v6079
    %vm6215 = vcmp.eq.f32.partialorder %v6214, 8.507059e+37
    %v6216 = vand.u32 %v6079, 2147483648
    %v6217 = vor.u32 1.1754944e-38, %v6216
    %v6218 = vsel %vm6215, %v6217, %v6213
    %v6219 = vmul.f32 1.0, %v6218
    %v6220 = vrcp.pop %v6080
    %v6221 = vmul.f32 %v6080, %v6220
    %v6222 = vsub.f32 1.0, %v6221
    %v6223 = vmul.f32 %v6220, %v6222
    %v6224 = vadd.f32 %v6220, %v6223
    %vm6225 = vweird.f32 %v6080
    %vm6226 = vweird.f32 %v6220
    %vm6227 = vmor %vm6225, %vm6226
    %v6228 = vsel %vm6227, %v6220, %v6224
    %v6229 = vand.u32 2147483647, %v6080
    %vm6230 = vcmp.eq.f32.partialorder %v6229, 8.507059e+37
    %v6231 = vand.u32 %v6080, 2147483648
    %v6232 = vor.u32 1.1754944e-38, %v6231
    %v6233 = vsel %vm6230, %v6232, %v6228
    %v6234 = vmul.f32 1.0, %v6233
    %v6235 = vrcp.pop %v6081
    %v6236 = vmul.f32 %v6081, %v6235
    %v6237 = vsub.f32 1.0, %v6236
    %v6238 = vmul.f32 %v6235, %v6237
    %v6239 = vadd.f32 %v6235, %v6238
    %vm6240 = vweird.f32 %v6081
    %vm6241 = vweird.f32 %v6235
    %vm6242 = vmor %vm6240, %vm6241
    %v6243 = vsel %vm6242, %v6235, %v6239
    %v6244 = vand.u32 2147483647, %v6081
    %vm6245 = vcmp.eq.f32.partialorder %v6244, 8.507059e+37
    %v6246 = vand.u32 %v6081, 2147483648
    %v6247 = vor.u32 1.1754944e-38, %v6246
    %v6248 = vsel %vm6245, %v6247, %v6243
    %v6249 = vmul.f32 1.0, %v6248
    %v6250 = vrcp.pop %v6082
    %v6251 = vmul.f32 %v6082, %v6250
    %v6252 = vsub.f32 1.0, %v6251
    %v6253 = vmul.f32 %v6250, %v6252
    %v6254 = vadd.f32 %v6250, %v6253
    %vm6255 = vweird.f32 %v6082
    %vm6256 = vweird.f32 %v6250
    %vm6257 = vmor %vm6255, %vm6256
    %v6258 = vsel %vm6257, %v6250, %v6254
    %v6259 = vand.u32 2147483647, %v6082
    %vm6260 = vcmp.eq.f32.partialorder %v6259, 8.507059e+37
    %v6261 = vand.u32 %v6082, 2147483648
    %v6262 = vor.u32 1.1754944e-38, %v6261
    %v6263 = vsel %vm6260, %v6262, %v6258
    %v6264 = vmul.f32 1.0, %v6263
    %v6265 = vrcp.pop %v6083
    %v6266 = vmul.f32 %v6083, %v6265
    %v6267 = vsub.f32 1.0, %v6266
    %v6268 = vmul.f32 %v6265, %v6267
    %v6269 = vadd.f32 %v6265, %v6268
    %vm6270 = vweird.f32 %v6083
    %vm6271 = vweird.f32 %v6265
    %vm6272 = vmor %vm6270, %vm6271
    %v6273 = vsel %vm6272, %v6265, %v6269
    %v6274 = vand.u32 2147483647, %v6083
    %vm6275 = vcmp.eq.f32.partialorder %v6274, 8.507059e+37
    %v6276 = vand.u32 %v6083, 2147483648
    %v6277 = vor.u32 1.1754944e-38, %v6276
    %v6278 = vsel %vm6275, %v6277, %v6273
    %v6279 = vmul.f32 1.0, %v6278
    %v6280 = vrcp.pop %v6084
    %v6281 = vmul.f32 %v6084, %v6280
    %v6282 = vsub.f32 1.0, %v6281
    %v6283 = vmul.f32 %v6280, %v6282
    %v6284 = vadd.f32 %v6280, %v6283
    %vm6285 = vweird.f32 %v6084
    %vm6286 = vweird.f32 %v6280
    %vm6287 = vmor %vm6285, %vm6286
    %v6288 = vsel %vm6287, %v6280, %v6284
    %v6289 = vand.u32 2147483647, %v6084
    %vm6290 = vcmp.eq.f32.partialorder %v6289, 8.507059e+37
    %v6291 = vand.u32 %v6084, 2147483648
    %v6292 = vor.u32 1.1754944e-38, %v6291
    %v6293 = vsel %vm6290, %v6292, %v6288
    %v6294 = vmul.f32 1.0, %v6293
    %6309 = vrot.lane.b32.xlu0 %v6099, 96
    %v6310 = vpop.permute.xlu0 %6309
    %6311 = vrot.lane.b32.xlu0 %v6114, 96
    %v6312 = vpop.permute.xlu0 %6311
    %6313 = vrot.lane.b32.xlu0 %v6129, 96
    %v6314 = vpop.permute.xlu0 %6313
    %6315 = vrot.lane.b32.xlu0 %v6144, 96
    %v6316 = vpop.permute.xlu0 %6315
    %6317 = vrot.lane.b32.xlu0 %v6159, 96
    %v6318 = vpop.permute.xlu0 %6317
    %6319 = vrot.lane.b32.xlu0 %v6174, 96
    %v6320 = vpop.permute.xlu0 %6319
    %6321 = vrot.lane.b32.xlu0 %v6189, 96
    %v6322 = vpop.permute.xlu0 %6321
    %6323 = vrot.lane.b32.xlu0 %v6204, 96
    %v6324 = vpop.permute.xlu0 %6323
    %6325 = vrot.lane.b32.xlu0 %v6219, 96
    %v6326 = vpop.permute.xlu0 %6325
    %6327 = vrot.lane.b32.xlu0 %v6234, 96
    %v6328 = vpop.permute.xlu0 %6327
    %6329 = vrot.lane.b32.xlu0 %v6249, 96
    %v6330 = vpop.permute.xlu0 %6329
    %6331 = vrot.lane.b32.xlu0 %v6264, 96
    %v6332 = vpop.permute.xlu0 %6331
    %6333 = vrot.lane.b32.xlu0 %v6279, 96
    %v6334 = vpop.permute.xlu0 %6333
    %6335 = vrot.lane.b32.xlu0 %v6294, 96
    %v6336 = vpop.permute.xlu0 %6335
    %v6351 = vmul.f32 %v6015, %v6310
    %v6352 = vmul.f32 %v6016, %v6312
    %v6353 = vmul.f32 %v6017, %v6314
    %v6354 = vmul.f32 %v6018, %v6316
    %v6355 = vmul.f32 %v6019, %v6318
    %v6356 = vmul.f32 %v6020, %v6320
    %v6357 = vmul.f32 %v6021, %v6322
    %v6358 = vmul.f32 %v6022, %v6324
    %v6359 = vmul.f32 %v6023, %v6326
    %v6360 = vmul.f32 %v6024, %v6328
    %v6361 = vmul.f32 %v6025, %v6330
    %v6362 = vmul.f32 %v6026, %v6332
    %v6363 = vmul.f32 %v6027, %v6334
    %v6364 = vmul.f32 %v6028, %v6336
    %s6365 = scalar_lea.vmem %s7, 96
    %v6366 = vld [vmem:[%s6365] sm:$0xff]
    %v6367 = vld [vmem:[%s6365 + $0x8] sm:$0xff]
    %v6368 = vld [vmem:[%s6365 + $0x10] sm:$0xff]
    %v6369 = vld [vmem:[%s6365 + $0x18] sm:$0xff]
    %s6370 = scalar_lea.vmem %s8, 3
    %v6371 = vld [vmem:[%s6370] sm:$0x1]
    %v6373 = vperm.slane %v6371, 0
    %v6376 = vsel %vm351, %v6351, 0
    %v6379 = vsel %vm351, %v6352, 0
    %v6382 = vsel %vm351, %v6353, 0
    %v6385 = vsel %vm351, %v6354, 0
    %v6388 = vsel %vm351, %v6355, 0
    %v6391 = vsel %vm351, %v6356, 0
    %v6394 = vsel %vm351, %v6357, 0
    %v6397 = vsel %vm351, %v6358, 0
    %v6400 = vsel %vm351, %v6359, 0
    %v6403 = vsel %vm351, %v6360, 0
    %v6406 = vsel %vm351, %v6361, 0
    %v6409 = vsel %vm351, %v6362, 0
    %v6412 = vsel %vm351, %v6363, 0
    %v6415 = vsel %vm351, %v6364, 0
    %6417 = vmatpush.msra.mxu0 0.0
    %6418 = vmatpush.msra.mxu0 0.0
    %6419 = vmatpush.msra.mxu0 0.0
    %6420 = vmatpush.msra.mxu0 0.0
    %6421 = vmatpush.msra.mxu0 0.0
    %6422 = vmatpush.msra.mxu0 0.0
    %6423 = vmatpush.msra.mxu0 0.0
    %6424 = vmatpush.msra.mxu0 0.0
    %6425 = vmatpush.msra.mxu0 0.0
    %6426 = vmatpush.msra.mxu0 0.0
    %6427 = vmatpush.msra.mxu0 0.0
    %6428 = vmatpush.msra.mxu0 0.0
    %6429 = vmatpush.msra.mxu0 %v6369
    %6430 = vmatpush.msra.mxu0 %v6368
    %6431 = vmatpush.msra.mxu0 %v6367
    %6432 = vmatpush.msra.mxu0 %v6366
    %6433 = vmatmul.f32.gmra.mxu0 %v6376
    %v6434 = vpop.f32.mrf.mxu0
    %6435 = vmatmul.f32.gmra.mxu0 %v6379
    %v6436 = vpop.f32.mrf.mxu0
    %6437 = vmatmul.f32.gmra.mxu0 %v6382
    %v6438 = vpop.f32.mrf.mxu0
    %6439 = vmatmul.f32.gmra.mxu0 %v6385
    %v6440 = vpop.f32.mrf.mxu0
    %6441 = vmatmul.f32.gmra.mxu0 %v6388
    %v6442 = vpop.f32.mrf.mxu0
    %6443 = vmatmul.f32.gmra.mxu0 %v6391
    %v6444 = vpop.f32.mrf.mxu0
    %6445 = vmatmul.f32.gmra.mxu0 %v6394
    %v6446 = vpop.f32.mrf.mxu0
    %6447 = vmatmul.f32.gmra.mxu0 %v6397
    %v6448 = vpop.f32.mrf.mxu0
    %6449 = vmatmul.f32.gmra.mxu0 %v6400
    %v6450 = vpop.f32.mrf.mxu0
    %6451 = vmatmul.f32.gmra.mxu0 %v6403
    %v6452 = vpop.f32.mrf.mxu0
    %6453 = vmatmul.f32.gmra.mxu0 %v6406
    %v6454 = vpop.f32.mrf.mxu0
    %6455 = vmatmul.f32.gmra.mxu0 %v6409
    %v6456 = vpop.f32.mrf.mxu0
    %6457 = vmatmul.f32.gmra.mxu0 %v6412
    %v6458 = vpop.f32.mrf.mxu0
    %v6459 = vadd.f32 %v6373, %v6458
    %6460 = vmatmul.f32.gmra.mxu0 %v6415
    %v6461 = vpop.f32.mrf.mxu0
    %v6462 = vadd.f32 %v6373, %v6461
    %6463 = vdwg.mxu0
    %v6464 = vadd.f32 %v6459, %v4998
    %v6465 = vadd.f32 %v6462, %v4999
    %v6466 = vld [vmem:[%s1] sm:$0xff]
    %v6467 = vld [vmem:[%s1 + $0x10] sm:$0xff]
    %v6468 = vld [vmem:[%s1 + $0x20] sm:$0xff]
    %v6469 = vld [vmem:[%s1 + $0x30] sm:$0xff]
    %v6470 = vld [vmem:[%s1 + $0x40] sm:$0xff]
    %v6471 = vld [vmem:[%s1 + $0x50] sm:$0xff]
    %v6472 = vld [vmem:[%s1 + $0x60] sm:$0xff]
    %v6473 = vld [vmem:[%s1 + $0x70] sm:$0xff]
    %v6474 = vld [vmem:[%s1 + $0x80] sm:$0xff]
    %v6475 = vld [vmem:[%s1 + $0x90] sm:$0xff]
    %v6476 = vld [vmem:[%s1 + $0xa0] sm:$0xff]
    %v6477 = vld [vmem:[%s1 + $0xb0] sm:$0xff]
    %v6478 = vld [vmem:[%s1 + $0xc0] sm:$0xff]
    %v6479 = vld [vmem:[%s1 + $0xd0] sm:$0xff]
    %vm6480 = vcmask 916480
    %v6482 = vsel %vm6480, %v6466, 0
    %v6485 = vsel %vm6480, %v6467, 0
    %v6488 = vsel %vm6480, %v6468, 0
    %v6491 = vsel %vm6480, %v6469, 0
    %v6494 = vsel %vm6480, %v6470, 0
    %v6497 = vsel %vm6480, %v6471, 0
    %v6500 = vsel %vm6480, %v6472, 0
    %v6503 = vsel %vm6480, %v6473, 0
    %v6506 = vsel %vm6480, %v6474, 0
    %v6509 = vsel %vm6480, %v6475, 0
    %v6512 = vsel %vm6480, %v6476, 0
    %v6515 = vsel %vm6480, %v6477, 0
    %v6518 = vsel %vm6480, %v6478, 0
    %v6521 = vsel %vm6480, %v6479, 0
    %6523 = vmatpush.msra.mxu0 0.0
    %6524 = vmatpush.msra.mxu0 0.0
    %6525 = vmatpush.msra.mxu0 %v6364
    %6526 = vmatpush.msra.mxu0 %v6363
    %6527 = vmatpush.msra.mxu0 %v6362
    %6528 = vmatpush.msra.mxu0 %v6361
    %6529 = vmatpush.msra.mxu0 %v6360
    %6530 = vmatpush.msra.mxu0 %v6359
    %6531 = vmatpush.msra.mxu0 %v6358
    %6532 = vmatpush.msra.mxu0 %v6357
    %6533 = vmatpush.msra.mxu0 %v6356
    %6534 = vmatpush.msra.mxu0 %v6355
    %6535 = vmatpush.msra.mxu0 %v6354
    %6536 = vmatpush.msra.mxu0 %v6353
    %6537 = vmatpush.msra.mxu0 %v6352
    %6538 = vmatpush.msra.mxu0 %v6351
    %6539 = vmatmul.f32.gmra.mxu0 %v6482
    %v6540 = vpop.f32.mrf.mxu0
    %v6541 = vadd.f32 0.0, %v6540
    %6542 = vmatmul.f32.gmra.mxu0 %v6485
    %v6543 = vpop.f32.mrf.mxu0
    %v6544 = vadd.f32 0.0, %v6543
    %6545 = vmatmul.f32.gmra.mxu0 %v6488
    %v6546 = vpop.f32.mrf.mxu0
    %v6547 = vadd.f32 0.0, %v6546
    %6548 = vmatmul.f32.gmra.mxu0 %v6491
    %v6549 = vpop.f32.mrf.mxu0
    %v6550 = vadd.f32 0.0, %v6549
    %6551 = vmatmul.f32.gmra.mxu0 %v6494
    %v6552 = vpop.f32.mrf.mxu0
    %v6553 = vadd.f32 0.0, %v6552
    %6554 = vmatmul.f32.gmra.mxu0 %v6497
    %v6555 = vpop.f32.mrf.mxu0
    %v6556 = vadd.f32 0.0, %v6555
    %6557 = vmatmul.f32.gmra.mxu0 %v6500
    %v6558 = vpop.f32.mrf.mxu0
    %v6559 = vadd.f32 0.0, %v6558
    %6560 = vmatmul.f32.gmra.mxu0 %v6503
    %v6561 = vpop.f32.mrf.mxu0
    %v6562 = vadd.f32 0.0, %v6561
    %6563 = vmatmul.f32.gmra.mxu0 %v6506
    %v6564 = vpop.f32.mrf.mxu0
    %v6565 = vadd.f32 0.0, %v6564
    %6566 = vmatmul.f32.gmra.mxu0 %v6509
    %v6567 = vpop.f32.mrf.mxu0
    %v6568 = vadd.f32 0.0, %v6567
    %6569 = vmatmul.f32.gmra.mxu0 %v6512
    %v6570 = vpop.f32.mrf.mxu0
    %v6571 = vadd.f32 0.0, %v6570
    %6572 = vmatmul.f32.gmra.mxu0 %v6515
    %v6573 = vpop.f32.mrf.mxu0
    %v6574 = vadd.f32 0.0, %v6573
    %6575 = vmatmul.f32.gmra.mxu0 %v6518
    %v6576 = vpop.f32.mrf.mxu0
    %v6577 = vadd.f32 0.0, %v6576
    %6578 = vmatmul.f32.gmra.mxu0 %v6521
    %v6579 = vpop.f32.mrf.mxu0
    %v6580 = vadd.f32 0.0, %v6579
    %6581 = vdwg.mxu0
    %6582 = vmatpush.msra.mxu0 0.0
    %6583 = vmatpush.msra.mxu0 0.0
    %6584 = vmatpush.msra.mxu0 %v6580
    %6585 = vmatpush.msra.mxu0 %v6577
    %6586 = vmatpush.msra.mxu0 %v6574
    %6587 = vmatpush.msra.mxu0 %v6571
    %6588 = vmatpush.msra.mxu0 %v6568
    %6589 = vmatpush.msra.mxu0 %v6565
    %6590 = vmatpush.msra.mxu0 %v6562
    %6591 = vmatpush.msra.mxu0 %v6559
    %6592 = vmatpush.msra.mxu0 %v6556
    %6593 = vmatpush.msra.mxu0 %v6553
    %6594 = vmatpush.msra.mxu0 %v6550
    %6595 = vmatpush.msra.mxu0 %v6547
    %6596 = vmatpush.msra.mxu0 %v6544
    %6597 = vmatpush.msra.mxu0 %v6541
    %6598 = vmatmul.f32.gmra.mxu0 %v6482
    %v6599 = vpop.f32.mrf.mxu0
    %v6600 = vadd.f32 0.0, %v6599
    %6601 = vmatmul.f32.gmra.mxu0 %v6485
    %v6602 = vpop.f32.mrf.mxu0
    %v6603 = vadd.f32 0.0, %v6602
    %6604 = vmatmul.f32.gmra.mxu0 %v6488
    %v6605 = vpop.f32.mrf.mxu0
    %v6606 = vadd.f32 0.0, %v6605
    %6607 = vmatmul.f32.gmra.mxu0 %v6491
    %v6608 = vpop.f32.mrf.mxu0
    %v6609 = vadd.f32 0.0, %v6608
    %6610 = vmatmul.f32.gmra.mxu0 %v6494
    %v6611 = vpop.f32.mrf.mxu0
    %v6612 = vadd.f32 0.0, %v6611
    %6613 = vmatmul.f32.gmra.mxu0 %v6497
    %v6614 = vpop.f32.mrf.mxu0
    %v6615 = vadd.f32 0.0, %v6614
    %6616 = vmatmul.f32.gmra.mxu0 %v6500
    %v6617 = vpop.f32.mrf.mxu0
    %v6618 = vadd.f32 0.0, %v6617
    %6619 = vmatmul.f32.gmra.mxu0 %v6503
    %v6620 = vpop.f32.mrf.mxu0
    %v6621 = vadd.f32 0.0, %v6620
    %6622 = vmatmul.f32.gmra.mxu0 %v6506
    %v6623 = vpop.f32.mrf.mxu0
    %v6624 = vadd.f32 0.0, %v6623
    %6625 = vmatmul.f32.gmra.mxu0 %v6509
    %v6626 = vpop.f32.mrf.mxu0
    %v6627 = vadd.f32 0.0, %v6626
    %6628 = vmatmul.f32.gmra.mxu0 %v6512
    %v6629 = vpop.f32.mrf.mxu0
    %v6630 = vadd.f32 0.0, %v6629
    %6631 = vmatmul.f32.gmra.mxu0 %v6515
    %v6632 = vpop.f32.mrf.mxu0
    %v6633 = vadd.f32 0.0, %v6632
    %6634 = vmatmul.f32.gmra.mxu0 %v6518
    %v6635 = vpop.f32.mrf.mxu0
    %v6636 = vadd.f32 0.0, %v6635
    %6637 = vmatmul.f32.gmra.mxu0 %v6521
    %v6638 = vpop.f32.mrf.mxu0
    %v6639 = vadd.f32 0.0, %v6638
    %6640 = vdwg.mxu0
    %s6641 = scalar_lea.vmem %s9, 288
    %v6642 = vld [vmem:[%s6641] sm:$0xff]
    %v6643 = vld [vmem:[%s6641 + $0x8] sm:$0xff]
    %v6644 = vld [vmem:[%s6641 + $0x10] sm:$0xff]
    %v6645 = vld [vmem:[%s6641 + $0x18] sm:$0xff]
    %v6646 = vld [vmem:[%s6641 + $0x20] sm:$0xff]
    %v6647 = vld [vmem:[%s6641 + $0x28] sm:$0xff]
    %v6648 = vld [vmem:[%s6641 + $0x30] sm:$0xff]
    %v6649 = vld [vmem:[%s6641 + $0x38] sm:$0xff]
    %v6650 = vld [vmem:[%s6641 + $0x40] sm:$0xff]
    %v6651 = vld [vmem:[%s6641 + $0x48] sm:$0xff]
    %v6652 = vld [vmem:[%s6641 + $0x50] sm:$0xff]
    %v6653 = vld [vmem:[%s6641 + $0x58] sm:$0xff]
    %v6655 = vsel %vm351, %v6541, 0
    %v6658 = vsel %vm351, %v6544, 0
    %v6661 = vsel %vm351, %v6547, 0
    %v6664 = vsel %vm351, %v6550, 0
    %v6667 = vsel %vm351, %v6553, 0
    %v6670 = vsel %vm351, %v6556, 0
    %v6673 = vsel %vm351, %v6559, 0
    %v6676 = vsel %vm351, %v6562, 0
    %v6679 = vsel %vm351, %v6565, 0
    %v6682 = vsel %vm351, %v6568, 0
    %v6685 = vsel %vm351, %v6571, 0
    %v6688 = vsel %vm351, %v6574, 0
    %v6691 = vsel %vm351, %v6577, 0
    %v6694 = vsel %vm351, %v6580, 0
    %6696 = vmatpush.msra.mxu0 0.0
    %6697 = vmatpush.msra.mxu0 0.0
    %6698 = vmatpush.msra.mxu0 0.0
    %6699 = vmatpush.msra.mxu0 0.0
    %6700 = vmatpush.msra.mxu0 0.0
    %6701 = vmatpush.msra.mxu0 0.0
    %6702 = vmatpush.msra.mxu0 0.0
    %6703 = vmatpush.msra.mxu0 0.0
    %6704 = vmatpush.msra.mxu0 0.0
    %6705 = vmatpush.msra.mxu0 0.0
    %6706 = vmatpush.msra.mxu0 0.0
    %6707 = vmatpush.msra.mxu0 0.0
    %6708 = vmatpush.msra.mxu0 %v6649
    %6709 = vmatpush.msra.mxu0 %v6648
    %6710 = vmatpush.msra.mxu0 %v6647
    %6711 = vmatpush.msra.mxu0 %v6646
    %6712 = vmatmul.f32.gmra.mxu0 %v6655
    %v6713 = vpop.f32.mrf.mxu0
    %v6714 = vadd.f32 0.0, %v6713
    %6715 = vmatmul.f32.gmra.mxu0 %v6658
    %v6716 = vpop.f32.mrf.mxu0
    %v6717 = vadd.f32 0.0, %v6716
    %6718 = vmatmul.f32.gmra.mxu0 %v6661
    %v6719 = vpop.f32.mrf.mxu0
    %v6720 = vadd.f32 0.0, %v6719
    %6721 = vmatmul.f32.gmra.mxu0 %v6664
    %v6722 = vpop.f32.mrf.mxu0
    %v6723 = vadd.f32 0.0, %v6722
    %6724 = vmatmul.f32.gmra.mxu0 %v6667
    %v6725 = vpop.f32.mrf.mxu0
    %v6726 = vadd.f32 0.0, %v6725
    %6727 = vmatmul.f32.gmra.mxu0 %v6670
    %v6728 = vpop.f32.mrf.mxu0
    %v6729 = vadd.f32 0.0, %v6728
    %6730 = vmatmul.f32.gmra.mxu0 %v6673
    %v6731 = vpop.f32.mrf.mxu0
    %v6732 = vadd.f32 0.0, %v6731
    %6733 = vmatmul.f32.gmra.mxu0 %v6676
    %v6734 = vpop.f32.mrf.mxu0
    %v6735 = vadd.f32 0.0, %v6734
    %6736 = vmatmul.f32.gmra.mxu0 %v6679
    %v6737 = vpop.f32.mrf.mxu0
    %v6738 = vadd.f32 0.0, %v6737
    %6739 = vmatmul.f32.gmra.mxu0 %v6682
    %v6740 = vpop.f32.mrf.mxu0
    %v6741 = vadd.f32 0.0, %v6740
    %6742 = vmatmul.f32.gmra.mxu0 %v6685
    %v6743 = vpop.f32.mrf.mxu0
    %v6744 = vadd.f32 0.0, %v6743
    %6745 = vmatmul.f32.gmra.mxu0 %v6688
    %v6746 = vpop.f32.mrf.mxu0
    %v6747 = vadd.f32 0.0, %v6746
    %6748 = vmatmul.f32.gmra.mxu0 %v6691
    %v6749 = vpop.f32.mrf.mxu0
    %v6750 = vadd.f32 0.0, %v6749
    %6751 = vmatmul.f32.gmra.mxu0 %v6694
    %v6752 = vpop.f32.mrf.mxu0
    %v6753 = vadd.f32 0.0, %v6752
    %6754 = vdwg.mxu0
    %6755 = vmatpush.msra.mxu0 0.0
    %6756 = vmatpush.msra.mxu0 0.0
    %6757 = vmatpush.msra.mxu0 0.0
    %6758 = vmatpush.msra.mxu0 0.0
    %6759 = vmatpush.msra.mxu0 0.0
    %6760 = vmatpush.msra.mxu0 0.0
    %6761 = vmatpush.msra.mxu0 0.0
    %6762 = vmatpush.msra.mxu0 0.0
    %6763 = vmatpush.msra.mxu0 0.0
    %6764 = vmatpush.msra.mxu0 0.0
    %6765 = vmatpush.msra.mxu0 0.0
    %6766 = vmatpush.msra.mxu0 0.0
    %6767 = vmatpush.msra.mxu0 %v6645
    %6768 = vmatpush.msra.mxu0 %v6644
    %6769 = vmatpush.msra.mxu0 %v6643
    %6770 = vmatpush.msra.mxu0 %v6642
    %6771 = vmatmul.f32.gmra.mxu0 %v6376
    %v6772 = vpop.f32.mrf.mxu0
    %v6773 = vadd.f32 %v6714, %v6772
    %6774 = vmatmul.f32.gmra.mxu0 %v6379
    %v6775 = vpop.f32.mrf.mxu0
    %v6776 = vadd.f32 %v6717, %v6775
    %6777 = vmatmul.f32.gmra.mxu0 %v6382
    %v6778 = vpop.f32.mrf.mxu0
    %v6779 = vadd.f32 %v6720, %v6778
    %6780 = vmatmul.f32.gmra.mxu0 %v6385
    %v6781 = vpop.f32.mrf.mxu0
    %v6782 = vadd.f32 %v6723, %v6781
    %6783 = vmatmul.f32.gmra.mxu0 %v6388
    %v6784 = vpop.f32.mrf.mxu0
    %v6785 = vadd.f32 %v6726, %v6784
    %6786 = vmatmul.f32.gmra.mxu0 %v6391
    %v6787 = vpop.f32.mrf.mxu0
    %v6788 = vadd.f32 %v6729, %v6787
    %6789 = vmatmul.f32.gmra.mxu0 %v6394
    %v6790 = vpop.f32.mrf.mxu0
    %v6791 = vadd.f32 %v6732, %v6790
    %6792 = vmatmul.f32.gmra.mxu0 %v6397
    %v6793 = vpop.f32.mrf.mxu0
    %v6794 = vadd.f32 %v6735, %v6793
    %6795 = vmatmul.f32.gmra.mxu0 %v6400
    %v6796 = vpop.f32.mrf.mxu0
    %v6797 = vadd.f32 %v6738, %v6796
    %6798 = vmatmul.f32.gmra.mxu0 %v6403
    %v6799 = vpop.f32.mrf.mxu0
    %v6800 = vadd.f32 %v6741, %v6799
    %6801 = vmatmul.f32.gmra.mxu0 %v6406
    %v6802 = vpop.f32.mrf.mxu0
    %v6803 = vadd.f32 %v6744, %v6802
    %6804 = vmatmul.f32.gmra.mxu0 %v6409
    %v6805 = vpop.f32.mrf.mxu0
    %v6806 = vadd.f32 %v6747, %v6805
    %6807 = vmatmul.f32.gmra.mxu0 %v6412
    %v6808 = vpop.f32.mrf.mxu0
    %v6809 = vadd.f32 %v6750, %v6808
    %6810 = vmatmul.f32.gmra.mxu0 %v6415
    %v6811 = vpop.f32.mrf.mxu0
    %v6812 = vadd.f32 %v6753, %v6811
    %6813 = vdwg.mxu0
    %v6815 = vsel %vm351, %v6600, 0
    %v6818 = vsel %vm351, %v6603, 0
    %v6821 = vsel %vm351, %v6606, 0
    %v6824 = vsel %vm351, %v6609, 0
    %v6827 = vsel %vm351, %v6612, 0
    %v6830 = vsel %vm351, %v6615, 0
    %v6833 = vsel %vm351, %v6618, 0
    %v6836 = vsel %vm351, %v6621, 0
    %v6839 = vsel %vm351, %v6624, 0
    %v6842 = vsel %vm351, %v6627, 0
    %v6845 = vsel %vm351, %v6630, 0
    %v6848 = vsel %vm351, %v6633, 0
    %v6851 = vsel %vm351, %v6636, 0
    %v6854 = vsel %vm351, %v6639, 0
    %6856 = vmatpush.msra.mxu0 0.0
    %6857 = vmatpush.msra.mxu0 0.0
    %6858 = vmatpush.msra.mxu0 0.0
    %6859 = vmatpush.msra.mxu0 0.0
    %6860 = vmatpush.msra.mxu0 0.0
    %6861 = vmatpush.msra.mxu0 0.0
    %6862 = vmatpush.msra.mxu0 0.0
    %6863 = vmatpush.msra.mxu0 0.0
    %6864 = vmatpush.msra.mxu0 0.0
    %6865 = vmatpush.msra.mxu0 0.0
    %6866 = vmatpush.msra.mxu0 0.0
    %6867 = vmatpush.msra.mxu0 0.0
    %6868 = vmatpush.msra.mxu0 %v6653
    %6869 = vmatpush.msra.mxu0 %v6652
    %6870 = vmatpush.msra.mxu0 %v6651
    %6871 = vmatpush.msra.mxu0 %v6650
    %6872 = vmatmul.f32.gmra.mxu0 %v6815
    %v6873 = vpop.f32.mrf.mxu0
    %v6874 = vadd.f32 0.0, %v6873
    %6875 = vmatmul.f32.gmra.mxu0 %v6818
    %v6876 = vpop.f32.mrf.mxu0
    %v6877 = vadd.f32 0.0, %v6876
    %6878 = vmatmul.f32.gmra.mxu0 %v6821
    %v6879 = vpop.f32.mrf.mxu0
    %v6880 = vadd.f32 0.0, %v6879
    %6881 = vmatmul.f32.gmra.mxu0 %v6824
    %v6882 = vpop.f32.mrf.mxu0
    %v6883 = vadd.f32 0.0, %v6882
    %6884 = vmatmul.f32.gmra.mxu0 %v6827
    %v6885 = vpop.f32.mrf.mxu0
    %v6886 = vadd.f32 0.0, %v6885
    %6887 = vmatmul.f32.gmra.mxu0 %v6830
    %v6888 = vpop.f32.mrf.mxu0
    %v6889 = vadd.f32 0.0, %v6888
    %6890 = vmatmul.f32.gmra.mxu0 %v6833
    %v6891 = vpop.f32.mrf.mxu0
    %v6892 = vadd.f32 0.0, %v6891
    %6893 = vmatmul.f32.gmra.mxu0 %v6836
    %v6894 = vpop.f32.mrf.mxu0
    %v6895 = vadd.f32 0.0, %v6894
    %6896 = vmatmul.f32.gmra.mxu0 %v6839
    %v6897 = vpop.f32.mrf.mxu0
    %v6898 = vadd.f32 0.0, %v6897
    %6899 = vmatmul.f32.gmra.mxu0 %v6842
    %v6900 = vpop.f32.mrf.mxu0
    %v6901 = vadd.f32 0.0, %v6900
    %6902 = vmatmul.f32.gmra.mxu0 %v6845
    %v6903 = vpop.f32.mrf.mxu0
    %v6904 = vadd.f32 0.0, %v6903
    %6905 = vmatmul.f32.gmra.mxu0 %v6848
    %v6906 = vpop.f32.mrf.mxu0
    %v6907 = vadd.f32 0.0, %v6906
    %6908 = vmatmul.f32.gmra.mxu0 %v6851
    %v6909 = vpop.f32.mrf.mxu0
    %v6910 = vadd.f32 0.0, %v6909
    %6911 = vmatmul.f32.gmra.mxu0 %v6854
    %v6912 = vpop.f32.mrf.mxu0
    %v6913 = vadd.f32 0.0, %v6912
    %6914 = vdwg.mxu0
    %v6915 = vadd.f32 %v6773, %v6874
    %v6916 = vadd.f32 %v6776, %v6877
    %v6917 = vadd.f32 %v6779, %v6880
    %v6918 = vadd.f32 %v6782, %v6883
    %v6919 = vadd.f32 %v6785, %v6886
    %v6920 = vadd.f32 %v6788, %v6889
    %v6921 = vadd.f32 %v6791, %v6892
    %v6922 = vadd.f32 %v6794, %v6895
    %v6923 = vadd.f32 %v6797, %v6898
    %v6924 = vadd.f32 %v6800, %v6901
    %v6925 = vadd.f32 %v6803, %v6904
    %v6926 = vadd.f32 %v6806, %v6907
    %v6927 = vadd.f32 %v6809, %v6910
    %v6928 = vadd.f32 %v6812, %v6913
    %s6929 = scalar_lea.vmem %s10, 3
    %v6930 = vld [vmem:[%s6929] sm:$0x1]
    %v6932 = vperm.slane %v6930, 0
    %v6934 = vadd.f32 %v6915, %v6932
    %v6935 = vadd.f32 %v6916, %v6932
    %v6936 = vadd.f32 %v6917, %v6932
    %v6937 = vadd.f32 %v6918, %v6932
    %v6938 = vadd.f32 %v6919, %v6932
    %v6939 = vadd.f32 %v6920, %v6932
    %v6940 = vadd.f32 %v6921, %v6932
    %v6941 = vadd.f32 %v6922, %v6932
    %v6942 = vadd.f32 %v6923, %v6932
    %v6943 = vadd.f32 %v6924, %v6932
    %v6944 = vadd.f32 %v6925, %v6932
    %v6945 = vadd.f32 %v6926, %v6932
    %v6946 = vadd.f32 %v6927, %v6932
    %v6947 = vadd.f32 %v6928, %v6932
    %v6948 = vadd.f32 %v6934, %v5800
    %v6949 = vadd.f32 %v6935, %v5801
    %v6950 = vadd.f32 %v6936, %v5802
    %v6951 = vadd.f32 %v6937, %v5803
    %v6952 = vadd.f32 %v6938, %v5804
    %v6953 = vadd.f32 %v6939, %v5805
    %v6954 = vadd.f32 %v6940, %v5806
    %v6955 = vadd.f32 %v6941, %v5807
    %v6956 = vadd.f32 %v6942, %v5808
    %v6957 = vadd.f32 %v6943, %v5809
    %v6958 = vadd.f32 %v6944, %v5810
    %v6959 = vadd.f32 %v6945, %v5811
    %v6960 = vadd.f32 %v6946, %v5812
    %v6961 = vadd.f32 %v6947, %v5813
    %s6962 = scalar_lea.vmem %s11, 3
    %v6963 = vld [vmem:[%s6962] sm:$0x1]
    %v6965 = vperm.slane %v6963, 0
    %v6967 = vmul.f32 %v6948, %v6965
    %v6968 = vmul.f32 %v6949, %v6965
    %v6969 = vmul.f32 %v6950, %v6965
    %v6970 = vmul.f32 %v6951, %v6965
    %v6971 = vmul.f32 %v6952, %v6965
    %v6972 = vmul.f32 %v6953, %v6965
    %v6973 = vmul.f32 %v6954, %v6965
    %v6974 = vmul.f32 %v6955, %v6965
    %v6975 = vmul.f32 %v6956, %v6965
    %v6976 = vmul.f32 %v6957, %v6965
    %v6977 = vmul.f32 %v6958, %v6965
    %v6978 = vmul.f32 %v6959, %v6965
    %v6979 = vmul.f32 %v6960, %v6965
    %v6980 = vmul.f32 %v6961, %v6965
    %s6981 = scalar_lea.vmem %s12, 3
    %v6982 = vld [vmem:[%s6981] sm:$0x1]
    %v6984 = vperm.slane %v6982, 0
    %v6986 = vadd.f32 %v6967, %v6984
    %v6987 = vadd.f32 %v6968, %v6984
    %v6988 = vadd.f32 %v6969, %v6984
    %v6989 = vadd.f32 %v6970, %v6984
    %v6990 = vadd.f32 %v6971, %v6984
    %v6991 = vadd.f32 %v6972, %v6984
    %v6992 = vadd.f32 %v6973, %v6984
    %v6993 = vadd.f32 %v6974, %v6984
    %v6994 = vadd.f32 %v6975, %v6984
    %v6995 = vadd.f32 %v6976, %v6984
    %v6996 = vadd.f32 %v6977, %v6984
    %v6997 = vadd.f32 %v6978, %v6984
    %v6998 = vadd.f32 %v6979, %v6984
    %v6999 = vadd.f32 %v6980, %v6984
    %s7000 = scalar_lea.vmem %s4, 128
    %v7001 = vld [vmem:[%s7000] sm:$0xff]
    %v7002 = vld [vmem:[%s7000 + $0x8] sm:$0xff]
    %v7003 = vld [vmem:[%s7000 + $0x10] sm:$0xff]
    %v7004 = vld [vmem:[%s7000 + $0x18] sm:$0xff]
    %s7005 = scalar_lea.vmem %s5, 128
    %v7006 = vld [vmem:[%s7005] sm:$0xff]
    %v7007 = vld [vmem:[%s7005 + $0x8] sm:$0xff]
    %v7008 = vld [vmem:[%s7005 + $0x10] sm:$0xff]
    %v7009 = vld [vmem:[%s7005 + $0x18] sm:$0xff]
    %v7011 = vsel %vm351, %v6988, 0
    %v7014 = vsel %vm351, %v6989, 0
    %v7017 = vsel %vm351, %v6990, 0
    %v7020 = vsel %vm351, %v6991, 0
    %v7023 = vsel %vm351, %v6992, 0
    %v7026 = vsel %vm351, %v6993, 0
    %v7029 = vsel %vm351, %v6994, 0
    %v7032 = vsel %vm351, %v6995, 0
    %v7035 = vsel %vm351, %v6996, 0
    %v7038 = vsel %vm351, %v6997, 0
    %v7041 = vsel %vm351, %v6998, 0
    %v7044 = vsel %vm351, %v6999, 0
    %7046 = vmatpush.msra.mxu0 0.0
    %7047 = vmatpush.msra.mxu0 0.0
    %7048 = vmatpush.msra.mxu0 0.0
    %7049 = vmatpush.msra.mxu0 0.0
    %7050 = vmatpush.msra.mxu0 0.0
    %7051 = vmatpush.msra.mxu0 0.0
    %7052 = vmatpush.msra.mxu0 0.0
    %7053 = vmatpush.msra.mxu0 0.0
    %7054 = vmatpush.msra.mxu0 0.0
    %7055 = vmatpush.msra.mxu0 0.0
    %7056 = vmatpush.msra.mxu0 0.0
    %7057 = vmatpush.msra.mxu0 0.0
    %7058 = vmatpush.msra.mxu0 %v7009
    %7059 = vmatpush.msra.mxu0 %v7008
    %7060 = vmatpush.msra.mxu0 %v7007
    %7061 = vmatpush.msra.mxu0 %v7006
    %7062 = vmatmul.f32.gmra.mxu0 %v7011
    %v7063 = vpop.f32.mrf.mxu0
    %v7064 = vadd.f32 0.0, %v7063
    %7065 = vmatmul.f32.gmra.mxu0 %v7014
    %v7066 = vpop.f32.mrf.mxu0
    %v7067 = vadd.f32 0.0, %v7066
    %7068 = vmatmul.f32.gmra.mxu0 %v7017
    %v7069 = vpop.f32.mrf.mxu0
    %v7070 = vadd.f32 0.0, %v7069
    %7071 = vmatmul.f32.gmra.mxu0 %v7020
    %v7072 = vpop.f32.mrf.mxu0
    %v7073 = vadd.f32 0.0, %v7072
    %7074 = vmatmul.f32.gmra.mxu0 %v7023
    %v7075 = vpop.f32.mrf.mxu0
    %v7076 = vadd.f32 0.0, %v7075
    %7077 = vmatmul.f32.gmra.mxu0 %v7026
    %v7078 = vpop.f32.mrf.mxu0
    %v7079 = vadd.f32 0.0, %v7078
    %7080 = vmatmul.f32.gmra.mxu0 %v7029
    %v7081 = vpop.f32.mrf.mxu0
    %v7082 = vadd.f32 0.0, %v7081
    %7083 = vmatmul.f32.gmra.mxu0 %v7032
    %v7084 = vpop.f32.mrf.mxu0
    %v7085 = vadd.f32 0.0, %v7084
    %7086 = vmatmul.f32.gmra.mxu0 %v7035
    %v7087 = vpop.f32.mrf.mxu0
    %v7088 = vadd.f32 0.0, %v7087
    %7089 = vmatmul.f32.gmra.mxu0 %v7038
    %v7090 = vpop.f32.mrf.mxu0
    %v7091 = vadd.f32 0.0, %v7090
    %7092 = vmatmul.f32.gmra.mxu0 %v7041
    %v7093 = vpop.f32.mrf.mxu0
    %v7094 = vadd.f32 0.0, %v7093
    %7095 = vmatmul.f32.gmra.mxu0 %v7044
    %v7096 = vpop.f32.mrf.mxu0
    %v7097 = vadd.f32 0.0, %v7096
    %7098 = vdwg.mxu0
    %v7100 = vsel %vm351, %v6986, 0
    %v7103 = vsel %vm351, %v6987, 0
    %7105 = vmatpush.msra.mxu0 0.0
    %7106 = vmatpush.msra.mxu0 0.0
    %7107 = vmatpush.msra.mxu0 0.0
    %7108 = vmatpush.msra.mxu0 0.0
    %7109 = vmatpush.msra.mxu0 0.0
    %7110 = vmatpush.msra.mxu0 0.0
    %7111 = vmatpush.msra.mxu0 0.0
    %7112 = vmatpush.msra.mxu0 0.0
    %7113 = vmatpush.msra.mxu0 0.0
    %7114 = vmatpush.msra.mxu0 0.0
    %7115 = vmatpush.msra.mxu0 0.0
    %7116 = vmatpush.msra.mxu0 0.0
    %7117 = vmatpush.msra.mxu0 %v7004
    %7118 = vmatpush.msra.mxu0 %v7003
    %7119 = vmatpush.msra.mxu0 %v7002
    %7120 = vmatpush.msra.mxu0 %v7001
    %7121 = vmatmul.f32.gmra.mxu0 %v7100
    %v7122 = vpop.f32.mrf.mxu0
    %v7123 = vadd.f32 %v7064, %v7122
    %7124 = vmatmul.f32.gmra.mxu0 %v7103
    %v7125 = vpop.f32.mrf.mxu0
    %v7126 = vadd.f32 %v7067, %v7125
    %7127 = vmatmul.f32.gmra.mxu0 %v7011
    %v7128 = vpop.f32.mrf.mxu0
    %v7129 = vadd.f32 %v7070, %v7128
    %7130 = vmatmul.f32.gmra.mxu0 %v7014
    %v7131 = vpop.f32.mrf.mxu0
    %v7132 = vadd.f32 %v7073, %v7131
    %7133 = vmatmul.f32.gmra.mxu0 %v7017
    %v7134 = vpop.f32.mrf.mxu0
    %v7135 = vadd.f32 %v7076, %v7134
    %7136 = vmatmul.f32.gmra.mxu0 %v7020
    %v7137 = vpop.f32.mrf.mxu0
    %v7138 = vadd.f32 %v7079, %v7137
    %7139 = vmatmul.f32.gmra.mxu0 %v7023
    %v7140 = vpop.f32.mrf.mxu0
    %v7141 = vadd.f32 %v7082, %v7140
    %7142 = vmatmul.f32.gmra.mxu0 %v7026
    %v7143 = vpop.f32.mrf.mxu0
    %v7144 = vadd.f32 %v7085, %v7143
    %7145 = vmatmul.f32.gmra.mxu0 %v7029
    %v7146 = vpop.f32.mrf.mxu0
    %v7147 = vadd.f32 %v7088, %v7146
    %7148 = vmatmul.f32.gmra.mxu0 %v7032
    %v7149 = vpop.f32.mrf.mxu0
    %v7150 = vadd.f32 %v7091, %v7149
    %7151 = vmatmul.f32.gmra.mxu0 %v7035
    %v7152 = vpop.f32.mrf.mxu0
    %v7153 = vadd.f32 %v7094, %v7152
    %7154 = vmatmul.f32.gmra.mxu0 %v7038
    %v7155 = vpop.f32.mrf.mxu0
    %v7156 = vadd.f32 %v7097, %v7155
    %7157 = vdwg.mxu0
    %s7158 = scalar_lea.vmem %s6, 4
    %v7159 = vld [vmem:[%s7158] sm:$0x1]
    %v7161 = vperm.slane %v7159, 0
    %v7163 = vadd.f32 %v7123, %v7161
    %v7164 = vadd.f32 %v7126, %v7161
    %v7165 = vadd.f32 %v7129, %v7161
    %v7166 = vadd.f32 %v7132, %v7161
    %v7167 = vadd.f32 %v7135, %v7161
    %v7168 = vadd.f32 %v7138, %v7161
    %v7169 = vadd.f32 %v7141, %v7161
    %v7170 = vadd.f32 %v7144, %v7161
    %v7171 = vadd.f32 %v7147, %v7161
    %v7172 = vadd.f32 %v7150, %v7161
    %v7173 = vadd.f32 %v7153, %v7161
    %v7174 = vadd.f32 %v7156, %v7161
    %v7175 = vtanh.pop %v7163
    %v7176 = vtanh.pop %v7164
    %v7177 = vtanh.pop %v7165
    %v7178 = vtanh.pop %v7166
    %v7179 = vtanh.pop %v7167
    %v7180 = vtanh.pop %v7168
    %v7181 = vtanh.pop %v7169
    %v7182 = vtanh.pop %v7170
    %v7183 = vtanh.pop %v7171
    %v7184 = vtanh.pop %v7172
    %v7185 = vtanh.pop %v7173
    %v7186 = vtanh.pop %v7174
    %v7187 = vxor.u32 %v7163, 2147483648
    %v7188 = vxor.u32 %v7164, 2147483648
    %v7189 = vxor.u32 %v7165, 2147483648
    %v7190 = vxor.u32 %v7166, 2147483648
    %v7191 = vxor.u32 %v7167, 2147483648
    %v7192 = vxor.u32 %v7168, 2147483648
    %v7193 = vxor.u32 %v7169, 2147483648
    %v7194 = vxor.u32 %v7170, 2147483648
    %v7195 = vxor.u32 %v7171, 2147483648
    %v7196 = vxor.u32 %v7172, 2147483648
    %v7197 = vxor.u32 %v7173, 2147483648
    %v7198 = vxor.u32 %v7174, 2147483648
    %v7199 = vmul.f32 %v7187, 1.442695
    %v7200 = vpow.pop %v7199
    %v7201 = vmul.f32 %v7188, 1.442695
    %v7202 = vpow.pop %v7201
    %v7203 = vmul.f32 %v7189, 1.442695
    %v7204 = vpow.pop %v7203
    %v7205 = vmul.f32 %v7190, 1.442695
    %v7206 = vpow.pop %v7205
    %v7207 = vmul.f32 %v7191, 1.442695
    %v7208 = vpow.pop %v7207
    %v7209 = vmul.f32 %v7192, 1.442695
    %v7210 = vpow.pop %v7209
    %v7211 = vmul.f32 %v7193, 1.442695
    %v7212 = vpow.pop %v7211
    %v7213 = vmul.f32 %v7194, 1.442695
    %v7214 = vpow.pop %v7213
    %v7215 = vmul.f32 %v7195, 1.442695
    %v7216 = vpow.pop %v7215
    %v7217 = vmul.f32 %v7196, 1.442695
    %v7218 = vpow.pop %v7217
    %v7219 = vmul.f32 %v7197, 1.442695
    %v7220 = vpow.pop %v7219
    %v7221 = vmul.f32 %v7198, 1.442695
    %v7222 = vpow.pop %v7221
    %v7223 = vadd.f32 %v7200, 1.0
    %v7224 = vadd.f32 %v7202, 1.0
    %v7225 = vadd.f32 %v7204, 1.0
    %v7226 = vadd.f32 %v7206, 1.0
    %v7227 = vadd.f32 %v7208, 1.0
    %v7228 = vadd.f32 %v7210, 1.0
    %v7229 = vadd.f32 %v7212, 1.0
    %v7230 = vadd.f32 %v7214, 1.0
    %v7231 = vadd.f32 %v7216, 1.0
    %v7232 = vadd.f32 %v7218, 1.0
    %v7233 = vadd.f32 %v7220, 1.0
    %v7234 = vadd.f32 %v7222, 1.0
    %v7235 = vrcp.pop %v7223
    %v7236 = vmul.f32 %v7223, %v7235
    %v7237 = vsub.f32 1.0, %v7236
    %v7238 = vmul.f32 %v7235, %v7237
    %v7239 = vadd.f32 %v7235, %v7238
    %vm7240 = vweird.f32 %v7223
    %vm7241 = vweird.f32 %v7235
    %vm7242 = vmor %vm7240, %vm7241
    %v7243 = vsel %vm7242, %v7235, %v7239
    %v7244 = vand.u32 2147483647, %v7223
    %vm7245 = vcmp.eq.f32.partialorder %v7244, 8.507059e+37
    %v7246 = vand.u32 %v7223, 2147483648
    %v7247 = vor.u32 1.1754944e-38, %v7246
    %v7248 = vsel %vm7245, %v7247, %v7243
    %v7249 = vmul.f32 1.0, %v7248
    %v7250 = vrcp.pop %v7224
    %v7251 = vmul.f32 %v7224, %v7250
    %v7252 = vsub.f32 1.0, %v7251
    %v7253 = vmul.f32 %v7250, %v7252
    %v7254 = vadd.f32 %v7250, %v7253
    %vm7255 = vweird.f32 %v7224
    %vm7256 = vweird.f32 %v7250
    %vm7257 = vmor %vm7255, %vm7256
    %v7258 = vsel %vm7257, %v7250, %v7254
    %v7259 = vand.u32 2147483647, %v7224
    %vm7260 = vcmp.eq.f32.partialorder %v7259, 8.507059e+37
    %v7261 = vand.u32 %v7224, 2147483648
    %v7262 = vor.u32 1.1754944e-38, %v7261
    %v7263 = vsel %vm7260, %v7262, %v7258
    %v7264 = vmul.f32 1.0, %v7263
    %v7265 = vrcp.pop %v7225
    %v7266 = vmul.f32 %v7225, %v7265
    %v7267 = vsub.f32 1.0, %v7266
    %v7268 = vmul.f32 %v7265, %v7267
    %v7269 = vadd.f32 %v7265, %v7268
    %vm7270 = vweird.f32 %v7225
    %vm7271 = vweird.f32 %v7265
    %vm7272 = vmor %vm7270, %vm7271
    %v7273 = vsel %vm7272, %v7265, %v7269
    %v7274 = vand.u32 2147483647, %v7225
    %vm7275 = vcmp.eq.f32.partialorder %v7274, 8.507059e+37
    %v7276 = vand.u32 %v7225, 2147483648
    %v7277 = vor.u32 1.1754944e-38, %v7276
    %v7278 = vsel %vm7275, %v7277, %v7273
    %v7279 = vmul.f32 1.0, %v7278
    %v7280 = vrcp.pop %v7226
    %v7281 = vmul.f32 %v7226, %v7280
    %v7282 = vsub.f32 1.0, %v7281
    %v7283 = vmul.f32 %v7280, %v7282
    %v7284 = vadd.f32 %v7280, %v7283
    %vm7285 = vweird.f32 %v7226
    %vm7286 = vweird.f32 %v7280
    %vm7287 = vmor %vm7285, %vm7286
    %v7288 = vsel %vm7287, %v7280, %v7284
    %v7289 = vand.u32 2147483647, %v7226
    %vm7290 = vcmp.eq.f32.partialorder %v7289, 8.507059e+37
    %v7291 = vand.u32 %v7226, 2147483648
    %v7292 = vor.u32 1.1754944e-38, %v7291
    %v7293 = vsel %vm7290, %v7292, %v7288
    %v7294 = vmul.f32 1.0, %v7293
    %v7295 = vrcp.pop %v7227
    %v7296 = vmul.f32 %v7227, %v7295
    %v7297 = vsub.f32 1.0, %v7296
    %v7298 = vmul.f32 %v7295, %v7297
    %v7299 = vadd.f32 %v7295, %v7298
    %vm7300 = vweird.f32 %v7227
    %vm7301 = vweird.f32 %v7295
    %vm7302 = vmor %vm7300, %vm7301
    %v7303 = vsel %vm7302, %v7295, %v7299
    %v7304 = vand.u32 2147483647, %v7227
    %vm7305 = vcmp.eq.f32.partialorder %v7304, 8.507059e+37
    %v7306 = vand.u32 %v7227, 2147483648
    %v7307 = vor.u32 1.1754944e-38, %v7306
    %v7308 = vsel %vm7305, %v7307, %v7303
    %v7309 = vmul.f32 1.0, %v7308
    %v7310 = vrcp.pop %v7228
    %v7311 = vmul.f32 %v7228, %v7310
    %v7312 = vsub.f32 1.0, %v7311
    %v7313 = vmul.f32 %v7310, %v7312
    %v7314 = vadd.f32 %v7310, %v7313
    %vm7315 = vweird.f32 %v7228
    %vm7316 = vweird.f32 %v7310
    %vm7317 = vmor %vm7315, %vm7316
    %v7318 = vsel %vm7317, %v7310, %v7314
    %v7319 = vand.u32 2147483647, %v7228
    %vm7320 = vcmp.eq.f32.partialorder %v7319, 8.507059e+37
    %v7321 = vand.u32 %v7228, 2147483648
    %v7322 = vor.u32 1.1754944e-38, %v7321
    %v7323 = vsel %vm7320, %v7322, %v7318
    %v7324 = vmul.f32 1.0, %v7323
    %v7325 = vrcp.pop %v7229
    %v7326 = vmul.f32 %v7229, %v7325
    %v7327 = vsub.f32 1.0, %v7326
    %v7328 = vmul.f32 %v7325, %v7327
    %v7329 = vadd.f32 %v7325, %v7328
    %vm7330 = vweird.f32 %v7229
    %vm7331 = vweird.f32 %v7325
    %vm7332 = vmor %vm7330, %vm7331
    %v7333 = vsel %vm7332, %v7325, %v7329
    %v7334 = vand.u32 2147483647, %v7229
    %vm7335 = vcmp.eq.f32.partialorder %v7334, 8.507059e+37
    %v7336 = vand.u32 %v7229, 2147483648
    %v7337 = vor.u32 1.1754944e-38, %v7336
    %v7338 = vsel %vm7335, %v7337, %v7333
    %v7339 = vmul.f32 1.0, %v7338
    %v7340 = vrcp.pop %v7230
    %v7341 = vmul.f32 %v7230, %v7340
    %v7342 = vsub.f32 1.0, %v7341
    %v7343 = vmul.f32 %v7340, %v7342
    %v7344 = vadd.f32 %v7340, %v7343
    %vm7345 = vweird.f32 %v7230
    %vm7346 = vweird.f32 %v7340
    %vm7347 = vmor %vm7345, %vm7346
    %v7348 = vsel %vm7347, %v7340, %v7344
    %v7349 = vand.u32 2147483647, %v7230
    %vm7350 = vcmp.eq.f32.partialorder %v7349, 8.507059e+37
    %v7351 = vand.u32 %v7230, 2147483648
    %v7352 = vor.u32 1.1754944e-38, %v7351
    %v7353 = vsel %vm7350, %v7352, %v7348
    %v7354 = vmul.f32 1.0, %v7353
    %v7355 = vrcp.pop %v7231
    %v7356 = vmul.f32 %v7231, %v7355
    %v7357 = vsub.f32 1.0, %v7356
    %v7358 = vmul.f32 %v7355, %v7357
    %v7359 = vadd.f32 %v7355, %v7358
    %vm7360 = vweird.f32 %v7231
    %vm7361 = vweird.f32 %v7355
    %vm7362 = vmor %vm7360, %vm7361
    %v7363 = vsel %vm7362, %v7355, %v7359
    %v7364 = vand.u32 2147483647, %v7231
    %vm7365 = vcmp.eq.f32.partialorder %v7364, 8.507059e+37
    %v7366 = vand.u32 %v7231, 2147483648
    %v7367 = vor.u32 1.1754944e-38, %v7366
    %v7368 = vsel %vm7365, %v7367, %v7363
    %v7369 = vmul.f32 1.0, %v7368
    %v7370 = vrcp.pop %v7232
    %v7371 = vmul.f32 %v7232, %v7370
    %v7372 = vsub.f32 1.0, %v7371
    %v7373 = vmul.f32 %v7370, %v7372
    %v7374 = vadd.f32 %v7370, %v7373
    %vm7375 = vweird.f32 %v7232
    %vm7376 = vweird.f32 %v7370
    %vm7377 = vmor %vm7375, %vm7376
    %v7378 = vsel %vm7377, %v7370, %v7374
    %v7379 = vand.u32 2147483647, %v7232
    %vm7380 = vcmp.eq.f32.partialorder %v7379, 8.507059e+37
    %v7381 = vand.u32 %v7232, 2147483648
    %v7382 = vor.u32 1.1754944e-38, %v7381
    %v7383 = vsel %vm7380, %v7382, %v7378
    %v7384 = vmul.f32 1.0, %v7383
    %v7385 = vrcp.pop %v7233
    %v7386 = vmul.f32 %v7233, %v7385
    %v7387 = vsub.f32 1.0, %v7386
    %v7388 = vmul.f32 %v7385, %v7387
    %v7389 = vadd.f32 %v7385, %v7388
    %vm7390 = vweird.f32 %v7233
    %vm7391 = vweird.f32 %v7385
    %vm7392 = vmor %vm7390, %vm7391
    %v7393 = vsel %vm7392, %v7385, %v7389
    %v7394 = vand.u32 2147483647, %v7233
    %vm7395 = vcmp.eq.f32.partialorder %v7394, 8.507059e+37
    %v7396 = vand.u32 %v7233, 2147483648
    %v7397 = vor.u32 1.1754944e-38, %v7396
    %v7398 = vsel %vm7395, %v7397, %v7393
    %v7399 = vmul.f32 1.0, %v7398
    %v7400 = vrcp.pop %v7234
    %v7401 = vmul.f32 %v7234, %v7400
    %v7402 = vsub.f32 1.0, %v7401
    %v7403 = vmul.f32 %v7400, %v7402
    %v7404 = vadd.f32 %v7400, %v7403
    %vm7405 = vweird.f32 %v7234
    %vm7406 = vweird.f32 %v7400
    %vm7407 = vmor %vm7405, %vm7406
    %v7408 = vsel %vm7407, %v7400, %v7404
    %v7409 = vand.u32 2147483647, %v7234
    %vm7410 = vcmp.eq.f32.partialorder %v7409, 8.507059e+37
    %v7411 = vand.u32 %v7234, 2147483648
    %v7412 = vor.u32 1.1754944e-38, %v7411
    %v7413 = vsel %vm7410, %v7412, %v7408
    %v7414 = vmul.f32 1.0, %v7413
    %7427 = vrot.lane.b32.xlu0 %v7249, 96
    %v7428 = vpop.permute.xlu0 %7427
    %7429 = vrot.lane.b32.xlu0 %v7264, 96
    %v7430 = vpop.permute.xlu0 %7429
    %7431 = vrot.lane.b32.xlu0 %v7279, 96
    %v7432 = vpop.permute.xlu0 %7431
    %7433 = vrot.lane.b32.xlu0 %v7294, 96
    %v7434 = vpop.permute.xlu0 %7433
    %7435 = vrot.lane.b32.xlu0 %v7309, 96
    %v7436 = vpop.permute.xlu0 %7435
    %7437 = vrot.lane.b32.xlu0 %v7324, 96
    %v7438 = vpop.permute.xlu0 %7437
    %7439 = vrot.lane.b32.xlu0 %v7339, 96
    %v7440 = vpop.permute.xlu0 %7439
    %7441 = vrot.lane.b32.xlu0 %v7354, 96
    %v7442 = vpop.permute.xlu0 %7441
    %7443 = vrot.lane.b32.xlu0 %v7369, 96
    %v7444 = vpop.permute.xlu0 %7443
    %7445 = vrot.lane.b32.xlu0 %v7384, 96
    %v7446 = vpop.permute.xlu0 %7445
    %7447 = vrot.lane.b32.xlu0 %v7399, 96
    %v7448 = vpop.permute.xlu0 %7447
    %7449 = vrot.lane.b32.xlu0 %v7414, 96
    %v7450 = vpop.permute.xlu0 %7449
    %v7463 = vmul.f32 %v7175, %v7428
    %v7464 = vmul.f32 %v7176, %v7430
    %v7465 = vmul.f32 %v7177, %v7432
    %v7466 = vmul.f32 %v7178, %v7434
    %v7467 = vmul.f32 %v7179, %v7436
    %v7468 = vmul.f32 %v7180, %v7438
    %v7469 = vmul.f32 %v7181, %v7440
    %v7470 = vmul.f32 %v7182, %v7442
    %v7471 = vmul.f32 %v7183, %v7444
    %v7472 = vmul.f32 %v7184, %v7446
    %v7473 = vmul.f32 %v7185, %v7448
    %v7474 = vmul.f32 %v7186, %v7450
    %s7475 = scalar_lea.vmem %s7, 128
    %v7476 = vld [vmem:[%s7475] sm:$0xff]
    %v7477 = vld [vmem:[%s7475 + $0x8] sm:$0xff]
    %v7478 = vld [vmem:[%s7475 + $0x10] sm:$0xff]
    %v7479 = vld [vmem:[%s7475 + $0x18] sm:$0xff]
    %s7480 = scalar_lea.vmem %s8, 4
    %v7481 = vld [vmem:[%s7480] sm:$0x1]
    %v7483 = vperm.slane %v7481, 0
    %v7486 = vsel %vm351, %v7463, 0
    %v7489 = vsel %vm351, %v7464, 0
    %v7492 = vsel %vm351, %v7465, 0
    %v7495 = vsel %vm351, %v7466, 0
    %v7498 = vsel %vm351, %v7467, 0
    %v7501 = vsel %vm351, %v7468, 0
    %v7504 = vsel %vm351, %v7469, 0
    %v7507 = vsel %vm351, %v7470, 0
    %v7510 = vsel %vm351, %v7471, 0
    %v7513 = vsel %vm351, %v7472, 0
    %v7516 = vsel %vm351, %v7473, 0
    %v7519 = vsel %vm351, %v7474, 0
    %7521 = vmatpush.msra.mxu0 0.0
    %7522 = vmatpush.msra.mxu0 0.0
    %7523 = vmatpush.msra.mxu0 0.0
    %7524 = vmatpush.msra.mxu0 0.0
    %7525 = vmatpush.msra.mxu0 0.0
    %7526 = vmatpush.msra.mxu0 0.0
    %7527 = vmatpush.msra.mxu0 0.0
    %7528 = vmatpush.msra.mxu0 0.0
    %7529 = vmatpush.msra.mxu0 0.0
    %7530 = vmatpush.msra.mxu0 0.0
    %7531 = vmatpush.msra.mxu0 0.0
    %7532 = vmatpush.msra.mxu0 0.0
    %7533 = vmatpush.msra.mxu0 %v7479
    %7534 = vmatpush.msra.mxu0 %v7478
    %7535 = vmatpush.msra.mxu0 %v7477
    %7536 = vmatpush.msra.mxu0 %v7476
    %7537 = vmatmul.f32.gmra.mxu0 %v7486
    %v7538 = vpop.f32.mrf.mxu0
    %7539 = vmatmul.f32.gmra.mxu0 %v7489
    %v7540 = vpop.f32.mrf.mxu0
    %7541 = vmatmul.f32.gmra.mxu0 %v7492
    %v7542 = vpop.f32.mrf.mxu0
    %7543 = vmatmul.f32.gmra.mxu0 %v7495
    %v7544 = vpop.f32.mrf.mxu0
    %7545 = vmatmul.f32.gmra.mxu0 %v7498
    %v7546 = vpop.f32.mrf.mxu0
    %7547 = vmatmul.f32.gmra.mxu0 %v7501
    %v7548 = vpop.f32.mrf.mxu0
    %7549 = vmatmul.f32.gmra.mxu0 %v7504
    %v7550 = vpop.f32.mrf.mxu0
    %7551 = vmatmul.f32.gmra.mxu0 %v7507
    %v7552 = vpop.f32.mrf.mxu0
    %7553 = vmatmul.f32.gmra.mxu0 %v7510
    %v7554 = vpop.f32.mrf.mxu0
    %7555 = vmatmul.f32.gmra.mxu0 %v7513
    %v7556 = vpop.f32.mrf.mxu0
    %7557 = vmatmul.f32.gmra.mxu0 %v7516
    %v7558 = vpop.f32.mrf.mxu0
    %v7559 = vadd.f32 %v7483, %v7558
    %7560 = vmatmul.f32.gmra.mxu0 %v7519
    %v7561 = vpop.f32.mrf.mxu0
    %v7562 = vadd.f32 %v7483, %v7561
    %7563 = vdwg.mxu0
    %v7564 = vadd.f32 %v7559, %v6464
    %v7565 = vadd.f32 %v7562, %v6465
    %v7566 = vld [vmem:[%s1] sm:$0xff]
    %v7567 = vld [vmem:[%s1 + $0x10] sm:$0xff]
    %v7568 = vld [vmem:[%s1 + $0x20] sm:$0xff]
    %v7569 = vld [vmem:[%s1 + $0x30] sm:$0xff]
    %v7570 = vld [vmem:[%s1 + $0x40] sm:$0xff]
    %v7571 = vld [vmem:[%s1 + $0x50] sm:$0xff]
    %v7572 = vld [vmem:[%s1 + $0x60] sm:$0xff]
    %v7573 = vld [vmem:[%s1 + $0x70] sm:$0xff]
    %v7574 = vld [vmem:[%s1 + $0x80] sm:$0xff]
    %v7575 = vld [vmem:[%s1 + $0x90] sm:$0xff]
    %v7576 = vld [vmem:[%s1 + $0xa0] sm:$0xff]
    %v7577 = vld [vmem:[%s1 + $0xb0] sm:$0xff]
    %vm7578 = vcmask 785408
    %v7580 = vsel %vm7578, %v7566, 0
    %v7583 = vsel %vm7578, %v7567, 0
    %v7586 = vsel %vm7578, %v7568, 0
    %v7589 = vsel %vm7578, %v7569, 0
    %v7592 = vsel %vm7578, %v7570, 0
    %v7595 = vsel %vm7578, %v7571, 0
    %v7598 = vsel %vm7578, %v7572, 0
    %v7601 = vsel %vm7578, %v7573, 0
    %v7604 = vsel %vm7578, %v7574, 0
    %v7607 = vsel %vm7578, %v7575, 0
    %v7610 = vsel %vm7578, %v7576, 0
    %v7613 = vsel %vm7578, %v7577, 0
    %7615 = vmatpush.msra.mxu0 0.0
    %7616 = vmatpush.msra.mxu0 0.0
    %7617 = vmatpush.msra.mxu0 0.0
    %7618 = vmatpush.msra.mxu0 0.0
    %7619 = vmatpush.msra.mxu0 %v7474
    %7620 = vmatpush.msra.mxu0 %v7473
    %7621 = vmatpush.msra.mxu0 %v7472
    %7622 = vmatpush.msra.mxu0 %v7471
    %7623 = vmatpush.msra.mxu0 %v7470
    %7624 = vmatpush.msra.mxu0 %v7469
    %7625 = vmatpush.msra.mxu0 %v7468
    %7626 = vmatpush.msra.mxu0 %v7467
    %7627 = vmatpush.msra.mxu0 %v7466
    %7628 = vmatpush.msra.mxu0 %v7465
    %7629 = vmatpush.msra.mxu0 %v7464
    %7630 = vmatpush.msra.mxu0 %v7463
    %7631 = vmatmul.f32.gmra.mxu0 %v7580
    %v7632 = vpop.f32.mrf.mxu0
    %v7633 = vadd.f32 0.0, %v7632
    %7634 = vmatmul.f32.gmra.mxu0 %v7583
    %v7635 = vpop.f32.mrf.mxu0
    %v7636 = vadd.f32 0.0, %v7635
    %7637 = vmatmul.f32.gmra.mxu0 %v7586
    %v7638 = vpop.f32.mrf.mxu0
    %v7639 = vadd.f32 0.0, %v7638
    %7640 = vmatmul.f32.gmra.mxu0 %v7589
    %v7641 = vpop.f32.mrf.mxu0
    %v7642 = vadd.f32 0.0, %v7641
    %7643 = vmatmul.f32.gmra.mxu0 %v7592
    %v7644 = vpop.f32.mrf.mxu0
    %v7645 = vadd.f32 0.0, %v7644
    %7646 = vmatmul.f32.gmra.mxu0 %v7595
    %v7647 = vpop.f32.mrf.mxu0
    %v7648 = vadd.f32 0.0, %v7647
    %7649 = vmatmul.f32.gmra.mxu0 %v7598
    %v7650 = vpop.f32.mrf.mxu0
    %v7651 = vadd.f32 0.0, %v7650
    %7652 = vmatmul.f32.gmra.mxu0 %v7601
    %v7653 = vpop.f32.mrf.mxu0
    %v7654 = vadd.f32 0.0, %v7653
    %7655 = vmatmul.f32.gmra.mxu0 %v7604
    %v7656 = vpop.f32.mrf.mxu0
    %v7657 = vadd.f32 0.0, %v7656
    %7658 = vmatmul.f32.gmra.mxu0 %v7607
    %v7659 = vpop.f32.mrf.mxu0
    %v7660 = vadd.f32 0.0, %v7659
    %7661 = vmatmul.f32.gmra.mxu0 %v7610
    %v7662 = vpop.f32.mrf.mxu0
    %v7663 = vadd.f32 0.0, %v7662
    %7664 = vmatmul.f32.gmra.mxu0 %v7613
    %v7665 = vpop.f32.mrf.mxu0
    %v7666 = vadd.f32 0.0, %v7665
    %7667 = vdwg.mxu0
    %7668 = vmatpush.msra.mxu0 0.0
    %7669 = vmatpush.msra.mxu0 0.0
    %7670 = vmatpush.msra.mxu0 0.0
    %7671 = vmatpush.msra.mxu0 0.0
    %7672 = vmatpush.msra.mxu0 %v7666
    %7673 = vmatpush.msra.mxu0 %v7663
    %7674 = vmatpush.msra.mxu0 %v7660
    %7675 = vmatpush.msra.mxu0 %v7657
    %7676 = vmatpush.msra.mxu0 %v7654
    %7677 = vmatpush.msra.mxu0 %v7651
    %7678 = vmatpush.msra.mxu0 %v7648
    %7679 = vmatpush.msra.mxu0 %v7645
    %7680 = vmatpush.msra.mxu0 %v7642
    %7681 = vmatpush.msra.mxu0 %v7639
    %7682 = vmatpush.msra.mxu0 %v7636
    %7683 = vmatpush.msra.mxu0 %v7633
    %7684 = vmatmul.f32.gmra.mxu0 %v7580
    %v7685 = vpop.f32.mrf.mxu0
    %v7686 = vadd.f32 0.0, %v7685
    %7687 = vmatmul.f32.gmra.mxu0 %v7583
    %v7688 = vpop.f32.mrf.mxu0
    %v7689 = vadd.f32 0.0, %v7688
    %7690 = vmatmul.f32.gmra.mxu0 %v7586
    %v7691 = vpop.f32.mrf.mxu0
    %v7692 = vadd.f32 0.0, %v7691
    %7693 = vmatmul.f32.gmra.mxu0 %v7589
    %v7694 = vpop.f32.mrf.mxu0
    %v7695 = vadd.f32 0.0, %v7694
    %7696 = vmatmul.f32.gmra.mxu0 %v7592
    %v7697 = vpop.f32.mrf.mxu0
    %v7698 = vadd.f32 0.0, %v7697
    %7699 = vmatmul.f32.gmra.mxu0 %v7595
    %v7700 = vpop.f32.mrf.mxu0
    %v7701 = vadd.f32 0.0, %v7700
    %7702 = vmatmul.f32.gmra.mxu0 %v7598
    %v7703 = vpop.f32.mrf.mxu0
    %v7704 = vadd.f32 0.0, %v7703
    %7705 = vmatmul.f32.gmra.mxu0 %v7601
    %v7706 = vpop.f32.mrf.mxu0
    %v7707 = vadd.f32 0.0, %v7706
    %7708 = vmatmul.f32.gmra.mxu0 %v7604
    %v7709 = vpop.f32.mrf.mxu0
    %v7710 = vadd.f32 0.0, %v7709
    %7711 = vmatmul.f32.gmra.mxu0 %v7607
    %v7712 = vpop.f32.mrf.mxu0
    %v7713 = vadd.f32 0.0, %v7712
    %7714 = vmatmul.f32.gmra.mxu0 %v7610
    %v7715 = vpop.f32.mrf.mxu0
    %v7716 = vadd.f32 0.0, %v7715
    %7717 = vmatmul.f32.gmra.mxu0 %v7613
    %v7718 = vpop.f32.mrf.mxu0
    %v7719 = vadd.f32 0.0, %v7718
    %7720 = vdwg.mxu0
    %s7721 = scalar_lea.vmem %s9, 384
    %v7722 = vld [vmem:[%s7721] sm:$0xff]
    %v7723 = vld [vmem:[%s7721 + $0x8] sm:$0xff]
    %v7724 = vld [vmem:[%s7721 + $0x10] sm:$0xff]
    %v7725 = vld [vmem:[%s7721 + $0x18] sm:$0xff]
    %v7726 = vld [vmem:[%s7721 + $0x20] sm:$0xff]
    %v7727 = vld [vmem:[%s7721 + $0x28] sm:$0xff]
    %v7728 = vld [vmem:[%s7721 + $0x30] sm:$0xff]
    %v7729 = vld [vmem:[%s7721 + $0x38] sm:$0xff]
    %v7730 = vld [vmem:[%s7721 + $0x40] sm:$0xff]
    %v7731 = vld [vmem:[%s7721 + $0x48] sm:$0xff]
    %v7732 = vld [vmem:[%s7721 + $0x50] sm:$0xff]
    %v7733 = vld [vmem:[%s7721 + $0x58] sm:$0xff]
    %v7735 = vsel %vm351, %v7633, 0
    %v7738 = vsel %vm351, %v7636, 0
    %v7741 = vsel %vm351, %v7639, 0
    %v7744 = vsel %vm351, %v7642, 0
    %v7747 = vsel %vm351, %v7645, 0
    %v7750 = vsel %vm351, %v7648, 0
    %v7753 = vsel %vm351, %v7651, 0
    %v7756 = vsel %vm351, %v7654, 0
    %v7759 = vsel %vm351, %v7657, 0
    %v7762 = vsel %vm351, %v7660, 0
    %v7765 = vsel %vm351, %v7663, 0
    %v7768 = vsel %vm351, %v7666, 0
    %7770 = vmatpush.msra.mxu0 0.0
    %7771 = vmatpush.msra.mxu0 0.0
    %7772 = vmatpush.msra.mxu0 0.0
    %7773 = vmatpush.msra.mxu0 0.0
    %7774 = vmatpush.msra.mxu0 0.0
    %7775 = vmatpush.msra.mxu0 0.0
    %7776 = vmatpush.msra.mxu0 0.0
    %7777 = vmatpush.msra.mxu0 0.0
    %7778 = vmatpush.msra.mxu0 0.0
    %7779 = vmatpush.msra.mxu0 0.0
    %7780 = vmatpush.msra.mxu0 0.0
    %7781 = vmatpush.msra.mxu0 0.0
    %7782 = vmatpush.msra.mxu0 %v7729
    %7783 = vmatpush.msra.mxu0 %v7728
    %7784 = vmatpush.msra.mxu0 %v7727
    %7785 = vmatpush.msra.mxu0 %v7726
    %7786 = vmatmul.f32.gmra.mxu0 %v7735
    %v7787 = vpop.f32.mrf.mxu0
    %v7788 = vadd.f32 0.0, %v7787
    %7789 = vmatmul.f32.gmra.mxu0 %v7738
    %v7790 = vpop.f32.mrf.mxu0
    %v7791 = vadd.f32 0.0, %v7790
    %7792 = vmatmul.f32.gmra.mxu0 %v7741
    %v7793 = vpop.f32.mrf.mxu0
    %v7794 = vadd.f32 0.0, %v7793
    %7795 = vmatmul.f32.gmra.mxu0 %v7744
    %v7796 = vpop.f32.mrf.mxu0
    %v7797 = vadd.f32 0.0, %v7796
    %7798 = vmatmul.f32.gmra.mxu0 %v7747
    %v7799 = vpop.f32.mrf.mxu0
    %v7800 = vadd.f32 0.0, %v7799
    %7801 = vmatmul.f32.gmra.mxu0 %v7750
    %v7802 = vpop.f32.mrf.mxu0
    %v7803 = vadd.f32 0.0, %v7802
    %7804 = vmatmul.f32.gmra.mxu0 %v7753
    %v7805 = vpop.f32.mrf.mxu0
    %v7806 = vadd.f32 0.0, %v7805
    %7807 = vmatmul.f32.gmra.mxu0 %v7756
    %v7808 = vpop.f32.mrf.mxu0
    %v7809 = vadd.f32 0.0, %v7808
    %7810 = vmatmul.f32.gmra.mxu0 %v7759
    %v7811 = vpop.f32.mrf.mxu0
    %v7812 = vadd.f32 0.0, %v7811
    %7813 = vmatmul.f32.gmra.mxu0 %v7762
    %v7814 = vpop.f32.mrf.mxu0
    %v7815 = vadd.f32 0.0, %v7814
    %7816 = vmatmul.f32.gmra.mxu0 %v7765
    %v7817 = vpop.f32.mrf.mxu0
    %v7818 = vadd.f32 0.0, %v7817
    %7819 = vmatmul.f32.gmra.mxu0 %v7768
    %v7820 = vpop.f32.mrf.mxu0
    %v7821 = vadd.f32 0.0, %v7820
    %7822 = vdwg.mxu0
    %7823 = vmatpush.msra.mxu0 0.0
    %7824 = vmatpush.msra.mxu0 0.0
    %7825 = vmatpush.msra.mxu0 0.0
    %7826 = vmatpush.msra.mxu0 0.0
    %7827 = vmatpush.msra.mxu0 0.0
    %7828 = vmatpush.msra.mxu0 0.0
    %7829 = vmatpush.msra.mxu0 0.0
    %7830 = vmatpush.msra.mxu0 0.0
    %7831 = vmatpush.msra.mxu0 0.0
    %7832 = vmatpush.msra.mxu0 0.0
    %7833 = vmatpush.msra.mxu0 0.0
    %7834 = vmatpush.msra.mxu0 0.0
    %7835 = vmatpush.msra.mxu0 %v7725
    %7836 = vmatpush.msra.mxu0 %v7724
    %7837 = vmatpush.msra.mxu0 %v7723
    %7838 = vmatpush.msra.mxu0 %v7722
    %7839 = vmatmul.f32.gmra.mxu0 %v7486
    %v7840 = vpop.f32.mrf.mxu0
    %v7841 = vadd.f32 %v7788, %v7840
    %7842 = vmatmul.f32.gmra.mxu0 %v7489
    %v7843 = vpop.f32.mrf.mxu0
    %v7844 = vadd.f32 %v7791, %v7843
    %7845 = vmatmul.f32.gmra.mxu0 %v7492
    %v7846 = vpop.f32.mrf.mxu0
    %v7847 = vadd.f32 %v7794, %v7846
    %7848 = vmatmul.f32.gmra.mxu0 %v7495
    %v7849 = vpop.f32.mrf.mxu0
    %v7850 = vadd.f32 %v7797, %v7849
    %7851 = vmatmul.f32.gmra.mxu0 %v7498
    %v7852 = vpop.f32.mrf.mxu0
    %v7853 = vadd.f32 %v7800, %v7852
    %7854 = vmatmul.f32.gmra.mxu0 %v7501
    %v7855 = vpop.f32.mrf.mxu0
    %v7856 = vadd.f32 %v7803, %v7855
    %7857 = vmatmul.f32.gmra.mxu0 %v7504
    %v7858 = vpop.f32.mrf.mxu0
    %v7859 = vadd.f32 %v7806, %v7858
    %7860 = vmatmul.f32.gmra.mxu0 %v7507
    %v7861 = vpop.f32.mrf.mxu0
    %v7862 = vadd.f32 %v7809, %v7861
    %7863 = vmatmul.f32.gmra.mxu0 %v7510
    %v7864 = vpop.f32.mrf.mxu0
    %v7865 = vadd.f32 %v7812, %v7864
    %7866 = vmatmul.f32.gmra.mxu0 %v7513
    %v7867 = vpop.f32.mrf.mxu0
    %v7868 = vadd.f32 %v7815, %v7867
    %7869 = vmatmul.f32.gmra.mxu0 %v7516
    %v7870 = vpop.f32.mrf.mxu0
    %v7871 = vadd.f32 %v7818, %v7870
    %7872 = vmatmul.f32.gmra.mxu0 %v7519
    %v7873 = vpop.f32.mrf.mxu0
    %v7874 = vadd.f32 %v7821, %v7873
    %7875 = vdwg.mxu0
    %v7877 = vsel %vm351, %v7686, 0
    %v7880 = vsel %vm351, %v7689, 0
    %v7883 = vsel %vm351, %v7692, 0
    %v7886 = vsel %vm351, %v7695, 0
    %v7889 = vsel %vm351, %v7698, 0
    %v7892 = vsel %vm351, %v7701, 0
    %v7895 = vsel %vm351, %v7704, 0
    %v7898 = vsel %vm351, %v7707, 0
    %v7901 = vsel %vm351, %v7710, 0
    %v7904 = vsel %vm351, %v7713, 0
    %v7907 = vsel %vm351, %v7716, 0
    %v7910 = vsel %vm351, %v7719, 0
    %7912 = vmatpush.msra.mxu0 0.0
    %7913 = vmatpush.msra.mxu0 0.0
    %7914 = vmatpush.msra.mxu0 0.0
    %7915 = vmatpush.msra.mxu0 0.0
    %7916 = vmatpush.msra.mxu0 0.0
    %7917 = vmatpush.msra.mxu0 0.0
    %7918 = vmatpush.msra.mxu0 0.0
    %7919 = vmatpush.msra.mxu0 0.0
    %7920 = vmatpush.msra.mxu0 0.0
    %7921 = vmatpush.msra.mxu0 0.0
    %7922 = vmatpush.msra.mxu0 0.0
    %7923 = vmatpush.msra.mxu0 0.0
    %7924 = vmatpush.msra.mxu0 %v7733
    %7925 = vmatpush.msra.mxu0 %v7732
    %7926 = vmatpush.msra.mxu0 %v7731
    %7927 = vmatpush.msra.mxu0 %v7730
    %7928 = vmatmul.f32.gmra.mxu0 %v7877
    %v7929 = vpop.f32.mrf.mxu0
    %v7930 = vadd.f32 0.0, %v7929
    %7931 = vmatmul.f32.gmra.mxu0 %v7880
    %v7932 = vpop.f32.mrf.mxu0
    %v7933 = vadd.f32 0.0, %v7932
    %7934 = vmatmul.f32.gmra.mxu0 %v7883
    %v7935 = vpop.f32.mrf.mxu0
    %v7936 = vadd.f32 0.0, %v7935
    %7937 = vmatmul.f32.gmra.mxu0 %v7886
    %v7938 = vpop.f32.mrf.mxu0
    %v7939 = vadd.f32 0.0, %v7938
    %7940 = vmatmul.f32.gmra.mxu0 %v7889
    %v7941 = vpop.f32.mrf.mxu0
    %v7942 = vadd.f32 0.0, %v7941
    %7943 = vmatmul.f32.gmra.mxu0 %v7892
    %v7944 = vpop.f32.mrf.mxu0
    %v7945 = vadd.f32 0.0, %v7944
    %7946 = vmatmul.f32.gmra.mxu0 %v7895
    %v7947 = vpop.f32.mrf.mxu0
    %v7948 = vadd.f32 0.0, %v7947
    %7949 = vmatmul.f32.gmra.mxu0 %v7898
    %v7950 = vpop.f32.mrf.mxu0
    %v7951 = vadd.f32 0.0, %v7950
    %7952 = vmatmul.f32.gmra.mxu0 %v7901
    %v7953 = vpop.f32.mrf.mxu0
    %v7954 = vadd.f32 0.0, %v7953
    %7955 = vmatmul.f32.gmra.mxu0 %v7904
    %v7956 = vpop.f32.mrf.mxu0
    %v7957 = vadd.f32 0.0, %v7956
    %7958 = vmatmul.f32.gmra.mxu0 %v7907
    %v7959 = vpop.f32.mrf.mxu0
    %v7960 = vadd.f32 0.0, %v7959
    %7961 = vmatmul.f32.gmra.mxu0 %v7910
    %v7962 = vpop.f32.mrf.mxu0
    %v7963 = vadd.f32 0.0, %v7962
    %7964 = vdwg.mxu0
    %v7965 = vadd.f32 %v7841, %v7930
    %v7966 = vadd.f32 %v7844, %v7933
    %v7967 = vadd.f32 %v7847, %v7936
    %v7968 = vadd.f32 %v7850, %v7939
    %v7969 = vadd.f32 %v7853, %v7942
    %v7970 = vadd.f32 %v7856, %v7945
    %v7971 = vadd.f32 %v7859, %v7948
    %v7972 = vadd.f32 %v7862, %v7951
    %v7973 = vadd.f32 %v7865, %v7954
    %v7974 = vadd.f32 %v7868, %v7957
    %v7975 = vadd.f32 %v7871, %v7960
    %v7976 = vadd.f32 %v7874, %v7963
    %s7977 = scalar_lea.vmem %s10, 4
    %v7978 = vld [vmem:[%s7977] sm:$0x1]
    %v7980 = vperm.slane %v7978, 0
    %v7982 = vadd.f32 %v7965, %v7980
    %v7983 = vadd.f32 %v7966, %v7980
    %v7984 = vadd.f32 %v7967, %v7980
    %v7985 = vadd.f32 %v7968, %v7980
    %v7986 = vadd.f32 %v7969, %v7980
    %v7987 = vadd.f32 %v7970, %v7980
    %v7988 = vadd.f32 %v7971, %v7980
    %v7989 = vadd.f32 %v7972, %v7980
    %v7990 = vadd.f32 %v7973, %v7980
    %v7991 = vadd.f32 %v7974, %v7980
    %v7992 = vadd.f32 %v7975, %v7980
    %v7993 = vadd.f32 %v7976, %v7980
    %v7994 = vadd.f32 %v7982, %v6988
    %v7995 = vadd.f32 %v7983, %v6989
    %v7996 = vadd.f32 %v7984, %v6990
    %v7997 = vadd.f32 %v7985, %v6991
    %v7998 = vadd.f32 %v7986, %v6992
    %v7999 = vadd.f32 %v7987, %v6993
    %v8000 = vadd.f32 %v7988, %v6994
    %v8001 = vadd.f32 %v7989, %v6995
    %v8002 = vadd.f32 %v7990, %v6996
    %v8003 = vadd.f32 %v7991, %v6997
    %v8004 = vadd.f32 %v7992, %v6998
    %v8005 = vadd.f32 %v7993, %v6999
    %s8006 = scalar_lea.vmem %s11, 4
    %v8007 = vld [vmem:[%s8006] sm:$0x1]
    %v8009 = vperm.slane %v8007, 0
    %v8011 = vmul.f32 %v7994, %v8009
    %v8012 = vmul.f32 %v7995, %v8009
    %v8013 = vmul.f32 %v7996, %v8009
    %v8014 = vmul.f32 %v7997, %v8009
    %v8015 = vmul.f32 %v7998, %v8009
    %v8016 = vmul.f32 %v7999, %v8009
    %v8017 = vmul.f32 %v8000, %v8009
    %v8018 = vmul.f32 %v8001, %v8009
    %v8019 = vmul.f32 %v8002, %v8009
    %v8020 = vmul.f32 %v8003, %v8009
    %v8021 = vmul.f32 %v8004, %v8009
    %v8022 = vmul.f32 %v8005, %v8009
    %s8023 = scalar_lea.vmem %s12, 4
    %v8024 = vld [vmem:[%s8023] sm:$0x1]
    %v8026 = vperm.slane %v8024, 0
    %v8028 = vadd.f32 %v8011, %v8026
    %v8029 = vadd.f32 %v8012, %v8026
    %v8030 = vadd.f32 %v8013, %v8026
    %v8031 = vadd.f32 %v8014, %v8026
    %v8032 = vadd.f32 %v8015, %v8026
    %v8033 = vadd.f32 %v8016, %v8026
    %v8034 = vadd.f32 %v8017, %v8026
    %v8035 = vadd.f32 %v8018, %v8026
    %v8036 = vadd.f32 %v8019, %v8026
    %v8037 = vadd.f32 %v8020, %v8026
    %v8038 = vadd.f32 %v8021, %v8026
    %v8039 = vadd.f32 %v8022, %v8026
    %s8040 = scalar_lea.vmem %s4, 160
    %v8041 = vld [vmem:[%s8040] sm:$0xff]
    %v8042 = vld [vmem:[%s8040 + $0x8] sm:$0xff]
    %v8043 = vld [vmem:[%s8040 + $0x10] sm:$0xff]
    %v8044 = vld [vmem:[%s8040 + $0x18] sm:$0xff]
    %s8045 = scalar_lea.vmem %s5, 160
    %v8046 = vld [vmem:[%s8045] sm:$0xff]
    %v8047 = vld [vmem:[%s8045 + $0x8] sm:$0xff]
    %v8048 = vld [vmem:[%s8045 + $0x10] sm:$0xff]
    %v8049 = vld [vmem:[%s8045 + $0x18] sm:$0xff]
    %v8051 = vsel %vm351, %v8032, 0
    %v8054 = vsel %vm351, %v8033, 0
    %v8057 = vsel %vm351, %v8034, 0
    %v8060 = vsel %vm351, %v8035, 0
    %v8063 = vsel %vm351, %v8036, 0
    %v8066 = vsel %vm351, %v8037, 0
    %v8069 = vsel %vm351, %v8038, 0
    %v8072 = vsel %vm351, %v8039, 0
    %8074 = vmatpush.msra.mxu0 0.0
    %8075 = vmatpush.msra.mxu0 0.0
    %8076 = vmatpush.msra.mxu0 0.0
    %8077 = vmatpush.msra.mxu0 0.0
    %8078 = vmatpush.msra.mxu0 0.0
    %8079 = vmatpush.msra.mxu0 0.0
    %8080 = vmatpush.msra.mxu0 0.0
    %8081 = vmatpush.msra.mxu0 0.0
    %8082 = vmatpush.msra.mxu0 0.0
    %8083 = vmatpush.msra.mxu0 0.0
    %8084 = vmatpush.msra.mxu0 0.0
    %8085 = vmatpush.msra.mxu0 0.0
    %8086 = vmatpush.msra.mxu0 %v8049
    %8087 = vmatpush.msra.mxu0 %v8048
    %8088 = vmatpush.msra.mxu0 %v8047
    %8089 = vmatpush.msra.mxu0 %v8046
    %8090 = vmatmul.f32.gmra.mxu0 %v8051
    %v8091 = vpop.f32.mrf.mxu0
    %v8092 = vadd.f32 0.0, %v8091
    %8093 = vmatmul.f32.gmra.mxu0 %v8054
    %v8094 = vpop.f32.mrf.mxu0
    %v8095 = vadd.f32 0.0, %v8094
    %8096 = vmatmul.f32.gmra.mxu0 %v8057
    %v8097 = vpop.f32.mrf.mxu0
    %v8098 = vadd.f32 0.0, %v8097
    %8099 = vmatmul.f32.gmra.mxu0 %v8060
    %v8100 = vpop.f32.mrf.mxu0
    %v8101 = vadd.f32 0.0, %v8100
    %8102 = vmatmul.f32.gmra.mxu0 %v8063
    %v8103 = vpop.f32.mrf.mxu0
    %v8104 = vadd.f32 0.0, %v8103
    %8105 = vmatmul.f32.gmra.mxu0 %v8066
    %v8106 = vpop.f32.mrf.mxu0
    %v8107 = vadd.f32 0.0, %v8106
    %8108 = vmatmul.f32.gmra.mxu0 %v8069
    %v8109 = vpop.f32.mrf.mxu0
    %v8110 = vadd.f32 0.0, %v8109
    %8111 = vmatmul.f32.gmra.mxu0 %v8072
    %v8112 = vpop.f32.mrf.mxu0
    %v8113 = vadd.f32 0.0, %v8112
    %8114 = vdwg.mxu0
    %v8116 = vsel %vm351, %v8028, 0
    %v8119 = vsel %vm351, %v8029, 0
    %v8122 = vsel %vm351, %v8030, 0
    %v8125 = vsel %vm351, %v8031, 0
    %8127 = vmatpush.msra.mxu0 0.0
    %8128 = vmatpush.msra.mxu0 0.0
    %8129 = vmatpush.msra.mxu0 0.0
    %8130 = vmatpush.msra.mxu0 0.0
    %8131 = vmatpush.msra.mxu0 0.0
    %8132 = vmatpush.msra.mxu0 0.0
    %8133 = vmatpush.msra.mxu0 0.0
    %8134 = vmatpush.msra.mxu0 0.0
    %8135 = vmatpush.msra.mxu0 0.0
    %8136 = vmatpush.msra.mxu0 0.0
    %8137 = vmatpush.msra.mxu0 0.0
    %8138 = vmatpush.msra.mxu0 0.0
    %8139 = vmatpush.msra.mxu0 %v8044
    %8140 = vmatpush.msra.mxu0 %v8043
    %8141 = vmatpush.msra.mxu0 %v8042
    %8142 = vmatpush.msra.mxu0 %v8041
    %8143 = vmatmul.f32.gmra.mxu0 %v8116
    %v8144 = vpop.f32.mrf.mxu0
    %v8145 = vadd.f32 %v8092, %v8144
    %8146 = vmatmul.f32.gmra.mxu0 %v8119
    %v8147 = vpop.f32.mrf.mxu0
    %v8148 = vadd.f32 %v8095, %v8147
    %8149 = vmatmul.f32.gmra.mxu0 %v8122
    %v8150 = vpop.f32.mrf.mxu0
    %v8151 = vadd.f32 %v8098, %v8150
    %8152 = vmatmul.f32.gmra.mxu0 %v8125
    %v8153 = vpop.f32.mrf.mxu0
    %v8154 = vadd.f32 %v8101, %v8153
    %8155 = vmatmul.f32.gmra.mxu0 %v8051
    %v8156 = vpop.f32.mrf.mxu0
    %v8157 = vadd.f32 %v8104, %v8156
    %8158 = vmatmul.f32.gmra.mxu0 %v8054
    %v8159 = vpop.f32.mrf.mxu0
    %v8160 = vadd.f32 %v8107, %v8159
    %8161 = vmatmul.f32.gmra.mxu0 %v8057
    %v8162 = vpop.f32.mrf.mxu0
    %v8163 = vadd.f32 %v8110, %v8162
    %8164 = vmatmul.f32.gmra.mxu0 %v8060
    %v8165 = vpop.f32.mrf.mxu0
    %v8166 = vadd.f32 %v8113, %v8165
    %8167 = vdwg.mxu0
    %s8168 = scalar_lea.vmem %s6, 5
    %v8169 = vld [vmem:[%s8168] sm:$0x1]
    %v8171 = vperm.slane %v8169, 0
    %v8173 = vadd.f32 %v8145, %v8171
    %v8174 = vadd.f32 %v8148, %v8171
    %v8175 = vadd.f32 %v8151, %v8171
    %v8176 = vadd.f32 %v8154, %v8171
    %v8177 = vadd.f32 %v8157, %v8171
    %v8178 = vadd.f32 %v8160, %v8171
    %v8179 = vadd.f32 %v8163, %v8171
    %v8180 = vadd.f32 %v8166, %v8171
    %v8181 = vtanh.pop %v8173
    %v8182 = vtanh.pop %v8174
    %v8183 = vtanh.pop %v8175
    %v8184 = vtanh.pop %v8176
    %v8185 = vtanh.pop %v8177
    %v8186 = vtanh.pop %v8178
    %v8187 = vtanh.pop %v8179
    %v8188 = vtanh.pop %v8180
    %v8189 = vxor.u32 %v8173, 2147483648
    %v8190 = vxor.u32 %v8174, 2147483648
    %v8191 = vxor.u32 %v8175, 2147483648
    %v8192 = vxor.u32 %v8176, 2147483648
    %v8193 = vxor.u32 %v8177, 2147483648
    %v8194 = vxor.u32 %v8178, 2147483648
    %v8195 = vxor.u32 %v8179, 2147483648
    %v8196 = vxor.u32 %v8180, 2147483648
    %v8197 = vmul.f32 %v8189, 1.442695
    %v8198 = vpow.pop %v8197
    %v8199 = vmul.f32 %v8190, 1.442695
    %v8200 = vpow.pop %v8199
    %v8201 = vmul.f32 %v8191, 1.442695
    %v8202 = vpow.pop %v8201
    %v8203 = vmul.f32 %v8192, 1.442695
    %v8204 = vpow.pop %v8203
    %v8205 = vmul.f32 %v8193, 1.442695
    %v8206 = vpow.pop %v8205
    %v8207 = vmul.f32 %v8194, 1.442695
    %v8208 = vpow.pop %v8207
    %v8209 = vmul.f32 %v8195, 1.442695
    %v8210 = vpow.pop %v8209
    %v8211 = vmul.f32 %v8196, 1.442695
    %v8212 = vpow.pop %v8211
    %v8213 = vadd.f32 %v8198, 1.0
    %v8214 = vadd.f32 %v8200, 1.0
    %v8215 = vadd.f32 %v8202, 1.0
    %v8216 = vadd.f32 %v8204, 1.0
    %v8217 = vadd.f32 %v8206, 1.0
    %v8218 = vadd.f32 %v8208, 1.0
    %v8219 = vadd.f32 %v8210, 1.0
    %v8220 = vadd.f32 %v8212, 1.0
    %v8221 = vrcp.pop %v8213
    %v8222 = vmul.f32 %v8213, %v8221
    %v8223 = vsub.f32 1.0, %v8222
    %v8224 = vmul.f32 %v8221, %v8223
    %v8225 = vadd.f32 %v8221, %v8224
    %vm8226 = vweird.f32 %v8213
    %vm8227 = vweird.f32 %v8221
    %vm8228 = vmor %vm8226, %vm8227
    %v8229 = vsel %vm8228, %v8221, %v8225
    %v8230 = vand.u32 2147483647, %v8213
    %vm8231 = vcmp.eq.f32.partialorder %v8230, 8.507059e+37
    %v8232 = vand.u32 %v8213, 2147483648
    %v8233 = vor.u32 1.1754944e-38, %v8232
    %v8234 = vsel %vm8231, %v8233, %v8229
    %v8235 = vmul.f32 1.0, %v8234
    %v8236 = vrcp.pop %v8214
    %v8237 = vmul.f32 %v8214, %v8236
    %v8238 = vsub.f32 1.0, %v8237
    %v8239 = vmul.f32 %v8236, %v8238
    %v8240 = vadd.f32 %v8236, %v8239
    %vm8241 = vweird.f32 %v8214
    %vm8242 = vweird.f32 %v8236
    %vm8243 = vmor %vm8241, %vm8242
    %v8244 = vsel %vm8243, %v8236, %v8240
    %v8245 = vand.u32 2147483647, %v8214
    %vm8246 = vcmp.eq.f32.partialorder %v8245, 8.507059e+37
    %v8247 = vand.u32 %v8214, 2147483648
    %v8248 = vor.u32 1.1754944e-38, %v8247
    %v8249 = vsel %vm8246, %v8248, %v8244
    %v8250 = vmul.f32 1.0, %v8249
    %v8251 = vrcp.pop %v8215
    %v8252 = vmul.f32 %v8215, %v8251
    %v8253 = vsub.f32 1.0, %v8252
    %v8254 = vmul.f32 %v8251, %v8253
    %v8255 = vadd.f32 %v8251, %v8254
    %vm8256 = vweird.f32 %v8215
    %vm8257 = vweird.f32 %v8251
    %vm8258 = vmor %vm8256, %vm8257
    %v8259 = vsel %vm8258, %v8251, %v8255
    %v8260 = vand.u32 2147483647, %v8215
    %vm8261 = vcmp.eq.f32.partialorder %v8260, 8.507059e+37
    %v8262 = vand.u32 %v8215, 2147483648
    %v8263 = vor.u32 1.1754944e-38, %v8262
    %v8264 = vsel %vm8261, %v8263, %v8259
    %v8265 = vmul.f32 1.0, %v8264
    %v8266 = vrcp.pop %v8216
    %v8267 = vmul.f32 %v8216, %v8266
    %v8268 = vsub.f32 1.0, %v8267
    %v8269 = vmul.f32 %v8266, %v8268
    %v8270 = vadd.f32 %v8266, %v8269
    %vm8271 = vweird.f32 %v8216
    %vm8272 = vweird.f32 %v8266
    %vm8273 = vmor %vm8271, %vm8272
    %v8274 = vsel %vm8273, %v8266, %v8270
    %v8275 = vand.u32 2147483647, %v8216
    %vm8276 = vcmp.eq.f32.partialorder %v8275, 8.507059e+37
    %v8277 = vand.u32 %v8216, 2147483648
    %v8278 = vor.u32 1.1754944e-38, %v8277
    %v8279 = vsel %vm8276, %v8278, %v8274
    %v8280 = vmul.f32 1.0, %v8279
    %v8281 = vrcp.pop %v8217
    %v8282 = vmul.f32 %v8217, %v8281
    %v8283 = vsub.f32 1.0, %v8282
    %v8284 = vmul.f32 %v8281, %v8283
    %v8285 = vadd.f32 %v8281, %v8284
    %vm8286 = vweird.f32 %v8217
    %vm8287 = vweird.f32 %v8281
    %vm8288 = vmor %vm8286, %vm8287
    %v8289 = vsel %vm8288, %v8281, %v8285
    %v8290 = vand.u32 2147483647, %v8217
    %vm8291 = vcmp.eq.f32.partialorder %v8290, 8.507059e+37
    %v8292 = vand.u32 %v8217, 2147483648
    %v8293 = vor.u32 1.1754944e-38, %v8292
    %v8294 = vsel %vm8291, %v8293, %v8289
    %v8295 = vmul.f32 1.0, %v8294
    %v8296 = vrcp.pop %v8218
    %v8297 = vmul.f32 %v8218, %v8296
    %v8298 = vsub.f32 1.0, %v8297
    %v8299 = vmul.f32 %v8296, %v8298
    %v8300 = vadd.f32 %v8296, %v8299
    %vm8301 = vweird.f32 %v8218
    %vm8302 = vweird.f32 %v8296
    %vm8303 = vmor %vm8301, %vm8302
    %v8304 = vsel %vm8303, %v8296, %v8300
    %v8305 = vand.u32 2147483647, %v8218
    %vm8306 = vcmp.eq.f32.partialorder %v8305, 8.507059e+37
    %v8307 = vand.u32 %v8218, 2147483648
    %v8308 = vor.u32 1.1754944e-38, %v8307
    %v8309 = vsel %vm8306, %v8308, %v8304
    %v8310 = vmul.f32 1.0, %v8309
    %v8311 = vrcp.pop %v8219
    %v8312 = vmul.f32 %v8219, %v8311
    %v8313 = vsub.f32 1.0, %v8312
    %v8314 = vmul.f32 %v8311, %v8313
    %v8315 = vadd.f32 %v8311, %v8314
    %vm8316 = vweird.f32 %v8219
    %vm8317 = vweird.f32 %v8311
    %vm8318 = vmor %vm8316, %vm8317
    %v8319 = vsel %vm8318, %v8311, %v8315
    %v8320 = vand.u32 2147483647, %v8219
    %vm8321 = vcmp.eq.f32.partialorder %v8320, 8.507059e+37
    %v8322 = vand.u32 %v8219, 2147483648
    %v8323 = vor.u32 1.1754944e-38, %v8322
    %v8324 = vsel %vm8321, %v8323, %v8319
    %v8325 = vmul.f32 1.0, %v8324
    %v8326 = vrcp.pop %v8220
    %v8327 = vmul.f32 %v8220, %v8326
    %v8328 = vsub.f32 1.0, %v8327
    %v8329 = vmul.f32 %v8326, %v8328
    %v8330 = vadd.f32 %v8326, %v8329
    %vm8331 = vweird.f32 %v8220
    %vm8332 = vweird.f32 %v8326
    %vm8333 = vmor %vm8331, %vm8332
    %v8334 = vsel %vm8333, %v8326, %v8330
    %v8335 = vand.u32 2147483647, %v8220
    %vm8336 = vcmp.eq.f32.partialorder %v8335, 8.507059e+37
    %v8337 = vand.u32 %v8220, 2147483648
    %v8338 = vor.u32 1.1754944e-38, %v8337
    %v8339 = vsel %vm8336, %v8338, %v8334
    %v8340 = vmul.f32 1.0, %v8339
    %8349 = vrot.lane.b32.xlu0 %v8235, 96
    %v8350 = vpop.permute.xlu0 %8349
    %8351 = vrot.lane.b32.xlu0 %v8250, 96
    %v8352 = vpop.permute.xlu0 %8351
    %8353 = vrot.lane.b32.xlu0 %v8265, 96
    %v8354 = vpop.permute.xlu0 %8353
    %8355 = vrot.lane.b32.xlu0 %v8280, 96
    %v8356 = vpop.permute.xlu0 %8355
    %8357 = vrot.lane.b32.xlu0 %v8295, 96
    %v8358 = vpop.permute.xlu0 %8357
    %8359 = vrot.lane.b32.xlu0 %v8310, 96
    %v8360 = vpop.permute.xlu0 %8359
    %8361 = vrot.lane.b32.xlu0 %v8325, 96
    %v8362 = vpop.permute.xlu0 %8361
    %8363 = vrot.lane.b32.xlu0 %v8340, 96
    %v8364 = vpop.permute.xlu0 %8363
    %v8373 = vmul.f32 %v8181, %v8350
    %v8374 = vmul.f32 %v8182, %v8352
    %v8375 = vmul.f32 %v8183, %v8354
    %v8376 = vmul.f32 %v8184, %v8356
    %v8377 = vmul.f32 %v8185, %v8358
    %v8378 = vmul.f32 %v8186, %v8360
    %v8379 = vmul.f32 %v8187, %v8362
    %v8380 = vmul.f32 %v8188, %v8364
    %s8381 = scalar_lea.vmem %s7, 160
    %v8382 = vld [vmem:[%s8381] sm:$0xff]
    %v8383 = vld [vmem:[%s8381 + $0x8] sm:$0xff]
    %v8384 = vld [vmem:[%s8381 + $0x10] sm:$0xff]
    %v8385 = vld [vmem:[%s8381 + $0x18] sm:$0xff]
    %s8386 = scalar_lea.vmem %s8, 5
    %v8387 = vld [vmem:[%s8386] sm:$0x1]
    %v8389 = vperm.slane %v8387, 0
    %v8392 = vsel %vm351, %v8373, 0
    %v8395 = vsel %vm351, %v8374, 0
    %v8398 = vsel %vm351, %v8375, 0
    %v8401 = vsel %vm351, %v8376, 0
    %v8404 = vsel %vm351, %v8377, 0
    %v8407 = vsel %vm351, %v8378, 0
    %v8410 = vsel %vm351, %v8379, 0
    %v8413 = vsel %vm351, %v8380, 0
    %8415 = vmatpush.msra.mxu0 0.0
    %8416 = vmatpush.msra.mxu0 0.0
    %8417 = vmatpush.msra.mxu0 0.0
    %8418 = vmatpush.msra.mxu0 0.0
    %8419 = vmatpush.msra.mxu0 0.0
    %8420 = vmatpush.msra.mxu0 0.0
    %8421 = vmatpush.msra.mxu0 0.0
    %8422 = vmatpush.msra.mxu0 0.0
    %8423 = vmatpush.msra.mxu0 0.0
    %8424 = vmatpush.msra.mxu0 0.0
    %8425 = vmatpush.msra.mxu0 0.0
    %8426 = vmatpush.msra.mxu0 0.0
    %8427 = vmatpush.msra.mxu0 %v8385
    %8428 = vmatpush.msra.mxu0 %v8384
    %8429 = vmatpush.msra.mxu0 %v8383
    %8430 = vmatpush.msra.mxu0 %v8382
    %8431 = vmatmul.f32.gmra.mxu0 %v8392
    %v8432 = vpop.f32.mrf.mxu0
    %8433 = vmatmul.f32.gmra.mxu0 %v8395
    %v8434 = vpop.f32.mrf.mxu0
    %8435 = vmatmul.f32.gmra.mxu0 %v8398
    %v8436 = vpop.f32.mrf.mxu0
    %8437 = vmatmul.f32.gmra.mxu0 %v8401
    %v8438 = vpop.f32.mrf.mxu0
    %8439 = vmatmul.f32.gmra.mxu0 %v8404
    %v8440 = vpop.f32.mrf.mxu0
    %8441 = vmatmul.f32.gmra.mxu0 %v8407
    %v8442 = vpop.f32.mrf.mxu0
    %8443 = vmatmul.f32.gmra.mxu0 %v8410
    %v8444 = vpop.f32.mrf.mxu0
    %v8445 = vadd.f32 %v8389, %v8444
    %8446 = vmatmul.f32.gmra.mxu0 %v8413
    %v8447 = vpop.f32.mrf.mxu0
    %v8448 = vadd.f32 %v8389, %v8447
    %8449 = vdwg.mxu0
    %v8450 = vadd.f32 %v8445, %v7564
    %v8451 = vadd.f32 %v8448, %v7565
    %v8452 = vld [vmem:[%s1] sm:$0xff]
    %v8453 = vld [vmem:[%s1 + $0x10] sm:$0xff]
    %v8454 = vld [vmem:[%s1 + $0x20] sm:$0xff]
    %v8455 = vld [vmem:[%s1 + $0x30] sm:$0xff]
    %v8456 = vld [vmem:[%s1 + $0x40] sm:$0xff]
    %v8457 = vld [vmem:[%s1 + $0x50] sm:$0xff]
    %v8458 = vld [vmem:[%s1 + $0x60] sm:$0xff]
    %v8459 = vld [vmem:[%s1 + $0x70] sm:$0xff]
    %v8461 = vsel %vm1431, %v8452, 0
    %v8464 = vsel %vm1431, %v8453, 0
    %v8467 = vsel %vm1431, %v8454, 0
    %v8470 = vsel %vm1431, %v8455, 0
    %v8473 = vsel %vm1431, %v8456, 0
    %v8476 = vsel %vm1431, %v8457, 0
    %v8479 = vsel %vm1431, %v8458, 0
    %v8482 = vsel %vm1431, %v8459, 0
    %8484 = vmatpush.msra.mxu0 0.0
    %8485 = vmatpush.msra.mxu0 0.0
    %8486 = vmatpush.msra.mxu0 0.0
    %8487 = vmatpush.msra.mxu0 0.0
    %8488 = vmatpush.msra.mxu0 0.0
    %8489 = vmatpush.msra.mxu0 0.0
    %8490 = vmatpush.msra.mxu0 0.0
    %8491 = vmatpush.msra.mxu0 0.0
    %8492 = vmatpush.msra.mxu0 %v8380
    %8493 = vmatpush.msra.mxu0 %v8379
    %8494 = vmatpush.msra.mxu0 %v8378
    %8495 = vmatpush.msra.mxu0 %v8377
    %8496 = vmatpush.msra.mxu0 %v8376
    %8497 = vmatpush.msra.mxu0 %v8375
    %8498 = vmatpush.msra.mxu0 %v8374
    %8499 = vmatpush.msra.mxu0 %v8373
    %8500 = vmatmul.f32.gmra.mxu0 %v8461
    %v8501 = vpop.f32.mrf.mxu0
    %v8502 = vadd.f32 0.0, %v8501
    %8503 = vmatmul.f32.gmra.mxu0 %v8464
    %v8504 = vpop.f32.mrf.mxu0
    %v8505 = vadd.f32 0.0, %v8504
    %8506 = vmatmul.f32.gmra.mxu0 %v8467
    %v8507 = vpop.f32.mrf.mxu0
    %v8508 = vadd.f32 0.0, %v8507
    %8509 = vmatmul.f32.gmra.mxu0 %v8470
    %v8510 = vpop.f32.mrf.mxu0
    %v8511 = vadd.f32 0.0, %v8510
    %8512 = vmatmul.f32.gmra.mxu0 %v8473
    %v8513 = vpop.f32.mrf.mxu0
    %v8514 = vadd.f32 0.0, %v8513
    %8515 = vmatmul.f32.gmra.mxu0 %v8476
    %v8516 = vpop.f32.mrf.mxu0
    %v8517 = vadd.f32 0.0, %v8516
    %8518 = vmatmul.f32.gmra.mxu0 %v8479
    %v8519 = vpop.f32.mrf.mxu0
    %v8520 = vadd.f32 0.0, %v8519
    %8521 = vmatmul.f32.gmra.mxu0 %v8482
    %v8522 = vpop.f32.mrf.mxu0
    %v8523 = vadd.f32 0.0, %v8522
    %8524 = vdwg.mxu0
    %8525 = vmatpush.msra.mxu0 0.0
    %8526 = vmatpush.msra.mxu0 0.0
    %8527 = vmatpush.msra.mxu0 0.0
    %8528 = vmatpush.msra.mxu0 0.0
    %8529 = vmatpush.msra.mxu0 0.0
    %8530 = vmatpush.msra.mxu0 0.0
    %8531 = vmatpush.msra.mxu0 0.0
    %8532 = vmatpush.msra.mxu0 0.0
    %8533 = vmatpush.msra.mxu0 %v8523
    %8534 = vmatpush.msra.mxu0 %v8520
    %8535 = vmatpush.msra.mxu0 %v8517
    %8536 = vmatpush.msra.mxu0 %v8514
    %8537 = vmatpush.msra.mxu0 %v8511
    %8538 = vmatpush.msra.mxu0 %v8508
    %8539 = vmatpush.msra.mxu0 %v8505
    %8540 = vmatpush.msra.mxu0 %v8502
    %8541 = vmatmul.f32.gmra.mxu0 %v8461
    %v8542 = vpop.f32.mrf.mxu0
    %v8543 = vadd.f32 0.0, %v8542
    %8544 = vmatmul.f32.gmra.mxu0 %v8464
    %v8545 = vpop.f32.mrf.mxu0
    %v8546 = vadd.f32 0.0, %v8545
    %8547 = vmatmul.f32.gmra.mxu0 %v8467
    %v8548 = vpop.f32.mrf.mxu0
    %v8549 = vadd.f32 0.0, %v8548
    %8550 = vmatmul.f32.gmra.mxu0 %v8470
    %v8551 = vpop.f32.mrf.mxu0
    %v8552 = vadd.f32 0.0, %v8551
    %8553 = vmatmul.f32.gmra.mxu0 %v8473
    %v8554 = vpop.f32.mrf.mxu0
    %v8555 = vadd.f32 0.0, %v8554
    %8556 = vmatmul.f32.gmra.mxu0 %v8476
    %v8557 = vpop.f32.mrf.mxu0
    %v8558 = vadd.f32 0.0, %v8557
    %8559 = vmatmul.f32.gmra.mxu0 %v8479
    %v8560 = vpop.f32.mrf.mxu0
    %v8561 = vadd.f32 0.0, %v8560
    %8562 = vmatmul.f32.gmra.mxu0 %v8482
    %v8563 = vpop.f32.mrf.mxu0
    %v8564 = vadd.f32 0.0, %v8563
    %8565 = vdwg.mxu0
    %s8566 = scalar_lea.vmem %s9, 480
    %v8567 = vld [vmem:[%s8566] sm:$0xff]
    %v8568 = vld [vmem:[%s8566 + $0x8] sm:$0xff]
    %v8569 = vld [vmem:[%s8566 + $0x10] sm:$0xff]
    %v8570 = vld [vmem:[%s8566 + $0x18] sm:$0xff]
    %v8571 = vld [vmem:[%s8566 + $0x20] sm:$0xff]
    %v8572 = vld [vmem:[%s8566 + $0x28] sm:$0xff]
    %v8573 = vld [vmem:[%s8566 + $0x30] sm:$0xff]
    %v8574 = vld [vmem:[%s8566 + $0x38] sm:$0xff]
    %v8575 = vld [vmem:[%s8566 + $0x40] sm:$0xff]
    %v8576 = vld [vmem:[%s8566 + $0x48] sm:$0xff]
    %v8577 = vld [vmem:[%s8566 + $0x50] sm:$0xff]
    %v8578 = vld [vmem:[%s8566 + $0x58] sm:$0xff]
    %v8580 = vsel %vm351, %v8502, 0
    %v8583 = vsel %vm351, %v8505, 0
    %v8586 = vsel %vm351, %v8508, 0
    %v8589 = vsel %vm351, %v8511, 0
    %v8592 = vsel %vm351, %v8514, 0
    %v8595 = vsel %vm351, %v8517, 0
    %v8598 = vsel %vm351, %v8520, 0
    %v8601 = vsel %vm351, %v8523, 0
    %8603 = vmatpush.msra.mxu0 0.0
    %8604 = vmatpush.msra.mxu0 0.0
    %8605 = vmatpush.msra.mxu0 0.0
    %8606 = vmatpush.msra.mxu0 0.0
    %8607 = vmatpush.msra.mxu0 0.0
    %8608 = vmatpush.msra.mxu0 0.0
    %8609 = vmatpush.msra.mxu0 0.0
    %8610 = vmatpush.msra.mxu0 0.0
    %8611 = vmatpush.msra.mxu0 0.0
    %8612 = vmatpush.msra.mxu0 0.0
    %8613 = vmatpush.msra.mxu0 0.0
    %8614 = vmatpush.msra.mxu0 0.0
    %8615 = vmatpush.msra.mxu0 %v8574
    %8616 = vmatpush.msra.mxu0 %v8573
    %8617 = vmatpush.msra.mxu0 %v8572
    %8618 = vmatpush.msra.mxu0 %v8571
    %8619 = vmatmul.f32.gmra.mxu0 %v8580
    %v8620 = vpop.f32.mrf.mxu0
    %v8621 = vadd.f32 0.0, %v8620
    %8622 = vmatmul.f32.gmra.mxu0 %v8583
    %v8623 = vpop.f32.mrf.mxu0
    %v8624 = vadd.f32 0.0, %v8623
    %8625 = vmatmul.f32.gmra.mxu0 %v8586
    %v8626 = vpop.f32.mrf.mxu0
    %v8627 = vadd.f32 0.0, %v8626
    %8628 = vmatmul.f32.gmra.mxu0 %v8589
    %v8629 = vpop.f32.mrf.mxu0
    %v8630 = vadd.f32 0.0, %v8629
    %8631 = vmatmul.f32.gmra.mxu0 %v8592
    %v8632 = vpop.f32.mrf.mxu0
    %v8633 = vadd.f32 0.0, %v8632
    %8634 = vmatmul.f32.gmra.mxu0 %v8595
    %v8635 = vpop.f32.mrf.mxu0
    %v8636 = vadd.f32 0.0, %v8635
    %8637 = vmatmul.f32.gmra.mxu0 %v8598
    %v8638 = vpop.f32.mrf.mxu0
    %v8639 = vadd.f32 0.0, %v8638
    %8640 = vmatmul.f32.gmra.mxu0 %v8601
    %v8641 = vpop.f32.mrf.mxu0
    %v8642 = vadd.f32 0.0, %v8641
    %8643 = vdwg.mxu0
    %8644 = vmatpush.msra.mxu0 0.0
    %8645 = vmatpush.msra.mxu0 0.0
    %8646 = vmatpush.msra.mxu0 0.0
    %8647 = vmatpush.msra.mxu0 0.0
    %8648 = vmatpush.msra.mxu0 0.0
    %8649 = vmatpush.msra.mxu0 0.0
    %8650 = vmatpush.msra.mxu0 0.0
    %8651 = vmatpush.msra.mxu0 0.0
    %8652 = vmatpush.msra.mxu0 0.0
    %8653 = vmatpush.msra.mxu0 0.0
    %8654 = vmatpush.msra.mxu0 0.0
    %8655 = vmatpush.msra.mxu0 0.0
    %8656 = vmatpush.msra.mxu0 %v8570
    %8657 = vmatpush.msra.mxu0 %v8569
    %8658 = vmatpush.msra.mxu0 %v8568
    %8659 = vmatpush.msra.mxu0 %v8567
    %8660 = vmatmul.f32.gmra.mxu0 %v8392
    %v8661 = vpop.f32.mrf.mxu0
    %v8662 = vadd.f32 %v8621, %v8661
    %8663 = vmatmul.f32.gmra.mxu0 %v8395
    %v8664 = vpop.f32.mrf.mxu0
    %v8665 = vadd.f32 %v8624, %v8664
    %8666 = vmatmul.f32.gmra.mxu0 %v8398
    %v8667 = vpop.f32.mrf.mxu0
    %v8668 = vadd.f32 %v8627, %v8667
    %8669 = vmatmul.f32.gmra.mxu0 %v8401
    %v8670 = vpop.f32.mrf.mxu0
    %v8671 = vadd.f32 %v8630, %v8670
    %8672 = vmatmul.f32.gmra.mxu0 %v8404
    %v8673 = vpop.f32.mrf.mxu0
    %v8674 = vadd.f32 %v8633, %v8673
    %8675 = vmatmul.f32.gmra.mxu0 %v8407
    %v8676 = vpop.f32.mrf.mxu0
    %v8677 = vadd.f32 %v8636, %v8676
    %8678 = vmatmul.f32.gmra.mxu0 %v8410
    %v8679 = vpop.f32.mrf.mxu0
    %v8680 = vadd.f32 %v8639, %v8679
    %8681 = vmatmul.f32.gmra.mxu0 %v8413
    %v8682 = vpop.f32.mrf.mxu0
    %v8683 = vadd.f32 %v8642, %v8682
    %8684 = vdwg.mxu0
    %v8686 = vsel %vm351, %v8543, 0
    %v8689 = vsel %vm351, %v8546, 0
    %v8692 = vsel %vm351, %v8549, 0
    %v8695 = vsel %vm351, %v8552, 0
    %v8698 = vsel %vm351, %v8555, 0
    %v8701 = vsel %vm351, %v8558, 0
    %v8704 = vsel %vm351, %v8561, 0
    %v8707 = vsel %vm351, %v8564, 0
    %8709 = vmatpush.msra.mxu0 0.0
    %8710 = vmatpush.msra.mxu0 0.0
    %8711 = vmatpush.msra.mxu0 0.0
    %8712 = vmatpush.msra.mxu0 0.0
    %8713 = vmatpush.msra.mxu0 0.0
    %8714 = vmatpush.msra.mxu0 0.0
    %8715 = vmatpush.msra.mxu0 0.0
    %8716 = vmatpush.msra.mxu0 0.0
    %8717 = vmatpush.msra.mxu0 0.0
    %8718 = vmatpush.msra.mxu0 0.0
    %8719 = vmatpush.msra.mxu0 0.0
    %8720 = vmatpush.msra.mxu0 0.0
    %8721 = vmatpush.msra.mxu0 %v8578
    %8722 = vmatpush.msra.mxu0 %v8577
    %8723 = vmatpush.msra.mxu0 %v8576
    %8724 = vmatpush.msra.mxu0 %v8575
    %8725 = vmatmul.f32.gmra.mxu0 %v8686
    %v8726 = vpop.f32.mrf.mxu0
    %v8727 = vadd.f32 0.0, %v8726
    %8728 = vmatmul.f32.gmra.mxu0 %v8689
    %v8729 = vpop.f32.mrf.mxu0
    %v8730 = vadd.f32 0.0, %v8729
    %8731 = vmatmul.f32.gmra.mxu0 %v8692
    %v8732 = vpop.f32.mrf.mxu0
    %v8733 = vadd.f32 0.0, %v8732
    %8734 = vmatmul.f32.gmra.mxu0 %v8695
    %v8735 = vpop.f32.mrf.mxu0
    %v8736 = vadd.f32 0.0, %v8735
    %8737 = vmatmul.f32.gmra.mxu0 %v8698
    %v8738 = vpop.f32.mrf.mxu0
    %v8739 = vadd.f32 0.0, %v8738
    %8740 = vmatmul.f32.gmra.mxu0 %v8701
    %v8741 = vpop.f32.mrf.mxu0
    %v8742 = vadd.f32 0.0, %v8741
    %8743 = vmatmul.f32.gmra.mxu0 %v8704
    %v8744 = vpop.f32.mrf.mxu0
    %v8745 = vadd.f32 0.0, %v8744
    %8746 = vmatmul.f32.gmra.mxu0 %v8707
    %v8747 = vpop.f32.mrf.mxu0
    %v8748 = vadd.f32 0.0, %v8747
    %8749 = vdwg.mxu0
    %v8750 = vadd.f32 %v8662, %v8727
    %v8751 = vadd.f32 %v8665, %v8730
    %v8752 = vadd.f32 %v8668, %v8733
    %v8753 = vadd.f32 %v8671, %v8736
    %v8754 = vadd.f32 %v8674, %v8739
    %v8755 = vadd.f32 %v8677, %v8742
    %v8756 = vadd.f32 %v8680, %v8745
    %v8757 = vadd.f32 %v8683, %v8748
    %s8758 = scalar_lea.vmem %s10, 5
    %v8759 = vld [vmem:[%s8758] sm:$0x1]
    %v8761 = vperm.slane %v8759, 0
    %v8763 = vadd.f32 %v8750, %v8761
    %v8764 = vadd.f32 %v8751, %v8761
    %v8765 = vadd.f32 %v8752, %v8761
    %v8766 = vadd.f32 %v8753, %v8761
    %v8767 = vadd.f32 %v8754, %v8761
    %v8768 = vadd.f32 %v8755, %v8761
    %v8769 = vadd.f32 %v8756, %v8761
    %v8770 = vadd.f32 %v8757, %v8761
    %v8771 = vadd.f32 %v8763, %v8032
    %v8772 = vadd.f32 %v8764, %v8033
    %v8773 = vadd.f32 %v8765, %v8034
    %v8774 = vadd.f32 %v8766, %v8035
    %v8775 = vadd.f32 %v8767, %v8036
    %v8776 = vadd.f32 %v8768, %v8037
    %v8777 = vadd.f32 %v8769, %v8038
    %v8778 = vadd.f32 %v8770, %v8039
    %s8779 = scalar_lea.vmem %s11, 5
    %v8780 = vld [vmem:[%s8779] sm:$0x1]
    %v8782 = vperm.slane %v8780, 0
    %v8784 = vmul.f32 %v8771, %v8782
    %v8785 = vmul.f32 %v8772, %v8782
    %v8786 = vmul.f32 %v8773, %v8782
    %v8787 = vmul.f32 %v8774, %v8782
    %v8788 = vmul.f32 %v8775, %v8782
    %v8789 = vmul.f32 %v8776, %v8782
    %v8790 = vmul.f32 %v8777, %v8782
    %v8791 = vmul.f32 %v8778, %v8782
    %s8792 = scalar_lea.vmem %s12, 5
    %v8793 = vld [vmem:[%s8792] sm:$0x1]
    %v8795 = vperm.slane %v8793, 0
    %v8797 = vadd.f32 %v8784, %v8795
    %v8798 = vadd.f32 %v8785, %v8795
    %v8799 = vadd.f32 %v8786, %v8795
    %v8800 = vadd.f32 %v8787, %v8795
    %v8801 = vadd.f32 %v8788, %v8795
    %v8802 = vadd.f32 %v8789, %v8795
    %v8803 = vadd.f32 %v8790, %v8795
    %v8804 = vadd.f32 %v8791, %v8795
    %s8805 = scalar_lea.vmem %s4, 192
    %v8806 = vld [vmem:[%s8805] sm:$0xff]
    %v8807 = vld [vmem:[%s8805 + $0x8] sm:$0xff]
    %v8808 = vld [vmem:[%s8805 + $0x10] sm:$0xff]
    %v8809 = vld [vmem:[%s8805 + $0x18] sm:$0xff]
    %s8810 = scalar_lea.vmem %s5, 192
    %v8811 = vld [vmem:[%s8810] sm:$0xff]
    %v8812 = vld [vmem:[%s8810 + $0x8] sm:$0xff]
    %v8813 = vld [vmem:[%s8810 + $0x10] sm:$0xff]
    %v8814 = vld [vmem:[%s8810 + $0x18] sm:$0xff]
    %v8816 = vsel %vm351, %v8799, 0
    %v8819 = vsel %vm351, %v8800, 0
    %v8822 = vsel %vm351, %v8801, 0
    %v8825 = vsel %vm351, %v8802, 0
    %v8828 = vsel %vm351, %v8803, 0
    %v8831 = vsel %vm351, %v8804, 0
    %8833 = vmatpush.msra.mxu0 0.0
    %8834 = vmatpush.msra.mxu0 0.0
    %8835 = vmatpush.msra.mxu0 0.0
    %8836 = vmatpush.msra.mxu0 0.0
    %8837 = vmatpush.msra.mxu0 0.0
    %8838 = vmatpush.msra.mxu0 0.0
    %8839 = vmatpush.msra.mxu0 0.0
    %8840 = vmatpush.msra.mxu0 0.0
    %8841 = vmatpush.msra.mxu0 0.0
    %8842 = vmatpush.msra.mxu0 0.0
    %8843 = vmatpush.msra.mxu0 0.0
    %8844 = vmatpush.msra.mxu0 0.0
    %8845 = vmatpush.msra.mxu0 %v8814
    %8846 = vmatpush.msra.mxu0 %v8813
    %8847 = vmatpush.msra.mxu0 %v8812
    %8848 = vmatpush.msra.mxu0 %v8811
    %8849 = vmatmul.f32.gmra.mxu0 %v8816
    %v8850 = vpop.f32.mrf.mxu0
    %v8851 = vadd.f32 0.0, %v8850
    %8852 = vmatmul.f32.gmra.mxu0 %v8819
    %v8853 = vpop.f32.mrf.mxu0
    %v8854 = vadd.f32 0.0, %v8853
    %8855 = vmatmul.f32.gmra.mxu0 %v8822
    %v8856 = vpop.f32.mrf.mxu0
    %v8857 = vadd.f32 0.0, %v8856
    %8858 = vmatmul.f32.gmra.mxu0 %v8825
    %v8859 = vpop.f32.mrf.mxu0
    %v8860 = vadd.f32 0.0, %v8859
    %8861 = vmatmul.f32.gmra.mxu0 %v8828
    %v8862 = vpop.f32.mrf.mxu0
    %v8863 = vadd.f32 0.0, %v8862
    %8864 = vmatmul.f32.gmra.mxu0 %v8831
    %v8865 = vpop.f32.mrf.mxu0
    %v8866 = vadd.f32 0.0, %v8865
    %8867 = vdwg.mxu0
    %v8869 = vsel %vm351, %v8797, 0
    %v8872 = vsel %vm351, %v8798, 0
    %8874 = vmatpush.msra.mxu0 0.0
    %8875 = vmatpush.msra.mxu0 0.0
    %8876 = vmatpush.msra.mxu0 0.0
    %8877 = vmatpush.msra.mxu0 0.0
    %8878 = vmatpush.msra.mxu0 0.0
    %8879 = vmatpush.msra.mxu0 0.0
    %8880 = vmatpush.msra.mxu0 0.0
    %8881 = vmatpush.msra.mxu0 0.0
    %8882 = vmatpush.msra.mxu0 0.0
    %8883 = vmatpush.msra.mxu0 0.0
    %8884 = vmatpush.msra.mxu0 0.0
    %8885 = vmatpush.msra.mxu0 0.0
    %8886 = vmatpush.msra.mxu0 %v8809
    %8887 = vmatpush.msra.mxu0 %v8808
    %8888 = vmatpush.msra.mxu0 %v8807
    %8889 = vmatpush.msra.mxu0 %v8806
    %8890 = vmatmul.f32.gmra.mxu0 %v8869
    %v8891 = vpop.f32.mrf.mxu0
    %v8892 = vadd.f32 %v8851, %v8891
    %8893 = vmatmul.f32.gmra.mxu0 %v8872
    %v8894 = vpop.f32.mrf.mxu0
    %v8895 = vadd.f32 %v8854, %v8894
    %8896 = vmatmul.f32.gmra.mxu0 %v8816
    %v8897 = vpop.f32.mrf.mxu0
    %v8898 = vadd.f32 %v8857, %v8897
    %8899 = vmatmul.f32.gmra.mxu0 %v8819
    %v8900 = vpop.f32.mrf.mxu0
    %v8901 = vadd.f32 %v8860, %v8900
    %8902 = vmatmul.f32.gmra.mxu0 %v8822
    %v8903 = vpop.f32.mrf.mxu0
    %v8904 = vadd.f32 %v8863, %v8903
    %8905 = vmatmul.f32.gmra.mxu0 %v8825
    %v8906 = vpop.f32.mrf.mxu0
    %v8907 = vadd.f32 %v8866, %v8906
    %8908 = vdwg.mxu0
    %s8909 = scalar_lea.vmem %s6, 6
    %v8910 = vld [vmem:[%s8909] sm:$0x1]
    %v8912 = vperm.slane %v8910, 0
    %v8914 = vadd.f32 %v8892, %v8912
    %v8915 = vadd.f32 %v8895, %v8912
    %v8916 = vadd.f32 %v8898, %v8912
    %v8917 = vadd.f32 %v8901, %v8912
    %v8918 = vadd.f32 %v8904, %v8912
    %v8919 = vadd.f32 %v8907, %v8912
    %v8920 = vtanh.pop %v8914
    %v8921 = vtanh.pop %v8915
    %v8922 = vtanh.pop %v8916
    %v8923 = vtanh.pop %v8917
    %v8924 = vtanh.pop %v8918
    %v8925 = vtanh.pop %v8919
    %v8926 = vxor.u32 %v8914, 2147483648
    %v8927 = vxor.u32 %v8915, 2147483648
    %v8928 = vxor.u32 %v8916, 2147483648
    %v8929 = vxor.u32 %v8917, 2147483648
    %v8930 = vxor.u32 %v8918, 2147483648
    %v8931 = vxor.u32 %v8919, 2147483648
    %v8932 = vmul.f32 %v8926, 1.442695
    %v8933 = vpow.pop %v8932
    %v8934 = vmul.f32 %v8927, 1.442695
    %v8935 = vpow.pop %v8934
    %v8936 = vmul.f32 %v8928, 1.442695
    %v8937 = vpow.pop %v8936
    %v8938 = vmul.f32 %v8929, 1.442695
    %v8939 = vpow.pop %v8938
    %v8940 = vmul.f32 %v8930, 1.442695
    %v8941 = vpow.pop %v8940
    %v8942 = vmul.f32 %v8931, 1.442695
    %v8943 = vpow.pop %v8942
    %v8944 = vadd.f32 %v8933, 1.0
    %v8945 = vadd.f32 %v8935, 1.0
    %v8946 = vadd.f32 %v8937, 1.0
    %v8947 = vadd.f32 %v8939, 1.0
    %v8948 = vadd.f32 %v8941, 1.0
    %v8949 = vadd.f32 %v8943, 1.0
    %v8950 = vrcp.pop %v8944
    %v8951 = vmul.f32 %v8944, %v8950
    %v8952 = vsub.f32 1.0, %v8951
    %v8953 = vmul.f32 %v8950, %v8952
    %v8954 = vadd.f32 %v8950, %v8953
    %vm8955 = vweird.f32 %v8944
    %vm8956 = vweird.f32 %v8950
    %vm8957 = vmor %vm8955, %vm8956
    %v8958 = vsel %vm8957, %v8950, %v8954
    %v8959 = vand.u32 2147483647, %v8944
    %vm8960 = vcmp.eq.f32.partialorder %v8959, 8.507059e+37
    %v8961 = vand.u32 %v8944, 2147483648
    %v8962 = vor.u32 1.1754944e-38, %v8961
    %v8963 = vsel %vm8960, %v8962, %v8958
    %v8964 = vmul.f32 1.0, %v8963
    %v8965 = vrcp.pop %v8945
    %v8966 = vmul.f32 %v8945, %v8965
    %v8967 = vsub.f32 1.0, %v8966
    %v8968 = vmul.f32 %v8965, %v8967
    %v8969 = vadd.f32 %v8965, %v8968
    %vm8970 = vweird.f32 %v8945
    %vm8971 = vweird.f32 %v8965
    %vm8972 = vmor %vm8970, %vm8971
    %v8973 = vsel %vm8972, %v8965, %v8969
    %v8974 = vand.u32 2147483647, %v8945
    %vm8975 = vcmp.eq.f32.partialorder %v8974, 8.507059e+37
    %v8976 = vand.u32 %v8945, 2147483648
    %v8977 = vor.u32 1.1754944e-38, %v8976
    %v8978 = vsel %vm8975, %v8977, %v8973
    %v8979 = vmul.f32 1.0, %v8978
    %v8980 = vrcp.pop %v8946
    %v8981 = vmul.f32 %v8946, %v8980
    %v8982 = vsub.f32 1.0, %v8981
    %v8983 = vmul.f32 %v8980, %v8982
    %v8984 = vadd.f32 %v8980, %v8983
    %vm8985 = vweird.f32 %v8946
    %vm8986 = vweird.f32 %v8980
    %vm8987 = vmor %vm8985, %vm8986
    %v8988 = vsel %vm8987, %v8980, %v8984
    %v8989 = vand.u32 2147483647, %v8946
    %vm8990 = vcmp.eq.f32.partialorder %v8989, 8.507059e+37
    %v8991 = vand.u32 %v8946, 2147483648
    %v8992 = vor.u32 1.1754944e-38, %v8991
    %v8993 = vsel %vm8990, %v8992, %v8988
    %v8994 = vmul.f32 1.0, %v8993
    %v8995 = vrcp.pop %v8947
    %v8996 = vmul.f32 %v8947, %v8995
    %v8997 = vsub.f32 1.0, %v8996
    %v8998 = vmul.f32 %v8995, %v8997
    %v8999 = vadd.f32 %v8995, %v8998
    %vm9000 = vweird.f32 %v8947
    %vm9001 = vweird.f32 %v8995
    %vm9002 = vmor %vm9000, %vm9001
    %v9003 = vsel %vm9002, %v8995, %v8999
    %v9004 = vand.u32 2147483647, %v8947
    %vm9005 = vcmp.eq.f32.partialorder %v9004, 8.507059e+37
    %v9006 = vand.u32 %v8947, 2147483648
    %v9007 = vor.u32 1.1754944e-38, %v9006
    %v9008 = vsel %vm9005, %v9007, %v9003
    %v9009 = vmul.f32 1.0, %v9008
    %v9010 = vrcp.pop %v8948
    %v9011 = vmul.f32 %v8948, %v9010
    %v9012 = vsub.f32 1.0, %v9011
    %v9013 = vmul.f32 %v9010, %v9012
    %v9014 = vadd.f32 %v9010, %v9013
    %vm9015 = vweird.f32 %v8948
    %vm9016 = vweird.f32 %v9010
    %vm9017 = vmor %vm9015, %vm9016
    %v9018 = vsel %vm9017, %v9010, %v9014
    %v9019 = vand.u32 2147483647, %v8948
    %vm9020 = vcmp.eq.f32.partialorder %v9019, 8.507059e+37
    %v9021 = vand.u32 %v8948, 2147483648
    %v9022 = vor.u32 1.1754944e-38, %v9021
    %v9023 = vsel %vm9020, %v9022, %v9018
    %v9024 = vmul.f32 1.0, %v9023
    %v9025 = vrcp.pop %v8949
    %v9026 = vmul.f32 %v8949, %v9025
    %v9027 = vsub.f32 1.0, %v9026
    %v9028 = vmul.f32 %v9025, %v9027
    %v9029 = vadd.f32 %v9025, %v9028
    %vm9030 = vweird.f32 %v8949
    %vm9031 = vweird.f32 %v9025
    %vm9032 = vmor %vm9030, %vm9031
    %v9033 = vsel %vm9032, %v9025, %v9029
    %v9034 = vand.u32 2147483647, %v8949
    %vm9035 = vcmp.eq.f32.partialorder %v9034, 8.507059e+37
    %v9036 = vand.u32 %v8949, 2147483648
    %v9037 = vor.u32 1.1754944e-38, %v9036
    %v9038 = vsel %vm9035, %v9037, %v9033
    %v9039 = vmul.f32 1.0, %v9038
    %9046 = vrot.lane.b32.xlu0 %v8964, 96
    %v9047 = vpop.permute.xlu0 %9046
    %9048 = vrot.lane.b32.xlu0 %v8979, 96
    %v9049 = vpop.permute.xlu0 %9048
    %9050 = vrot.lane.b32.xlu0 %v8994, 96
    %v9051 = vpop.permute.xlu0 %9050
    %9052 = vrot.lane.b32.xlu0 %v9009, 96
    %v9053 = vpop.permute.xlu0 %9052
    %9054 = vrot.lane.b32.xlu0 %v9024, 96
    %v9055 = vpop.permute.xlu0 %9054
    %9056 = vrot.lane.b32.xlu0 %v9039, 96
    %v9057 = vpop.permute.xlu0 %9056
    %v9064 = vmul.f32 %v8920, %v9047
    %v9065 = vmul.f32 %v8921, %v9049
    %v9066 = vmul.f32 %v8922, %v9051
    %v9067 = vmul.f32 %v8923, %v9053
    %v9068 = vmul.f32 %v8924, %v9055
    %v9069 = vmul.f32 %v8925, %v9057
    %s9070 = scalar_lea.vmem %s7, 192
    %v9071 = vld [vmem:[%s9070] sm:$0xff]
    %v9072 = vld [vmem:[%s9070 + $0x8] sm:$0xff]
    %v9073 = vld [vmem:[%s9070 + $0x10] sm:$0xff]
    %v9074 = vld [vmem:[%s9070 + $0x18] sm:$0xff]
    %s9075 = scalar_lea.vmem %s8, 6
    %v9076 = vld [vmem:[%s9075] sm:$0x1]
    %v9078 = vperm.slane %v9076, 0
    %v9081 = vsel %vm351, %v9064, 0
    %v9084 = vsel %vm351, %v9065, 0
    %v9087 = vsel %vm351, %v9066, 0
    %v9090 = vsel %vm351, %v9067, 0
    %v9093 = vsel %vm351, %v9068, 0
    %v9096 = vsel %vm351, %v9069, 0
    %9098 = vmatpush.msra.mxu0 0.0
    %9099 = vmatpush.msra.mxu0 0.0
    %9100 = vmatpush.msra.mxu0 0.0
    %9101 = vmatpush.msra.mxu0 0.0
    %9102 = vmatpush.msra.mxu0 0.0
    %9103 = vmatpush.msra.mxu0 0.0
    %9104 = vmatpush.msra.mxu0 0.0
    %9105 = vmatpush.msra.mxu0 0.0
    %9106 = vmatpush.msra.mxu0 0.0
    %9107 = vmatpush.msra.mxu0 0.0
    %9108 = vmatpush.msra.mxu0 0.0
    %9109 = vmatpush.msra.mxu0 0.0
    %9110 = vmatpush.msra.mxu0 %v9074
    %9111 = vmatpush.msra.mxu0 %v9073
    %9112 = vmatpush.msra.mxu0 %v9072
    %9113 = vmatpush.msra.mxu0 %v9071
    %9114 = vmatmul.f32.gmra.mxu0 %v9081
    %v9115 = vpop.f32.mrf.mxu0
    %9116 = vmatmul.f32.gmra.mxu0 %v9084
    %v9117 = vpop.f32.mrf.mxu0
    %9118 = vmatmul.f32.gmra.mxu0 %v9087
    %v9119 = vpop.f32.mrf.mxu0
    %9120 = vmatmul.f32.gmra.mxu0 %v9090
    %v9121 = vpop.f32.mrf.mxu0
    %9122 = vmatmul.f32.gmra.mxu0 %v9093
    %v9123 = vpop.f32.mrf.mxu0
    %v9124 = vadd.f32 %v9078, %v9123
    %9125 = vmatmul.f32.gmra.mxu0 %v9096
    %v9126 = vpop.f32.mrf.mxu0
    %v9127 = vadd.f32 %v9078, %v9126
    %9128 = vdwg.mxu0
    %v9129 = vadd.f32 %v9124, %v8450
    %v9130 = vadd.f32 %v9127, %v8451
    %v9131 = vld [vmem:[%s1] sm:$0xff]
    %v9132 = vld [vmem:[%s1 + $0x10] sm:$0xff]
    %v9133 = vld [vmem:[%s1 + $0x20] sm:$0xff]
    %v9134 = vld [vmem:[%s1 + $0x30] sm:$0xff]
    %v9135 = vld [vmem:[%s1 + $0x40] sm:$0xff]
    %v9136 = vld [vmem:[%s1 + $0x50] sm:$0xff]
    %vm9137 = vcmask 392192
    %v9139 = vsel %vm9137, %v9131, 0
    %v9142 = vsel %vm9137, %v9132, 0
    %v9145 = vsel %vm9137, %v9133, 0
    %v9148 = vsel %vm9137, %v9134, 0
    %v9151 = vsel %vm9137, %v9135, 0
    %v9154 = vsel %vm9137, %v9136, 0
    %9156 = vmatpush.msra.mxu0 0.0
    %9157 = vmatpush.msra.mxu0 0.0
    %9158 = vmatpush.msra.mxu0 0.0
    %9159 = vmatpush.msra.mxu0 0.0
    %9160 = vmatpush.msra.mxu0 0.0
    %9161 = vmatpush.msra.mxu0 0.0
    %9162 = vmatpush.msra.mxu0 0.0
    %9163 = vmatpush.msra.mxu0 0.0
    %9164 = vmatpush.msra.mxu0 0.0
    %9165 = vmatpush.msra.mxu0 0.0
    %9166 = vmatpush.msra.mxu0 %v9069
    %9167 = vmatpush.msra.mxu0 %v9068
    %9168 = vmatpush.msra.mxu0 %v9067
    %9169 = vmatpush.msra.mxu0 %v9066
    %9170 = vmatpush.msra.mxu0 %v9065
    %9171 = vmatpush.msra.mxu0 %v9064
    %9172 = vmatmul.f32.gmra.mxu0 %v9139
    %v9173 = vpop.f32.mrf.mxu0
    %v9174 = vadd.f32 0.0, %v9173
    %9175 = vmatmul.f32.gmra.mxu0 %v9142
    %v9176 = vpop.f32.mrf.mxu0
    %v9177 = vadd.f32 0.0, %v9176
    %9178 = vmatmul.f32.gmra.mxu0 %v9145
    %v9179 = vpop.f32.mrf.mxu0
    %v9180 = vadd.f32 0.0, %v9179
    %9181 = vmatmul.f32.gmra.mxu0 %v9148
    %v9182 = vpop.f32.mrf.mxu0
    %v9183 = vadd.f32 0.0, %v9182
    %9184 = vmatmul.f32.gmra.mxu0 %v9151
    %v9185 = vpop.f32.mrf.mxu0
    %v9186 = vadd.f32 0.0, %v9185
    %9187 = vmatmul.f32.gmra.mxu0 %v9154
    %v9188 = vpop.f32.mrf.mxu0
    %v9189 = vadd.f32 0.0, %v9188
    %9190 = vdwg.mxu0
    %9191 = vmatpush.msra.mxu0 0.0
    %9192 = vmatpush.msra.mxu0 0.0
    %9193 = vmatpush.msra.mxu0 0.0
    %9194 = vmatpush.msra.mxu0 0.0
    %9195 = vmatpush.msra.mxu0 0.0
    %9196 = vmatpush.msra.mxu0 0.0
    %9197 = vmatpush.msra.mxu0 0.0
    %9198 = vmatpush.msra.mxu0 0.0
    %9199 = vmatpush.msra.mxu0 0.0
    %9200 = vmatpush.msra.mxu0 0.0
    %9201 = vmatpush.msra.mxu0 %v9189
    %9202 = vmatpush.msra.mxu0 %v9186
    %9203 = vmatpush.msra.mxu0 %v9183
    %9204 = vmatpush.msra.mxu0 %v9180
    %9205 = vmatpush.msra.mxu0 %v9177
    %9206 = vmatpush.msra.mxu0 %v9174
    %9207 = vmatmul.f32.gmra.mxu0 %v9139
    %v9208 = vpop.f32.mrf.mxu0
    %v9209 = vadd.f32 0.0, %v9208
    %9210 = vmatmul.f32.gmra.mxu0 %v9142
    %v9211 = vpop.f32.mrf.mxu0
    %v9212 = vadd.f32 0.0, %v9211
    %9213 = vmatmul.f32.gmra.mxu0 %v9145
    %v9214 = vpop.f32.mrf.mxu0
    %v9215 = vadd.f32 0.0, %v9214
    %9216 = vmatmul.f32.gmra.mxu0 %v9148
    %v9217 = vpop.f32.mrf.mxu0
    %v9218 = vadd.f32 0.0, %v9217
    %9219 = vmatmul.f32.gmra.mxu0 %v9151
    %v9220 = vpop.f32.mrf.mxu0
    %v9221 = vadd.f32 0.0, %v9220
    %9222 = vmatmul.f32.gmra.mxu0 %v9154
    %v9223 = vpop.f32.mrf.mxu0
    %v9224 = vadd.f32 0.0, %v9223
    %9225 = vdwg.mxu0
    %s9226 = scalar_lea.vmem %s9, 576
    %v9227 = vld [vmem:[%s9226] sm:$0xff]
    %v9228 = vld [vmem:[%s9226 + $0x8] sm:$0xff]
    %v9229 = vld [vmem:[%s9226 + $0x10] sm:$0xff]
    %v9230 = vld [vmem:[%s9226 + $0x18] sm:$0xff]
    %v9231 = vld [vmem:[%s9226 + $0x20] sm:$0xff]
    %v9232 = vld [vmem:[%s9226 + $0x28] sm:$0xff]
    %v9233 = vld [vmem:[%s9226 + $0x30] sm:$0xff]
    %v9234 = vld [vmem:[%s9226 + $0x38] sm:$0xff]
    %v9235 = vld [vmem:[%s9226 + $0x40] sm:$0xff]
    %v9236 = vld [vmem:[%s9226 + $0x48] sm:$0xff]
    %v9237 = vld [vmem:[%s9226 + $0x50] sm:$0xff]
    %v9238 = vld [vmem:[%s9226 + $0x58] sm:$0xff]
    %v9240 = vsel %vm351, %v9174, 0
    %v9243 = vsel %vm351, %v9177, 0
    %v9246 = vsel %vm351, %v9180, 0
    %v9249 = vsel %vm351, %v9183, 0
    %v9252 = vsel %vm351, %v9186, 0
    %v9255 = vsel %vm351, %v9189, 0
    %9257 = vmatpush.msra.mxu0 0.0
    %9258 = vmatpush.msra.mxu0 0.0
    %9259 = vmatpush.msra.mxu0 0.0
    %9260 = vmatpush.msra.mxu0 0.0
    %9261 = vmatpush.msra.mxu0 0.0
    %9262 = vmatpush.msra.mxu0 0.0
    %9263 = vmatpush.msra.mxu0 0.0
    %9264 = vmatpush.msra.mxu0 0.0
    %9265 = vmatpush.msra.mxu0 0.0
    %9266 = vmatpush.msra.mxu0 0.0
    %9267 = vmatpush.msra.mxu0 0.0
    %9268 = vmatpush.msra.mxu0 0.0
    %9269 = vmatpush.msra.mxu0 %v9234
    %9270 = vmatpush.msra.mxu0 %v9233
    %9271 = vmatpush.msra.mxu0 %v9232
    %9272 = vmatpush.msra.mxu0 %v9231
    %9273 = vmatmul.f32.gmra.mxu0 %v9240
    %v9274 = vpop.f32.mrf.mxu0
    %v9275 = vadd.f32 0.0, %v9274
    %9276 = vmatmul.f32.gmra.mxu0 %v9243
    %v9277 = vpop.f32.mrf.mxu0
    %v9278 = vadd.f32 0.0, %v9277
    %9279 = vmatmul.f32.gmra.mxu0 %v9246
    %v9280 = vpop.f32.mrf.mxu0
    %9281 = vmatmul.f32.gmra.mxu0 %v9249
    %v9282 = vpop.f32.mrf.mxu0
    %9283 = vmatmul.f32.gmra.mxu0 %v9252
    %v9284 = vpop.f32.mrf.mxu0
    %v9285 = vadd.f32 0.0, %v9284
    %9286 = vmatmul.f32.gmra.mxu0 %v9255
    %v9287 = vpop.f32.mrf.mxu0
    %v9288 = vadd.f32 0.0, %v9287
    %9289 = vdwg.mxu0
    %9290 = vmatpush.msra.mxu0 0.0
    %9291 = vmatpush.msra.mxu0 0.0
    %9292 = vmatpush.msra.mxu0 0.0
    %9293 = vmatpush.msra.mxu0 0.0
    %9294 = vmatpush.msra.mxu0 0.0
    %9295 = vmatpush.msra.mxu0 0.0
    %9296 = vmatpush.msra.mxu0 0.0
    %9297 = vmatpush.msra.mxu0 0.0
    %9298 = vmatpush.msra.mxu0 0.0
    %9299 = vmatpush.msra.mxu0 0.0
    %9300 = vmatpush.msra.mxu0 0.0
    %9301 = vmatpush.msra.mxu0 0.0
    %9302 = vmatpush.msra.mxu0 %v9230
    %9303 = vmatpush.msra.mxu0 %v9229
    %9304 = vmatpush.msra.mxu0 %v9228
    %9305 = vmatpush.msra.mxu0 %v9227
    %9306 = vmatmul.f32.gmra.mxu0 %v9081
    %v9307 = vpop.f32.mrf.mxu0
    %v9308 = vadd.f32 %v9275, %v9307
    %9309 = vmatmul.f32.gmra.mxu0 %v9084
    %v9310 = vpop.f32.mrf.mxu0
    %v9311 = vadd.f32 %v9278, %v9310
    %9312 = vmatmul.f32.gmra.mxu0 %v9087
    %v9313 = vpop.f32.mrf.mxu0
    %9314 = vmatmul.f32.gmra.mxu0 %v9090
    %v9315 = vpop.f32.mrf.mxu0
    %9316 = vmatmul.f32.gmra.mxu0 %v9093
    %v9317 = vpop.f32.mrf.mxu0
    %v9318 = vadd.f32 %v9285, %v9317
    %9319 = vmatmul.f32.gmra.mxu0 %v9096
    %v9320 = vpop.f32.mrf.mxu0
    %v9321 = vadd.f32 %v9288, %v9320
    %9322 = vdwg.mxu0
    %v9324 = vsel %vm351, %v9209, 0
    %v9327 = vsel %vm351, %v9212, 0
    %v9330 = vsel %vm351, %v9215, 0
    %v9333 = vsel %vm351, %v9218, 0
    %v9336 = vsel %vm351, %v9221, 0
    %v9339 = vsel %vm351, %v9224, 0
    %9341 = vmatpush.msra.mxu0 0.0
    %9342 = vmatpush.msra.mxu0 0.0
    %9343 = vmatpush.msra.mxu0 0.0
    %9344 = vmatpush.msra.mxu0 0.0
    %9345 = vmatpush.msra.mxu0 0.0
    %9346 = vmatpush.msra.mxu0 0.0
    %9347 = vmatpush.msra.mxu0 0.0
    %9348 = vmatpush.msra.mxu0 0.0
    %9349 = vmatpush.msra.mxu0 0.0
    %9350 = vmatpush.msra.mxu0 0.0
    %9351 = vmatpush.msra.mxu0 0.0
    %9352 = vmatpush.msra.mxu0 0.0
    %9353 = vmatpush.msra.mxu0 %v9238
    %9354 = vmatpush.msra.mxu0 %v9237
    %9355 = vmatpush.msra.mxu0 %v9236
    %9356 = vmatpush.msra.mxu0 %v9235
    %9357 = vmatmul.f32.gmra.mxu0 %v9324
    %v9358 = vpop.f32.mrf.mxu0
    %v9359 = vadd.f32 0.0, %v9358
    %9360 = vmatmul.f32.gmra.mxu0 %v9327
    %v9361 = vpop.f32.mrf.mxu0
    %v9362 = vadd.f32 0.0, %v9361
    %9363 = vmatmul.f32.gmra.mxu0 %v9330
    %v9364 = vpop.f32.mrf.mxu0
    %9365 = vmatmul.f32.gmra.mxu0 %v9333
    %v9366 = vpop.f32.mrf.mxu0
    %9367 = vmatmul.f32.gmra.mxu0 %v9336
    %v9368 = vpop.f32.mrf.mxu0
    %v9369 = vadd.f32 0.0, %v9368
    %9370 = vmatmul.f32.gmra.mxu0 %v9339
    %v9371 = vpop.f32.mrf.mxu0
    %v9372 = vadd.f32 0.0, %v9371
    %9373 = vdwg.mxu0
    %v9374 = vadd.f32 %v9308, %v9359
    %v9375 = vadd.f32 %v9311, %v9362
    %v9376 = vadd.f32 %v9318, %v9369
    %v9377 = vadd.f32 %v9321, %v9372
    %s9378 = scalar_lea.vmem %s10, 6
    %v9379 = vld [vmem:[%s9378] sm:$0x1]
    %v9381 = vperm.slane %v9379, 0
    %v9383 = vadd.f32 %v9374, %v9381
    %v9384 = vadd.f32 %v9375, %v9381
    %v9385 = vadd.f32 %v9376, %v9381
    %v9386 = vadd.f32 %v9377, %v9381
    %v9387 = vadd.f32 %v9383, %v8799
    %v9388 = vadd.f32 %v9384, %v8800
    %v9389 = vadd.f32 %v9385, %v8803
    %v9390 = vadd.f32 %v9386, %v8804
    %s9391 = scalar_lea.vmem %s11, 6
    %v9392 = vld [vmem:[%s9391] sm:$0x1]
    %v9394 = vperm.slane %v9392, 0
    %v9396 = vmul.f32 %v9387, %v9394
    %v9397 = vmul.f32 %v9388, %v9394
    %v9398 = vmul.f32 %v9389, %v9394
    %v9399 = vmul.f32 %v9390, %v9394
    %s9400 = scalar_lea.vmem %s12, 6
    %v9401 = vld [vmem:[%s9400] sm:$0x1]
    %v9403 = vperm.slane %v9401, 0
    %v9405 = vadd.f32 %v9396, %v9403
    %v9406 = vadd.f32 %v9397, %v9403
    %v9407 = vadd.f32 %v9398, %v9403
    %v9408 = vadd.f32 %v9399, %v9403
    %s9409 = scalar_lea.vmem %s4, 224
    %v9410 = vld [vmem:[%s9409] sm:$0xff]
    %v9411 = vld [vmem:[%s9409 + $0x8] sm:$0xff]
    %v9412 = vld [vmem:[%s9409 + $0x10] sm:$0xff]
    %v9413 = vld [vmem:[%s9409 + $0x18] sm:$0xff]
    %s9414 = scalar_lea.vmem %s5, 224
    %v9415 = vld [vmem:[%s9414] sm:$0xff]
    %v9416 = vld [vmem:[%s9414 + $0x8] sm:$0xff]
    %v9417 = vld [vmem:[%s9414 + $0x10] sm:$0xff]
    %v9418 = vld [vmem:[%s9414 + $0x18] sm:$0xff]
    %v9420 = vsel %vm351, %v9407, 0
    %v9423 = vsel %vm351, %v9408, 0
    %9425 = vmatpush.msra.mxu0 0.0
    %9426 = vmatpush.msra.mxu0 0.0
    %9427 = vmatpush.msra.mxu0 0.0
    %9428 = vmatpush.msra.mxu0 0.0
    %9429 = vmatpush.msra.mxu0 0.0
    %9430 = vmatpush.msra.mxu0 0.0
    %9431 = vmatpush.msra.mxu0 0.0
    %9432 = vmatpush.msra.mxu0 0.0
    %9433 = vmatpush.msra.mxu0 0.0
    %9434 = vmatpush.msra.mxu0 0.0
    %9435 = vmatpush.msra.mxu0 0.0
    %9436 = vmatpush.msra.mxu0 0.0
    %9437 = vmatpush.msra.mxu0 %v9418
    %9438 = vmatpush.msra.mxu0 %v9417
    %9439 = vmatpush.msra.mxu0 %v9416
    %9440 = vmatpush.msra.mxu0 %v9415
    %9441 = vmatmul.f32.gmra.mxu0 %v9420
    %v9442 = vpop.f32.mrf.mxu0
    %v9443 = vadd.f32 0.0, %v9442
    %9444 = vmatmul.f32.gmra.mxu0 %v9423
    %v9445 = vpop.f32.mrf.mxu0
    %v9446 = vadd.f32 0.0, %v9445
    %9447 = vdwg.mxu0
    %v9449 = vsel %vm351, %v9405, 0
    %v9452 = vsel %vm351, %v9406, 0
    %9454 = vmatpush.msra.mxu0 0.0
    %9455 = vmatpush.msra.mxu0 0.0
    %9456 = vmatpush.msra.mxu0 0.0
    %9457 = vmatpush.msra.mxu0 0.0
    %9458 = vmatpush.msra.mxu0 0.0
    %9459 = vmatpush.msra.mxu0 0.0
    %9460 = vmatpush.msra.mxu0 0.0
    %9461 = vmatpush.msra.mxu0 0.0
    %9462 = vmatpush.msra.mxu0 0.0
    %9463 = vmatpush.msra.mxu0 0.0
    %9464 = vmatpush.msra.mxu0 0.0
    %9465 = vmatpush.msra.mxu0 0.0
    %9466 = vmatpush.msra.mxu0 %v9413
    %9467 = vmatpush.msra.mxu0 %v9412
    %9468 = vmatpush.msra.mxu0 %v9411
    %9469 = vmatpush.msra.mxu0 %v9410
    %9470 = vmatmul.f32.gmra.mxu0 %v9449
    %v9471 = vpop.f32.mrf.mxu0
    %v9472 = vadd.f32 %v9443, %v9471
    %9473 = vmatmul.f32.gmra.mxu0 %v9452
    %v9474 = vpop.f32.mrf.mxu0
    %v9475 = vadd.f32 %v9446, %v9474
    %9476 = vdwg.mxu0
    %s9477 = scalar_lea.vmem %s6, 7
    %v9478 = vld [vmem:[%s9477] sm:$0x1]
    %v9480 = vperm.slane %v9478, 0
    %v9482 = vadd.f32 %v9472, %v9480
    %v9483 = vadd.f32 %v9475, %v9480
    %v9484 = vtanh.pop %v9482
    %v9485 = vtanh.pop %v9483
    %v9486 = vxor.u32 %v9482, 2147483648
    %v9487 = vxor.u32 %v9483, 2147483648
    %v9488 = vmul.f32 %v9486, 1.442695
    %v9489 = vpow.pop %v9488
    %v9490 = vmul.f32 %v9487, 1.442695
    %v9491 = vpow.pop %v9490
    %v9492 = vadd.f32 %v9489, 1.0
    %v9493 = vadd.f32 %v9491, 1.0
    %v9494 = vrcp.pop %v9492
    %v9495 = vmul.f32 %v9492, %v9494
    %v9496 = vsub.f32 1.0, %v9495
    %v9497 = vmul.f32 %v9494, %v9496
    %v9498 = vadd.f32 %v9494, %v9497
    %vm9499 = vweird.f32 %v9492
    %vm9500 = vweird.f32 %v9494
    %vm9501 = vmor %vm9499, %vm9500
    %v9502 = vsel %vm9501, %v9494, %v9498
    %v9503 = vand.u32 2147483647, %v9492
    %vm9504 = vcmp.eq.f32.partialorder %v9503, 8.507059e+37
    %v9505 = vand.u32 %v9492, 2147483648
    %v9506 = vor.u32 1.1754944e-38, %v9505
    %v9507 = vsel %vm9504, %v9506, %v9502
    %v9508 = vmul.f32 1.0, %v9507
    %v9509 = vrcp.pop %v9493
    %v9510 = vmul.f32 %v9493, %v9509
    %v9511 = vsub.f32 1.0, %v9510
    %v9512 = vmul.f32 %v9509, %v9511
    %v9513 = vadd.f32 %v9509, %v9512
    %vm9514 = vweird.f32 %v9493
    %vm9515 = vweird.f32 %v9509
    %vm9516 = vmor %vm9514, %vm9515
    %v9517 = vsel %vm9516, %v9509, %v9513
    %v9518 = vand.u32 2147483647, %v9493
    %vm9519 = vcmp.eq.f32.partialorder %v9518, 8.507059e+37
    %v9520 = vand.u32 %v9493, 2147483648
    %v9521 = vor.u32 1.1754944e-38, %v9520
    %v9522 = vsel %vm9519, %v9521, %v9517
    %v9523 = vmul.f32 1.0, %v9522
    %9526 = vrot.lane.b32.xlu0 %v9508, 96
    %v9527 = vpop.permute.xlu0 %9526
    %9528 = vrot.lane.b32.xlu0 %v9523, 96
    %v9529 = vpop.permute.xlu0 %9528
    %v9532 = vmul.f32 %v9484, %v9527
    %v9533 = vmul.f32 %v9485, %v9529
    %s9534 = scalar_lea.vmem %s7, 224
    %v9535 = vld [vmem:[%s9534] sm:$0xff]
    %v9536 = vld [vmem:[%s9534 + $0x8] sm:$0xff]
    %v9537 = vld [vmem:[%s9534 + $0x10] sm:$0xff]
    %v9538 = vld [vmem:[%s9534 + $0x18] sm:$0xff]
    %s9539 = scalar_lea.vmem %s8, 7
    %v9540 = vld [vmem:[%s9539] sm:$0x1]
    %v9542 = vperm.slane %v9540, 0
    %v9545 = vsel %vm351, %v9532, 0
    %v9548 = vsel %vm351, %v9533, 0
    %9550 = vmatpush.msra.mxu0 0.0
    %9551 = vmatpush.msra.mxu0 0.0
    %9552 = vmatpush.msra.mxu0 0.0
    %9553 = vmatpush.msra.mxu0 0.0
    %9554 = vmatpush.msra.mxu0 0.0
    %9555 = vmatpush.msra.mxu0 0.0
    %9556 = vmatpush.msra.mxu0 0.0
    %9557 = vmatpush.msra.mxu0 0.0
    %9558 = vmatpush.msra.mxu0 0.0
    %9559 = vmatpush.msra.mxu0 0.0
    %9560 = vmatpush.msra.mxu0 0.0
    %9561 = vmatpush.msra.mxu0 0.0
    %9562 = vmatpush.msra.mxu0 %v9538
    %9563 = vmatpush.msra.mxu0 %v9537
    %9564 = vmatpush.msra.mxu0 %v9536
    %9565 = vmatpush.msra.mxu0 %v9535
    %9566 = vmatmul.f32.gmra.mxu0 %v9545
    %v9567 = vpop.f32.mrf.mxu0
    %v9568 = vadd.f32 %v9542, %v9567
    %9569 = vmatmul.f32.gmra.mxu0 %v9548
    %v9570 = vpop.f32.mrf.mxu0
    %v9571 = vadd.f32 %v9542, %v9570
    %9572 = vdwg.mxu0
    %v9573 = vadd.f32 %v9568, %v9129
    %v9574 = vadd.f32 %v9571, %v9130
    %v9575 = vmax.f32 %v9573, 0.0
    %v9576 = vmax.f32 %v9574, 0.0
    %v9577 = vld [vmem:[#allocation7] sm:$0xff]
    %v9578 = vld [vmem:[#allocation7 + $0x8] sm:$0xff]
    %v9579 = vld [vmem:[#allocation7 + $0x10] sm:$0xff]
    %v9580 = vld [vmem:[#allocation7 + $0x18] sm:$0xff]
    %v9581 = vld [vmem:[#allocation7 + $0x20] sm:$0xff]
    %v9582 = vld [vmem:[#allocation7 + $0x28] sm:$0xff]
    %v9583 = vld [vmem:[#allocation7 + $0x30] sm:$0xff]
    %v9584 = vld [vmem:[#allocation7 + $0x38] sm:$0xff]
    %v9585 = vld [vmem:[#allocation8] sm:$0x1]
    %v9587 = vperm.slane %v9585, 0
    %v9590 = vsel %vm1431, %v9575, 0
    %v9593 = vsel %vm1431, %v9576, 0
    %9595 = vmatpush.msra.mxu0 0.0
    %9596 = vmatpush.msra.mxu0 0.0
    %9597 = vmatpush.msra.mxu0 0.0
    %9598 = vmatpush.msra.mxu0 0.0
    %9599 = vmatpush.msra.mxu0 0.0
    %9600 = vmatpush.msra.mxu0 0.0
    %9601 = vmatpush.msra.mxu0 0.0
    %9602 = vmatpush.msra.mxu0 0.0
    %9603 = vmatpush.msra.mxu0 %v9584
    %9604 = vmatpush.msra.mxu0 %v9583
    %9605 = vmatpush.msra.mxu0 %v9582
    %9606 = vmatpush.msra.mxu0 %v9581
    %9607 = vmatpush.msra.mxu0 %v9580
    %9608 = vmatpush.msra.mxu0 %v9579
    %9609 = vmatpush.msra.mxu0 %v9578
    %9610 = vmatpush.msra.mxu0 %v9577
    %9611 = vmatmul.f32.gmra.mxu0 %v9590
    %v9612 = vpop.f32.mrf.mxu0
    %v9613 = vadd.f32 %v9587, %v9612
    %9614 = vmatmul.f32.gmra.mxu0 %v9593
    %v9615 = vpop.f32.mrf.mxu0
    %v9616 = vadd.f32 %v9587, %v9615
    %9617 = vdwg.mxu0
    %v9618 = vmax.f32 %v9613, 0.0
    %v9619 = vmax.f32 %v9616, 0.0
    %v9620 = vld [vmem:[%s15] sm:$0xff]
    %v9621 = vld [vmem:[%s15 + $0x8] sm:$0xff]
    %v9622 = vld [vmem:[%s15 + $0x10] sm:$0xff]
    %v9623 = vld [vmem:[%s15 + $0x18] sm:$0xff]
    %v9624 = vld [vmem:[%s15 + $0x20] sm:$0xff]
    %v9625 = vld [vmem:[%s15 + $0x28] sm:$0xff]
    %v9626 = vld [vmem:[%s15 + $0x30] sm:$0xff]
    %v9627 = vld [vmem:[%s15 + $0x38] sm:$0xff]
    %v9628 = vld [vmem:[%s15 + $0x40] sm:$0xff]
    %v9629 = vld [vmem:[%s15 + $0x48] sm:$0xff]
    %v9630 = vld [vmem:[%s15 + $0x50] sm:$0xff]
    %v9631 = vld [vmem:[%s15 + $0x58] sm:$0xff]
    %v9632 = vld [vmem:[%s15 + $0x60] sm:$0xff]
    %v9633 = vld [vmem:[%s15 + $0x68] sm:$0xff]
    %v9634 = vld [vmem:[%s15 + $0x70] sm:$0xff]
    %v9635 = vld [vmem:[%s15 + $0x78] sm:$0xff]
    %v9636 = vld [vmem:[#allocation10] sm:$0x1]
    %v9638 = vperm.slane %v9636, 0
    %9640 = vmatpush.msra.mxu0 %v9635
    %9641 = vmatpush.msra.mxu0 %v9634
    %9642 = vmatpush.msra.mxu0 %v9633
    %9643 = vmatpush.msra.mxu0 %v9632
    %9644 = vmatpush.msra.mxu0 %v9631
    %9645 = vmatpush.msra.mxu0 %v9630
    %9646 = vmatpush.msra.mxu0 %v9629
    %9647 = vmatpush.msra.mxu0 %v9628
    %9648 = vmatpush.msra.mxu0 %v9627
    %9649 = vmatpush.msra.mxu0 %v9626
    %9650 = vmatpush.msra.mxu0 %v9625
    %9651 = vmatpush.msra.mxu0 %v9624
    %9652 = vmatpush.msra.mxu0 %v9623
    %9653 = vmatpush.msra.mxu0 %v9622
    %9654 = vmatpush.msra.mxu0 %v9621
    %9655 = vmatpush.msra.mxu0 %v9620
    %9656 = vmatmul.f32.gmra.mxu0 %v9618
    %v9657 = vpop.f32.mrf.mxu0
    %v9658 = vadd.f32 %v9638, %v9657
    %9659 = vmatmul.f32.gmra.mxu0 %v9619
    %v9660 = vpop.f32.mrf.mxu0
    %v9661 = vadd.f32 %v9638, %v9660
    %9662 = vdwg.mxu0
    %vm9663 = vcmask 97280
    %9664 = vst.msk [vmem:[#allocation11] sm:$0xff] %vm9663, %v9658
    %9665 = vst.msk [vmem:[#allocation11 + $0x8] sm:$0xff] %vm9663, %v9661
    // Predicated region
    $region90: #{stabc_forward.3} parent=1 // pred_check
      _
    $region91: #{stabc_forward.3} parent=1 // pred_check_branch
      %9667 = sbr.rel (0) target = $region93
    $region92: #{stabc_forward.3} parent=1 // pred_region
      %9669 = vsyncadd [#allocation4], 0
      %s9670 = sshll.u32 [#allocation11], 4
      %s9671 = int_to_ptr.vmem [resolvable:$true] %s9670
      %s9672 = sshll.u32 %s17, 4
      %s9673 = int_to_ptr.hbm [resolvable:$true] %s9672
      %9678 = dma.vmem_to_hbm [thread:$0]  %s9671, 256, %s9673, [#allocation4], 128, 128, 8
    $region93: #{stabc_forward.3} parent=1 // pred_fallthru
      _
    // Predicated region
    $region94: #{stabc_forward.3} parent=1 // pred_check
      _
    $region95: #{stabc_forward.3} parent=1 // pred_check_branch
      %9680 = sbr.rel (0) target = $region97
    $region96: #{stabc_forward.3} parent=1 // pred_region
      %9682 = dma.done [#allocation4], 256
    $region97: #{stabc_forward.3} parent=1 // pred_fallthru
      _
    %9683 = vsyncpa [#allocation3], 1
    %9684 = vsyncpa [#allocation6], 1
    %9685 = vsyncpa [#allocation9], 1
    %9686 = vsyncpa [#allocation4], 1

</llo_original>
